<compile_context>
chip_gen: v7x
topology: tpu7x:2x2x1
jax: 0.10.0
libtpu: 0.0.40
codegen_flags: <defaults>
</compile_context>

<pallas_src>
import functools

import jax
import jax.numpy as jnp
from jax.experimental import pallas as pl
from jax.experimental.pallas import tpu as pltpu

_EPS = 1e-5
_LANE = 128


def _round_up(x, m):
    return (x + m - 1) // m * m


# ---------------------------------------------------------------------------
# in-kernel helpers (traced inside the Pallas bodies)
# ---------------------------------------------------------------------------
def _shift_rows_zero_fill(a, dy):
    """out[y, x, :] = a[y + dy, x, :]; rows shifted in from outside are zero.

    a is (H, W, C); the concat is along the untiled H axis, so this is the
    in-register height-halo handling (no padded scratch, no masked stores).
    """
    if dy == 0:
        return a
    h, w, c = a.shape
    zeros = jnp.zeros((abs(dy), w, c), a.dtype)
    if dy > 0:
        return jnp.concatenate([a[dy:], zeros], axis=0)
    return jnp.concatenate([zeros, a[:h + dy]], axis=0)


def _conv3x3_from_wpadded(x_wp, w9, stride):
    """3x3 'same' (pad=1) conv, stride `stride`, on one image.

    x_wp : (H, W+2, Ci) f32 value -- width already carries the 1-pixel zero
           halo; the height halo is handled with zero-fill row shifts.
    w9   : (3, 3, Ci, Co) bf16 value.
    Returns the raw conv output flattened to (Ho*Wo, Co), accumulated in f32.
    MXU operands are bf16; the accumulator is seeded by the first tap.
    """
    h, wp2, ci = x_wp.shape
    w = wp2 - 2
    ho = (h - 1) // stride + 1
    wo = (w - 1) // stride + 1
    acc = None
    for kh in range(3):
        shifted = _shift_rows_zero_fill(x_wp, kh - 1)
        for kw in range(3):
            patch = jax.lax.slice(
                shifted, (0, kw, 0),
                ((ho - 1) * stride + 1, kw + (wo - 1) * stride + 1, ci),
                (stride, stride, 1))
            tap = jnp.dot(patch.reshape(ho * wo, ci).astype(jnp.bfloat16),
                          w9[kh, kw],
                          preferred_element_type=jnp.float32)
            acc = tap if acc is None else acc + tap
    return acc


# ---------------------------------------------------------------------------
# Pallas kernels (grid = batch, one image per step)
# ---------------------------------------------------------------------------
def _block_pass_a(*refs, stride, has_shortcut):
    """conv1 (3x3, stride) [+ 1x1 shortcut conv]: raw outputs + BN statistics."""
    if has_shortcut:
        x_ref, w1_ref, wsc_ref, y1_ref, ysc_ref, stats_ref = refs
    else:
        x_ref, w1_ref, y1_ref, stats_ref = refs
    _, ho, wo, pp = y1_ref.shape

    # Transient f32 copy of the small bf16 tile keeps the halo shifts / strided
    # slices in plain 32-bit layout; the MXU still sees bf16 operands.
    x_wp = x_ref[0].astype(jnp.float32)                       # (H, W+2, Cin_p)

    acc1 = _conv3x3_from_wpadded(x_wp, w1_ref[...], stride)   # (Ho*Wo, Pp) f32
    y1_ref[...] = acc1.reshape(1, ho, wo, pp)
    # per-image partial BN stats; the tiny cross-batch sum happens outside
    stats_ref[0, 0:1, :] = jnp.sum(acc1, axis=0, keepdims=True)
    stats_ref[0, 1:2, :] = jnp.sum(acc1 * acc1, axis=0, keepdims=True)

    if has_shortcut:
        ci = x_wp.shape[-1]
        xs = jax.lax.slice(
            x_wp, (0, 1, 0),
            ((ho - 1) * stride + 1, 1 + (wo - 1) * stride + 1, ci),
            (stride, stride, 1))
        sc = jnp.dot(xs.reshape(ho * wo, ci).astype(jnp.bfloat16),
                     wsc_ref[...], preferred_element_type=jnp.float32)
        ysc_ref[...] = sc.reshape(1, ho, wo, pp)
        stats_ref[0, 2:3, :] = jnp.sum(sc, axis=0, keepdims=True)
        stats_ref[0, 3:4, :] = jnp.sum(sc * sc, axis=0, keepdims=True)


def _block_pass_b(y1_ref, scale1_ref, shift1_ref, w2_ref, y2_ref, stats_ref,
                  h1_scr):
    """BN1 (folded scale/shift) + ReLU + conv2: raw output + BN2 statistics."""
    _, ho, wo, pp = y1_ref.shape
    h1 = jnp.maximum(y1_ref[0] * scale1_ref[...] + shift1_ref[...], 0.0)

    # Width halo for conv2: only the two halo columns of a small VMEM scratch
    # are zeroed (no full-buffer zeroing); the interior assignment below is the
    # only sublane-offset (masked) store in the block -- lanes stay dense.
    zero_col = jnp.zeros((ho, 1, pp), jnp.float32)
    h1_scr[:, 0:1, :] = zero_col
    h1_scr[:, wo + 1:wo + 2, :] = zero_col
    h1_scr[:, 1:wo + 1, :] = h1

    acc2 = _conv3x3_from_wpadded(h1_scr[...], w2_ref[...], 1)
    y2_ref[...] = acc2.reshape(1, ho, wo, pp)
    stats_ref[0, 0:1, :] = jnp.sum(acc2, axis=0, keepdims=True)
    stats_ref[0, 1:2, :] = jnp.sum(acc2 * acc2, axis=0, keepdims=True)


def _block_pass_c(*refs, has_shortcut):
    """BN2 + shortcut BN (or identity) + residual add + ReLU."""
    if has_shortcut:
        (y2_ref, res_ref, scale2_ref, shift2_ref,
         scale_sc_ref, shift_sc_ref, out_ref) = refs
    else:
        y2_ref, res_ref, scale2_ref, shift2_ref, out_ref = refs
    out = y2_ref[...] * scale2_ref[...] + shift2_ref[...]
    if has_shortcut:
        res = res_ref[...] * scale_sc_ref[...] + shift_sc_ref[...]
    else:
        res = res_ref[...]
    out_ref[...] = jnp.maximum(out + res, 0.0).astype(out_ref.dtype)


# ---------------------------------------------------------------------------
# wrapper
# ---------------------------------------------------------------------------
def _bn_scale_shift(s, sq, gamma, beta, count):
    """Fold batch statistics (sum, sum of squares) into per-channel scale/shift."""
    mean = s / count
    var = jnp.maximum(sq / count - mean * mean, 0.0)
    scale = gamma * jax.lax.rsqrt(var + _EPS)
    shift = beta - mean * scale
    return scale.reshape(1, -1), shift.reshape(1, -1)


def local_binary_basic_block_nhwc(x_nhwc, params, stride=1):
    """Forward pass on an NHWC input (training-mode BatchNorm statistics)."""
    n, h, w, cin = x_nhwc.shape
    planes = params["w1"].shape[3]
    has_shortcut = (stride != 1) or (cin != planes)
    ho = (h - 1) // stride + 1
    wo = (w - 1) // stride + 1
    cp = _round_up(cin, _LANE)            # lane-dense channel padding
    pp = _round_up(planes, _LANE)
    f32, bf16 = jnp.float32, jnp.bfloat16

    # ---- layout prep (a full network would do this once, not per block) -----
    # One pad fuses (a) channel padding to a multiple of 128 lanes and (b) the
    # 1-pixel width halo for conv1.  The height halo is handled in-register.
    x_wp_f32 = jnp.pad(x_nhwc.astype(f32),
                       ((0, 0), (0, 0), (1, 1), (0, cp - cin)))
    x_wp = x_wp_f32.astype(bf16)          # bf16 MXU operands in HBM
    w1 = jnp.pad(params["w1"],
                 ((0, 0), (0, 0), (0, cp - cin), (0, pp - planes))).astype(bf16)
    w2 = jnp.pad(params["w2"],
                 ((0, 0), (0, 0), (0, pp - planes), (0, pp - planes))).astype(bf16)
    g1 = jnp.pad(params["g1"].astype(f32), (0, pp - planes))
    b1 = jnp.pad(params["b1"].astype(f32), (0, pp - planes))
    g2 = jnp.pad(params["g2"].astype(f32), (0, pp - planes))
    b2 = jnp.pad(params["b2"].astype(f32), (0, pp - planes))
    if has_shortcut:
        wsc = jnp.pad(params["wsc"],
                      ((0, cp - cin), (0, pp - planes))).astype(bf16)
        gsc = jnp.pad(params["gsc"].astype(f32), (0, pp - planes))
        bsc = jnp.pad(params["bsc"].astype(f32), (0, pp - planes))

    count = float(n * ho * wo)
    # Batch axis is independent per pass -> "parallel" (megacore on v7x).
    # vmem_limit set explicitly; per-step working set here is ~1-2 MiB, well
    # under v7x's 64 MiB physical VMEM.
    cparams = pltpu.CompilerParams(
        dimension_semantics=("parallel",),
        vmem_limit_bytes=48 * 1024 * 1024)

    img_spec_in = pl.BlockSpec((1, h, w + 2, cp), lambda i: (i, 0, 0, 0))
    img_spec_out = pl.BlockSpec((1, ho, wo, pp), lambda i: (i, 0, 0, 0))
    vec_spec = pl.BlockSpec((1, pp), lambda i: (0, 0))

    # -------- pass A: conv1 (+ shortcut conv), raw outputs + BN stats --------
    n_stat_a = 4 if has_shortcut else 2
    a_in = [x_wp, w1]
    a_in_specs = [img_spec_in,
                  pl.BlockSpec((3, 3, cp, pp), lambda i: (0, 0, 0, 0))]
    a_out_shape = [jax.ShapeDtypeStruct((n, ho, wo, pp), f32)]
    a_out_specs = [img_spec_out]
    if has_shortcut:
        a_in.append(wsc)
        a_in_specs.append(pl.BlockSpec((cp, pp), lambda i: (0, 0)))
        a_out_shape.append(jax.ShapeDtypeStruct((n, ho, wo, pp), f32))
        a_out_specs.append(img_spec_out)
    a_out_shape.append(jax.ShapeDtypeStruct((n, n_stat_a, pp), f32))
    a_out_specs.append(pl.BlockSpec((1, n_stat_a, pp), lambda i: (i, 0, 0)))

    a_flops = 2 * n * ho * wo * 9 * cp * pp + (
        2 * n * ho * wo * cp * pp if has_shortcut else 0)
    a_bytes = (x_wp.size * 2 + w1.size * 2
               + (wsc.size * 2 if has_shortcut else 0)
               + n * ho * wo * pp * 4 * (2 if has_shortcut else 1)
               + n * n_stat_a * pp * 4)
    a_res = pl.pallas_call(
        functools.partial(_block_pass_a, stride=stride,
                          has_shortcut=has_shortcut),
        grid=(n,),
        in_specs=a_in_specs,
        out_specs=tuple(a_out_specs),
        out_shape=tuple(a_out_shape),
        compiler_params=cparams,
        cost_estimate=pl.CostEstimate(flops=int(a_flops), transcendentals=0,
                                      bytes_accessed=int(a_bytes)),
    )(*a_in)
    if has_shortcut:
        y1, ysc, stats_a = a_res
    else:
        y1, stats_a = a_res
        ysc = None

    # tiny cross-batch stat reduction + BN scale/shift folding (plain XLA)
    stats_a = jnp.sum(stats_a, axis=0)
    scale1, shift1 = _bn_scale_shift(stats_a[0], stats_a[1], g1, b1, count)
    if has_shortcut:
        scale_sc, shift_sc = _bn_scale_shift(stats_a[2], stats_a[3],
                                             gsc, bsc, count)

    # -------- pass B: BN1 + ReLU + conv2, raw output + BN2 stats -------------
    b_flops = 2 * n * ho * wo * 9 * pp * pp
    b_bytes = 2 * n * ho * wo * pp * 4 + w2.size * 2 + n * 2 * pp * 4
    y2, stats_b = pl.pallas_call(
        _block_pass_b,
        grid=(n,),
        in_specs=[img_spec_out, vec_spec, vec_spec,
                  pl.BlockSpec((3, 3, pp, pp), lambda i: (0, 0, 0, 0))],
        out_specs=(img_spec_out,
                   pl.BlockSpec((1, 2, pp), lambda i: (i, 0, 0))),
        out_shape=(jax.ShapeDtypeStruct((n, ho, wo, pp), f32),
                   jax.ShapeDtypeStruct((n, 2, pp), f32)),
        scratch_shapes=[pltpu.VMEM((ho, wo + 2, pp), f32)],
        compiler_params=cparams,
        cost_estimate=pl.CostEstimate(flops=int(b_flops), transcendentals=0,
                                      bytes_accessed=int(b_bytes)),
    )(y1, scale1, shift1, w2)
    stats_b = jnp.sum(stats_b, axis=0)
    scale2, shift2 = _bn_scale_shift(stats_b[0], stats_b[1], g2, b2, count)

    # -------- pass C: BN2 + shortcut BN / identity + add + ReLU --------------
    if has_shortcut:
        c_in = [y2, ysc, scale2, shift2, scale_sc, shift_sc]
        c_in_specs = [img_spec_out, img_spec_out,
                      vec_spec, vec_spec, vec_spec, vec_spec]
    else:
        res_arr = x_wp_f32[:, :, 1:-1, :]       # identity shortcut (exact f32)
        c_in = [y2, res_arr, scale2, shift2]
        c_in_specs = [img_spec_out, img_spec_out, vec_spec, vec_spec]
    out_p = pl.pallas_call(
        functools.partial(_block_pass_c, has_shortcut=has_shortcut),
        grid=(n,),
        in_specs=c_in_specs,
        out_specs=img_spec_out,
        out_shape=jax.ShapeDtypeStruct((n, ho, wo, pp), f32),
        compiler_params=cparams,
        cost_estimate=pl.CostEstimate(flops=int(4 * n * ho * wo * pp),
                                      transcendentals=0,
                                      bytes_accessed=int(3 * n * ho * wo * pp * 4)),
    )(*c_in)

    return out_p[..., :planes]


def local_binary_basic_block(x_nchw, params, stride=1):
    """PyTorch-convention NCHW adapter (a full model would stay in NHWC)."""
    x_nhwc = jnp.transpose(x_nchw, (0, 2, 3, 1))
    out_nhwc = local_binary_basic_block_nhwc(x_nhwc, params, stride=stride)
    return jnp.transpose(out_nhwc, (0, 3, 1, 2))


# ---------------------------------------------------------------------------
# pure-JAX reference (same numerics: bf16 conv operands, f32 accumulation,
# training-mode BatchNorm) for the correctness check
# ---------------------------------------------------------------------------
def _reference(x_nchw, params, stride=1):
    f32, bf16 = jnp.float32, jnp.bfloat16

    def conv(x, wgt, s, pad):
        return jax.lax.conv_general_dilated(
            x.astype(bf16), wgt.astype(bf16),
            window_strides=(s, s), padding=pad,
            dimension_numbers=("NHWC", "HWIO", "NHWC"),
            preferred_element_type=f32)

    def bn(x, g, b):
        mu = jnp.mean(x, axis=(0, 1, 2), keepdims=True)
        var = jnp.mean((x - mu) ** 2, axis=(0, 1, 2), keepdims=True)
        return (x - mu) * jax.lax.rsqrt(var + _EPS) * g + b

    x = jnp.transpose(x_nchw, (0, 2, 3, 1)).astype(f32)
    cin, planes = x.shape[3], params["w1"].shape[3]
    out = jax.nn.relu(bn(conv(x, params["w1"], stride, ((1, 1), (1, 1))),
                         params["g1"], params["b1"]))
    out = bn(conv(out, params["w2"], 1, ((1, 1), (1, 1))),
             params["g2"], params["b2"])
    if stride != 1 or cin != planes:
        wsc = params["wsc"].reshape(1, 1, cin, planes)
        sc = bn(conv(x, wsc, stride, ((0, 0), (0, 0))),
                params["gsc"], params["bsc"])
    else:
        sc = x
    out = jax.nn.relu(out + sc)
    return jnp.transpose(out, (0, 3, 1, 2))


# ---------------------------------------------------------------------------
if __name__ == "__main__":
    key = jax.random.PRNGKey(0)
    n, cin, h, w = 2, 4, 16, 16
    planes, stride = 8, 1        # cin != planes -> shortcut has conv1x1 + BN
    keys = jax.random.split(key, 8)

    x = jax.random.normal(keys[0], (n, cin, h, w), jnp.float32)
    params = {
        # conv weights stored in HWIO (kh, kw, Cin, Cout)
        "w1": 0.1 * jax.random.normal(keys[1], (3, 3, cin, planes), jnp.float32),
        "g1": 1.0 + 0.1 * jax.random.normal(keys[2], (planes,), jnp.float32),
        "b1": 0.1 * jax.random.normal(keys[3], (planes,), jnp.float32),
        "w2": 0.1 * jax.random.normal(keys[4], (3, 3, planes, planes), jnp.float32),
        "g2": 1.0 + 0.1 * jax.random.normal(keys[5], (planes,), jnp.float32),
        "b2": 0.1 * jax.random.normal(keys[6], (planes,), jnp.float32),
    }
    if stride != 1 or cin != planes:
        ks = jax.random.split(keys[7], 3)
        params["wsc"] = 0.1 * jax.random.normal(ks[0], (cin, planes), jnp.float32)
        params["gsc"] = 1.0 + 0.1 * jax.random.normal(ks[1], (planes,), jnp.float32)
        params["bsc"] = 0.1 * jax.random.normal(ks[2], (planes,), jnp.float32)

    fwd = jax.jit(functools.partial(local_binary_basic_block, stride=stride))
    out = jax.block_until_ready(fwd(x, params))
    ref = jax.block_until_ready(_reference(x, params, stride=stride))

    assert out.shape == (n, planes, h // stride, w // stride), out.shape
    max_err = float(jnp.max(jnp.abs(out - ref)))
    assert jnp.allclose(out, ref, atol=1e-2, rtol=1e-2), max_err
    print("KERNEL_OK")
</pallas_src>

<mosaic_0001>
module attributes {stable_mosaic.version = 11 : i64} {
  func.func @_block_pass_a(%arg0: i32, %arg1: memref<1x16x18x128xbf16, #tpu.memory_space<vmem>>, %arg2: memref<3x3x128x128xbf16, #tpu.memory_space<vmem>>, %arg3: memref<128x128xbf16, #tpu.memory_space<vmem>>, %arg4: memref<1x16x16x128xf32, #tpu.memory_space<vmem>>, %arg5: memref<1x16x16x128xf32, #tpu.memory_space<vmem>>, %arg6: memref<1x4x128xf32, #tpu.memory_space<vmem>>) attributes {dimension_semantics = [#tpu.dimension_semantics<parallel>], iteration_bounds = array<i64: 2>, scalar_prefetch = 0 : i64, scratch_operands = 0 : i64, tpu.core_type = #tpu.core_type<tc>, window_params = [{transform_indices = @transform_0, window_bounds = array<i64: 1, 16, 18, 128>}, {pipeline_mode = #tpu.pipeline_mode<synchronous>, transform_indices = @transform_1, window_bounds = array<i64: 3, 3, 128, 128>}, {pipeline_mode = #tpu.pipeline_mode<synchronous>, transform_indices = @transform_2, window_bounds = array<i64: 128, 128>}, {transform_indices = @transform_3, window_bounds = array<i64: 1, 16, 16, 128>}, {transform_indices = @transform_4, window_bounds = array<i64: 1, 16, 16, 128>}, {transform_indices = @transform_5, window_bounds = array<i64: 1, 4, 128>}]} {
    %c0 = arith.constant 0 : index
    %c0_0 = arith.constant 0 : index
    %c0_1 = arith.constant 0 : index
    %c0_2 = arith.constant 0 : index
    %0 = vector.load %arg1[%c0, %c0_0, %c0_1, %c0_2] : memref<1x16x18x128xbf16, #tpu.memory_space<vmem>>, vector<1x16x18x128xbf16>
    %1 = vector.shape_cast %0 : vector<1x16x18x128xbf16> to vector<16x18x128xbf16>
    %2 = arith.extf %1 : vector<16x18x128xbf16> to vector<16x18x128xf32>
    %c0_3 = arith.constant 0 : index
    %c0_4 = arith.constant 0 : index
    %c0_5 = arith.constant 0 : index
    %c0_6 = arith.constant 0 : index
    %3 = vector.load %arg2[%c0_3, %c0_4, %c0_5, %c0_6] : memref<3x3x128x128xbf16, #tpu.memory_space<vmem>>, vector<3x3x128x128xbf16>
    %cst = arith.constant 0.000000e+00 : f32
    %4 = vector.broadcast %cst : f32 to vector<1x18x128xf32>
    %5 = vector.extract_strided_slice %2 {offsets = [0, 0, 0], sizes = [15, 18, 128], strides = [1, 1, 1]} : vector<16x18x128xf32> to vector<15x18x128xf32>
    %6 = tpu.concatenate %4, %5 in 0 : vector<1x18x128xf32>, vector<15x18x128xf32> -> vector<16x18x128xf32>
    %7 = vector.extract_strided_slice %6 {offsets = [0, 0, 0], sizes = [16, 16, 128], strides = [1, 1, 1]} : vector<16x18x128xf32> to vector<16x16x128xf32>
    %8 = vector.shape_cast %7 : vector<16x16x128xf32> to vector<256x128xf32>
    %9 = arith.truncf %8 : vector<256x128xf32> to vector<256x128xbf16>
    %10 = vector.extract_strided_slice %3 {offsets = [0, 0, 0, 0], sizes = [1, 1, 128, 128], strides = [1, 1, 1, 1]} : vector<3x3x128x128xbf16> to vector<1x1x128x128xbf16>
    %11 = vector.shape_cast %10 : vector<1x1x128x128xbf16> to vector<128x128xbf16>
    %cst_7 = arith.constant dense<0.000000e+00> : vector<256x128xf32>
    %12 = tpu.matmul %9, %11, %cst_7 {dimension_numbers = #tpu.dot_dimension_numbers<[1], [0], [0], [1], [0, 0, 1, 1], [], []>} : vector<256x128xbf16>, vector<128x128xbf16>, vector<256x128xf32> -> vector<256x128xf32>
    %13 = vector.extract_strided_slice %6 {offsets = [0, 1, 0], sizes = [16, 16, 128], strides = [1, 1, 1]} : vector<16x18x128xf32> to vector<16x16x128xf32>
    %14 = vector.shape_cast %13 : vector<16x16x128xf32> to vector<256x128xf32>
    %15 = arith.truncf %14 : vector<256x128xf32> to vector<256x128xbf16>
    %16 = vector.extract_strided_slice %3 {offsets = [0, 1, 0, 0], sizes = [1, 1, 128, 128], strides = [1, 1, 1, 1]} : vector<3x3x128x128xbf16> to vector<1x1x128x128xbf16>
    %17 = vector.shape_cast %16 : vector<1x1x128x128xbf16> to vector<128x128xbf16>
    %cst_8 = arith.constant dense<0.000000e+00> : vector<256x128xf32>
    %18 = tpu.matmul %15, %17, %cst_8 {dimension_numbers = #tpu.dot_dimension_numbers<[1], [0], [0], [1], [0, 0, 1, 1], [], []>} : vector<256x128xbf16>, vector<128x128xbf16>, vector<256x128xf32> -> vector<256x128xf32>
    %19 = arith.addf %12, %18 : vector<256x128xf32>
    %20 = vector.extract_strided_slice %6 {offsets = [0, 2, 0], sizes = [16, 16, 128], strides = [1, 1, 1]} : vector<16x18x128xf32> to vector<16x16x128xf32>
    %21 = vector.shape_cast %20 : vector<16x16x128xf32> to vector<256x128xf32>
    %22 = arith.truncf %21 : vector<256x128xf32> to vector<256x128xbf16>
    %23 = vector.extract_strided_slice %3 {offsets = [0, 2, 0, 0], sizes = [1, 1, 128, 128], strides = [1, 1, 1, 1]} : vector<3x3x128x128xbf16> to vector<1x1x128x128xbf16>
    %24 = vector.shape_cast %23 : vector<1x1x128x128xbf16> to vector<128x128xbf16>
    %cst_9 = arith.constant dense<0.000000e+00> : vector<256x128xf32>
    %25 = tpu.matmul %22, %24, %cst_9 {dimension_numbers = #tpu.dot_dimension_numbers<[1], [0], [0], [1], [0, 0, 1, 1], [], []>} : vector<256x128xbf16>, vector<128x128xbf16>, vector<256x128xf32> -> vector<256x128xf32>
    %26 = arith.addf %19, %25 : vector<256x128xf32>
    %27 = vector.extract_strided_slice %2 {offsets = [0, 0, 0], sizes = [16, 16, 128], strides = [1, 1, 1]} : vector<16x18x128xf32> to vector<16x16x128xf32>
    %28 = vector.shape_cast %27 : vector<16x16x128xf32> to vector<256x128xf32>
    %29 = arith.truncf %28 : vector<256x128xf32> to vector<256x128xbf16>
    %30 = vector.extract_strided_slice %3 {offsets = [1, 0, 0, 0], sizes = [1, 1, 128, 128], strides = [1, 1, 1, 1]} : vector<3x3x128x128xbf16> to vector<1x1x128x128xbf16>
    %31 = vector.shape_cast %30 : vector<1x1x128x128xbf16> to vector<128x128xbf16>
    %cst_10 = arith.constant dense<0.000000e+00> : vector<256x128xf32>
    %32 = tpu.matmul %29, %31, %cst_10 {dimension_numbers = #tpu.dot_dimension_numbers<[1], [0], [0], [1], [0, 0, 1, 1], [], []>} : vector<256x128xbf16>, vector<128x128xbf16>, vector<256x128xf32> -> vector<256x128xf32>
    %33 = arith.addf %26, %32 : vector<256x128xf32>
    %34 = vector.extract_strided_slice %2 {offsets = [0, 1, 0], sizes = [16, 16, 128], strides = [1, 1, 1]} : vector<16x18x128xf32> to vector<16x16x128xf32>
    %35 = vector.shape_cast %34 : vector<16x16x128xf32> to vector<256x128xf32>
    %36 = arith.truncf %35 : vector<256x128xf32> to vector<256x128xbf16>
    %37 = vector.extract_strided_slice %3 {offsets = [1, 1, 0, 0], sizes = [1, 1, 128, 128], strides = [1, 1, 1, 1]} : vector<3x3x128x128xbf16> to vector<1x1x128x128xbf16>
    %38 = vector.shape_cast %37 : vector<1x1x128x128xbf16> to vector<128x128xbf16>
    %cst_11 = arith.constant dense<0.000000e+00> : vector<256x128xf32>
    %39 = tpu.matmul %36, %38, %cst_11 {dimension_numbers = #tpu.dot_dimension_numbers<[1], [0], [0], [1], [0, 0, 1, 1], [], []>} : vector<256x128xbf16>, vector<128x128xbf16>, vector<256x128xf32> -> vector<256x128xf32>
    %40 = arith.addf %33, %39 : vector<256x128xf32>
    %41 = vector.extract_strided_slice %2 {offsets = [0, 2, 0], sizes = [16, 16, 128], strides = [1, 1, 1]} : vector<16x18x128xf32> to vector<16x16x128xf32>
    %42 = vector.shape_cast %41 : vector<16x16x128xf32> to vector<256x128xf32>
    %43 = arith.truncf %42 : vector<256x128xf32> to vector<256x128xbf16>
    %44 = vector.extract_strided_slice %3 {offsets = [1, 2, 0, 0], sizes = [1, 1, 128, 128], strides = [1, 1, 1, 1]} : vector<3x3x128x128xbf16> to vector<1x1x128x128xbf16>
    %45 = vector.shape_cast %44 : vector<1x1x128x128xbf16> to vector<128x128xbf16>
    %cst_12 = arith.constant dense<0.000000e+00> : vector<256x128xf32>
    %46 = tpu.matmul %43, %45, %cst_12 {dimension_numbers = #tpu.dot_dimension_numbers<[1], [0], [0], [1], [0, 0, 1, 1], [], []>} : vector<256x128xbf16>, vector<128x128xbf16>, vector<256x128xf32> -> vector<256x128xf32>
    %47 = arith.addf %40, %46 : vector<256x128xf32>
    %cst_13 = arith.constant 0.000000e+00 : f32
    %48 = vector.broadcast %cst_13 : f32 to vector<1x18x128xf32>
    %49 = vector.extract_strided_slice %2 {offsets = [1, 0, 0], sizes = [15, 18, 128], strides = [1, 1, 1]} : vector<16x18x128xf32> to vector<15x18x128xf32>
    %50 = tpu.concatenate %49, %48 in 0 : vector<15x18x128xf32>, vector<1x18x128xf32> -> vector<16x18x128xf32>
    %51 = vector.extract_strided_slice %50 {offsets = [0, 0, 0], sizes = [16, 16, 128], strides = [1, 1, 1]} : vector<16x18x128xf32> to vector<16x16x128xf32>
    %52 = vector.shape_cast %51 : vector<16x16x128xf32> to vector<256x128xf32>
    %53 = arith.truncf %52 : vector<256x128xf32> to vector<256x128xbf16>
    %54 = vector.extract_strided_slice %3 {offsets = [2, 0, 0, 0], sizes = [1, 1, 128, 128], strides = [1, 1, 1, 1]} : vector<3x3x128x128xbf16> to vector<1x1x128x128xbf16>
    %55 = vector.shape_cast %54 : vector<1x1x128x128xbf16> to vector<128x128xbf16>
    %cst_14 = arith.constant dense<0.000000e+00> : vector<256x128xf32>
    %56 = tpu.matmul %53, %55, %cst_14 {dimension_numbers = #tpu.dot_dimension_numbers<[1], [0], [0], [1], [0, 0, 1, 1], [], []>} : vector<256x128xbf16>, vector<128x128xbf16>, vector<256x128xf32> -> vector<256x128xf32>
    %57 = arith.addf %47, %56 : vector<256x128xf32>
    %58 = vector.extract_strided_slice %50 {offsets = [0, 1, 0], sizes = [16, 16, 128], strides = [1, 1, 1]} : vector<16x18x128xf32> to vector<16x16x128xf32>
    %59 = vector.shape_cast %58 : vector<16x16x128xf32> to vector<256x128xf32>
    %60 = arith.truncf %59 : vector<256x128xf32> to vector<256x128xbf16>
    %61 = vector.extract_strided_slice %3 {offsets = [2, 1, 0, 0], sizes = [1, 1, 128, 128], strides = [1, 1, 1, 1]} : vector<3x3x128x128xbf16> to vector<1x1x128x128xbf16>
    %62 = vector.shape_cast %61 : vector<1x1x128x128xbf16> to vector<128x128xbf16>
    %cst_15 = arith.constant dense<0.000000e+00> : vector<256x128xf32>
    %63 = tpu.matmul %60, %62, %cst_15 {dimension_numbers = #tpu.dot_dimension_numbers<[1], [0], [0], [1], [0, 0, 1, 1], [], []>} : vector<256x128xbf16>, vector<128x128xbf16>, vector<256x128xf32> -> vector<256x128xf32>
    %64 = arith.addf %57, %63 : vector<256x128xf32>
    %65 = vector.extract_strided_slice %50 {offsets = [0, 2, 0], sizes = [16, 16, 128], strides = [1, 1, 1]} : vector<16x18x128xf32> to vector<16x16x128xf32>
    %66 = vector.shape_cast %65 : vector<16x16x128xf32> to vector<256x128xf32>
    %67 = arith.truncf %66 : vector<256x128xf32> to vector<256x128xbf16>
    %68 = vector.extract_strided_slice %3 {offsets = [2, 2, 0, 0], sizes = [1, 1, 128, 128], strides = [1, 1, 1, 1]} : vector<3x3x128x128xbf16> to vector<1x1x128x128xbf16>
    %69 = vector.shape_cast %68 : vector<1x1x128x128xbf16> to vector<128x128xbf16>
    %cst_16 = arith.constant dense<0.000000e+00> : vector<256x128xf32>
    %70 = tpu.matmul %67, %69, %cst_16 {dimension_numbers = #tpu.dot_dimension_numbers<[1], [0], [0], [1], [0, 0, 1, 1], [], []>} : vector<256x128xbf16>, vector<128x128xbf16>, vector<256x128xf32> -> vector<256x128xf32>
    %71 = arith.addf %64, %70 : vector<256x128xf32>
    %72 = vector.shape_cast %71 : vector<256x128xf32> to vector<1x16x16x128xf32>
    %c0_17 = arith.constant 0 : index
    %c0_18 = arith.constant 0 : index
    %c0_19 = arith.constant 0 : index
    %c0_20 = arith.constant 0 : index
    %73 = vector.load %arg4[%c0_17, %c0_18, %c0_19, %c0_20] : memref<1x16x16x128xf32, #tpu.memory_space<vmem>>, vector<1x16x16x128xf32>
    tpu.vector_store %arg4[%c0_17, %c0_18, %c0_19, %c0_20], %72 {strides = array<i32>} : memref<1x16x16x128xf32, #tpu.memory_space<vmem>>, vector<1x16x16x128xf32>,
    %cst_21 = arith.constant dense<0.000000e+00> : vector<128xf32>
    %74 = vector.multi_reduction <add>, %71, %cst_21 [0] : vector<256x128xf32> to vector<128xf32>
    %75 = vector.shape_cast %74 : vector<128xf32> to vector<1x128xf32>
    %c0_22 = arith.constant 0 : index
    %c0_23 = arith.constant 0 : index
    %c0_24 = arith.constant 0 : index
    %76 = vector.load %arg6[%c0_22, %c0_23, %c0_24] : memref<1x4x128xf32, #tpu.memory_space<vmem>>, vector<1x1x128xf32>
    %77 = vector.shape_cast %76 : vector<1x1x128xf32> to vector<1x128xf32>
    %78 = vector.shape_cast %75 : vector<1x128xf32> to vector<1x1x128xf32>
    tpu.vector_store %arg6[%c0_22, %c0_23, %c0_24], %78 {strides = array<i32>} : memref<1x4x128xf32, #tpu.memory_space<vmem>>, vector<1x1x128xf32>,
    %79 = arith.mulf %71, %71 : vector<256x128xf32>
    %cst_25 = arith.constant dense<0.000000e+00> : vector<128xf32>
    %80 = vector.multi_reduction <add>, %79, %cst_25 [0] : vector<256x128xf32> to vector<128xf32>
    %81 = vector.shape_cast %80 : vector<128xf32> to vector<1x128xf32>
    %c0_26 = arith.constant 0 : index
    %c1 = arith.constant 1 : index
    %c0_27 = arith.constant 0 : index
    %82 = vector.load %arg6[%c0_26, %c1, %c0_27] : memref<1x4x128xf32, #tpu.memory_space<vmem>>, vector<1x1x128xf32>
    %83 = vector.shape_cast %82 : vector<1x1x128xf32> to vector<1x128xf32>
    %84 = vector.shape_cast %81 : vector<1x128xf32> to vector<1x1x128xf32>
    tpu.vector_store %arg6[%c0_26, %c1, %c0_27], %84 {strides = array<i32>} : memref<1x4x128xf32, #tpu.memory_space<vmem>>, vector<1x1x128xf32>,
    %85 = vector.extract_strided_slice %2 {offsets = [0, 1, 0], sizes = [16, 16, 128], strides = [1, 1, 1]} : vector<16x18x128xf32> to vector<16x16x128xf32>
    %86 = vector.shape_cast %85 : vector<16x16x128xf32> to vector<256x128xf32>
    %87 = arith.truncf %86 : vector<256x128xf32> to vector<256x128xbf16>
    %c0_28 = arith.constant 0 : index
    %c0_29 = arith.constant 0 : index
    %88 = vector.load %arg3[%c0_28, %c0_29] : memref<128x128xbf16, #tpu.memory_space<vmem>>, vector<128x128xbf16>
    %cst_30 = arith.constant dense<0.000000e+00> : vector<256x128xf32>
    %89 = tpu.matmul %87, %88, %cst_30 {dimension_numbers = #tpu.dot_dimension_numbers<[1], [0], [0], [1], [0, 0, 1, 1], [], []>} : vector<256x128xbf16>, vector<128x128xbf16>, vector<256x128xf32> -> vector<256x128xf32>
    %90 = vector.shape_cast %89 : vector<256x128xf32> to vector<1x16x16x128xf32>
    %c0_31 = arith.constant 0 : index
    %c0_32 = arith.constant 0 : index
    %c0_33 = arith.constant 0 : index
    %c0_34 = arith.constant 0 : index
    %91 = vector.load %arg5[%c0_31, %c0_32, %c0_33, %c0_34] : memref<1x16x16x128xf32, #tpu.memory_space<vmem>>, vector<1x16x16x128xf32>
    tpu.vector_store %arg5[%c0_31, %c0_32, %c0_33, %c0_34], %90 {strides = array<i32>} : memref<1x16x16x128xf32, #tpu.memory_space<vmem>>, vector<1x16x16x128xf32>,
    %cst_35 = arith.constant dense<0.000000e+00> : vector<128xf32>
    %92 = vector.multi_reduction <add>, %89, %cst_35 [0] : vector<256x128xf32> to vector<128xf32>
    %93 = vector.shape_cast %92 : vector<128xf32> to vector<1x128xf32>
    %c0_36 = arith.constant 0 : index
    %c2 = arith.constant 2 : index
    %c0_37 = arith.constant 0 : index
    %94 = vector.load %arg6[%c0_36, %c2, %c0_37] : memref<1x4x128xf32, #tpu.memory_space<vmem>>, vector<1x1x128xf32>
    %95 = vector.shape_cast %94 : vector<1x1x128xf32> to vector<1x128xf32>
    %96 = vector.shape_cast %93 : vector<1x128xf32> to vector<1x1x128xf32>
    tpu.vector_store %arg6[%c0_36, %c2, %c0_37], %96 {strides = array<i32>} : memref<1x4x128xf32, #tpu.memory_space<vmem>>, vector<1x1x128xf32>,
    %97 = arith.mulf %89, %89 : vector<256x128xf32>
    %cst_38 = arith.constant dense<0.000000e+00> : vector<128xf32>
    %98 = vector.multi_reduction <add>, %97, %cst_38 [0] : vector<256x128xf32> to vector<128xf32>
    %99 = vector.shape_cast %98 : vector<128xf32> to vector<1x128xf32>
    %c0_39 = arith.constant 0 : index
    %c3 = arith.constant 3 : index
    %c0_40 = arith.constant 0 : index
    %100 = vector.load %arg6[%c0_39, %c3, %c0_40] : memref<1x4x128xf32, #tpu.memory_space<vmem>>, vector<1x1x128xf32>
    %101 = vector.shape_cast %100 : vector<1x1x128xf32> to vector<1x128xf32>
    %102 = vector.shape_cast %99 : vector<1x128xf32> to vector<1x1x128xf32>
    tpu.vector_store %arg6[%c0_39, %c3, %c0_40], %102 {strides = array<i32>} : memref<1x4x128xf32, #tpu.memory_space<vmem>>, vector<1x1x128xf32>,
    return
  }
  func.func @transform_0(%arg0: i32) -> (i32, i32, i32, i32) {
    %c0_i32 = arith.constant 0 : i32
    %c0_i32_0 = arith.constant 0 : i32
    %c0_i32_1 = arith.constant 0 : i32
    %c0_i32_2 = arith.constant 0 : i32
    return %arg0, %c0_i32, %c0_i32_0, %c0_i32_1 : i32, i32, i32, i32
  }
  func.func @transform_1(%arg0: i32) -> (i32, i32, i32, i32) {
    %c0_i32 = arith.constant 0 : i32
    %c0_i32_0 = arith.constant 0 : i32
    %c0_i32_1 = arith.constant 0 : i32
    %c0_i32_2 = arith.constant 0 : i32
    %c0_i32_3 = arith.constant 0 : i32
    return %c0_i32, %c0_i32_0, %c0_i32_1, %c0_i32_2 : i32, i32, i32, i32
  }
  func.func @transform_2(%arg0: i32) -> (i32, i32) {
    %c0_i32 = arith.constant 0 : i32
    %c0_i32_0 = arith.constant 0 : i32
    %c0_i32_1 = arith.constant 0 : i32
    return %c0_i32, %c0_i32_0 : i32, i32
  }
  func.func @transform_3(%arg0: i32) -> (i32, i32, i32, i32) {
    %c0_i32 = arith.constant 0 : i32
    %c0_i32_0 = arith.constant 0 : i32
    %c0_i32_1 = arith.constant 0 : i32
    %c0_i32_2 = arith.constant 0 : i32
    return %arg0, %c0_i32, %c0_i32_0, %c0_i32_1 : i32, i32, i32, i32
  }
  func.func @transform_4(%arg0: i32) -> (i32, i32, i32, i32) {
    %c0_i32 = arith.constant 0 : i32
    %c0_i32_0 = arith.constant 0 : i32
    %c0_i32_1 = arith.constant 0 : i32
    %c0_i32_2 = arith.constant 0 : i32
    return %arg0, %c0_i32, %c0_i32_0, %c0_i32_1 : i32, i32, i32, i32
  }
  func.func @transform_5(%arg0: i32) -> (i32, i32, i32) {
    %c0_i32 = arith.constant 0 : i32
    %c0_i32_0 = arith.constant 0 : i32
    %c0_i32_1 = arith.constant 0 : i32
    return %arg0, %c0_i32, %c0_i32_0 : i32, i32, i32
  }
}

module attributes {stable_mosaic.version = 11 : i64} {
  func.func @_block_pass_b(%arg0: i32, %arg1: memref<1x16x16x128xf32, #tpu.memory_space<vmem>>, %arg2: memref<1x128xf32, #tpu.memory_space<vmem>>, %arg3: memref<1x128xf32, #tpu.memory_space<vmem>>, %arg4: memref<3x3x128x128xbf16, #tpu.memory_space<vmem>>, %arg5: memref<1x16x16x128xf32, #tpu.memory_space<vmem>>, %arg6: memref<1x2x128xf32, #tpu.memory_space<vmem>>, %arg7: memref<16x18x128xf32, #tpu.memory_space<vmem>>) attributes {dimension_semantics = [#tpu.dimension_semantics<parallel>], iteration_bounds = array<i64: 2>, scalar_prefetch = 0 : i64, scratch_operands = 1 : i64, tpu.core_type = #tpu.core_type<tc>, window_params = [{transform_indices = @transform_0, window_bounds = array<i64: 1, 16, 16, 128>}, {pipeline_mode = #tpu.pipeline_mode<synchronous>, transform_indices = @transform_1, window_bounds = array<i64: 1, 128>}, {pipeline_mode = #tpu.pipeline_mode<synchronous>, transform_indices = @transform_2, window_bounds = array<i64: 1, 128>}, {pipeline_mode = #tpu.pipeline_mode<synchronous>, transform_indices = @transform_3, window_bounds = array<i64: 3, 3, 128, 128>}, {transform_indices = @transform_4, window_bounds = array<i64: 1, 16, 16, 128>}, {transform_indices = @transform_5, window_bounds = array<i64: 1, 2, 128>}]} {
    %c0 = arith.constant 0 : index
    %c0_0 = arith.constant 0 : index
    %c0_1 = arith.constant 0 : index
    %c0_2 = arith.constant 0 : index
    %0 = vector.load %arg1[%c0, %c0_0, %c0_1, %c0_2] : memref<1x16x16x128xf32, #tpu.memory_space<vmem>>, vector<1x16x16x128xf32>
    %1 = vector.shape_cast %0 : vector<1x16x16x128xf32> to vector<16x16x128xf32>
    %c0_3 = arith.constant 0 : index
    %c0_4 = arith.constant 0 : index
    %2 = vector.load %arg2[%c0_3, %c0_4] : memref<1x128xf32, #tpu.memory_space<vmem>>, vector<1x128xf32>
    %3 = vector.shape_cast %2 : vector<1x128xf32> to vector<1x1x128xf32>
    %4 = vector.broadcast %3 : vector<1x1x128xf32> to vector<16x16x128xf32>
    %5 = arith.mulf %1, %4 : vector<16x16x128xf32>
    %c0_5 = arith.constant 0 : index
    %c0_6 = arith.constant 0 : index
    %6 = vector.load %arg3[%c0_5, %c0_6] : memref<1x128xf32, #tpu.memory_space<vmem>>, vector<1x128xf32>
    %7 = vector.shape_cast %6 : vector<1x128xf32> to vector<1x1x128xf32>
    %8 = vector.broadcast %7 : vector<1x1x128xf32> to vector<16x16x128xf32>
    %9 = arith.addf %5, %8 : vector<16x16x128xf32>
    %cst = arith.constant 0.000000e+00 : f32
    %10 = vector.broadcast %cst : f32 to vector<16x16x128xf32>
    %11 = arith.maximumf %9, %10 : vector<16x16x128xf32>
    %cst_7 = arith.constant 0.000000e+00 : f32
    %12 = vector.broadcast %cst_7 : f32 to vector<16x1x128xf32>
    %c0_8 = arith.constant 0 : index
    %c0_9 = arith.constant 0 : index
    %c0_10 = arith.constant 0 : index
    %13 = vector.load %arg7[%c0_8, %c0_9, %c0_10] : memref<16x18x128xf32, #tpu.memory_space<vmem>>, vector<16x1x128xf32>
    tpu.vector_store %arg7[%c0_8, %c0_9, %c0_10], %12 {strides = array<i32>} : memref<16x18x128xf32, #tpu.memory_space<vmem>>, vector<16x1x128xf32>,
    %c0_11 = arith.constant 0 : index
    %c17 = arith.constant 17 : index
    %c0_12 = arith.constant 0 : index
    %14 = vector.load %arg7[%c0_11, %c17, %c0_12] : memref<16x18x128xf32, #tpu.memory_space<vmem>>, vector<16x1x128xf32>
    tpu.vector_store %arg7[%c0_11, %c17, %c0_12], %12 {strides = array<i32>} : memref<16x18x128xf32, #tpu.memory_space<vmem>>, vector<16x1x128xf32>,
    %c0_13 = arith.constant 0 : index
    %c1 = arith.constant 1 : index
    %c0_14 = arith.constant 0 : index
    %15 = vector.load %arg7[%c0_13, %c1, %c0_14] : memref<16x18x128xf32, #tpu.memory_space<vmem>>, vector<16x16x128xf32>
    tpu.vector_store %arg7[%c0_13, %c1, %c0_14], %11 {strides = array<i32>} : memref<16x18x128xf32, #tpu.memory_space<vmem>>, vector<16x16x128xf32>,
    %c0_15 = arith.constant 0 : index
    %c0_16 = arith.constant 0 : index
    %c0_17 = arith.constant 0 : index
    %16 = vector.load %arg7[%c0_15, %c0_16, %c0_17] : memref<16x18x128xf32, #tpu.memory_space<vmem>>, vector<16x18x128xf32>
    %c0_18 = arith.constant 0 : index
    %c0_19 = arith.constant 0 : index
    %c0_20 = arith.constant 0 : index
    %c0_21 = arith.constant 0 : index
    %17 = vector.load %arg4[%c0_18, %c0_19, %c0_20, %c0_21] : memref<3x3x128x128xbf16, #tpu.memory_space<vmem>>, vector<3x3x128x128xbf16>
    %cst_22 = arith.constant 0.000000e+00 : f32
    %18 = vector.broadcast %cst_22 : f32 to vector<1x18x128xf32>
    %19 = vector.extract_strided_slice %16 {offsets = [0, 0, 0], sizes = [15, 18, 128], strides = [1, 1, 1]} : vector<16x18x128xf32> to vector<15x18x128xf32>
    %20 = tpu.concatenate %18, %19 in 0 : vector<1x18x128xf32>, vector<15x18x128xf32> -> vector<16x18x128xf32>
    %21 = vector.extract_strided_slice %20 {offsets = [0, 0, 0], sizes = [16, 16, 128], strides = [1, 1, 1]} : vector<16x18x128xf32> to vector<16x16x128xf32>
    %22 = vector.shape_cast %21 : vector<16x16x128xf32> to vector<256x128xf32>
    %23 = arith.truncf %22 : vector<256x128xf32> to vector<256x128xbf16>
    %24 = vector.extract_strided_slice %17 {offsets = [0, 0, 0, 0], sizes = [1, 1, 128, 128], strides = [1, 1, 1, 1]} : vector<3x3x128x128xbf16> to vector<1x1x128x128xbf16>
    %25 = vector.shape_cast %24 : vector<1x1x128x128xbf16> to vector<128x128xbf16>
    %cst_23 = arith.constant dense<0.000000e+00> : vector<256x128xf32>
    %26 = tpu.matmul %23, %25, %cst_23 {dimension_numbers = #tpu.dot_dimension_numbers<[1], [0], [0], [1], [0, 0, 1, 1], [], []>} : vector<256x128xbf16>, vector<128x128xbf16>, vector<256x128xf32> -> vector<256x128xf32>
    %27 = vector.extract_strided_slice %20 {offsets = [0, 1, 0], sizes = [16, 16, 128], strides = [1, 1, 1]} : vector<16x18x128xf32> to vector<16x16x128xf32>
    %28 = vector.shape_cast %27 : vector<16x16x128xf32> to vector<256x128xf32>
    %29 = arith.truncf %28 : vector<256x128xf32> to vector<256x128xbf16>
    %30 = vector.extract_strided_slice %17 {offsets = [0, 1, 0, 0], sizes = [1, 1, 128, 128], strides = [1, 1, 1, 1]} : vector<3x3x128x128xbf16> to vector<1x1x128x128xbf16>
    %31 = vector.shape_cast %30 : vector<1x1x128x128xbf16> to vector<128x128xbf16>
    %cst_24 = arith.constant dense<0.000000e+00> : vector<256x128xf32>
    %32 = tpu.matmul %29, %31, %cst_24 {dimension_numbers = #tpu.dot_dimension_numbers<[1], [0], [0], [1], [0, 0, 1, 1], [], []>} : vector<256x128xbf16>, vector<128x128xbf16>, vector<256x128xf32> -> vector<256x128xf32>
    %33 = arith.addf %26, %32 : vector<256x128xf32>
    %34 = vector.extract_strided_slice %20 {offsets = [0, 2, 0], sizes = [16, 16, 128], strides = [1, 1, 1]} : vector<16x18x128xf32> to vector<16x16x128xf32>
    %35 = vector.shape_cast %34 : vector<16x16x128xf32> to vector<256x128xf32>
    %36 = arith.truncf %35 : vector<256x128xf32> to vector<256x128xbf16>
    %37 = vector.extract_strided_slice %17 {offsets = [0, 2, 0, 0], sizes = [1, 1, 128, 128], strides = [1, 1, 1, 1]} : vector<3x3x128x128xbf16> to vector<1x1x128x128xbf16>
    %38 = vector.shape_cast %37 : vector<1x1x128x128xbf16> to vector<128x128xbf16>
    %cst_25 = arith.constant dense<0.000000e+00> : vector<256x128xf32>
    %39 = tpu.matmul %36, %38, %cst_25 {dimension_numbers = #tpu.dot_dimension_numbers<[1], [0], [0], [1], [0, 0, 1, 1], [], []>} : vector<256x128xbf16>, vector<128x128xbf16>, vector<256x128xf32> -> vector<256x128xf32>
    %40 = arith.addf %33, %39 : vector<256x128xf32>
    %41 = vector.extract_strided_slice %16 {offsets = [0, 0, 0], sizes = [16, 16, 128], strides = [1, 1, 1]} : vector<16x18x128xf32> to vector<16x16x128xf32>
    %42 = vector.shape_cast %41 : vector<16x16x128xf32> to vector<256x128xf32>
    %43 = arith.truncf %42 : vector<256x128xf32> to vector<256x128xbf16>
    %44 = vector.extract_strided_slice %17 {offsets = [1, 0, 0, 0], sizes = [1, 1, 128, 128], strides = [1, 1, 1, 1]} : vector<3x3x128x128xbf16> to vector<1x1x128x128xbf16>
    %45 = vector.shape_cast %44 : vector<1x1x128x128xbf16> to vector<128x128xbf16>
    %cst_26 = arith.constant dense<0.000000e+00> : vector<256x128xf32>
    %46 = tpu.matmul %43, %45, %cst_26 {dimension_numbers = #tpu.dot_dimension_numbers<[1], [0], [0], [1], [0, 0, 1, 1], [], []>} : vector<256x128xbf16>, vector<128x128xbf16>, vector<256x128xf32> -> vector<256x128xf32>
    %47 = arith.addf %40, %46 : vector<256x128xf32>
    %48 = vector.extract_strided_slice %16 {offsets = [0, 1, 0], sizes = [16, 16, 128], strides = [1, 1, 1]} : vector<16x18x128xf32> to vector<16x16x128xf32>
    %49 = vector.shape_cast %48 : vector<16x16x128xf32> to vector<256x128xf32>
    %50 = arith.truncf %49 : vector<256x128xf32> to vector<256x128xbf16>
    %51 = vector.extract_strided_slice %17 {offsets = [1, 1, 0, 0], sizes = [1, 1, 128, 128], strides = [1, 1, 1, 1]} : vector<3x3x128x128xbf16> to vector<1x1x128x128xbf16>
    %52 = vector.shape_cast %51 : vector<1x1x128x128xbf16> to vector<128x128xbf16>
    %cst_27 = arith.constant dense<0.000000e+00> : vector<256x128xf32>
    %53 = tpu.matmul %50, %52, %cst_27 {dimension_numbers = #tpu.dot_dimension_numbers<[1], [0], [0], [1], [0, 0, 1, 1], [], []>} : vector<256x128xbf16>, vector<128x128xbf16>, vector<256x128xf32> -> vector<256x128xf32>
    %54 = arith.addf %47, %53 : vector<256x128xf32>
    %55 = vector.extract_strided_slice %16 {offsets = [0, 2, 0], sizes = [16, 16, 128], strides = [1, 1, 1]} : vector<16x18x128xf32> to vector<16x16x128xf32>
    %56 = vector.shape_cast %55 : vector<16x16x128xf32> to vector<256x128xf32>
    %57 = arith.truncf %56 : vector<256x128xf32> to vector<256x128xbf16>
    %58 = vector.extract_strided_slice %17 {offsets = [1, 2, 0, 0], sizes = [1, 1, 128, 128], strides = [1, 1, 1, 1]} : vector<3x3x128x128xbf16> to vector<1x1x128x128xbf16>
    %59 = vector.shape_cast %58 : vector<1x1x128x128xbf16> to vector<128x128xbf16>
    %cst_28 = arith.constant dense<0.000000e+00> : vector<256x128xf32>
    %60 = tpu.matmul %57, %59, %cst_28 {dimension_numbers = #tpu.dot_dimension_numbers<[1], [0], [0], [1], [0, 0, 1, 1], [], []>} : vector<256x128xbf16>, vector<128x128xbf16>, vector<256x128xf32> -> vector<256x128xf32>
    %61 = arith.addf %54, %60 : vector<256x128xf32>
    %cst_29 = arith.constant 0.000000e+00 : f32
    %62 = vector.broadcast %cst_29 : f32 to vector<1x18x128xf32>
    %63 = vector.extract_strided_slice %16 {offsets = [1, 0, 0], sizes = [15, 18, 128], strides = [1, 1, 1]} : vector<16x18x128xf32> to vector<15x18x128xf32>
    %64 = tpu.concatenate %63, %62 in 0 : vector<15x18x128xf32>, vector<1x18x128xf32> -> vector<16x18x128xf32>
    %65 = vector.extract_strided_slice %64 {offsets = [0, 0, 0], sizes = [16, 16, 128], strides = [1, 1, 1]} : vector<16x18x128xf32> to vector<16x16x128xf32>
    %66 = vector.shape_cast %65 : vector<16x16x128xf32> to vector<256x128xf32>
    %67 = arith.truncf %66 : vector<256x128xf32> to vector<256x128xbf16>
    %68 = vector.extract_strided_slice %17 {offsets = [2, 0, 0, 0], sizes = [1, 1, 128, 128], strides = [1, 1, 1, 1]} : vector<3x3x128x128xbf16> to vector<1x1x128x128xbf16>
    %69 = vector.shape_cast %68 : vector<1x1x128x128xbf16> to vector<128x128xbf16>
    %cst_30 = arith.constant dense<0.000000e+00> : vector<256x128xf32>
    %70 = tpu.matmul %67, %69, %cst_30 {dimension_numbers = #tpu.dot_dimension_numbers<[1], [0], [0], [1], [0, 0, 1, 1], [], []>} : vector<256x128xbf16>, vector<128x128xbf16>, vector<256x128xf32> -> vector<256x128xf32>
    %71 = arith.addf %61, %70 : vector<256x128xf32>
    %72 = vector.extract_strided_slice %64 {offsets = [0, 1, 0], sizes = [16, 16, 128], strides = [1, 1, 1]} : vector<16x18x128xf32> to vector<16x16x128xf32>
    %73 = vector.shape_cast %72 : vector<16x16x128xf32> to vector<256x128xf32>
    %74 = arith.truncf %73 : vector<256x128xf32> to vector<256x128xbf16>
    %75 = vector.extract_strided_slice %17 {offsets = [2, 1, 0, 0], sizes = [1, 1, 128, 128], strides = [1, 1, 1, 1]} : vector<3x3x128x128xbf16> to vector<1x1x128x128xbf16>
    %76 = vector.shape_cast %75 : vector<1x1x128x128xbf16> to vector<128x128xbf16>
    %cst_31 = arith.constant dense<0.000000e+00> : vector<256x128xf32>
    %77 = tpu.matmul %74, %76, %cst_31 {dimension_numbers = #tpu.dot_dimension_numbers<[1], [0], [0], [1], [0, 0, 1, 1], [], []>} : vector<256x128xbf16>, vector<128x128xbf16>, vector<256x128xf32> -> vector<256x128xf32>
    %78 = arith.addf %71, %77 : vector<256x128xf32>
    %79 = vector.extract_strided_slice %64 {offsets = [0, 2, 0], sizes = [16, 16, 128], strides = [1, 1, 1]} : vector<16x18x128xf32> to vector<16x16x128xf32>
    %80 = vector.shape_cast %79 : vector<16x16x128xf32> to vector<256x128xf32>
    %81 = arith.truncf %80 : vector<256x128xf32> to vector<256x128xbf16>
    %82 = vector.extract_strided_slice %17 {offsets = [2, 2, 0, 0], sizes = [1, 1, 128, 128], strides = [1, 1, 1, 1]} : vector<3x3x128x128xbf16> to vector<1x1x128x128xbf16>
    %83 = vector.shape_cast %82 : vector<1x1x128x128xbf16> to vector<128x128xbf16>
    %cst_32 = arith.constant dense<0.000000e+00> : vector<256x128xf32>
    %84 = tpu.matmul %81, %83, %cst_32 {dimension_numbers = #tpu.dot_dimension_numbers<[1], [0], [0], [1], [0, 0, 1, 1], [], []>} : vector<256x128xbf16>, vector<128x128xbf16>, vector<256x128xf32> -> vector<256x128xf32>
    %85 = arith.addf %78, %84 : vector<256x128xf32>
    %86 = vector.shape_cast %85 : vector<256x128xf32> to vector<1x16x16x128xf32>
    %c0_33 = arith.constant 0 : index
    %c0_34 = arith.constant 0 : index
    %c0_35 = arith.constant 0 : index
    %c0_36 = arith.constant 0 : index
    %87 = vector.load %arg5[%c0_33, %c0_34, %c0_35, %c0_36] : memref<1x16x16x128xf32, #tpu.memory_space<vmem>>, vector<1x16x16x128xf32>
    tpu.vector_store %arg5[%c0_33, %c0_34, %c0_35, %c0_36], %86 {strides = array<i32>} : memref<1x16x16x128xf32, #tpu.memory_space<vmem>>, vector<1x16x16x128xf32>,
    %cst_37 = arith.constant dense<0.000000e+00> : vector<128xf32>
    %88 = vector.multi_reduction <add>, %85, %cst_37 [0] : vector<256x128xf32> to vector<128xf32>
    %89 = vector.shape_cast %88 : vector<128xf32> to vector<1x128xf32>
    %c0_38 = arith.constant 0 : index
    %c0_39 = arith.constant 0 : index
    %c0_40 = arith.constant 0 : index
    %90 = vector.load %arg6[%c0_38, %c0_39, %c0_40] : memref<1x2x128xf32, #tpu.memory_space<vmem>>, vector<1x1x128xf32>
    %91 = vector.shape_cast %90 : vector<1x1x128xf32> to vector<1x128xf32>
    %92 = vector.shape_cast %89 : vector<1x128xf32> to vector<1x1x128xf32>
    tpu.vector_store %arg6[%c0_38, %c0_39, %c0_40], %92 {strides = array<i32>} : memref<1x2x128xf32, #tpu.memory_space<vmem>>, vector<1x1x128xf32>,
    %93 = arith.mulf %85, %85 : vector<256x128xf32>
    %cst_41 = arith.constant dense<0.000000e+00> : vector<128xf32>
    %94 = vector.multi_reduction <add>, %93, %cst_41 [0] : vector<256x128xf32> to vector<128xf32>
    %95 = vector.shape_cast %94 : vector<128xf32> to vector<1x128xf32>
    %c0_42 = arith.constant 0 : index
    %c1_43 = arith.constant 1 : index
    %c0_44 = arith.constant 0 : index
    %96 = vector.load %arg6[%c0_42, %c1_43, %c0_44] : memref<1x2x128xf32, #tpu.memory_space<vmem>>, vector<1x1x128xf32>
    %97 = vector.shape_cast %96 : vector<1x1x128xf32> to vector<1x128xf32>
    %98 = vector.shape_cast %95 : vector<1x128xf32> to vector<1x1x128xf32>
    tpu.vector_store %arg6[%c0_42, %c1_43, %c0_44], %98 {strides = array<i32>} : memref<1x2x128xf32, #tpu.memory_space<vmem>>, vector<1x1x128xf32>,
    return
  }
  func.func @transform_0(%arg0: i32) -> (i32, i32, i32, i32) {
    %c0_i32 = arith.constant 0 : i32
    %c0_i32_0 = arith.constant 0 : i32
    %c0_i32_1 = arith.constant 0 : i32
    %c0_i32_2 = arith.constant 0 : i32
    return %arg0, %c0_i32, %c0_i32_0, %c0_i32_1 : i32, i32, i32, i32
  }
  func.func @transform_1(%arg0: i32) -> (i32, i32) {
    %c0_i32 = arith.constant 0 : i32
    %c0_i32_0 = arith.constant 0 : i32
    %c0_i32_1 = arith.constant 0 : i32
    return %c0_i32, %c0_i32_0 : i32, i32
  }
  func.func @transform_2(%arg0: i32) -> (i32, i32) {
    %c0_i32 = arith.constant 0 : i32
    %c0_i32_0 = arith.constant 0 : i32
    %c0_i32_1 = arith.constant 0 : i32
    return %c0_i32, %c0_i32_0 : i32, i32
  }
  func.func @transform_3(%arg0: i32) -> (i32, i32, i32, i32) {
    %c0_i32 = arith.constant 0 : i32
    %c0_i32_0 = arith.constant 0 : i32
    %c0_i32_1 = arith.constant 0 : i32
    %c0_i32_2 = arith.constant 0 : i32
    %c0_i32_3 = arith.constant 0 : i32
    return %c0_i32, %c0_i32_0, %c0_i32_1, %c0_i32_2 : i32, i32, i32, i32
  }
  func.func @transform_4(%arg0: i32) -> (i32, i32, i32, i32) {
    %c0_i32 = arith.constant 0 : i32
    %c0_i32_0 = arith.constant 0 : i32
    %c0_i32_1 = arith.constant 0 : i32
    %c0_i32_2 = arith.constant 0 : i32
    return %arg0, %c0_i32, %c0_i32_0, %c0_i32_1 : i32, i32, i32, i32
  }
  func.func @transform_5(%arg0: i32) -> (i32, i32, i32) {
    %c0_i32 = arith.constant 0 : i32
    %c0_i32_0 = arith.constant 0 : i32
    %c0_i32_1 = arith.constant 0 : i32
    return %arg0, %c0_i32, %c0_i32_0 : i32, i32, i32
  }
}

module attributes {stable_mosaic.version = 11 : i64} {
  func.func @_block_pass_c(%arg0: i32, %arg1: memref<1x16x16x128xf32, #tpu.memory_space<vmem>>, %arg2: memref<1x16x16x128xf32, #tpu.memory_space<vmem>>, %arg3: memref<1x128xf32, #tpu.memory_space<vmem>>, %arg4: memref<1x128xf32, #tpu.memory_space<vmem>>, %arg5: memref<1x128xf32, #tpu.memory_space<vmem>>, %arg6: memref<1x128xf32, #tpu.memory_space<vmem>>, %arg7: memref<1x16x16x128xf32, #tpu.memory_space<vmem>>) attributes {dimension_semantics = [#tpu.dimension_semantics<parallel>], iteration_bounds = array<i64: 2>, scalar_prefetch = 0 : i64, scratch_operands = 0 : i64, tpu.core_type = #tpu.core_type<tc>, window_params = [{transform_indices = @transform_0, window_bounds = array<i64: 1, 16, 16, 128>}, {transform_indices = @transform_1, window_bounds = array<i64: 1, 16, 16, 128>}, {pipeline_mode = #tpu.pipeline_mode<synchronous>, transform_indices = @transform_2, window_bounds = array<i64: 1, 128>}, {pipeline_mode = #tpu.pipeline_mode<synchronous>, transform_indices = @transform_3, window_bounds = array<i64: 1, 128>}, {pipeline_mode = #tpu.pipeline_mode<synchronous>, transform_indices = @transform_4, window_bounds = array<i64: 1, 128>}, {pipeline_mode = #tpu.pipeline_mode<synchronous>, transform_indices = @transform_5, window_bounds = array<i64: 1, 128>}, {transform_indices = @transform_6, window_bounds = array<i64: 1, 16, 16, 128>}]} {
    %c0 = arith.constant 0 : index
    %c0_0 = arith.constant 0 : index
    %c0_1 = arith.constant 0 : index
    %c0_2 = arith.constant 0 : index
    %0 = vector.load %arg1[%c0, %c0_0, %c0_1, %c0_2] : memref<1x16x16x128xf32, #tpu.memory_space<vmem>>, vector<1x16x16x128xf32>
    %c0_3 = arith.constant 0 : index
    %c0_4 = arith.constant 0 : index
    %1 = vector.load %arg3[%c0_3, %c0_4] : memref<1x128xf32, #tpu.memory_space<vmem>>, vector<1x128xf32>
    %2 = vector.shape_cast %1 : vector<1x128xf32> to vector<1x1x1x128xf32>
    %3 = vector.broadcast %2 : vector<1x1x1x128xf32> to vector<1x16x16x128xf32>
    %4 = arith.mulf %0, %3 : vector<1x16x16x128xf32>
    %c0_5 = arith.constant 0 : index
    %c0_6 = arith.constant 0 : index
    %5 = vector.load %arg4[%c0_5, %c0_6] : memref<1x128xf32, #tpu.memory_space<vmem>>, vector<1x128xf32>
    %6 = vector.shape_cast %5 : vector<1x128xf32> to vector<1x1x1x128xf32>
    %7 = vector.broadcast %6 : vector<1x1x1x128xf32> to vector<1x16x16x128xf32>
    %8 = arith.addf %4, %7 : vector<1x16x16x128xf32>
    %c0_7 = arith.constant 0 : index
    %c0_8 = arith.constant 0 : index
    %c0_9 = arith.constant 0 : index
    %c0_10 = arith.constant 0 : index
    %9 = vector.load %arg2[%c0_7, %c0_8, %c0_9, %c0_10] : memref<1x16x16x128xf32, #tpu.memory_space<vmem>>, vector<1x16x16x128xf32>
    %c0_11 = arith.constant 0 : index
    %c0_12 = arith.constant 0 : index
    %10 = vector.load %arg5[%c0_11, %c0_12] : memref<1x128xf32, #tpu.memory_space<vmem>>, vector<1x128xf32>
    %11 = vector.shape_cast %10 : vector<1x128xf32> to vector<1x1x1x128xf32>
    %12 = vector.broadcast %11 : vector<1x1x1x128xf32> to vector<1x16x16x128xf32>
    %13 = arith.mulf %9, %12 : vector<1x16x16x128xf32>
    %c0_13 = arith.constant 0 : index
    %c0_14 = arith.constant 0 : index
    %14 = vector.load %arg6[%c0_13, %c0_14] : memref<1x128xf32, #tpu.memory_space<vmem>>, vector<1x128xf32>
    %15 = vector.shape_cast %14 : vector<1x128xf32> to vector<1x1x1x128xf32>
    %16 = vector.broadcast %15 : vector<1x1x1x128xf32> to vector<1x16x16x128xf32>
    %17 = arith.addf %13, %16 : vector<1x16x16x128xf32>
    %18 = arith.addf %8, %17 : vector<1x16x16x128xf32>
    %cst = arith.constant 0.000000e+00 : f32
    %19 = vector.broadcast %cst : f32 to vector<1x16x16x128xf32>
    %20 = arith.maximumf %18, %19 : vector<1x16x16x128xf32>
    %c0_15 = arith.constant 0 : index
    %c0_16 = arith.constant 0 : index
    %c0_17 = arith.constant 0 : index
    %c0_18 = arith.constant 0 : index
    %21 = vector.load %arg7[%c0_15, %c0_16, %c0_17, %c0_18] : memref<1x16x16x128xf32, #tpu.memory_space<vmem>>, vector<1x16x16x128xf32>
    tpu.vector_store %arg7[%c0_15, %c0_16, %c0_17, %c0_18], %20 {strides = array<i32>} : memref<1x16x16x128xf32, #tpu.memory_space<vmem>>, vector<1x16x16x128xf32>,
    return
  }
  func.func @transform_0(%arg0: i32) -> (i32, i32, i32, i32) {
    %c0_i32 = arith.constant 0 : i32
    %c0_i32_0 = arith.constant 0 : i32
    %c0_i32_1 = arith.constant 0 : i32
    %c0_i32_2 = arith.constant 0 : i32
    return %arg0, %c0_i32, %c0_i32_0, %c0_i32_1 : i32, i32, i32, i32
  }
  func.func @transform_1(%arg0: i32) -> (i32, i32, i32, i32) {
    %c0_i32 = arith.constant 0 : i32
    %c0_i32_0 = arith.constant 0 : i32
    %c0_i32_1 = arith.constant 0 : i32
    %c0_i32_2 = arith.constant 0 : i32
    return %arg0, %c0_i32, %c0_i32_0, %c0_i32_1 : i32, i32, i32, i32
  }
  func.func @transform_2(%arg0: i32) -> (i32, i32) {
    %c0_i32 = arith.constant 0 : i32
    %c0_i32_0 = arith.constant 0 : i32
    %c0_i32_1 = arith.constant 0 : i32
    return %c0_i32, %c0_i32_0 : i32, i32
  }
  func.func @transform_3(%arg0: i32) -> (i32, i32) {
    %c0_i32 = arith.constant 0 : i32
    %c0_i32_0 = arith.constant 0 : i32
    %c0_i32_1 = arith.constant 0 : i32
    return %c0_i32, %c0_i32_0 : i32, i32
  }
  func.func @transform_4(%arg0: i32) -> (i32, i32) {
    %c0_i32 = arith.constant 0 : i32
    %c0_i32_0 = arith.constant 0 : i32
    %c0_i32_1 = arith.constant 0 : i32
    return %c0_i32, %c0_i32_0 : i32, i32
  }
  func.func @transform_5(%arg0: i32) -> (i32, i32) {
    %c0_i32 = arith.constant 0 : i32
    %c0_i32_0 = arith.constant 0 : i32
    %c0_i32_1 = arith.constant 0 : i32
    return %c0_i32, %c0_i32_0 : i32, i32
  }
  func.func @transform_6(%arg0: i32) -> (i32, i32, i32, i32) {
    %c0_i32 = arith.constant 0 : i32
    %c0_i32_0 = arith.constant 0 : i32
    %c0_i32_1 = arith.constant 0 : i32
    %c0_i32_2 = arith.constant 0 : i32
    return %arg0, %c0_i32, %c0_i32_0, %c0_i32_1 : i32, i32, i32, i32
  }
}

</mosaic_0001>

<llo_original>
// kernel: local_binary_basic_block.5
$region0: #{local_binary_basic_block.5}
  #allocation0 [shape = 'u32[]', space=smem, size = 0x4, offset = 0x4, fixed_abs, tag = 'smem constant byte address 0x4 - core index']
  #allocation1 [shape = 'u32[144,128]{1,0:T(1,128)}', space=vmem, size = 0x12000, scoped, tag = 'internal scratch']
  %s0 = inlined_call_operand.vmem [shape: f32[2,16,16,128], index: 0, kind: input, shape index: {}]
  %s1 = inlined_call_operand.vmem [shape: f32[2,16,16,128], index: 1, kind: input, shape index: {}]
  %s2 = inlined_call_operand.vmem [shape: f32[1,128], index: 2, kind: input, shape index: {}]
  %s3 = inlined_call_operand.vmem [shape: f32[1,128], index: 3, kind: input, shape index: {}]
  %s4 = inlined_call_operand.vmem [shape: f32[1,128], index: 4, kind: input, shape index: {}]
  %s5 = inlined_call_operand.vmem [shape: f32[1,128], index: 5, kind: input, shape index: {}]
  %s6 = inlined_call_operand.vmem [shape: f32[2,16,16,128], index: 6, kind: output, shape index: {}]
  %s7 = sld [smem:[#allocation0]]
  $region57: #{local_binary_basic_block.5} parent=0
    _
  %s9 = ssub.s32 1, %s7
  %s10 = scalar_select 0, %s9, %s7
  loop: start=0, step=1, limit=4
  $region2: #{local_binary_basic_block.5} parent=0 // loop_pre_header
    _
  $region3: #{local_binary_basic_block.5} parent=0 // loop_header
    %s12 = sphi 0, %s16
    %p13 = scmp.ge.s32.totalorder %s12, 4
    %s22 = sphi 0, %s24
    %s25 = sphi 0, %s22
    %s26 = sphi 0, %s25
    %s42 = sphi 0, %s26
    %s48 = sphi 0, %s50
    %s51 = sphi 0, %s48
    %s52 = sphi 0, %s51
    %s68 = sphi 0, %s52
    %s72 = sphi 0, %s72
    %s74 = sphi 0, %s72
    %s75 = sphi 0, %s74
    %s89 = sphi 0, %s75
    %s93 = sphi 0, %s93
    %s95 = sphi 0, %s93
    %s96 = sphi 0, %s95
    %s110 = sphi 0, %s96
    %s114 = sphi 0, %s114
    %s116 = sphi 0, %s114
    %s117 = sphi 0, %s116
    %s131 = sphi 0, %s117
    %s135 = sphi 0, %s135
    %s137 = sphi 0, %s135
    %s138 = sphi 0, %s137
    %s152 = sphi 0, %s138
    %s158 = sphi 0, %s160
    %s161 = sphi 0, %s158
    %s162 = sphi 0, %s161
    %s178 = sphi 0, %s162
  $region4: #{local_binary_basic_block.5} parent=0 // loop_header_branch
    %15 = sbr.rel (%p13) target = $region8
  $region5: #{local_binary_basic_block.5} parent=0 // loop_body
    %s17 = ssub.s32 %s12, 1
    %s18 = ssub.s32 %s12, 2
    %s19 = sadd.s32 %s12, 1
    %s20 = ssub.s32 %s12, %s19
    %p21 = scmp.eq.s32.totalorder %s20, 0
    %s23 = sadd.s32 %s22, 1
    %s24 = scalar_select %p21, %s22, %s23
    %p27 = pneg %p21
    %p28 = scmp.eq.s32.totalorder %s12, 1
    %p29 = por %p27, %p28
    %p30 = scmp.ne.s32.totalorder %s22, %s25
    %p31 = scmp.eq.s32.totalorder %s12, 0
    %p32 = por %p30, %p31
    %p33 = scmp.ne.s32.totalorder %s22, %s25
    %p34 = scmp.eq.s32.totalorder %s17, 1
    %p35 = por %p33, %p34
    %p36 = scmp.ne.s32.totalorder %s25, %s26
    %p37 = scmp.eq.s32.totalorder %s17, 0
    %p38 = por %p36, %p37
    %p39 = scmp.ne.s32.totalorder %s25, %s26
    %p40 = scmp.eq.s32.totalorder %s18, 1
    %p41 = por %p39, %p40
    %p43 = scmp.ne.s32.totalorder %s26, %s42
    %p44 = scmp.eq.s32.totalorder %s18, 0
    %p45 = por %p43, %p44
    %s46 = ssub.s32 %s12, %s19
    %p47 = scmp.eq.s32.totalorder %s46, 0
    %s49 = sadd.s32 %s48, 1
    %s50 = scalar_select %p47, %s48, %s49
    %p53 = pneg %p47
    %p54 = scmp.eq.s32.totalorder %s12, 1
    %p55 = por %p53, %p54
    %p56 = scmp.ne.s32.totalorder %s48, %s51
    %p57 = scmp.eq.s32.totalorder %s12, 0
    %p58 = por %p56, %p57
    %p59 = scmp.ne.s32.totalorder %s48, %s51
    %p60 = scmp.eq.s32.totalorder %s17, 1
    %p61 = por %p59, %p60
    %p62 = scmp.ne.s32.totalorder %s51, %s52
    %p63 = scmp.eq.s32.totalorder %s17, 0
    %p64 = por %p62, %p63
    %p65 = scmp.ne.s32.totalorder %s51, %s52
    %p66 = scmp.eq.s32.totalorder %s18, 1
    %p67 = por %p65, %p66
    %p69 = scmp.ne.s32.totalorder %s52, %s68
    %p70 = scmp.eq.s32.totalorder %s18, 0
    %p71 = por %p69, %p70
    %s73 = sadd.s32 %s72, 1
    %p76 = scmp.eq.s32.totalorder %s12, 1
    %p77 = scmp.ne.s32.totalorder %s72, %s74
    %p78 = scmp.eq.s32.totalorder %s12, 0
    %p79 = por %p77, %p78
    %p80 = scmp.ne.s32.totalorder %s72, %s74
    %p81 = scmp.eq.s32.totalorder %s17, 1
    %p82 = por %p80, %p81
    %p83 = scmp.ne.s32.totalorder %s74, %s75
    %p84 = scmp.eq.s32.totalorder %s17, 0
    %p85 = por %p83, %p84
    %p86 = scmp.ne.s32.totalorder %s74, %s75
    %p87 = scmp.eq.s32.totalorder %s18, 1
    %p88 = por %p86, %p87
    %p90 = scmp.ne.s32.totalorder %s75, %s89
    %p91 = scmp.eq.s32.totalorder %s18, 0
    %p92 = por %p90, %p91
    %s94 = sadd.s32 %s93, 1
    %p97 = scmp.eq.s32.totalorder %s12, 1
    %p98 = scmp.ne.s32.totalorder %s93, %s95
    %p99 = scmp.eq.s32.totalorder %s12, 0
    %p100 = por %p98, %p99
    %p101 = scmp.ne.s32.totalorder %s93, %s95
    %p102 = scmp.eq.s32.totalorder %s17, 1
    %p103 = por %p101, %p102
    %p104 = scmp.ne.s32.totalorder %s95, %s96
    %p105 = scmp.eq.s32.totalorder %s17, 0
    %p106 = por %p104, %p105
    %p107 = scmp.ne.s32.totalorder %s95, %s96
    %p108 = scmp.eq.s32.totalorder %s18, 1
    %p109 = por %p107, %p108
    %p111 = scmp.ne.s32.totalorder %s96, %s110
    %p112 = scmp.eq.s32.totalorder %s18, 0
    %p113 = por %p111, %p112
    %s115 = sadd.s32 %s114, 1
    %p118 = scmp.eq.s32.totalorder %s12, 1
    %p119 = scmp.ne.s32.totalorder %s114, %s116
    %p120 = scmp.eq.s32.totalorder %s12, 0
    %p121 = por %p119, %p120
    %p122 = scmp.ne.s32.totalorder %s114, %s116
    %p123 = scmp.eq.s32.totalorder %s17, 1
    %p124 = por %p122, %p123
    %p125 = scmp.ne.s32.totalorder %s116, %s117
    %p126 = scmp.eq.s32.totalorder %s17, 0
    %p127 = por %p125, %p126
    %p128 = scmp.ne.s32.totalorder %s116, %s117
    %p129 = scmp.eq.s32.totalorder %s18, 1
    %p130 = por %p128, %p129
    %p132 = scmp.ne.s32.totalorder %s117, %s131
    %p133 = scmp.eq.s32.totalorder %s18, 0
    %p134 = por %p132, %p133
    %s136 = sadd.s32 %s135, 1
    %p139 = scmp.eq.s32.totalorder %s12, 1
    %p140 = scmp.ne.s32.totalorder %s135, %s137
    %p141 = scmp.eq.s32.totalorder %s12, 0
    %p142 = por %p140, %p141
    %p143 = scmp.ne.s32.totalorder %s135, %s137
    %p144 = scmp.eq.s32.totalorder %s17, 1
    %p145 = por %p143, %p144
    %p146 = scmp.ne.s32.totalorder %s137, %s138
    %p147 = scmp.eq.s32.totalorder %s17, 0
    %p148 = por %p146, %p147
    %p149 = scmp.ne.s32.totalorder %s137, %s138
    %p150 = scmp.eq.s32.totalorder %s18, 1
    %p151 = por %p149, %p150
    %p153 = scmp.ne.s32.totalorder %s138, %s152
    %p154 = scmp.eq.s32.totalorder %s18, 0
    %p155 = por %p153, %p154
    %s156 = ssub.s32 %s12, %s19
    %p157 = scmp.eq.s32.totalorder %s156, 0
    %s159 = sadd.s32 %s158, 1
    %s160 = scalar_select %p157, %s158, %s159
    %p163 = pneg %p157
    %p164 = scmp.eq.s32.totalorder %s12, 1
    %p165 = por %p163, %p164
    %p166 = scmp.ne.s32.totalorder %s158, %s161
    %p167 = scmp.eq.s32.totalorder %s12, 0
    %p168 = por %p166, %p167
    %p169 = scmp.ne.s32.totalorder %s158, %s161
    %p170 = scmp.eq.s32.totalorder %s17, 1
    %p171 = por %p169, %p170
    %p172 = scmp.ne.s32.totalorder %s161, %s162
    %p173 = scmp.eq.s32.totalorder %s17, 0
    %p174 = por %p172, %p173
    %p175 = scmp.ne.s32.totalorder %s161, %s162
    %p176 = scmp.eq.s32.totalorder %s18, 1
    %p177 = por %p175, %p176
    %p179 = scmp.ne.s32.totalorder %s162, %s178
    %p180 = scmp.eq.s32.totalorder %s18, 0
    %p181 = por %p179, %p180
    %p182 = scmp.le.s32.totalorder 1, %s12
    %p183 = scmp.lt.s32.totalorder %s12, 3
    %p184 = pnand %p182, %p183
    %p185 = pneg %p184
    // Predicated region
    $region9: #{local_binary_basic_block.5} parent=5 // pred_check
      _
    $region10: #{local_binary_basic_block.5} parent=5 // pred_check_branch
      %187 = sbr.rel (%p184) target = $region12
    $region11: #{local_binary_basic_block.5} parent=5 // pred_region
      %s188 = ssub.s32 %s12, 1
      // Predicated region
      $region13: #{local_binary_basic_block.5} parent=11 // pred_check
        %p189 = pneg %p85
      $region14: #{local_binary_basic_block.5} parent=11 // pred_check_branch
        %191 = sbr.rel (%p189) target = $region16
      $region15: #{local_binary_basic_block.5} parent=11 // pred_region
        _
      $region16: #{local_binary_basic_block.5} parent=11 // pred_fallthru
        _
      // Predicated region
      $region17: #{local_binary_basic_block.5} parent=11 // pred_check
        %p192 = pneg %p106
      $region18: #{local_binary_basic_block.5} parent=11 // pred_check_branch
        %194 = sbr.rel (%p192) target = $region20
      $region19: #{local_binary_basic_block.5} parent=11 // pred_region
        _
      $region20: #{local_binary_basic_block.5} parent=11 // pred_fallthru
        _
      // Predicated region
      $region21: #{local_binary_basic_block.5} parent=11 // pred_check
        %p195 = pneg %p127
      $region22: #{local_binary_basic_block.5} parent=11 // pred_check_branch
        %197 = sbr.rel (%p195) target = $region24
      $region23: #{local_binary_basic_block.5} parent=11 // pred_region
        _
      $region24: #{local_binary_basic_block.5} parent=11 // pred_fallthru
        _
      // Predicated region
      $region25: #{local_binary_basic_block.5} parent=11 // pred_check
        %p198 = pneg %p148
      $region26: #{local_binary_basic_block.5} parent=11 // pred_check_branch
        %200 = sbr.rel (%p198) target = $region28
      $region27: #{local_binary_basic_block.5} parent=11 // pred_region
        _
      $region28: #{local_binary_basic_block.5} parent=11 // pred_fallthru
        _
    $region12: #{local_binary_basic_block.5} parent=5 // pred_fallthru
      _
    %p201 = scmp.lt.s32.totalorder %s12, 2
    // Predicated region
    $region29: #{local_binary_basic_block.5} parent=5 // pred_check
      %p202 = pneg %p201
    $region30: #{local_binary_basic_block.5} parent=5 // pred_check_branch
      %204 = sbr.rel (%p202) target = $region32
    $region31: #{local_binary_basic_block.5} parent=5 // pred_region
      // Predicated region
      $region33: #{local_binary_basic_block.5} parent=31 // pred_check
        %p205 = pneg %p32
      $region34: #{local_binary_basic_block.5} parent=31 // pred_check_branch
        %207 = sbr.rel (%p205) target = $region36
      $region35: #{local_binary_basic_block.5} parent=31 // pred_region
        %p208 = scmp.lt.s32.totalorder %s12, 1
        %s209 = scalar_select %p208, %s12, 1
        %s210 = smul.addr %s209, 32
        %s211 = smul.addr %s210, 8
        %s212 = scalar_lea.vmem %s0, %s211
      $region36: #{local_binary_basic_block.5} parent=31 // pred_fallthru
        _
      // Predicated region
      $region37: #{local_binary_basic_block.5} parent=31 // pred_check
        %p213 = pneg %p58
      $region38: #{local_binary_basic_block.5} parent=31 // pred_check_branch
        %215 = sbr.rel (%p213) target = $region40
      $region39: #{local_binary_basic_block.5} parent=31 // pred_region
        %p216 = scmp.lt.s32.totalorder %s12, 1
        %s217 = scalar_select %p216, %s12, 1
        %s218 = smul.addr %s217, 32
        %s219 = smul.addr %s218, 8
        %s220 = scalar_lea.vmem %s1, %s219
      $region40: #{local_binary_basic_block.5} parent=31 // pred_fallthru
        _
    $region32: #{local_binary_basic_block.5} parent=5 // pred_fallthru
      _
    %p221 = scmp.le.s32.totalorder 1, %s12
    %p222 = scmp.lt.s32.totalorder %s12, 3
    %p223 = pnand %p221, %p222
    %p224 = pneg %p223
    // Predicated region
    $region41: #{local_binary_basic_block.5} parent=5 // pred_check
      _
    $region42: #{local_binary_basic_block.5} parent=5 // pred_check_branch
      %226 = sbr.rel (%p223) target = $region44
    $region43: #{local_binary_basic_block.5} parent=5 // pred_region
      %s227 = ssub.s32 %s12, 1
      %p228 = scmp.lt.s32.totalorder %s17, 1
      %s229 = scalar_select %p228, %s17, 1
      %s230 = smul.addr %s229, 32
      %s231 = smul.addr %s230, 8
      %s232 = scalar_lea.vmem %s0, %s231
      %p233 = pneg %p38
      %p234 = pneg %p35
      %p235 = scmp.lt.s32.totalorder %s17, 1
      %s236 = scalar_select %p235, %s17, 1
      %s237 = smul.addr %s236, 32
      %s238 = smul.addr %s237, 8
      %s239 = scalar_lea.vmem %s1, %s238
      %p240 = pneg %p64
      %p241 = pneg %p61
      %p242 = pneg %p85
      %p243 = pneg %p82
      %p244 = pneg %p106
      %p245 = pneg %p103
      %p246 = pneg %p127
      %p247 = pneg %p124
      %p248 = pneg %p148
      %p249 = pneg %p145
      %p250 = pneg %p174
      %p251 = pneg %p171
      %p252 = scmp.lt.s32.totalorder %s17, 1
      %s253 = scalar_select %p252, %s17, 1
      %s254 = smul.addr %s253, 32
      %s255 = smul.addr %s254, 8
      %s256 = scalar_lea.vmem %s6, %s255
      %p257 = scmp.lt.s32.totalorder %s17, 1
      %s258 = scalar_select %p257, %s17, 1
      %s259 = smul.addr %s258, 32
      %s260 = smul.addr %s259, 8
      %s261 = scalar_lea.vmem %s0, %s260
      %p262 = scmp.lt.s32.totalorder %s17, 1
      %s263 = scalar_select %p262, %s17, 1
      %s264 = smul.addr %s263, 32
      %s265 = smul.addr %s264, 8
      %s266 = scalar_lea.vmem %s1, %s265
      %p267 = scmp.lt.s32.totalorder %s17, 1
      %s268 = scalar_select %p267, %s17, 1
      %s269 = smul.addr %s268, 32
      %s270 = smul.addr %s269, 8
      %s271 = scalar_lea.vmem %s6, %s270
      %v272 = vld [vmem:[%s261] sm:$0xff]
      %v273 = vld [vmem:[%s261 + $0x8] sm:$0xff]
      %v274 = vld [vmem:[%s261 + $0x10] sm:$0xff]
      %v275 = vld [vmem:[%s261 + $0x18] sm:$0xff]
      %v276 = vld [vmem:[%s261 + $0x20] sm:$0xff]
      %v277 = vld [vmem:[%s261 + $0x28] sm:$0xff]
      %v278 = vld [vmem:[%s261 + $0x30] sm:$0xff]
      %v279 = vld [vmem:[%s261 + $0x38] sm:$0xff]
      %v280 = vld [vmem:[%s261 + $0x40] sm:$0xff]
      %v281 = vld [vmem:[%s261 + $0x48] sm:$0xff]
      %v282 = vld [vmem:[%s261 + $0x50] sm:$0xff]
      %v283 = vld [vmem:[%s261 + $0x58] sm:$0xff]
      %v284 = vld [vmem:[%s261 + $0x60] sm:$0xff]
      %v285 = vld [vmem:[%s261 + $0x68] sm:$0xff]
      %v286 = vld [vmem:[%s261 + $0x70] sm:$0xff]
      %v287 = vld [vmem:[%s261 + $0x78] sm:$0xff]
      %v288 = vld [vmem:[%s261 + $0x80] sm:$0xff]
      %v289 = vld [vmem:[%s261 + $0x88] sm:$0xff]
      %v290 = vld [vmem:[%s261 + $0x90] sm:$0xff]
      %v291 = vld [vmem:[%s261 + $0x98] sm:$0xff]
      %v292 = vld [vmem:[%s261 + $0xa0] sm:$0xff]
      %v293 = vld [vmem:[%s261 + $0xa8] sm:$0xff]
      %v294 = vld [vmem:[%s261 + $0xb0] sm:$0xff]
      %v295 = vld [vmem:[%s261 + $0xb8] sm:$0xff]
      %v296 = vld [vmem:[%s261 + $0xc0] sm:$0xff]
      %v297 = vld [vmem:[%s261 + $0xc8] sm:$0xff]
      %v298 = vld [vmem:[%s261 + $0xd0] sm:$0xff]
      %v299 = vld [vmem:[%s261 + $0xd8] sm:$0xff]
      %v300 = vld [vmem:[%s261 + $0xe0] sm:$0xff]
      %v301 = vld [vmem:[%s261 + $0xe8] sm:$0xff]
      %v302 = vld [vmem:[%s261 + $0xf0] sm:$0xff]
      %v303 = vld [vmem:[%s261 + $0xf8] sm:$0xff]
      %v304 = vld [vmem:[%s2] sm:$0x1]
      %v306 = vlaneseq
      %v307 = vshrl.u32 %v306, 7
      %v308 = vsub.s32 0, %v307
      %v309 = vrot.slane %v304, %v308
      %v311 = vmul.f32 %v272, %v309
      %v312 = vmul.f32 %v273, %v309
      %v313 = vmul.f32 %v274, %v309
      %v314 = vmul.f32 %v275, %v309
      %v315 = vmul.f32 %v276, %v309
      %v316 = vmul.f32 %v277, %v309
      %v317 = vmul.f32 %v278, %v309
      %v318 = vmul.f32 %v279, %v309
      %v319 = vmul.f32 %v280, %v309
      %v320 = vmul.f32 %v281, %v309
      %v321 = vmul.f32 %v282, %v309
      %v322 = vmul.f32 %v283, %v309
      %v323 = vmul.f32 %v284, %v309
      %v324 = vmul.f32 %v285, %v309
      %v325 = vmul.f32 %v286, %v309
      %v326 = vmul.f32 %v287, %v309
      %v327 = vmul.f32 %v288, %v309
      %v328 = vmul.f32 %v289, %v309
      %v329 = vmul.f32 %v290, %v309
      %v330 = vmul.f32 %v291, %v309
      %v331 = vmul.f32 %v292, %v309
      %v332 = vmul.f32 %v293, %v309
      %v333 = vmul.f32 %v294, %v309
      %v334 = vmul.f32 %v295, %v309
      %v335 = vmul.f32 %v296, %v309
      %v336 = vmul.f32 %v297, %v309
      %v337 = vmul.f32 %v298, %v309
      %v338 = vmul.f32 %v299, %v309
      %v339 = vmul.f32 %v300, %v309
      %v340 = vmul.f32 %v301, %v309
      %v341 = vmul.f32 %v302, %v309
      %v342 = vmul.f32 %v303, %v309
      %v343 = vld [vmem:[%s3] sm:$0x1]
      %v345 = vlaneseq
      %v346 = vshrl.u32 %v345, 7
      %v347 = vsub.s32 0, %v346
      %v348 = vrot.slane %v343, %v347
      %v350 = vadd.f32 %v311, %v348
      %v351 = vadd.f32 %v312, %v348
      %v352 = vadd.f32 %v313, %v348
      %v353 = vadd.f32 %v314, %v348
      %v354 = vadd.f32 %v315, %v348
      %v355 = vadd.f32 %v316, %v348
      %v356 = vadd.f32 %v317, %v348
      %v357 = vadd.f32 %v318, %v348
      %v358 = vadd.f32 %v319, %v348
      %v359 = vadd.f32 %v320, %v348
      %v360 = vadd.f32 %v321, %v348
      %v361 = vadd.f32 %v322, %v348
      %v362 = vadd.f32 %v323, %v348
      %v363 = vadd.f32 %v324, %v348
      %v364 = vadd.f32 %v325, %v348
      %v365 = vadd.f32 %v326, %v348
      %v366 = vadd.f32 %v327, %v348
      %v367 = vadd.f32 %v328, %v348
      %v368 = vadd.f32 %v329, %v348
      %v369 = vadd.f32 %v330, %v348
      %v370 = vadd.f32 %v331, %v348
      %v371 = vadd.f32 %v332, %v348
      %v372 = vadd.f32 %v333, %v348
      %v373 = vadd.f32 %v334, %v348
      %v374 = vadd.f32 %v335, %v348
      %v375 = vadd.f32 %v336, %v348
      %v376 = vadd.f32 %v337, %v348
      %v377 = vadd.f32 %v338, %v348
      %v378 = vadd.f32 %v339, %v348
      %v379 = vadd.f32 %v340, %v348
      %v380 = vadd.f32 %v341, %v348
      %v381 = vadd.f32 %v342, %v348
      %v382 = vld [vmem:[%s266] sm:$0xff]
      %v383 = vld [vmem:[%s266 + $0x8] sm:$0xff]
      %v384 = vld [vmem:[%s266 + $0x10] sm:$0xff]
      %v385 = vld [vmem:[%s266 + $0x18] sm:$0xff]
      %v386 = vld [vmem:[%s266 + $0x20] sm:$0xff]
      %v387 = vld [vmem:[%s266 + $0x28] sm:$0xff]
      %v388 = vld [vmem:[%s266 + $0x30] sm:$0xff]
      %v389 = vld [vmem:[%s266 + $0x38] sm:$0xff]
      %v390 = vld [vmem:[%s266 + $0x40] sm:$0xff]
      %v391 = vld [vmem:[%s266 + $0x48] sm:$0xff]
      %v392 = vld [vmem:[%s266 + $0x50] sm:$0xff]
      %v393 = vld [vmem:[%s266 + $0x58] sm:$0xff]
      %v394 = vld [vmem:[%s266 + $0x60] sm:$0xff]
      %v395 = vld [vmem:[%s266 + $0x68] sm:$0xff]
      %v396 = vld [vmem:[%s266 + $0x70] sm:$0xff]
      %v397 = vld [vmem:[%s266 + $0x78] sm:$0xff]
      %v398 = vld [vmem:[%s266 + $0x80] sm:$0xff]
      %v399 = vld [vmem:[%s266 + $0x88] sm:$0xff]
      %v400 = vld [vmem:[%s266 + $0x90] sm:$0xff]
      %v401 = vld [vmem:[%s266 + $0x98] sm:$0xff]
      %v402 = vld [vmem:[%s266 + $0xa0] sm:$0xff]
      %v403 = vld [vmem:[%s266 + $0xa8] sm:$0xff]
      %v404 = vld [vmem:[%s266 + $0xb0] sm:$0xff]
      %v405 = vld [vmem:[%s266 + $0xb8] sm:$0xff]
      %v406 = vld [vmem:[%s266 + $0xc0] sm:$0xff]
      %v407 = vld [vmem:[%s266 + $0xc8] sm:$0xff]
      %v408 = vld [vmem:[%s266 + $0xd0] sm:$0xff]
      %v409 = vld [vmem:[%s266 + $0xd8] sm:$0xff]
      %v410 = vld [vmem:[%s266 + $0xe0] sm:$0xff]
      %v411 = vld [vmem:[%s266 + $0xe8] sm:$0xff]
      %v412 = vld [vmem:[%s266 + $0xf0] sm:$0xff]
      %v413 = vld [vmem:[%s266 + $0xf8] sm:$0xff]
      %v414 = vld [vmem:[%s4] sm:$0x1]
      %v416 = vlaneseq
      %v417 = vshrl.u32 %v416, 7
      %v418 = vsub.s32 0, %v417
      %v419 = vrot.slane %v414, %v418
      %v421 = vmul.f32 %v382, %v419
      %v422 = vmul.f32 %v383, %v419
      %v423 = vmul.f32 %v384, %v419
      %v424 = vmul.f32 %v385, %v419
      %v425 = vmul.f32 %v386, %v419
      %v426 = vmul.f32 %v387, %v419
      %v427 = vmul.f32 %v388, %v419
      %v428 = vmul.f32 %v389, %v419
      %v429 = vmul.f32 %v390, %v419
      %v430 = vmul.f32 %v391, %v419
      %v431 = vmul.f32 %v392, %v419
      %v432 = vmul.f32 %v393, %v419
      %v433 = vmul.f32 %v394, %v419
      %v434 = vmul.f32 %v395, %v419
      %v435 = vmul.f32 %v396, %v419
      %v436 = vmul.f32 %v397, %v419
      %v437 = vmul.f32 %v398, %v419
      %v438 = vmul.f32 %v399, %v419
      %v439 = vmul.f32 %v400, %v419
      %v440 = vmul.f32 %v401, %v419
      %v441 = vmul.f32 %v402, %v419
      %v442 = vmul.f32 %v403, %v419
      %v443 = vmul.f32 %v404, %v419
      %v444 = vmul.f32 %v405, %v419
      %v445 = vmul.f32 %v406, %v419
      %v446 = vmul.f32 %v407, %v419
      %v447 = vmul.f32 %v408, %v419
      %v448 = vmul.f32 %v409, %v419
      %v449 = vmul.f32 %v410, %v419
      %v450 = vmul.f32 %v411, %v419
      %v451 = vmul.f32 %v412, %v419
      %v452 = vmul.f32 %v413, %v419
      %v453 = vld [vmem:[%s5] sm:$0x1]
      %v455 = vlaneseq
      %v456 = vshrl.u32 %v455, 7
      %v457 = vsub.s32 0, %v456
      %v458 = vrot.slane %v453, %v457
      %v460 = vadd.f32 %v421, %v458
      %v461 = vadd.f32 %v422, %v458
      %v462 = vadd.f32 %v423, %v458
      %v463 = vadd.f32 %v424, %v458
      %v464 = vadd.f32 %v425, %v458
      %v465 = vadd.f32 %v426, %v458
      %v466 = vadd.f32 %v427, %v458
      %v467 = vadd.f32 %v428, %v458
      %v468 = vadd.f32 %v429, %v458
      %v469 = vadd.f32 %v430, %v458
      %v470 = vadd.f32 %v431, %v458
      %v471 = vadd.f32 %v432, %v458
      %v472 = vadd.f32 %v433, %v458
      %v473 = vadd.f32 %v434, %v458
      %v474 = vadd.f32 %v435, %v458
      %v475 = vadd.f32 %v436, %v458
      %v476 = vadd.f32 %v437, %v458
      %v477 = vadd.f32 %v438, %v458
      %v478 = vadd.f32 %v439, %v458
      %v479 = vadd.f32 %v440, %v458
      %v480 = vadd.f32 %v441, %v458
      %v481 = vadd.f32 %v442, %v458
      %v482 = vadd.f32 %v443, %v458
      %v483 = vadd.f32 %v444, %v458
      %v484 = vadd.f32 %v445, %v458
      %v485 = vadd.f32 %v446, %v458
      %v486 = vadd.f32 %v447, %v458
      %v487 = vadd.f32 %v448, %v458
      %v488 = vadd.f32 %v449, %v458
      %v489 = vadd.f32 %v450, %v458
      %v490 = vadd.f32 %v451, %v458
      %v491 = vadd.f32 %v452, %v458
      %v492 = vadd.f32 %v350, %v460
      %v493 = vadd.f32 %v351, %v461
      %v494 = vadd.f32 %v352, %v462
      %v495 = vadd.f32 %v353, %v463
      %v496 = vadd.f32 %v354, %v464
      %v497 = vadd.f32 %v355, %v465
      %v498 = vadd.f32 %v356, %v466
      %v499 = vadd.f32 %v357, %v467
      %v500 = vadd.f32 %v358, %v468
      %v501 = vadd.f32 %v359, %v469
      %v502 = vadd.f32 %v360, %v470
      %v503 = vadd.f32 %v361, %v471
      %v504 = vadd.f32 %v362, %v472
      %v505 = vadd.f32 %v363, %v473
      %v506 = vadd.f32 %v364, %v474
      %v507 = vadd.f32 %v365, %v475
      %v508 = vadd.f32 %v366, %v476
      %v509 = vadd.f32 %v367, %v477
      %v510 = vadd.f32 %v368, %v478
      %v511 = vadd.f32 %v369, %v479
      %v512 = vadd.f32 %v370, %v480
      %v513 = vadd.f32 %v371, %v481
      %v514 = vadd.f32 %v372, %v482
      %v515 = vadd.f32 %v373, %v483
      %v516 = vadd.f32 %v374, %v484
      %v517 = vadd.f32 %v375, %v485
      %v518 = vadd.f32 %v376, %v486
      %v519 = vadd.f32 %v377, %v487
      %v520 = vadd.f32 %v378, %v488
      %v521 = vadd.f32 %v379, %v489
      %v522 = vadd.f32 %v380, %v490
      %v523 = vadd.f32 %v381, %v491
      %v524 = vmax.f32 %v492, 0.0
      %v525 = vmax.f32 %v493, 0.0
      %v526 = vmax.f32 %v494, 0.0
      %v527 = vmax.f32 %v495, 0.0
      %v528 = vmax.f32 %v496, 0.0
      %v529 = vmax.f32 %v497, 0.0
      %v530 = vmax.f32 %v498, 0.0
      %v531 = vmax.f32 %v499, 0.0
      %v532 = vmax.f32 %v500, 0.0
      %v533 = vmax.f32 %v501, 0.0
      %v534 = vmax.f32 %v502, 0.0
      %v535 = vmax.f32 %v503, 0.0
      %v536 = vmax.f32 %v504, 0.0
      %v537 = vmax.f32 %v505, 0.0
      %v538 = vmax.f32 %v506, 0.0
      %v539 = vmax.f32 %v507, 0.0
      %v540 = vmax.f32 %v508, 0.0
      %v541 = vmax.f32 %v509, 0.0
      %v542 = vmax.f32 %v510, 0.0
      %v543 = vmax.f32 %v511, 0.0
      %v544 = vmax.f32 %v512, 0.0
      %v545 = vmax.f32 %v513, 0.0
      %v546 = vmax.f32 %v514, 0.0
      %v547 = vmax.f32 %v515, 0.0
      %v548 = vmax.f32 %v516, 0.0
      %v549 = vmax.f32 %v517, 0.0
      %v550 = vmax.f32 %v518, 0.0
      %v551 = vmax.f32 %v519, 0.0
      %v552 = vmax.f32 %v520, 0.0
      %v553 = vmax.f32 %v521, 0.0
      %v554 = vmax.f32 %v522, 0.0
      %v555 = vmax.f32 %v523, 0.0
      %556 = vst [vmem:[%s271] sm:$0xff] %v524
      %557 = vst [vmem:[%s271 + $0x8] sm:$0xff] %v525
      %558 = vst [vmem:[%s271 + $0x10] sm:$0xff] %v526
      %559 = vst [vmem:[%s271 + $0x18] sm:$0xff] %v527
      %560 = vst [vmem:[%s271 + $0x20] sm:$0xff] %v528
      %561 = vst [vmem:[%s271 + $0x28] sm:$0xff] %v529
      %562 = vst [vmem:[%s271 + $0x30] sm:$0xff] %v530
      %563 = vst [vmem:[%s271 + $0x38] sm:$0xff] %v531
      %564 = vst [vmem:[%s271 + $0x40] sm:$0xff] %v532
      %565 = vst [vmem:[%s271 + $0x48] sm:$0xff] %v533
      %566 = vst [vmem:[%s271 + $0x50] sm:$0xff] %v534
      %567 = vst [vmem:[%s271 + $0x58] sm:$0xff] %v535
      %568 = vst [vmem:[%s271 + $0x60] sm:$0xff] %v536
      %569 = vst [vmem:[%s271 + $0x68] sm:$0xff] %v537
      %570 = vst [vmem:[%s271 + $0x70] sm:$0xff] %v538
      %571 = vst [vmem:[%s271 + $0x78] sm:$0xff] %v539
      %572 = vst [vmem:[%s271 + $0x80] sm:$0xff] %v540
      %573 = vst [vmem:[%s271 + $0x88] sm:$0xff] %v541
      %574 = vst [vmem:[%s271 + $0x90] sm:$0xff] %v542
      %575 = vst [vmem:[%s271 + $0x98] sm:$0xff] %v543
      %576 = vst [vmem:[%s271 + $0xa0] sm:$0xff] %v544
      %577 = vst [vmem:[%s271 + $0xa8] sm:$0xff] %v545
      %578 = vst [vmem:[%s271 + $0xb0] sm:$0xff] %v546
      %579 = vst [vmem:[%s271 + $0xb8] sm:$0xff] %v547
      %580 = vst [vmem:[%s271 + $0xc0] sm:$0xff] %v548
      %581 = vst [vmem:[%s271 + $0xc8] sm:$0xff] %v549
      %582 = vst [vmem:[%s271 + $0xd0] sm:$0xff] %v550
      %583 = vst [vmem:[%s271 + $0xd8] sm:$0xff] %v551
      %584 = vst [vmem:[%s271 + $0xe0] sm:$0xff] %v552
      %585 = vst [vmem:[%s271 + $0xe8] sm:$0xff] %v553
      %586 = vst [vmem:[%s271 + $0xf0] sm:$0xff] %v554
      %587 = vst [vmem:[%s271 + $0xf8] sm:$0xff] %v555
      %p588 = scmp.lt.s32.totalorder %s17, 1
      %s589 = scalar_select %p588, %s17, 1
      %s590 = smul.addr %s589, 32
      %s591 = smul.addr %s590, 8
      %s592 = scalar_lea.vmem %s6, %s591
      // Predicated region
      $region45: #{local_binary_basic_block.5} parent=43 // pred_check
        %p593 = pneg %p171
      $region46: #{local_binary_basic_block.5} parent=43 // pred_check_branch
        %595 = sbr.rel (%p593) target = $region48
      $region47: #{local_binary_basic_block.5} parent=43 // pred_region
        _
      $region48: #{local_binary_basic_block.5} parent=43 // pred_fallthru
        _
    $region44: #{local_binary_basic_block.5} parent=5 // pred_fallthru
      _
    %p596 = scmp.le.s32.totalorder 2, %s12
    // Predicated region
    $region49: #{local_binary_basic_block.5} parent=5 // pred_check
      %p597 = pneg %p596
    $region50: #{local_binary_basic_block.5} parent=5 // pred_check_branch
      %599 = sbr.rel (%p597) target = $region52
    $region51: #{local_binary_basic_block.5} parent=5 // pred_region
      %s600 = ssub.s32 %s12, 2
      // Predicated region
      $region53: #{local_binary_basic_block.5} parent=51 // pred_check
        %p601 = pneg %p177
      $region54: #{local_binary_basic_block.5} parent=51 // pred_check_branch
        %603 = sbr.rel (%p601) target = $region56
      $region55: #{local_binary_basic_block.5} parent=51 // pred_region
        %p604 = scmp.lt.s32.totalorder %s18, 1
        %s605 = scalar_select %p604, %s18, 1
        %s606 = smul.addr %s605, 32
        %s607 = smul.addr %s606, 8
        %s608 = scalar_lea.vmem %s6, %s607
      $region56: #{local_binary_basic_block.5} parent=51 // pred_fallthru
        _
    $region52: #{local_binary_basic_block.5} parent=5 // pred_fallthru
      _
  $region6: #{local_binary_basic_block.5} parent=0 // loop_footer
    %s16 = sadd.s32 1, %s12
  $region7: #{local_binary_basic_block.5} parent=0 // loop_footer_branch
    %11 = sbr.rel target = $region3
  $region8: #{local_binary_basic_block.5} parent=0 // loop_exit
    _

// kernel: local_binary_basic_block.3
$region0: #{local_binary_basic_block.3}
  #allocation0 [shape = 'u32[]', space=smem, size = 0x4, offset = 0x4, fixed_abs, tag = 'smem constant byte address 0x4 - core index']
  #allocation1 [shape = 'u32[144,128]{1,0:T(1,128)}', space=vmem, size = 0x12000, scoped, tag = 'internal scratch']
  %s0 = inlined_call_operand.vmem [shape: bf16[2,16,18,128], index: 0, kind: input, shape index: {}]
  %s1 = inlined_call_operand.vmem [shape: bf16[3,3,128,128], index: 1, kind: input, shape index: {}]
  %s2 = inlined_call_operand.vmem [shape: bf16[128,128], index: 2, kind: input, shape index: {}]
  %s3 = inlined_call_operand.vmem [shape: f32[2,16,16,128], index: 3, kind: output, shape index: {0}]
  %s4 = inlined_call_operand.vmem [shape: f32[2,16,16,128], index: 4, kind: output, shape index: {1}]
  %s5 = inlined_call_operand.vmem [shape: f32[2,4,128], index: 5, kind: output, shape index: {2}]
  %6 = xla_tuple %s3, %s4, %s5
  %s7 = sld [smem:[#allocation0]]
  $region61: #{local_binary_basic_block.3} parent=0
    _
  %s9 = ssub.s32 1, %s7
  %s10 = scalar_select 0, %s9, %s7
  loop: start=0, step=1, limit=4
  $region2: #{local_binary_basic_block.3} parent=0 // loop_pre_header
    _
  $region3: #{local_binary_basic_block.3} parent=0 // loop_header
    %s12 = sphi 0, %s16
    %p13 = scmp.ge.s32.totalorder %s12, 4
    %s22 = sphi 0, %s24
    %s25 = sphi 0, %s22
    %s26 = sphi 0, %s25
    %s42 = sphi 0, %s26
    %s46 = sphi 0, %s46
    %s48 = sphi 0, %s46
    %s49 = sphi 0, %s48
    %s63 = sphi 0, %s49
    %s67 = sphi 0, %s67
    %s69 = sphi 0, %s67
    %s70 = sphi 0, %s69
    %s84 = sphi 0, %s70
    %s90 = sphi 0, %s92
    %s93 = sphi 0, %s90
    %s94 = sphi 0, %s93
    %s110 = sphi 0, %s94
    %s116 = sphi 0, %s118
    %s119 = sphi 0, %s116
    %s120 = sphi 0, %s119
    %s136 = sphi 0, %s120
    %s142 = sphi 0, %s144
    %s145 = sphi 0, %s142
    %s146 = sphi 0, %s145
    %s162 = sphi 0, %s146
  $region4: #{local_binary_basic_block.3} parent=0 // loop_header_branch
    %15 = sbr.rel (%p13) target = $region8
  $region5: #{local_binary_basic_block.3} parent=0 // loop_body
    %s17 = ssub.s32 %s12, 1
    %s18 = ssub.s32 %s12, 2
    %s19 = sadd.s32 %s12, 1
    %s20 = ssub.s32 %s12, %s19
    %p21 = scmp.eq.s32.totalorder %s20, 0
    %s23 = sadd.s32 %s22, 1
    %s24 = scalar_select %p21, %s22, %s23
    %p27 = pneg %p21
    %p28 = scmp.eq.s32.totalorder %s12, 1
    %p29 = por %p27, %p28
    %p30 = scmp.ne.s32.totalorder %s22, %s25
    %p31 = scmp.eq.s32.totalorder %s12, 0
    %p32 = por %p30, %p31
    %p33 = scmp.ne.s32.totalorder %s22, %s25
    %p34 = scmp.eq.s32.totalorder %s17, 1
    %p35 = por %p33, %p34
    %p36 = scmp.ne.s32.totalorder %s25, %s26
    %p37 = scmp.eq.s32.totalorder %s17, 0
    %p38 = por %p36, %p37
    %p39 = scmp.ne.s32.totalorder %s25, %s26
    %p40 = scmp.eq.s32.totalorder %s18, 1
    %p41 = por %p39, %p40
    %p43 = scmp.ne.s32.totalorder %s26, %s42
    %p44 = scmp.eq.s32.totalorder %s18, 0
    %p45 = por %p43, %p44
    %s47 = sadd.s32 %s46, 1
    %p50 = scmp.eq.s32.totalorder %s12, 1
    %p51 = scmp.ne.s32.totalorder %s46, %s48
    %p52 = scmp.eq.s32.totalorder %s12, 0
    %p53 = por %p51, %p52
    %p54 = scmp.ne.s32.totalorder %s46, %s48
    %p55 = scmp.eq.s32.totalorder %s17, 1
    %p56 = por %p54, %p55
    %p57 = scmp.ne.s32.totalorder %s48, %s49
    %p58 = scmp.eq.s32.totalorder %s17, 0
    %p59 = por %p57, %p58
    %p60 = scmp.ne.s32.totalorder %s48, %s49
    %p61 = scmp.eq.s32.totalorder %s18, 1
    %p62 = por %p60, %p61
    %p64 = scmp.ne.s32.totalorder %s49, %s63
    %p65 = scmp.eq.s32.totalorder %s18, 0
    %p66 = por %p64, %p65
    %s68 = sadd.s32 %s67, 1
    %p71 = scmp.eq.s32.totalorder %s12, 1
    %p72 = scmp.ne.s32.totalorder %s67, %s69
    %p73 = scmp.eq.s32.totalorder %s12, 0
    %p74 = por %p72, %p73
    %p75 = scmp.ne.s32.totalorder %s67, %s69
    %p76 = scmp.eq.s32.totalorder %s17, 1
    %p77 = por %p75, %p76
    %p78 = scmp.ne.s32.totalorder %s69, %s70
    %p79 = scmp.eq.s32.totalorder %s17, 0
    %p80 = por %p78, %p79
    %p81 = scmp.ne.s32.totalorder %s69, %s70
    %p82 = scmp.eq.s32.totalorder %s18, 1
    %p83 = por %p81, %p82
    %p85 = scmp.ne.s32.totalorder %s70, %s84
    %p86 = scmp.eq.s32.totalorder %s18, 0
    %p87 = por %p85, %p86
    %s88 = ssub.s32 %s12, %s19
    %p89 = scmp.eq.s32.totalorder %s88, 0
    %s91 = sadd.s32 %s90, 1
    %s92 = scalar_select %p89, %s90, %s91
    %p95 = pneg %p89
    %p96 = scmp.eq.s32.totalorder %s12, 1
    %p97 = por %p95, %p96
    %p98 = scmp.ne.s32.totalorder %s90, %s93
    %p99 = scmp.eq.s32.totalorder %s12, 0
    %p100 = por %p98, %p99
    %p101 = scmp.ne.s32.totalorder %s90, %s93
    %p102 = scmp.eq.s32.totalorder %s17, 1
    %p103 = por %p101, %p102
    %p104 = scmp.ne.s32.totalorder %s93, %s94
    %p105 = scmp.eq.s32.totalorder %s17, 0
    %p106 = por %p104, %p105
    %p107 = scmp.ne.s32.totalorder %s93, %s94
    %p108 = scmp.eq.s32.totalorder %s18, 1
    %p109 = por %p107, %p108
    %p111 = scmp.ne.s32.totalorder %s94, %s110
    %p112 = scmp.eq.s32.totalorder %s18, 0
    %p113 = por %p111, %p112
    %s114 = ssub.s32 %s12, %s19
    %p115 = scmp.eq.s32.totalorder %s114, 0
    %s117 = sadd.s32 %s116, 1
    %s118 = scalar_select %p115, %s116, %s117
    %p121 = pneg %p115
    %p122 = scmp.eq.s32.totalorder %s12, 1
    %p123 = por %p121, %p122
    %p124 = scmp.ne.s32.totalorder %s116, %s119
    %p125 = scmp.eq.s32.totalorder %s12, 0
    %p126 = por %p124, %p125
    %p127 = scmp.ne.s32.totalorder %s116, %s119
    %p128 = scmp.eq.s32.totalorder %s17, 1
    %p129 = por %p127, %p128
    %p130 = scmp.ne.s32.totalorder %s119, %s120
    %p131 = scmp.eq.s32.totalorder %s17, 0
    %p132 = por %p130, %p131
    %p133 = scmp.ne.s32.totalorder %s119, %s120
    %p134 = scmp.eq.s32.totalorder %s18, 1
    %p135 = por %p133, %p134
    %p137 = scmp.ne.s32.totalorder %s120, %s136
    %p138 = scmp.eq.s32.totalorder %s18, 0
    %p139 = por %p137, %p138
    %s140 = ssub.s32 %s12, %s19
    %p141 = scmp.eq.s32.totalorder %s140, 0
    %s143 = sadd.s32 %s142, 1
    %s144 = scalar_select %p141, %s142, %s143
    %p147 = pneg %p141
    %p148 = scmp.eq.s32.totalorder %s12, 1
    %p149 = por %p147, %p148
    %p150 = scmp.ne.s32.totalorder %s142, %s145
    %p151 = scmp.eq.s32.totalorder %s12, 0
    %p152 = por %p150, %p151
    %p153 = scmp.ne.s32.totalorder %s142, %s145
    %p154 = scmp.eq.s32.totalorder %s17, 1
    %p155 = por %p153, %p154
    %p156 = scmp.ne.s32.totalorder %s145, %s146
    %p157 = scmp.eq.s32.totalorder %s17, 0
    %p158 = por %p156, %p157
    %p159 = scmp.ne.s32.totalorder %s145, %s146
    %p160 = scmp.eq.s32.totalorder %s18, 1
    %p161 = por %p159, %p160
    %p163 = scmp.ne.s32.totalorder %s146, %s162
    %p164 = scmp.eq.s32.totalorder %s18, 0
    %p165 = por %p163, %p164
    %p166 = scmp.le.s32.totalorder 1, %s12
    %p167 = scmp.lt.s32.totalorder %s12, 3
    %p168 = pnand %p166, %p167
    %p169 = pneg %p168
    // Predicated region
    $region9: #{local_binary_basic_block.3} parent=5 // pred_check
      _
    $region10: #{local_binary_basic_block.3} parent=5 // pred_check_branch
      %171 = sbr.rel (%p168) target = $region12
    $region11: #{local_binary_basic_block.3} parent=5 // pred_region
      %s172 = ssub.s32 %s12, 1
      // Predicated region
      $region13: #{local_binary_basic_block.3} parent=11 // pred_check
        %p173 = pneg %p59
      $region14: #{local_binary_basic_block.3} parent=11 // pred_check_branch
        %175 = sbr.rel (%p173) target = $region16
      $region15: #{local_binary_basic_block.3} parent=11 // pred_region
        _
      $region16: #{local_binary_basic_block.3} parent=11 // pred_fallthru
        _
      // Predicated region
      $region17: #{local_binary_basic_block.3} parent=11 // pred_check
        %p176 = pneg %p80
      $region18: #{local_binary_basic_block.3} parent=11 // pred_check_branch
        %178 = sbr.rel (%p176) target = $region20
      $region19: #{local_binary_basic_block.3} parent=11 // pred_region
        _
      $region20: #{local_binary_basic_block.3} parent=11 // pred_fallthru
        _
    $region12: #{local_binary_basic_block.3} parent=5 // pred_fallthru
      _
    %p179 = scmp.lt.s32.totalorder %s12, 2
    // Predicated region
    $region21: #{local_binary_basic_block.3} parent=5 // pred_check
      %p180 = pneg %p179
    $region22: #{local_binary_basic_block.3} parent=5 // pred_check_branch
      %182 = sbr.rel (%p180) target = $region24
    $region23: #{local_binary_basic_block.3} parent=5 // pred_region
      // Predicated region
      $region25: #{local_binary_basic_block.3} parent=23 // pred_check
        %p183 = pneg %p32
      $region26: #{local_binary_basic_block.3} parent=23 // pred_check_branch
        %185 = sbr.rel (%p183) target = $region28
      $region27: #{local_binary_basic_block.3} parent=23 // pred_region
        %p186 = scmp.lt.s32.totalorder %s12, 1
        %s187 = scalar_select %p186, %s12, 1
        %s188 = smul.addr %s187, 48
        %s189 = smul.addr %s188, 4
        %s190 = scalar_lea.vmem %s0, %s189
      $region28: #{local_binary_basic_block.3} parent=23 // pred_fallthru
        _
    $region24: #{local_binary_basic_block.3} parent=5 // pred_fallthru
      _
    %p191 = scmp.le.s32.totalorder 1, %s12
    %p192 = scmp.lt.s32.totalorder %s12, 3
    %p193 = pnand %p191, %p192
    %p194 = pneg %p193
    // Predicated region
    $region29: #{local_binary_basic_block.3} parent=5 // pred_check
      _
    $region30: #{local_binary_basic_block.3} parent=5 // pred_check_branch
      %196 = sbr.rel (%p193) target = $region32
    $region31: #{local_binary_basic_block.3} parent=5 // pred_region
      %s197 = ssub.s32 %s12, 1
      %p198 = scmp.lt.s32.totalorder %s17, 1
      %s199 = scalar_select %p198, %s17, 1
      %s200 = smul.addr %s199, 48
      %s201 = smul.addr %s200, 4
      %s202 = scalar_lea.vmem %s0, %s201
      %p203 = pneg %p38
      %p204 = pneg %p35
      %p205 = pneg %p59
      %p206 = pneg %p56
      %p207 = pneg %p80
      %p208 = pneg %p77
      %p209 = pneg %p106
      %p210 = pneg %p103
      %p211 = scmp.lt.s32.totalorder %s17, 1
      %s212 = scalar_select %p211, %s17, 1
      %s213 = smul.addr %s212, 32
      %s214 = smul.addr %s213, 8
      %s215 = scalar_lea.vmem %s3, %s214
      %p216 = pneg %p132
      %p217 = pneg %p129
      %p218 = scmp.lt.s32.totalorder %s17, 1
      %s219 = scalar_select %p218, %s17, 1
      %s220 = smul.addr %s219, 32
      %s221 = smul.addr %s220, 8
      %s222 = scalar_lea.vmem %s4, %s221
      %p223 = pneg %p158
      %p224 = pneg %p155
      %p225 = scmp.lt.s32.totalorder %s17, 1
      %s226 = scalar_select %p225, %s17, 1
      %s227 = smul.addr %s226, 4
      %s228 = scalar_lea.vmem %s5, %s227
      %p229 = scmp.lt.s32.totalorder %s17, 1
      %s230 = scalar_select %p229, %s17, 1
      %s231 = smul.addr %s230, 48
      %s232 = smul.addr %s231, 4
      %s233 = scalar_lea.vmem %s0, %s232
      %p234 = scmp.lt.s32.totalorder %s17, 1
      %s235 = scalar_select %p234, %s17, 1
      %s236 = smul.addr %s235, 32
      %s237 = smul.addr %s236, 8
      %s238 = scalar_lea.vmem %s3, %s237
      %p239 = scmp.lt.s32.totalorder %s17, 1
      %s240 = scalar_select %p239, %s17, 1
      %s241 = smul.addr %s240, 32
      %s242 = smul.addr %s241, 8
      %s243 = scalar_lea.vmem %s4, %s242
      %p244 = scmp.lt.s32.totalorder %s17, 1
      %s245 = scalar_select %p244, %s17, 1
      %s246 = smul.addr %s245, 4
      %s247 = scalar_lea.vmem %s5, %s246
      %v249 = vld [vmem:[%s233] sm:$0xf]
      %v250 = vld [vmem:[%s233 + $0x4] sm:$0xf]
      %v251 = vld [vmem:[%s233 + $0x8] sm:$0x1]
      %v252 = vld [vmem:[%s233 + $0xc] sm:$0xf]
      %v253 = vld [vmem:[%s233 + $0x10] sm:$0xf]
      %v254 = vld [vmem:[%s233 + $0x14] sm:$0x1]
      %v255 = vld [vmem:[%s233 + $0x18] sm:$0xf]
      %v256 = vld [vmem:[%s233 + $0x1c] sm:$0xf]
      %v257 = vld [vmem:[%s233 + $0x20] sm:$0x1]
      %v258 = vld [vmem:[%s233 + $0x24] sm:$0xf]
      %v259 = vld [vmem:[%s233 + $0x28] sm:$0xf]
      %v260 = vld [vmem:[%s233 + $0x2c] sm:$0x1]
      %v261 = vld [vmem:[%s233 + $0x30] sm:$0xf]
      %v262 = vld [vmem:[%s233 + $0x34] sm:$0xf]
      %v263 = vld [vmem:[%s233 + $0x38] sm:$0x1]
      %v264 = vld [vmem:[%s233 + $0x3c] sm:$0xf]
      %v265 = vld [vmem:[%s233 + $0x40] sm:$0xf]
      %v266 = vld [vmem:[%s233 + $0x44] sm:$0x1]
      %v267 = vld [vmem:[%s233 + $0x48] sm:$0xf]
      %v268 = vld [vmem:[%s233 + $0x4c] sm:$0xf]
      %v269 = vld [vmem:[%s233 + $0x50] sm:$0x1]
      %v270 = vld [vmem:[%s233 + $0x54] sm:$0xf]
      %v271 = vld [vmem:[%s233 + $0x58] sm:$0xf]
      %v272 = vld [vmem:[%s233 + $0x5c] sm:$0x1]
      %v273 = vld [vmem:[%s233 + $0x60] sm:$0xf]
      %v274 = vld [vmem:[%s233 + $0x64] sm:$0xf]
      %v275 = vld [vmem:[%s233 + $0x68] sm:$0x1]
      %v276 = vld [vmem:[%s233 + $0x6c] sm:$0xf]
      %v277 = vld [vmem:[%s233 + $0x70] sm:$0xf]
      %v278 = vld [vmem:[%s233 + $0x74] sm:$0x1]
      %v279 = vld [vmem:[%s233 + $0x78] sm:$0xf]
      %v280 = vld [vmem:[%s233 + $0x7c] sm:$0xf]
      %v281 = vld [vmem:[%s233 + $0x80] sm:$0x1]
      %v282 = vld [vmem:[%s233 + $0x84] sm:$0xf]
      %v283 = vld [vmem:[%s233 + $0x88] sm:$0xf]
      %v284 = vld [vmem:[%s233 + $0x8c] sm:$0x1]
      %v285 = vld [vmem:[%s233 + $0x90] sm:$0xf]
      %v286 = vld [vmem:[%s233 + $0x94] sm:$0xf]
      %v287 = vld [vmem:[%s233 + $0x98] sm:$0x1]
      %v288 = vld [vmem:[%s233 + $0x9c] sm:$0xf]
      %v289 = vld [vmem:[%s233 + $0xa0] sm:$0xf]
      %v290 = vld [vmem:[%s233 + $0xa4] sm:$0x1]
      %v291 = vld [vmem:[%s233 + $0xa8] sm:$0xf]
      %v292 = vld [vmem:[%s233 + $0xac] sm:$0xf]
      %v293 = vld [vmem:[%s233 + $0xb0] sm:$0x1]
      %v294 = vld [vmem:[%s233 + $0xb4] sm:$0xf]
      %v295 = vld [vmem:[%s233 + $0xb8] sm:$0xf]
      %v296 = vld [vmem:[%s233 + $0xbc] sm:$0x1]
      %v297 = vunpack.c.l.bf16 %v249
      %v298 = vunpack.c.l.bf16 %v250
      %v299 = vunpack.c.l.bf16 %v251
      %v300 = vunpack.c.l.bf16 %v252
      %v301 = vunpack.c.l.bf16 %v253
      %v302 = vunpack.c.l.bf16 %v254
      %v303 = vunpack.c.l.bf16 %v255
      %v304 = vunpack.c.l.bf16 %v256
      %v305 = vunpack.c.l.bf16 %v257
      %v306 = vunpack.c.l.bf16 %v258
      %v307 = vunpack.c.l.bf16 %v259
      %v308 = vunpack.c.l.bf16 %v260
      %v309 = vunpack.c.l.bf16 %v261
      %v310 = vunpack.c.l.bf16 %v262
      %v311 = vunpack.c.l.bf16 %v263
      %v312 = vunpack.c.l.bf16 %v264
      %v313 = vunpack.c.l.bf16 %v265
      %v314 = vunpack.c.l.bf16 %v266
      %v315 = vunpack.c.l.bf16 %v267
      %v316 = vunpack.c.l.bf16 %v268
      %v317 = vunpack.c.l.bf16 %v269
      %v318 = vunpack.c.l.bf16 %v270
      %v319 = vunpack.c.l.bf16 %v271
      %v320 = vunpack.c.l.bf16 %v272
      %v321 = vunpack.c.l.bf16 %v273
      %v322 = vunpack.c.l.bf16 %v274
      %v323 = vunpack.c.l.bf16 %v275
      %v324 = vunpack.c.l.bf16 %v276
      %v325 = vunpack.c.l.bf16 %v277
      %v326 = vunpack.c.l.bf16 %v278
      %v327 = vunpack.c.l.bf16 %v279
      %v328 = vunpack.c.l.bf16 %v280
      %v329 = vunpack.c.l.bf16 %v281
      %v330 = vunpack.c.l.bf16 %v282
      %v331 = vunpack.c.l.bf16 %v283
      %v332 = vunpack.c.l.bf16 %v284
      %v333 = vunpack.c.l.bf16 %v285
      %v334 = vunpack.c.l.bf16 %v286
      %v335 = vunpack.c.l.bf16 %v287
      %v336 = vunpack.c.l.bf16 %v288
      %v337 = vunpack.c.l.bf16 %v289
      %v338 = vunpack.c.l.bf16 %v290
      %v339 = vunpack.c.l.bf16 %v291
      %v340 = vunpack.c.l.bf16 %v292
      %v341 = vunpack.c.l.bf16 %v293
      %v342 = vunpack.c.l.bf16 %v294
      %v343 = vunpack.c.l.bf16 %v295
      %v344 = vunpack.c.l.bf16 %v296
      %v345 = vld [vmem:[%s1] sm:$0xf]
      %v346 = vld [vmem:[%s1 + $0x4] sm:$0xf]
      %v347 = vld [vmem:[%s1 + $0x8] sm:$0xf]
      %v348 = vld [vmem:[%s1 + $0xc] sm:$0xf]
      %v349 = vld [vmem:[%s1 + $0x10] sm:$0xf]
      %v350 = vld [vmem:[%s1 + $0x14] sm:$0xf]
      %v351 = vld [vmem:[%s1 + $0x18] sm:$0xf]
      %v352 = vld [vmem:[%s1 + $0x1c] sm:$0xf]
      %v353 = vld [vmem:[%s1 + $0x20] sm:$0xf]
      %v354 = vld [vmem:[%s1 + $0x24] sm:$0xf]
      %v355 = vld [vmem:[%s1 + $0x28] sm:$0xf]
      %v356 = vld [vmem:[%s1 + $0x2c] sm:$0xf]
      %v357 = vld [vmem:[%s1 + $0x30] sm:$0xf]
      %v358 = vld [vmem:[%s1 + $0x34] sm:$0xf]
      %v359 = vld [vmem:[%s1 + $0x38] sm:$0xf]
      %v360 = vld [vmem:[%s1 + $0x3c] sm:$0xf]
      %v361 = vld [vmem:[%s1 + $0x40] sm:$0xf]
      %v362 = vld [vmem:[%s1 + $0x44] sm:$0xf]
      %v363 = vld [vmem:[%s1 + $0x48] sm:$0xf]
      %v364 = vld [vmem:[%s1 + $0x4c] sm:$0xf]
      %v365 = vld [vmem:[%s1 + $0x50] sm:$0xf]
      %v366 = vld [vmem:[%s1 + $0x54] sm:$0xf]
      %v367 = vld [vmem:[%s1 + $0x58] sm:$0xf]
      %v368 = vld [vmem:[%s1 + $0x5c] sm:$0xf]
      %v369 = vld [vmem:[%s1 + $0x60] sm:$0xf]
      %v370 = vld [vmem:[%s1 + $0x64] sm:$0xf]
      %v371 = vld [vmem:[%s1 + $0x68] sm:$0xf]
      %v372 = vld [vmem:[%s1 + $0x6c] sm:$0xf]
      %v373 = vld [vmem:[%s1 + $0x70] sm:$0xf]
      %v374 = vld [vmem:[%s1 + $0x74] sm:$0xf]
      %v375 = vld [vmem:[%s1 + $0x78] sm:$0xf]
      %v376 = vld [vmem:[%s1 + $0x7c] sm:$0xf]
      %v377 = vld [vmem:[%s1 + $0x80] sm:$0xf]
      %v378 = vld [vmem:[%s1 + $0x84] sm:$0xf]
      %v379 = vld [vmem:[%s1 + $0x88] sm:$0xf]
      %v380 = vld [vmem:[%s1 + $0x8c] sm:$0xf]
      %v381 = vld [vmem:[%s1 + $0x90] sm:$0xf]
      %v382 = vld [vmem:[%s1 + $0x94] sm:$0xf]
      %v383 = vld [vmem:[%s1 + $0x98] sm:$0xf]
      %v384 = vld [vmem:[%s1 + $0x9c] sm:$0xf]
      %v385 = vld [vmem:[%s1 + $0xa0] sm:$0xf]
      %v386 = vld [vmem:[%s1 + $0xa4] sm:$0xf]
      %v387 = vld [vmem:[%s1 + $0xa8] sm:$0xf]
      %v388 = vld [vmem:[%s1 + $0xac] sm:$0xf]
      %v389 = vld [vmem:[%s1 + $0xb0] sm:$0xf]
      %v390 = vld [vmem:[%s1 + $0xb4] sm:$0xf]
      %v391 = vld [vmem:[%s1 + $0xb8] sm:$0xf]
      %v392 = vld [vmem:[%s1 + $0xbc] sm:$0xf]
      %v393 = vld [vmem:[%s1 + $0xc0] sm:$0xf]
      %v394 = vld [vmem:[%s1 + $0xc4] sm:$0xf]
      %v395 = vld [vmem:[%s1 + $0xc8] sm:$0xf]
      %v396 = vld [vmem:[%s1 + $0xcc] sm:$0xf]
      %v397 = vld [vmem:[%s1 + $0xd0] sm:$0xf]
      %v398 = vld [vmem:[%s1 + $0xd4] sm:$0xf]
      %v399 = vld [vmem:[%s1 + $0xd8] sm:$0xf]
      %v400 = vld [vmem:[%s1 + $0xdc] sm:$0xf]
      %v401 = vld [vmem:[%s1 + $0xe0] sm:$0xf]
      %v402 = vld [vmem:[%s1 + $0xe4] sm:$0xf]
      %v403 = vld [vmem:[%s1 + $0xe8] sm:$0xf]
      %v404 = vld [vmem:[%s1 + $0xec] sm:$0xf]
      %v405 = vld [vmem:[%s1 + $0xf0] sm:$0xf]
      %v406 = vld [vmem:[%s1 + $0xf4] sm:$0xf]
      %v407 = vld [vmem:[%s1 + $0xf8] sm:$0xf]
      %v408 = vld [vmem:[%s1 + $0xfc] sm:$0xf]
      %v409 = vld [vmem:[%s1 + $0x100] sm:$0xf]
      %v410 = vld [vmem:[%s1 + $0x104] sm:$0xf]
      %v411 = vld [vmem:[%s1 + $0x108] sm:$0xf]
      %v412 = vld [vmem:[%s1 + $0x10c] sm:$0xf]
      %v413 = vld [vmem:[%s1 + $0x110] sm:$0xf]
      %v414 = vld [vmem:[%s1 + $0x114] sm:$0xf]
      %v415 = vld [vmem:[%s1 + $0x118] sm:$0xf]
      %v416 = vld [vmem:[%s1 + $0x11c] sm:$0xf]
      %v417 = vld [vmem:[%s1 + $0x120] sm:$0xf]
      %v418 = vld [vmem:[%s1 + $0x124] sm:$0xf]
      %v419 = vld [vmem:[%s1 + $0x128] sm:$0xf]
      %v420 = vld [vmem:[%s1 + $0x12c] sm:$0xf]
      %v421 = vld [vmem:[%s1 + $0x130] sm:$0xf]
      %v422 = vld [vmem:[%s1 + $0x134] sm:$0xf]
      %v423 = vld [vmem:[%s1 + $0x138] sm:$0xf]
      %v424 = vld [vmem:[%s1 + $0x13c] sm:$0xf]
      %v425 = vld [vmem:[%s1 + $0x140] sm:$0xf]
      %v426 = vld [vmem:[%s1 + $0x144] sm:$0xf]
      %v427 = vld [vmem:[%s1 + $0x148] sm:$0xf]
      %v428 = vld [vmem:[%s1 + $0x14c] sm:$0xf]
      %v429 = vld [vmem:[%s1 + $0x150] sm:$0xf]
      %v430 = vld [vmem:[%s1 + $0x154] sm:$0xf]
      %v431 = vld [vmem:[%s1 + $0x158] sm:$0xf]
      %v432 = vld [vmem:[%s1 + $0x15c] sm:$0xf]
      %v433 = vld [vmem:[%s1 + $0x160] sm:$0xf]
      %v434 = vld [vmem:[%s1 + $0x164] sm:$0xf]
      %v435 = vld [vmem:[%s1 + $0x168] sm:$0xf]
      %v436 = vld [vmem:[%s1 + $0x16c] sm:$0xf]
      %v437 = vld [vmem:[%s1 + $0x170] sm:$0xf]
      %v438 = vld [vmem:[%s1 + $0x174] sm:$0xf]
      %v439 = vld [vmem:[%s1 + $0x178] sm:$0xf]
      %v440 = vld [vmem:[%s1 + $0x17c] sm:$0xf]
      %v441 = vld [vmem:[%s1 + $0x180] sm:$0xf]
      %v442 = vld [vmem:[%s1 + $0x184] sm:$0xf]
      %v443 = vld [vmem:[%s1 + $0x188] sm:$0xf]
      %v444 = vld [vmem:[%s1 + $0x18c] sm:$0xf]
      %v445 = vld [vmem:[%s1 + $0x190] sm:$0xf]
      %v446 = vld [vmem:[%s1 + $0x194] sm:$0xf]
      %v447 = vld [vmem:[%s1 + $0x198] sm:$0xf]
      %v448 = vld [vmem:[%s1 + $0x19c] sm:$0xf]
      %v449 = vld [vmem:[%s1 + $0x1a0] sm:$0xf]
      %v450 = vld [vmem:[%s1 + $0x1a4] sm:$0xf]
      %v451 = vld [vmem:[%s1 + $0x1a8] sm:$0xf]
      %v452 = vld [vmem:[%s1 + $0x1ac] sm:$0xf]
      %v453 = vld [vmem:[%s1 + $0x1b0] sm:$0xf]
      %v454 = vld [vmem:[%s1 + $0x1b4] sm:$0xf]
      %v455 = vld [vmem:[%s1 + $0x1b8] sm:$0xf]
      %v456 = vld [vmem:[%s1 + $0x1bc] sm:$0xf]
      %v457 = vld [vmem:[%s1 + $0x1c0] sm:$0xf]
      %v458 = vld [vmem:[%s1 + $0x1c4] sm:$0xf]
      %v459 = vld [vmem:[%s1 + $0x1c8] sm:$0xf]
      %v460 = vld [vmem:[%s1 + $0x1cc] sm:$0xf]
      %v461 = vld [vmem:[%s1 + $0x1d0] sm:$0xf]
      %v462 = vld [vmem:[%s1 + $0x1d4] sm:$0xf]
      %v463 = vld [vmem:[%s1 + $0x1d8] sm:$0xf]
      %v464 = vld [vmem:[%s1 + $0x1dc] sm:$0xf]
      %v465 = vld [vmem:[%s1 + $0x1e0] sm:$0xf]
      %v466 = vld [vmem:[%s1 + $0x1e4] sm:$0xf]
      %v467 = vld [vmem:[%s1 + $0x1e8] sm:$0xf]
      %v468 = vld [vmem:[%s1 + $0x1ec] sm:$0xf]
      %v469 = vld [vmem:[%s1 + $0x1f0] sm:$0xf]
      %v470 = vld [vmem:[%s1 + $0x1f4] sm:$0xf]
      %v471 = vld [vmem:[%s1 + $0x1f8] sm:$0xf]
      %v472 = vld [vmem:[%s1 + $0x1fc] sm:$0xf]
      %v473 = vld [vmem:[%s1 + $0x200] sm:$0xf]
      %v474 = vld [vmem:[%s1 + $0x204] sm:$0xf]
      %v475 = vld [vmem:[%s1 + $0x208] sm:$0xf]
      %v476 = vld [vmem:[%s1 + $0x20c] sm:$0xf]
      %v477 = vld [vmem:[%s1 + $0x210] sm:$0xf]
      %v478 = vld [vmem:[%s1 + $0x214] sm:$0xf]
      %v479 = vld [vmem:[%s1 + $0x218] sm:$0xf]
      %v480 = vld [vmem:[%s1 + $0x21c] sm:$0xf]
      %v481 = vld [vmem:[%s1 + $0x220] sm:$0xf]
      %v482 = vld [vmem:[%s1 + $0x224] sm:$0xf]
      %v483 = vld [vmem:[%s1 + $0x228] sm:$0xf]
      %v484 = vld [vmem:[%s1 + $0x22c] sm:$0xf]
      %v485 = vld [vmem:[%s1 + $0x230] sm:$0xf]
      %v486 = vld [vmem:[%s1 + $0x234] sm:$0xf]
      %v487 = vld [vmem:[%s1 + $0x238] sm:$0xf]
      %v488 = vld [vmem:[%s1 + $0x23c] sm:$0xf]
      %v489 = vpack.c.bf16 0.0, 0.0
      %v490 = vpack.c.bf16 %v298, %v297
      %v491 = vpack.c.bf16 %v301, %v300
      %v492 = vpack.c.bf16 %v304, %v303
      %v493 = vpack.c.bf16 %v307, %v306
      %v494 = vpack.c.bf16 %v310, %v309
      %v495 = vpack.c.bf16 %v313, %v312
      %v496 = vpack.c.bf16 %v316, %v315
      %v497 = vpack.c.bf16 %v319, %v318
      %v498 = vpack.c.bf16 %v322, %v321
      %v499 = vpack.c.bf16 %v325, %v324
      %v500 = vpack.c.bf16 %v328, %v327
      %v501 = vpack.c.bf16 %v331, %v330
      %v502 = vpack.c.bf16 %v334, %v333
      %v503 = vpack.c.bf16 %v337, %v336
      %v504 = vpack.c.bf16 %v340, %v339
      %vm551 = vcmask 1046528
      %v552 = vrot.slane 0.0, 1
      %v553 = vsel %vm551, %v552, %v552
      %v554 = vrot.slane %v297, 1
      %v555 = vrot.slane %v298, 1
      %v556 = vsel %vm551, %v554, %v555
      %v557 = vrot.slane %v299, 1
      %v558 = vsel %vm551, %v555, %v557
      %v559 = vrot.slane %v300, 1
      %v560 = vrot.slane %v301, 1
      %v561 = vsel %vm551, %v559, %v560
      %v562 = vrot.slane %v302, 1
      %v563 = vsel %vm551, %v560, %v562
      %v564 = vrot.slane %v303, 1
      %v565 = vrot.slane %v304, 1
      %v566 = vsel %vm551, %v564, %v565
      %v567 = vrot.slane %v305, 1
      %v568 = vsel %vm551, %v565, %v567
      %v569 = vrot.slane %v306, 1
      %v570 = vrot.slane %v307, 1
      %v571 = vsel %vm551, %v569, %v570
      %v572 = vrot.slane %v308, 1
      %v573 = vsel %vm551, %v570, %v572
      %v574 = vrot.slane %v309, 1
      %v575 = vrot.slane %v310, 1
      %v576 = vsel %vm551, %v574, %v575
      %v577 = vrot.slane %v311, 1
      %v578 = vsel %vm551, %v575, %v577
      %v579 = vrot.slane %v312, 1
      %v580 = vrot.slane %v313, 1
      %v581 = vsel %vm551, %v579, %v580
      %v582 = vrot.slane %v314, 1
      %v583 = vsel %vm551, %v580, %v582
      %v584 = vrot.slane %v315, 1
      %v585 = vrot.slane %v316, 1
      %v586 = vsel %vm551, %v584, %v585
      %v587 = vrot.slane %v317, 1
      %v588 = vsel %vm551, %v585, %v587
      %v589 = vrot.slane %v318, 1
      %v590 = vrot.slane %v319, 1
      %v591 = vsel %vm551, %v589, %v590
      %v592 = vrot.slane %v320, 1
      %v593 = vsel %vm551, %v590, %v592
      %v594 = vrot.slane %v321, 1
      %v595 = vrot.slane %v322, 1
      %v596 = vsel %vm551, %v594, %v595
      %v597 = vrot.slane %v323, 1
      %v598 = vsel %vm551, %v595, %v597
      %v599 = vrot.slane %v324, 1
      %v600 = vrot.slane %v325, 1
      %v601 = vsel %vm551, %v599, %v600
      %v602 = vrot.slane %v326, 1
      %v603 = vsel %vm551, %v600, %v602
      %v604 = vrot.slane %v327, 1
      %v605 = vrot.slane %v328, 1
      %v606 = vsel %vm551, %v604, %v605
      %v607 = vrot.slane %v329, 1
      %v608 = vsel %vm551, %v605, %v607
      %v609 = vrot.slane %v330, 1
      %v610 = vrot.slane %v331, 1
      %v611 = vsel %vm551, %v609, %v610
      %v612 = vrot.slane %v332, 1
      %v613 = vsel %vm551, %v610, %v612
      %v614 = vrot.slane %v333, 1
      %v615 = vrot.slane %v334, 1
      %v616 = vsel %vm551, %v614, %v615
      %v617 = vrot.slane %v335, 1
      %v618 = vsel %vm551, %v615, %v617
      %v619 = vrot.slane %v336, 1
      %v620 = vrot.slane %v337, 1
      %v621 = vsel %vm551, %v619, %v620
      %v622 = vrot.slane %v338, 1
      %v623 = vsel %vm551, %v620, %v622
      %v624 = vrot.slane %v339, 1
      %v625 = vrot.slane %v340, 1
      %v626 = vsel %vm551, %v624, %v625
      %v627 = vrot.slane %v341, 1
      %v628 = vsel %vm551, %v625, %v627
      %v660 = vpack.c.bf16 %v553, %v553
      %v661 = vpack.c.bf16 %v558, %v556
      %v662 = vpack.c.bf16 %v563, %v561
      %v663 = vpack.c.bf16 %v568, %v566
      %v664 = vpack.c.bf16 %v573, %v571
      %v665 = vpack.c.bf16 %v578, %v576
      %v666 = vpack.c.bf16 %v583, %v581
      %v667 = vpack.c.bf16 %v588, %v586
      %v668 = vpack.c.bf16 %v593, %v591
      %v669 = vpack.c.bf16 %v598, %v596
      %v670 = vpack.c.bf16 %v603, %v601
      %v671 = vpack.c.bf16 %v608, %v606
      %v672 = vpack.c.bf16 %v613, %v611
      %v673 = vpack.c.bf16 %v618, %v616
      %v674 = vpack.c.bf16 %v623, %v621
      %v675 = vpack.c.bf16 %v628, %v626
      %v692 = vunpack.c.l.b16 %v361
      %v693 = vunpack.c.l.b16 %v362
      %v694 = vunpack.c.l.b16 %v363
      %v695 = vunpack.c.l.b16 %v364
      %v696 = vunpack.c.l.b16 %v365
      %v697 = vunpack.c.l.b16 %v366
      %v698 = vunpack.c.l.b16 %v367
      %v699 = vunpack.c.l.b16 %v368
      %v700 = vunpack.c.l.b16 %v369
      %v701 = vunpack.c.l.b16 %v370
      %v702 = vunpack.c.l.b16 %v371
      %v703 = vunpack.c.l.b16 %v372
      %v704 = vunpack.c.l.b16 %v373
      %v705 = vunpack.c.l.b16 %v374
      %v706 = vunpack.c.l.b16 %v375
      %v707 = vunpack.c.l.b16 %v376
      %v708 = vpack.c.b16 %v693, %v692
      %v709 = vpack.c.b16 %v695, %v694
      %v710 = vpack.c.b16 %v697, %v696
      %v711 = vpack.c.b16 %v699, %v698
      %v712 = vpack.c.b16 %v701, %v700
      %v713 = vpack.c.b16 %v703, %v702
      %v714 = vpack.c.b16 %v705, %v704
      %v715 = vpack.c.b16 %v707, %v706
      %724 = vmatprep.subr.bf16.mxu0 0
      %725 = vmatpush1.bf16.msra.mxu0 %v708
      %726 = vmatprep.subr.bf16.mxu0 0
      %727 = vmatpush1.bf16.msra.mxu0 %v709
      %728 = vmatprep.subr.bf16.mxu0 0
      %729 = vmatpush1.bf16.msra.mxu0 %v710
      %730 = vmatprep.subr.bf16.mxu0 0
      %731 = vmatpush1.bf16.msra.mxu0 %v711
      %732 = vmatprep.subr.bf16.mxu0 0
      %733 = vmatpush1.bf16.msra.mxu0 %v712
      %734 = vmatprep.subr.bf16.mxu0 0
      %735 = vmatpush1.bf16.msra.mxu0 %v713
      %736 = vmatprep.subr.bf16.mxu0 0
      %737 = vmatpush1.bf16.msra.mxu0 %v714
      %738 = vmatprep.subr.bf16.mxu0 0
      %739 = vmatpush1.bf16.msra.mxu0 %v715
      %740 = vmatprep.subr.bf16.mxu0 0
      %741 = vmatpush1.bf16.msra.mxu0 0
      %742 = vmatprep.subr.bf16.mxu0 0
      %743 = vmatpush1.bf16.msra.mxu0 0
      %744 = vmatprep.subr.bf16.mxu0 0
      %745 = vmatpush1.bf16.msra.mxu0 0
      %746 = vmatprep.subr.bf16.mxu0 0
      %747 = vmatpush1.bf16.msra.mxu0 0
      %748 = vmatprep.subr.bf16.mxu0 0
      %749 = vmatpush1.bf16.msra.mxu0 0
      %750 = vmatprep.subr.bf16.mxu0 0
      %751 = vmatpush1.bf16.msra.mxu0 0
      %752 = vmatprep.subr.bf16.mxu0 0
      %753 = vmatpush1.bf16.msra.mxu0 0
      %754 = vmatprep.subr.bf16.mxu0 0
      %755 = vmatpush1.bf16.msra.mxu0 0
      %756 = vmatprep.mubr.bf16.mxu0 0
      %757 = vmatmul.mubr.bf16.gmra.mrb[0].mxu0 %v660
      %v758 = vpop.f32.mrb[0].mxu0
      %v759 = vadd.f32 0.0, %v758
      %v760 = vpop.f32.mrb[0].mxu0
      %v761 = vpop.f32.mrb[0].mxu0
      %v762 = vadd.f32 0.0, %v761
      %v763 = vpop.f32.mrb[0].mxu0
      %764 = vmatprep.mubr.bf16.mxu0 0
      %765 = vmatmul.mubr.bf16.gmra.mrb[0].mxu0 %v661
      %v766 = vpop.f32.mrb[0].mxu0
      %v767 = vadd.f32 0.0, %v766
      %v768 = vpop.f32.mrb[0].mxu0
      %v769 = vpop.f32.mrb[0].mxu0
      %v770 = vadd.f32 0.0, %v769
      %v771 = vpop.f32.mrb[0].mxu0
      %772 = vmatprep.mubr.bf16.mxu0 0
      %773 = vmatmul.mubr.bf16.gmra.mrb[0].mxu0 %v662
      %v774 = vpop.f32.mrb[0].mxu0
      %v775 = vadd.f32 0.0, %v774
      %v776 = vpop.f32.mrb[0].mxu0
      %v777 = vpop.f32.mrb[0].mxu0
      %v778 = vadd.f32 0.0, %v777
      %v779 = vpop.f32.mrb[0].mxu0
      %780 = vmatprep.mubr.bf16.mxu0 0
      %781 = vmatmul.mubr.bf16.gmra.mrb[0].mxu0 %v663
      %v782 = vpop.f32.mrb[0].mxu0
      %v783 = vadd.f32 0.0, %v782
      %v784 = vpop.f32.mrb[0].mxu0
      %v785 = vpop.f32.mrb[0].mxu0
      %v786 = vadd.f32 0.0, %v785
      %v787 = vpop.f32.mrb[0].mxu0
      %788 = vmatprep.mubr.bf16.mxu0 0
      %789 = vmatmul.mubr.bf16.gmra.mrb[0].mxu0 %v664
      %v790 = vpop.f32.mrb[0].mxu0
      %v791 = vadd.f32 0.0, %v790
      %v792 = vpop.f32.mrb[0].mxu0
      %v793 = vpop.f32.mrb[0].mxu0
      %v794 = vadd.f32 0.0, %v793
      %v795 = vpop.f32.mrb[0].mxu0
      %796 = vmatprep.mubr.bf16.mxu0 0
      %797 = vmatmul.mubr.bf16.gmra.mrb[0].mxu0 %v665
      %v798 = vpop.f32.mrb[0].mxu0
      %v799 = vadd.f32 0.0, %v798
      %v800 = vpop.f32.mrb[0].mxu0
      %v801 = vpop.f32.mrb[0].mxu0
      %v802 = vadd.f32 0.0, %v801
      %v803 = vpop.f32.mrb[0].mxu0
      %804 = vmatprep.mubr.bf16.mxu0 0
      %805 = vmatmul.mubr.bf16.gmra.mrb[0].mxu0 %v666
      %v806 = vpop.f32.mrb[0].mxu0
      %v807 = vadd.f32 0.0, %v806
      %v808 = vpop.f32.mrb[0].mxu0
      %v809 = vpop.f32.mrb[0].mxu0
      %v810 = vadd.f32 0.0, %v809
      %v811 = vpop.f32.mrb[0].mxu0
      %812 = vmatprep.mubr.bf16.mxu0 0
      %813 = vmatmul.mubr.bf16.gmra.mrb[0].mxu0 %v667
      %v814 = vpop.f32.mrb[0].mxu0
      %v815 = vadd.f32 0.0, %v814
      %v816 = vpop.f32.mrb[0].mxu0
      %v817 = vpop.f32.mrb[0].mxu0
      %v818 = vadd.f32 0.0, %v817
      %v819 = vpop.f32.mrb[0].mxu0
      %820 = vmatprep.mubr.bf16.mxu0 0
      %821 = vmatmul.mubr.bf16.gmra.mrb[0].mxu0 %v668
      %v822 = vpop.f32.mrb[0].mxu0
      %v823 = vadd.f32 0.0, %v822
      %v824 = vpop.f32.mrb[0].mxu0
      %v825 = vpop.f32.mrb[0].mxu0
      %v826 = vadd.f32 0.0, %v825
      %v827 = vpop.f32.mrb[0].mxu0
      %828 = vmatprep.mubr.bf16.mxu0 0
      %829 = vmatmul.mubr.bf16.gmra.mrb[0].mxu0 %v669
      %v830 = vpop.f32.mrb[0].mxu0
      %v831 = vadd.f32 0.0, %v830
      %v832 = vpop.f32.mrb[0].mxu0
      %v833 = vpop.f32.mrb[0].mxu0
      %v834 = vadd.f32 0.0, %v833
      %v835 = vpop.f32.mrb[0].mxu0
      %836 = vmatprep.mubr.bf16.mxu0 0
      %837 = vmatmul.mubr.bf16.gmra.mrb[0].mxu0 %v670
      %v838 = vpop.f32.mrb[0].mxu0
      %v839 = vadd.f32 0.0, %v838
      %v840 = vpop.f32.mrb[0].mxu0
      %v841 = vpop.f32.mrb[0].mxu0
      %v842 = vadd.f32 0.0, %v841
      %v843 = vpop.f32.mrb[0].mxu0
      %844 = vmatprep.mubr.bf16.mxu0 0
      %845 = vmatmul.mubr.bf16.gmra.mrb[0].mxu0 %v671
      %v846 = vpop.f32.mrb[0].mxu0
      %v847 = vadd.f32 0.0, %v846
      %v848 = vpop.f32.mrb[0].mxu0
      %v849 = vpop.f32.mrb[0].mxu0
      %v850 = vadd.f32 0.0, %v849
      %v851 = vpop.f32.mrb[0].mxu0
      %852 = vmatprep.mubr.bf16.mxu0 0
      %853 = vmatmul.mubr.bf16.gmra.mrb[0].mxu0 %v672
      %v854 = vpop.f32.mrb[0].mxu0
      %v855 = vadd.f32 0.0, %v854
      %v856 = vpop.f32.mrb[0].mxu0
      %v857 = vpop.f32.mrb[0].mxu0
      %v858 = vadd.f32 0.0, %v857
      %v859 = vpop.f32.mrb[0].mxu0
      %860 = vmatprep.mubr.bf16.mxu0 0
      %861 = vmatmul.mubr.bf16.gmra.mrb[0].mxu0 %v673
      %v862 = vpop.f32.mrb[0].mxu0
      %v863 = vadd.f32 0.0, %v862
      %v864 = vpop.f32.mrb[0].mxu0
      %v865 = vpop.f32.mrb[0].mxu0
      %v866 = vadd.f32 0.0, %v865
      %v867 = vpop.f32.mrb[0].mxu0
      %868 = vmatprep.mubr.bf16.mxu0 0
      %869 = vmatmul.mubr.bf16.gmra.mrb[0].mxu0 %v674
      %v870 = vpop.f32.mrb[0].mxu0
      %v871 = vadd.f32 0.0, %v870
      %v872 = vpop.f32.mrb[0].mxu0
      %v873 = vpop.f32.mrb[0].mxu0
      %v874 = vadd.f32 0.0, %v873
      %v875 = vpop.f32.mrb[0].mxu0
      %876 = vmatprep.mubr.bf16.mxu0 0
      %877 = vmatmul.mubr.bf16.gmra.mrb[0].mxu0 %v675
      %v878 = vpop.f32.mrb[0].mxu0
      %v879 = vadd.f32 0.0, %v878
      %v880 = vpop.f32.mrb[0].mxu0
      %v881 = vpop.f32.mrb[0].mxu0
      %v882 = vadd.f32 0.0, %v881
      %v883 = vpop.f32.mrb[0].mxu0
      %884 = vdwg.mxu0
      %v901 = vunpack.c.l.b16 %v345
      %v902 = vunpack.c.l.b16 %v346
      %v903 = vunpack.c.l.b16 %v347
      %v904 = vunpack.c.l.b16 %v348
      %v905 = vunpack.c.l.b16 %v349
      %v906 = vunpack.c.l.b16 %v350
      %v907 = vunpack.c.l.b16 %v351
      %v908 = vunpack.c.l.b16 %v352
      %v909 = vunpack.c.l.b16 %v353
      %v910 = vunpack.c.l.b16 %v354
      %v911 = vunpack.c.l.b16 %v355
      %v912 = vunpack.c.l.b16 %v356
      %v913 = vunpack.c.l.b16 %v357
      %v914 = vunpack.c.l.b16 %v358
      %v915 = vunpack.c.l.b16 %v359
      %v916 = vunpack.c.l.b16 %v360
      %v917 = vpack.c.b16 %v902, %v901
      %v918 = vpack.c.b16 %v904, %v903
      %v919 = vpack.c.b16 %v906, %v905
      %v920 = vpack.c.b16 %v908, %v907
      %v921 = vpack.c.b16 %v910, %v909
      %v922 = vpack.c.b16 %v912, %v911
      %v923 = vpack.c.b16 %v914, %v913
      %v924 = vpack.c.b16 %v916, %v915
      %933 = vmatprep.subr.bf16.mxu0 0
      %934 = vmatpush1.bf16.msra.mxu0 %v917
      %935 = vmatprep.subr.bf16.mxu0 0
      %936 = vmatpush1.bf16.msra.mxu0 %v918
      %937 = vmatprep.subr.bf16.mxu0 0
      %938 = vmatpush1.bf16.msra.mxu0 %v919
      %939 = vmatprep.subr.bf16.mxu0 0
      %940 = vmatpush1.bf16.msra.mxu0 %v920
      %941 = vmatprep.subr.bf16.mxu0 0
      %942 = vmatpush1.bf16.msra.mxu0 %v921
      %943 = vmatprep.subr.bf16.mxu0 0
      %944 = vmatpush1.bf16.msra.mxu0 %v922
      %945 = vmatprep.subr.bf16.mxu0 0
      %946 = vmatpush1.bf16.msra.mxu0 %v923
      %947 = vmatprep.subr.bf16.mxu0 0
      %948 = vmatpush1.bf16.msra.mxu0 %v924
      %949 = vmatprep.subr.bf16.mxu0 0
      %950 = vmatpush1.bf16.msra.mxu0 0
      %951 = vmatprep.subr.bf16.mxu0 0
      %952 = vmatpush1.bf16.msra.mxu0 0
      %953 = vmatprep.subr.bf16.mxu0 0
      %954 = vmatpush1.bf16.msra.mxu0 0
      %955 = vmatprep.subr.bf16.mxu0 0
      %956 = vmatpush1.bf16.msra.mxu0 0
      %957 = vmatprep.subr.bf16.mxu0 0
      %958 = vmatpush1.bf16.msra.mxu0 0
      %959 = vmatprep.subr.bf16.mxu0 0
      %960 = vmatpush1.bf16.msra.mxu0 0
      %961 = vmatprep.subr.bf16.mxu0 0
      %962 = vmatpush1.bf16.msra.mxu0 0
      %963 = vmatprep.subr.bf16.mxu0 0
      %964 = vmatpush1.bf16.msra.mxu0 0
      %965 = vmatprep.mubr.bf16.mxu0 0
      %966 = vmatmul.mubr.bf16.gmra.mrb[0].mxu0 %v489
      %v967 = vpop.f32.mrb[0].mxu0
      %v968 = vadd.f32 %v759, %v967
      %v969 = vpop.f32.mrb[0].mxu0
      %v970 = vpop.f32.mrb[0].mxu0
      %v971 = vadd.f32 %v762, %v970
      %v972 = vpop.f32.mrb[0].mxu0
      %973 = vmatprep.mubr.bf16.mxu0 0
      %974 = vmatmul.mubr.bf16.gmra.mrb[0].mxu0 %v490
      %v975 = vpop.f32.mrb[0].mxu0
      %v976 = vadd.f32 %v767, %v975
      %v977 = vpop.f32.mrb[0].mxu0
      %v978 = vpop.f32.mrb[0].mxu0
      %v979 = vadd.f32 %v770, %v978
      %v980 = vpop.f32.mrb[0].mxu0
      %981 = vmatprep.mubr.bf16.mxu0 0
      %982 = vmatmul.mubr.bf16.gmra.mrb[0].mxu0 %v491
      %v983 = vpop.f32.mrb[0].mxu0
      %v984 = vadd.f32 %v775, %v983
      %v985 = vpop.f32.mrb[0].mxu0
      %v986 = vpop.f32.mrb[0].mxu0
      %v987 = vadd.f32 %v778, %v986
      %v988 = vpop.f32.mrb[0].mxu0
      %989 = vmatprep.mubr.bf16.mxu0 0
      %990 = vmatmul.mubr.bf16.gmra.mrb[0].mxu0 %v492
      %v991 = vpop.f32.mrb[0].mxu0
      %v992 = vadd.f32 %v783, %v991
      %v993 = vpop.f32.mrb[0].mxu0
      %v994 = vpop.f32.mrb[0].mxu0
      %v995 = vadd.f32 %v786, %v994
      %v996 = vpop.f32.mrb[0].mxu0
      %997 = vmatprep.mubr.bf16.mxu0 0
      %998 = vmatmul.mubr.bf16.gmra.mrb[0].mxu0 %v493
      %v999 = vpop.f32.mrb[0].mxu0
      %v1000 = vadd.f32 %v791, %v999
      %v1001 = vpop.f32.mrb[0].mxu0
      %v1002 = vpop.f32.mrb[0].mxu0
      %v1003 = vadd.f32 %v794, %v1002
      %v1004 = vpop.f32.mrb[0].mxu0
      %1005 = vmatprep.mubr.bf16.mxu0 0
      %1006 = vmatmul.mubr.bf16.gmra.mrb[0].mxu0 %v494
      %v1007 = vpop.f32.mrb[0].mxu0
      %v1008 = vadd.f32 %v799, %v1007
      %v1009 = vpop.f32.mrb[0].mxu0
      %v1010 = vpop.f32.mrb[0].mxu0
      %v1011 = vadd.f32 %v802, %v1010
      %v1012 = vpop.f32.mrb[0].mxu0
      %1013 = vmatprep.mubr.bf16.mxu0 0
      %1014 = vmatmul.mubr.bf16.gmra.mrb[0].mxu0 %v495
      %v1015 = vpop.f32.mrb[0].mxu0
      %v1016 = vadd.f32 %v807, %v1015
      %v1017 = vpop.f32.mrb[0].mxu0
      %v1018 = vpop.f32.mrb[0].mxu0
      %v1019 = vadd.f32 %v810, %v1018
      %v1020 = vpop.f32.mrb[0].mxu0
      %1021 = vmatprep.mubr.bf16.mxu0 0
      %1022 = vmatmul.mubr.bf16.gmra.mrb[0].mxu0 %v496
      %v1023 = vpop.f32.mrb[0].mxu0
      %v1024 = vadd.f32 %v815, %v1023
      %v1025 = vpop.f32.mrb[0].mxu0
      %v1026 = vpop.f32.mrb[0].mxu0
      %v1027 = vadd.f32 %v818, %v1026
      %v1028 = vpop.f32.mrb[0].mxu0
      %1029 = vmatprep.mubr.bf16.mxu0 0
      %1030 = vmatmul.mubr.bf16.gmra.mrb[0].mxu0 %v497
      %v1031 = vpop.f32.mrb[0].mxu0
      %v1032 = vadd.f32 %v823, %v1031
      %v1033 = vpop.f32.mrb[0].mxu0
      %v1034 = vpop.f32.mrb[0].mxu0
      %v1035 = vadd.f32 %v826, %v1034
      %v1036 = vpop.f32.mrb[0].mxu0
      %1037 = vmatprep.mubr.bf16.mxu0 0
      %1038 = vmatmul.mubr.bf16.gmra.mrb[0].mxu0 %v498
      %v1039 = vpop.f32.mrb[0].mxu0
      %v1040 = vadd.f32 %v831, %v1039
      %v1041 = vpop.f32.mrb[0].mxu0
      %v1042 = vpop.f32.mrb[0].mxu0
      %v1043 = vadd.f32 %v834, %v1042
      %v1044 = vpop.f32.mrb[0].mxu0
      %1045 = vmatprep.mubr.bf16.mxu0 0
      %1046 = vmatmul.mubr.bf16.gmra.mrb[0].mxu0 %v499
      %v1047 = vpop.f32.mrb[0].mxu0
      %v1048 = vadd.f32 %v839, %v1047
      %v1049 = vpop.f32.mrb[0].mxu0
      %v1050 = vpop.f32.mrb[0].mxu0
      %v1051 = vadd.f32 %v842, %v1050
      %v1052 = vpop.f32.mrb[0].mxu0
      %1053 = vmatprep.mubr.bf16.mxu0 0
      %1054 = vmatmul.mubr.bf16.gmra.mrb[0].mxu0 %v500
      %v1055 = vpop.f32.mrb[0].mxu0
      %v1056 = vadd.f32 %v847, %v1055
      %v1057 = vpop.f32.mrb[0].mxu0
      %v1058 = vpop.f32.mrb[0].mxu0
      %v1059 = vadd.f32 %v850, %v1058
      %v1060 = vpop.f32.mrb[0].mxu0
      %1061 = vmatprep.mubr.bf16.mxu0 0
      %1062 = vmatmul.mubr.bf16.gmra.mrb[0].mxu0 %v501
      %v1063 = vpop.f32.mrb[0].mxu0
      %v1064 = vadd.f32 %v855, %v1063
      %v1065 = vpop.f32.mrb[0].mxu0
      %v1066 = vpop.f32.mrb[0].mxu0
      %v1067 = vadd.f32 %v858, %v1066
      %v1068 = vpop.f32.mrb[0].mxu0
      %1069 = vmatprep.mubr.bf16.mxu0 0
      %1070 = vmatmul.mubr.bf16.gmra.mrb[0].mxu0 %v502
      %v1071 = vpop.f32.mrb[0].mxu0
      %v1072 = vadd.f32 %v863, %v1071
      %v1073 = vpop.f32.mrb[0].mxu0
      %v1074 = vpop.f32.mrb[0].mxu0
      %v1075 = vadd.f32 %v866, %v1074
      %v1076 = vpop.f32.mrb[0].mxu0
      %1077 = vmatprep.mubr.bf16.mxu0 0
      %1078 = vmatmul.mubr.bf16.gmra.mrb[0].mxu0 %v503
      %v1079 = vpop.f32.mrb[0].mxu0
      %v1080 = vadd.f32 %v871, %v1079
      %v1081 = vpop.f32.mrb[0].mxu0
      %v1082 = vpop.f32.mrb[0].mxu0
      %v1083 = vadd.f32 %v874, %v1082
      %v1084 = vpop.f32.mrb[0].mxu0
      %1085 = vmatprep.mubr.bf16.mxu0 0
      %1086 = vmatmul.mubr.bf16.gmra.mrb[0].mxu0 %v504
      %v1087 = vpop.f32.mrb[0].mxu0
      %v1088 = vadd.f32 %v879, %v1087
      %v1089 = vpop.f32.mrb[0].mxu0
      %v1090 = vpop.f32.mrb[0].mxu0
      %v1091 = vadd.f32 %v882, %v1090
      %v1092 = vpop.f32.mrb[0].mxu0
      %1093 = vdwg.mxu0
      %vm1094 = vcmask 1045504
      %v1095 = vrot.slane 0.0, 2
      %v1096 = vsel %vm1094, %v1095, %v1095
      %v1097 = vrot.slane %v297, 2
      %v1098 = vrot.slane %v298, 2
      %v1099 = vsel %vm1094, %v1097, %v1098
      %v1100 = vrot.slane %v299, 2
      %v1101 = vsel %vm1094, %v1098, %v1100
      %v1102 = vrot.slane %v300, 2
      %v1103 = vrot.slane %v301, 2
      %v1104 = vsel %vm1094, %v1102, %v1103
      %v1105 = vrot.slane %v302, 2
      %v1106 = vsel %vm1094, %v1103, %v1105
      %v1107 = vrot.slane %v303, 2
      %v1108 = vrot.slane %v304, 2
      %v1109 = vsel %vm1094, %v1107, %v1108
      %v1110 = vrot.slane %v305, 2
      %v1111 = vsel %vm1094, %v1108, %v1110
      %v1112 = vrot.slane %v306, 2
      %v1113 = vrot.slane %v307, 2
      %v1114 = vsel %vm1094, %v1112, %v1113
      %v1115 = vrot.slane %v308, 2
      %v1116 = vsel %vm1094, %v1113, %v1115
      %v1117 = vrot.slane %v309, 2
      %v1118 = vrot.slane %v310, 2
      %v1119 = vsel %vm1094, %v1117, %v1118
      %v1120 = vrot.slane %v311, 2
      %v1121 = vsel %vm1094, %v1118, %v1120
      %v1122 = vrot.slane %v312, 2
      %v1123 = vrot.slane %v313, 2
      %v1124 = vsel %vm1094, %v1122, %v1123
      %v1125 = vrot.slane %v314, 2
      %v1126 = vsel %vm1094, %v1123, %v1125
      %v1127 = vrot.slane %v315, 2
      %v1128 = vrot.slane %v316, 2
      %v1129 = vsel %vm1094, %v1127, %v1128
      %v1130 = vrot.slane %v317, 2
      %v1131 = vsel %vm1094, %v1128, %v1130
      %v1132 = vrot.slane %v318, 2
      %v1133 = vrot.slane %v319, 2
      %v1134 = vsel %vm1094, %v1132, %v1133
      %v1135 = vrot.slane %v320, 2
      %v1136 = vsel %vm1094, %v1133, %v1135
      %v1137 = vrot.slane %v321, 2
      %v1138 = vrot.slane %v322, 2
      %v1139 = vsel %vm1094, %v1137, %v1138
      %v1140 = vrot.slane %v323, 2
      %v1141 = vsel %vm1094, %v1138, %v1140
      %v1142 = vrot.slane %v324, 2
      %v1143 = vrot.slane %v325, 2
      %v1144 = vsel %vm1094, %v1142, %v1143
      %v1145 = vrot.slane %v326, 2
      %v1146 = vsel %vm1094, %v1143, %v1145
      %v1147 = vrot.slane %v327, 2
      %v1148 = vrot.slane %v328, 2
      %v1149 = vsel %vm1094, %v1147, %v1148
      %v1150 = vrot.slane %v329, 2
      %v1151 = vsel %vm1094, %v1148, %v1150
      %v1152 = vrot.slane %v330, 2
      %v1153 = vrot.slane %v331, 2
      %v1154 = vsel %vm1094, %v1152, %v1153
      %v1155 = vrot.slane %v332, 2
      %v1156 = vsel %vm1094, %v1153, %v1155
      %v1157 = vrot.slane %v333, 2
      %v1158 = vrot.slane %v334, 2
      %v1159 = vsel %vm1094, %v1157, %v1158
      %v1160 = vrot.slane %v335, 2
      %v1161 = vsel %vm1094, %v1158, %v1160
      %v1162 = vrot.slane %v336, 2
      %v1163 = vrot.slane %v337, 2
      %v1164 = vsel %vm1094, %v1162, %v1163
      %v1165 = vrot.slane %v338, 2
      %v1166 = vsel %vm1094, %v1163, %v1165
      %v1167 = vrot.slane %v339, 2
      %v1168 = vrot.slane %v340, 2
      %v1169 = vsel %vm1094, %v1167, %v1168
      %v1170 = vrot.slane %v341, 2
      %v1171 = vsel %vm1094, %v1168, %v1170
      %v1203 = vpack.c.bf16 %v1096, %v1096
      %v1204 = vpack.c.bf16 %v1101, %v1099
      %v1205 = vpack.c.bf16 %v1106, %v1104
      %v1206 = vpack.c.bf16 %v1111, %v1109
      %v1207 = vpack.c.bf16 %v1116, %v1114
      %v1208 = vpack.c.bf16 %v1121, %v1119
      %v1209 = vpack.c.bf16 %v1126, %v1124
      %v1210 = vpack.c.bf16 %v1131, %v1129
      %v1211 = vpack.c.bf16 %v1136, %v1134
      %v1212 = vpack.c.bf16 %v1141, %v1139
      %v1213 = vpack.c.bf16 %v1146, %v1144
      %v1214 = vpack.c.bf16 %v1151, %v1149
      %v1215 = vpack.c.bf16 %v1156, %v1154
      %v1216 = vpack.c.bf16 %v1161, %v1159
      %v1217 = vpack.c.bf16 %v1166, %v1164
      %v1218 = vpack.c.bf16 %v1171, %v1169
      %v1235 = vunpack.c.l.b16 %v377
      %v1236 = vunpack.c.l.b16 %v378
      %v1237 = vunpack.c.l.b16 %v379
      %v1238 = vunpack.c.l.b16 %v380
      %v1239 = vunpack.c.l.b16 %v381
      %v1240 = vunpack.c.l.b16 %v382
      %v1241 = vunpack.c.l.b16 %v383
      %v1242 = vunpack.c.l.b16 %v384
      %v1243 = vunpack.c.l.b16 %v385
      %v1244 = vunpack.c.l.b16 %v386
      %v1245 = vunpack.c.l.b16 %v387
      %v1246 = vunpack.c.l.b16 %v388
      %v1247 = vunpack.c.l.b16 %v389
      %v1248 = vunpack.c.l.b16 %v390
      %v1249 = vunpack.c.l.b16 %v391
      %v1250 = vunpack.c.l.b16 %v392
      %v1251 = vpack.c.b16 %v1236, %v1235
      %v1252 = vpack.c.b16 %v1238, %v1237
      %v1253 = vpack.c.b16 %v1240, %v1239
      %v1254 = vpack.c.b16 %v1242, %v1241
      %v1255 = vpack.c.b16 %v1244, %v1243
      %v1256 = vpack.c.b16 %v1246, %v1245
      %v1257 = vpack.c.b16 %v1248, %v1247
      %v1258 = vpack.c.b16 %v1250, %v1249
      %1267 = vmatprep.subr.bf16.mxu0 0
      %1268 = vmatpush1.bf16.msra.mxu0 %v1251
      %1269 = vmatprep.subr.bf16.mxu0 0
      %1270 = vmatpush1.bf16.msra.mxu0 %v1252
      %1271 = vmatprep.subr.bf16.mxu0 0
      %1272 = vmatpush1.bf16.msra.mxu0 %v1253
      %1273 = vmatprep.subr.bf16.mxu0 0
      %1274 = vmatpush1.bf16.msra.mxu0 %v1254
      %1275 = vmatprep.subr.bf16.mxu0 0
      %1276 = vmatpush1.bf16.msra.mxu0 %v1255
      %1277 = vmatprep.subr.bf16.mxu0 0
      %1278 = vmatpush1.bf16.msra.mxu0 %v1256
      %1279 = vmatprep.subr.bf16.mxu0 0
      %1280 = vmatpush1.bf16.msra.mxu0 %v1257
      %1281 = vmatprep.subr.bf16.mxu0 0
      %1282 = vmatpush1.bf16.msra.mxu0 %v1258
      %1283 = vmatprep.subr.bf16.mxu0 0
      %1284 = vmatpush1.bf16.msra.mxu0 0
      %1285 = vmatprep.subr.bf16.mxu0 0
      %1286 = vmatpush1.bf16.msra.mxu0 0
      %1287 = vmatprep.subr.bf16.mxu0 0
      %1288 = vmatpush1.bf16.msra.mxu0 0
      %1289 = vmatprep.subr.bf16.mxu0 0
      %1290 = vmatpush1.bf16.msra.mxu0 0
      %1291 = vmatprep.subr.bf16.mxu0 0
      %1292 = vmatpush1.bf16.msra.mxu0 0
      %1293 = vmatprep.subr.bf16.mxu0 0
      %1294 = vmatpush1.bf16.msra.mxu0 0
      %1295 = vmatprep.subr.bf16.mxu0 0
      %1296 = vmatpush1.bf16.msra.mxu0 0
      %1297 = vmatprep.subr.bf16.mxu0 0
      %1298 = vmatpush1.bf16.msra.mxu0 0
      %1299 = vmatprep.mubr.bf16.mxu0 0
      %1300 = vmatmul.mubr.bf16.gmra.mrb[0].mxu0 %v1203
      %v1301 = vpop.f32.mrb[0].mxu0
      %v1302 = vadd.f32 0.0, %v1301
      %v1303 = vpop.f32.mrb[0].mxu0
      %v1304 = vpop.f32.mrb[0].mxu0
      %v1305 = vadd.f32 0.0, %v1304
      %v1306 = vpop.f32.mrb[0].mxu0
      %1307 = vmatprep.mubr.bf16.mxu0 0
      %1308 = vmatmul.mubr.bf16.gmra.mrb[0].mxu0 %v1204
      %v1309 = vpop.f32.mrb[0].mxu0
      %v1310 = vadd.f32 0.0, %v1309
      %v1311 = vpop.f32.mrb[0].mxu0
      %v1312 = vpop.f32.mrb[0].mxu0
      %v1313 = vadd.f32 0.0, %v1312
      %v1314 = vpop.f32.mrb[0].mxu0
      %1315 = vmatprep.mubr.bf16.mxu0 0
      %1316 = vmatmul.mubr.bf16.gmra.mrb[0].mxu0 %v1205
      %v1317 = vpop.f32.mrb[0].mxu0
      %v1318 = vadd.f32 0.0, %v1317
      %v1319 = vpop.f32.mrb[0].mxu0
      %v1320 = vpop.f32.mrb[0].mxu0
      %v1321 = vadd.f32 0.0, %v1320
      %v1322 = vpop.f32.mrb[0].mxu0
      %1323 = vmatprep.mubr.bf16.mxu0 0
      %1324 = vmatmul.mubr.bf16.gmra.mrb[0].mxu0 %v1206
      %v1325 = vpop.f32.mrb[0].mxu0
      %v1326 = vadd.f32 0.0, %v1325
      %v1327 = vpop.f32.mrb[0].mxu0
      %v1328 = vpop.f32.mrb[0].mxu0
      %v1329 = vadd.f32 0.0, %v1328
      %v1330 = vpop.f32.mrb[0].mxu0
      %1331 = vmatprep.mubr.bf16.mxu0 0
      %1332 = vmatmul.mubr.bf16.gmra.mrb[0].mxu0 %v1207
      %v1333 = vpop.f32.mrb[0].mxu0
      %v1334 = vadd.f32 0.0, %v1333
      %v1335 = vpop.f32.mrb[0].mxu0
      %v1336 = vpop.f32.mrb[0].mxu0
      %v1337 = vadd.f32 0.0, %v1336
      %v1338 = vpop.f32.mrb[0].mxu0
      %1339 = vmatprep.mubr.bf16.mxu0 0
      %1340 = vmatmul.mubr.bf16.gmra.mrb[0].mxu0 %v1208
      %v1341 = vpop.f32.mrb[0].mxu0
      %v1342 = vadd.f32 0.0, %v1341
      %v1343 = vpop.f32.mrb[0].mxu0
      %v1344 = vpop.f32.mrb[0].mxu0
      %v1345 = vadd.f32 0.0, %v1344
      %v1346 = vpop.f32.mrb[0].mxu0
      %1347 = vmatprep.mubr.bf16.mxu0 0
      %1348 = vmatmul.mubr.bf16.gmra.mrb[0].mxu0 %v1209
      %v1349 = vpop.f32.mrb[0].mxu0
      %v1350 = vadd.f32 0.0, %v1349
      %v1351 = vpop.f32.mrb[0].mxu0
      %v1352 = vpop.f32.mrb[0].mxu0
      %v1353 = vadd.f32 0.0, %v1352
      %v1354 = vpop.f32.mrb[0].mxu0
      %1355 = vmatprep.mubr.bf16.mxu0 0
      %1356 = vmatmul.mubr.bf16.gmra.mrb[0].mxu0 %v1210
      %v1357 = vpop.f32.mrb[0].mxu0
      %v1358 = vadd.f32 0.0, %v1357
      %v1359 = vpop.f32.mrb[0].mxu0
      %v1360 = vpop.f32.mrb[0].mxu0
      %v1361 = vadd.f32 0.0, %v1360
      %v1362 = vpop.f32.mrb[0].mxu0
      %1363 = vmatprep.mubr.bf16.mxu0 0
      %1364 = vmatmul.mubr.bf16.gmra.mrb[0].mxu0 %v1211
      %v1365 = vpop.f32.mrb[0].mxu0
      %v1366 = vadd.f32 0.0, %v1365
      %v1367 = vpop.f32.mrb[0].mxu0
      %v1368 = vpop.f32.mrb[0].mxu0
      %v1369 = vadd.f32 0.0, %v1368
      %v1370 = vpop.f32.mrb[0].mxu0
      %1371 = vmatprep.mubr.bf16.mxu0 0
      %1372 = vmatmul.mubr.bf16.gmra.mrb[0].mxu0 %v1212
      %v1373 = vpop.f32.mrb[0].mxu0
      %v1374 = vadd.f32 0.0, %v1373
      %v1375 = vpop.f32.mrb[0].mxu0
      %v1376 = vpop.f32.mrb[0].mxu0
      %v1377 = vadd.f32 0.0, %v1376
      %v1378 = vpop.f32.mrb[0].mxu0
      %1379 = vmatprep.mubr.bf16.mxu0 0
      %1380 = vmatmul.mubr.bf16.gmra.mrb[0].mxu0 %v1213
      %v1381 = vpop.f32.mrb[0].mxu0
      %v1382 = vadd.f32 0.0, %v1381
      %v1383 = vpop.f32.mrb[0].mxu0
      %v1384 = vpop.f32.mrb[0].mxu0
      %v1385 = vadd.f32 0.0, %v1384
      %v1386 = vpop.f32.mrb[0].mxu0
      %1387 = vmatprep.mubr.bf16.mxu0 0
      %1388 = vmatmul.mubr.bf16.gmra.mrb[0].mxu0 %v1214
      %v1389 = vpop.f32.mrb[0].mxu0
      %v1390 = vadd.f32 0.0, %v1389
      %v1391 = vpop.f32.mrb[0].mxu0
      %v1392 = vpop.f32.mrb[0].mxu0
      %v1393 = vadd.f32 0.0, %v1392
      %v1394 = vpop.f32.mrb[0].mxu0
      %1395 = vmatprep.mubr.bf16.mxu0 0
      %1396 = vmatmul.mubr.bf16.gmra.mrb[0].mxu0 %v1215
      %v1397 = vpop.f32.mrb[0].mxu0
      %v1398 = vadd.f32 0.0, %v1397
      %v1399 = vpop.f32.mrb[0].mxu0
      %v1400 = vpop.f32.mrb[0].mxu0
      %v1401 = vadd.f32 0.0, %v1400
      %v1402 = vpop.f32.mrb[0].mxu0
      %1403 = vmatprep.mubr.bf16.mxu0 0
      %1404 = vmatmul.mubr.bf16.gmra.mrb[0].mxu0 %v1216
      %v1405 = vpop.f32.mrb[0].mxu0
      %v1406 = vadd.f32 0.0, %v1405
      %v1407 = vpop.f32.mrb[0].mxu0
      %v1408 = vpop.f32.mrb[0].mxu0
      %v1409 = vadd.f32 0.0, %v1408
      %v1410 = vpop.f32.mrb[0].mxu0
      %1411 = vmatprep.mubr.bf16.mxu0 0
      %1412 = vmatmul.mubr.bf16.gmra.mrb[0].mxu0 %v1217
      %v1413 = vpop.f32.mrb[0].mxu0
      %v1414 = vadd.f32 0.0, %v1413
      %v1415 = vpop.f32.mrb[0].mxu0
      %v1416 = vpop.f32.mrb[0].mxu0
      %v1417 = vadd.f32 0.0, %v1416
      %v1418 = vpop.f32.mrb[0].mxu0
      %1419 = vmatprep.mubr.bf16.mxu0 0
      %1420 = vmatmul.mubr.bf16.gmra.mrb[0].mxu0 %v1218
      %v1421 = vpop.f32.mrb[0].mxu0
      %v1422 = vadd.f32 0.0, %v1421
      %v1423 = vpop.f32.mrb[0].mxu0
      %v1424 = vpop.f32.mrb[0].mxu0
      %v1425 = vadd.f32 0.0, %v1424
      %v1426 = vpop.f32.mrb[0].mxu0
      %1427 = vdwg.mxu0
      %v1428 = vadd.f32 %v968, %v1302
      %v1429 = vadd.f32 %v971, %v1305
      %v1430 = vadd.f32 %v976, %v1310
      %v1431 = vadd.f32 %v979, %v1313
      %v1432 = vadd.f32 %v984, %v1318
      %v1433 = vadd.f32 %v987, %v1321
      %v1434 = vadd.f32 %v992, %v1326
      %v1435 = vadd.f32 %v995, %v1329
      %v1436 = vadd.f32 %v1000, %v1334
      %v1437 = vadd.f32 %v1003, %v1337
      %v1438 = vadd.f32 %v1008, %v1342
      %v1439 = vadd.f32 %v1011, %v1345
      %v1440 = vadd.f32 %v1016, %v1350
      %v1441 = vadd.f32 %v1019, %v1353
      %v1442 = vadd.f32 %v1024, %v1358
      %v1443 = vadd.f32 %v1027, %v1361
      %v1444 = vadd.f32 %v1032, %v1366
      %v1445 = vadd.f32 %v1035, %v1369
      %v1446 = vadd.f32 %v1040, %v1374
      %v1447 = vadd.f32 %v1043, %v1377
      %v1448 = vadd.f32 %v1048, %v1382
      %v1449 = vadd.f32 %v1051, %v1385
      %v1450 = vadd.f32 %v1056, %v1390
      %v1451 = vadd.f32 %v1059, %v1393
      %v1452 = vadd.f32 %v1064, %v1398
      %v1453 = vadd.f32 %v1067, %v1401
      %v1454 = vadd.f32 %v1072, %v1406
      %v1455 = vadd.f32 %v1075, %v1409
      %v1456 = vadd.f32 %v1080, %v1414
      %v1457 = vadd.f32 %v1083, %v1417
      %v1458 = vadd.f32 %v1088, %v1422
      %v1459 = vadd.f32 %v1091, %v1425
      %v1460 = vpack.c.bf16 %v343, %v342
      %v1477 = vunpack.c.l.b16 %v393
      %v1478 = vunpack.c.l.b16 %v394
      %v1479 = vunpack.c.l.b16 %v395
      %v1480 = vunpack.c.l.b16 %v396
      %v1481 = vunpack.c.l.b16 %v397
      %v1482 = vunpack.c.l.b16 %v398
      %v1483 = vunpack.c.l.b16 %v399
      %v1484 = vunpack.c.l.b16 %v400
      %v1485 = vunpack.c.l.b16 %v401
      %v1486 = vunpack.c.l.b16 %v402
      %v1487 = vunpack.c.l.b16 %v403
      %v1488 = vunpack.c.l.b16 %v404
      %v1489 = vunpack.c.l.b16 %v405
      %v1490 = vunpack.c.l.b16 %v406
      %v1491 = vunpack.c.l.b16 %v407
      %v1492 = vunpack.c.l.b16 %v408
      %v1493 = vpack.c.b16 %v1478, %v1477
      %v1494 = vpack.c.b16 %v1480, %v1479
      %v1495 = vpack.c.b16 %v1482, %v1481
      %v1496 = vpack.c.b16 %v1484, %v1483
      %v1497 = vpack.c.b16 %v1486, %v1485
      %v1498 = vpack.c.b16 %v1488, %v1487
      %v1499 = vpack.c.b16 %v1490, %v1489
      %v1500 = vpack.c.b16 %v1492, %v1491
      %1509 = vmatprep.subr.bf16.mxu0 0
      %1510 = vmatpush1.bf16.msra.mxu0 %v1493
      %1511 = vmatprep.subr.bf16.mxu0 0
      %1512 = vmatpush1.bf16.msra.mxu0 %v1494
      %1513 = vmatprep.subr.bf16.mxu0 0
      %1514 = vmatpush1.bf16.msra.mxu0 %v1495
      %1515 = vmatprep.subr.bf16.mxu0 0
      %1516 = vmatpush1.bf16.msra.mxu0 %v1496
      %1517 = vmatprep.subr.bf16.mxu0 0
      %1518 = vmatpush1.bf16.msra.mxu0 %v1497
      %1519 = vmatprep.subr.bf16.mxu0 0
      %1520 = vmatpush1.bf16.msra.mxu0 %v1498
      %1521 = vmatprep.subr.bf16.mxu0 0
      %1522 = vmatpush1.bf16.msra.mxu0 %v1499
      %1523 = vmatprep.subr.bf16.mxu0 0
      %1524 = vmatpush1.bf16.msra.mxu0 %v1500
      %1525 = vmatprep.subr.bf16.mxu0 0
      %1526 = vmatpush1.bf16.msra.mxu0 0
      %1527 = vmatprep.subr.bf16.mxu0 0
      %1528 = vmatpush1.bf16.msra.mxu0 0
      %1529 = vmatprep.subr.bf16.mxu0 0
      %1530 = vmatpush1.bf16.msra.mxu0 0
      %1531 = vmatprep.subr.bf16.mxu0 0
      %1532 = vmatpush1.bf16.msra.mxu0 0
      %1533 = vmatprep.subr.bf16.mxu0 0
      %1534 = vmatpush1.bf16.msra.mxu0 0
      %1535 = vmatprep.subr.bf16.mxu0 0
      %1536 = vmatpush1.bf16.msra.mxu0 0
      %1537 = vmatprep.subr.bf16.mxu0 0
      %1538 = vmatpush1.bf16.msra.mxu0 0
      %1539 = vmatprep.subr.bf16.mxu0 0
      %1540 = vmatpush1.bf16.msra.mxu0 0
      %1541 = vmatprep.mubr.bf16.mxu0 0
      %1542 = vmatmul.mubr.bf16.gmra.mrb[0].mxu0 %v490
      %v1543 = vpop.f32.mrb[0].mxu0
      %v1544 = vadd.f32 0.0, %v1543
      %v1545 = vpop.f32.mrb[0].mxu0
      %v1546 = vpop.f32.mrb[0].mxu0
      %v1547 = vadd.f32 0.0, %v1546
      %v1548 = vpop.f32.mrb[0].mxu0
      %1549 = vmatprep.mubr.bf16.mxu0 0
      %1550 = vmatmul.mubr.bf16.gmra.mrb[0].mxu0 %v491
      %v1551 = vpop.f32.mrb[0].mxu0
      %v1552 = vadd.f32 0.0, %v1551
      %v1553 = vpop.f32.mrb[0].mxu0
      %v1554 = vpop.f32.mrb[0].mxu0
      %v1555 = vadd.f32 0.0, %v1554
      %v1556 = vpop.f32.mrb[0].mxu0
      %1557 = vmatprep.mubr.bf16.mxu0 0
      %1558 = vmatmul.mubr.bf16.gmra.mrb[0].mxu0 %v492
      %v1559 = vpop.f32.mrb[0].mxu0
      %v1560 = vadd.f32 0.0, %v1559
      %v1561 = vpop.f32.mrb[0].mxu0
      %v1562 = vpop.f32.mrb[0].mxu0
      %v1563 = vadd.f32 0.0, %v1562
      %v1564 = vpop.f32.mrb[0].mxu0
      %1565 = vmatprep.mubr.bf16.mxu0 0
      %1566 = vmatmul.mubr.bf16.gmra.mrb[0].mxu0 %v493
      %v1567 = vpop.f32.mrb[0].mxu0
      %v1568 = vadd.f32 0.0, %v1567
      %v1569 = vpop.f32.mrb[0].mxu0
      %v1570 = vpop.f32.mrb[0].mxu0
      %v1571 = vadd.f32 0.0, %v1570
      %v1572 = vpop.f32.mrb[0].mxu0
      %1573 = vmatprep.mubr.bf16.mxu0 0
      %1574 = vmatmul.mubr.bf16.gmra.mrb[0].mxu0 %v494
      %v1575 = vpop.f32.mrb[0].mxu0
      %v1576 = vadd.f32 0.0, %v1575
      %v1577 = vpop.f32.mrb[0].mxu0
      %v1578 = vpop.f32.mrb[0].mxu0
      %v1579 = vadd.f32 0.0, %v1578
      %v1580 = vpop.f32.mrb[0].mxu0
      %1581 = vmatprep.mubr.bf16.mxu0 0
      %1582 = vmatmul.mubr.bf16.gmra.mrb[0].mxu0 %v495
      %v1583 = vpop.f32.mrb[0].mxu0
      %v1584 = vadd.f32 0.0, %v1583
      %v1585 = vpop.f32.mrb[0].mxu0
      %v1586 = vpop.f32.mrb[0].mxu0
      %v1587 = vadd.f32 0.0, %v1586
      %v1588 = vpop.f32.mrb[0].mxu0
      %1589 = vmatprep.mubr.bf16.mxu0 0
      %1590 = vmatmul.mubr.bf16.gmra.mrb[0].mxu0 %v496
      %v1591 = vpop.f32.mrb[0].mxu0
      %v1592 = vadd.f32 0.0, %v1591
      %v1593 = vpop.f32.mrb[0].mxu0
      %v1594 = vpop.f32.mrb[0].mxu0
      %v1595 = vadd.f32 0.0, %v1594
      %v1596 = vpop.f32.mrb[0].mxu0
      %1597 = vmatprep.mubr.bf16.mxu0 0
      %1598 = vmatmul.mubr.bf16.gmra.mrb[0].mxu0 %v497
      %v1599 = vpop.f32.mrb[0].mxu0
      %v1600 = vadd.f32 0.0, %v1599
      %v1601 = vpop.f32.mrb[0].mxu0
      %v1602 = vpop.f32.mrb[0].mxu0
      %v1603 = vadd.f32 0.0, %v1602
      %v1604 = vpop.f32.mrb[0].mxu0
      %1605 = vmatprep.mubr.bf16.mxu0 0
      %1606 = vmatmul.mubr.bf16.gmra.mrb[0].mxu0 %v498
      %v1607 = vpop.f32.mrb[0].mxu0
      %v1608 = vadd.f32 0.0, %v1607
      %v1609 = vpop.f32.mrb[0].mxu0
      %v1610 = vpop.f32.mrb[0].mxu0
      %v1611 = vadd.f32 0.0, %v1610
      %v1612 = vpop.f32.mrb[0].mxu0
      %1613 = vmatprep.mubr.bf16.mxu0 0
      %1614 = vmatmul.mubr.bf16.gmra.mrb[0].mxu0 %v499
      %v1615 = vpop.f32.mrb[0].mxu0
      %v1616 = vadd.f32 0.0, %v1615
      %v1617 = vpop.f32.mrb[0].mxu0
      %v1618 = vpop.f32.mrb[0].mxu0
      %v1619 = vadd.f32 0.0, %v1618
      %v1620 = vpop.f32.mrb[0].mxu0
      %1621 = vmatprep.mubr.bf16.mxu0 0
      %1622 = vmatmul.mubr.bf16.gmra.mrb[0].mxu0 %v500
      %v1623 = vpop.f32.mrb[0].mxu0
      %v1624 = vadd.f32 0.0, %v1623
      %v1625 = vpop.f32.mrb[0].mxu0
      %v1626 = vpop.f32.mrb[0].mxu0
      %v1627 = vadd.f32 0.0, %v1626
      %v1628 = vpop.f32.mrb[0].mxu0
      %1629 = vmatprep.mubr.bf16.mxu0 0
      %1630 = vmatmul.mubr.bf16.gmra.mrb[0].mxu0 %v501
      %v1631 = vpop.f32.mrb[0].mxu0
      %v1632 = vadd.f32 0.0, %v1631
      %v1633 = vpop.f32.mrb[0].mxu0
      %v1634 = vpop.f32.mrb[0].mxu0
      %v1635 = vadd.f32 0.0, %v1634
      %v1636 = vpop.f32.mrb[0].mxu0
      %1637 = vmatprep.mubr.bf16.mxu0 0
      %1638 = vmatmul.mubr.bf16.gmra.mrb[0].mxu0 %v502
      %v1639 = vpop.f32.mrb[0].mxu0
      %v1640 = vadd.f32 0.0, %v1639
      %v1641 = vpop.f32.mrb[0].mxu0
      %v1642 = vpop.f32.mrb[0].mxu0
      %v1643 = vadd.f32 0.0, %v1642
      %v1644 = vpop.f32.mrb[0].mxu0
      %1645 = vmatprep.mubr.bf16.mxu0 0
      %1646 = vmatmul.mubr.bf16.gmra.mrb[0].mxu0 %v503
      %v1647 = vpop.f32.mrb[0].mxu0
      %v1648 = vadd.f32 0.0, %v1647
      %v1649 = vpop.f32.mrb[0].mxu0
      %v1650 = vpop.f32.mrb[0].mxu0
      %v1651 = vadd.f32 0.0, %v1650
      %v1652 = vpop.f32.mrb[0].mxu0
      %1653 = vmatprep.mubr.bf16.mxu0 0
      %1654 = vmatmul.mubr.bf16.gmra.mrb[0].mxu0 %v504
      %v1655 = vpop.f32.mrb[0].mxu0
      %v1656 = vadd.f32 0.0, %v1655
      %v1657 = vpop.f32.mrb[0].mxu0
      %v1658 = vpop.f32.mrb[0].mxu0
      %v1659 = vadd.f32 0.0, %v1658
      %v1660 = vpop.f32.mrb[0].mxu0
      %1661 = vmatprep.mubr.bf16.mxu0 0
      %1662 = vmatmul.mubr.bf16.gmra.mrb[0].mxu0 %v1460
      %v1663 = vpop.f32.mrb[0].mxu0
      %v1664 = vadd.f32 0.0, %v1663
      %v1665 = vpop.f32.mrb[0].mxu0
      %v1666 = vpop.f32.mrb[0].mxu0
      %v1667 = vadd.f32 0.0, %v1666
      %v1668 = vpop.f32.mrb[0].mxu0
      %1669 = vdwg.mxu0
      %v1670 = vadd.f32 %v1428, %v1544
      %v1671 = vadd.f32 %v1429, %v1547
      %v1672 = vadd.f32 %v1430, %v1552
      %v1673 = vadd.f32 %v1431, %v1555
      %v1674 = vadd.f32 %v1432, %v1560
      %v1675 = vadd.f32 %v1433, %v1563
      %v1676 = vadd.f32 %v1434, %v1568
      %v1677 = vadd.f32 %v1435, %v1571
      %v1678 = vadd.f32 %v1436, %v1576
      %v1679 = vadd.f32 %v1437, %v1579
      %v1680 = vadd.f32 %v1438, %v1584
      %v1681 = vadd.f32 %v1439, %v1587
      %v1682 = vadd.f32 %v1440, %v1592
      %v1683 = vadd.f32 %v1441, %v1595
      %v1684 = vadd.f32 %v1442, %v1600
      %v1685 = vadd.f32 %v1443, %v1603
      %v1686 = vadd.f32 %v1444, %v1608
      %v1687 = vadd.f32 %v1445, %v1611
      %v1688 = vadd.f32 %v1446, %v1616
      %v1689 = vadd.f32 %v1447, %v1619
      %v1690 = vadd.f32 %v1448, %v1624
      %v1691 = vadd.f32 %v1449, %v1627
      %v1692 = vadd.f32 %v1450, %v1632
      %v1693 = vadd.f32 %v1451, %v1635
      %v1694 = vadd.f32 %v1452, %v1640
      %v1695 = vadd.f32 %v1453, %v1643
      %v1696 = vadd.f32 %v1454, %v1648
      %v1697 = vadd.f32 %v1455, %v1651
      %v1698 = vadd.f32 %v1456, %v1656
      %v1699 = vadd.f32 %v1457, %v1659
      %v1700 = vadd.f32 %v1458, %v1664
      %v1701 = vadd.f32 %v1459, %v1667
      %v1705 = vrot.slane %v342, 1
      %v1706 = vrot.slane %v343, 1
      %v1707 = vsel %vm551, %v1705, %v1706
      %v1708 = vrot.slane %v344, 1
      %v1709 = vsel %vm551, %v1706, %v1708
      %v1712 = vpack.c.bf16 %v1709, %v1707
      %v1729 = vunpack.c.l.b16 %v409
      %v1730 = vunpack.c.l.b16 %v410
      %v1731 = vunpack.c.l.b16 %v411
      %v1732 = vunpack.c.l.b16 %v412
      %v1733 = vunpack.c.l.b16 %v413
      %v1734 = vunpack.c.l.b16 %v414
      %v1735 = vunpack.c.l.b16 %v415
      %v1736 = vunpack.c.l.b16 %v416
      %v1737 = vunpack.c.l.b16 %v417
      %v1738 = vunpack.c.l.b16 %v418
      %v1739 = vunpack.c.l.b16 %v419
      %v1740 = vunpack.c.l.b16 %v420
      %v1741 = vunpack.c.l.b16 %v421
      %v1742 = vunpack.c.l.b16 %v422
      %v1743 = vunpack.c.l.b16 %v423
      %v1744 = vunpack.c.l.b16 %v424
      %v1745 = vpack.c.b16 %v1730, %v1729
      %v1746 = vpack.c.b16 %v1732, %v1731
      %v1747 = vpack.c.b16 %v1734, %v1733
      %v1748 = vpack.c.b16 %v1736, %v1735
      %v1749 = vpack.c.b16 %v1738, %v1737
      %v1750 = vpack.c.b16 %v1740, %v1739
      %v1751 = vpack.c.b16 %v1742, %v1741
      %v1752 = vpack.c.b16 %v1744, %v1743
      %1761 = vmatprep.subr.bf16.mxu0 0
      %1762 = vmatpush1.bf16.msra.mxu0 %v1745
      %1763 = vmatprep.subr.bf16.mxu0 0
      %1764 = vmatpush1.bf16.msra.mxu0 %v1746
      %1765 = vmatprep.subr.bf16.mxu0 0
      %1766 = vmatpush1.bf16.msra.mxu0 %v1747
      %1767 = vmatprep.subr.bf16.mxu0 0
      %1768 = vmatpush1.bf16.msra.mxu0 %v1748
      %1769 = vmatprep.subr.bf16.mxu0 0
      %1770 = vmatpush1.bf16.msra.mxu0 %v1749
      %1771 = vmatprep.subr.bf16.mxu0 0
      %1772 = vmatpush1.bf16.msra.mxu0 %v1750
      %1773 = vmatprep.subr.bf16.mxu0 0
      %1774 = vmatpush1.bf16.msra.mxu0 %v1751
      %1775 = vmatprep.subr.bf16.mxu0 0
      %1776 = vmatpush1.bf16.msra.mxu0 %v1752
      %1777 = vmatprep.subr.bf16.mxu0 0
      %1778 = vmatpush1.bf16.msra.mxu0 0
      %1779 = vmatprep.subr.bf16.mxu0 0
      %1780 = vmatpush1.bf16.msra.mxu0 0
      %1781 = vmatprep.subr.bf16.mxu0 0
      %1782 = vmatpush1.bf16.msra.mxu0 0
      %1783 = vmatprep.subr.bf16.mxu0 0
      %1784 = vmatpush1.bf16.msra.mxu0 0
      %1785 = vmatprep.subr.bf16.mxu0 0
      %1786 = vmatpush1.bf16.msra.mxu0 0
      %1787 = vmatprep.subr.bf16.mxu0 0
      %1788 = vmatpush1.bf16.msra.mxu0 0
      %1789 = vmatprep.subr.bf16.mxu0 0
      %1790 = vmatpush1.bf16.msra.mxu0 0
      %1791 = vmatprep.subr.bf16.mxu0 0
      %1792 = vmatpush1.bf16.msra.mxu0 0
      %1793 = vmatprep.mubr.bf16.mxu0 0
      %1794 = vmatmul.mubr.bf16.gmra.mrb[0].mxu0 %v661
      %v1795 = vpop.f32.mrb[0].mxu0
      %v1796 = vadd.f32 0.0, %v1795
      %v1797 = vpop.f32.mrb[0].mxu0
      %v1798 = vpop.f32.mrb[0].mxu0
      %v1799 = vadd.f32 0.0, %v1798
      %v1800 = vpop.f32.mrb[0].mxu0
      %1801 = vmatprep.mubr.bf16.mxu0 0
      %1802 = vmatmul.mubr.bf16.gmra.mrb[0].mxu0 %v662
      %v1803 = vpop.f32.mrb[0].mxu0
      %v1804 = vadd.f32 0.0, %v1803
      %v1805 = vpop.f32.mrb[0].mxu0
      %v1806 = vpop.f32.mrb[0].mxu0
      %v1807 = vadd.f32 0.0, %v1806
      %v1808 = vpop.f32.mrb[0].mxu0
      %1809 = vmatprep.mubr.bf16.mxu0 0
      %1810 = vmatmul.mubr.bf16.gmra.mrb[0].mxu0 %v663
      %v1811 = vpop.f32.mrb[0].mxu0
      %v1812 = vadd.f32 0.0, %v1811
      %v1813 = vpop.f32.mrb[0].mxu0
      %v1814 = vpop.f32.mrb[0].mxu0
      %v1815 = vadd.f32 0.0, %v1814
      %v1816 = vpop.f32.mrb[0].mxu0
      %1817 = vmatprep.mubr.bf16.mxu0 0
      %1818 = vmatmul.mubr.bf16.gmra.mrb[0].mxu0 %v664
      %v1819 = vpop.f32.mrb[0].mxu0
      %v1820 = vadd.f32 0.0, %v1819
      %v1821 = vpop.f32.mrb[0].mxu0
      %v1822 = vpop.f32.mrb[0].mxu0
      %v1823 = vadd.f32 0.0, %v1822
      %v1824 = vpop.f32.mrb[0].mxu0
      %1825 = vmatprep.mubr.bf16.mxu0 0
      %1826 = vmatmul.mubr.bf16.gmra.mrb[0].mxu0 %v665
      %v1827 = vpop.f32.mrb[0].mxu0
      %v1828 = vadd.f32 0.0, %v1827
      %v1829 = vpop.f32.mrb[0].mxu0
      %v1830 = vpop.f32.mrb[0].mxu0
      %v1831 = vadd.f32 0.0, %v1830
      %v1832 = vpop.f32.mrb[0].mxu0
      %1833 = vmatprep.mubr.bf16.mxu0 0
      %1834 = vmatmul.mubr.bf16.gmra.mrb[0].mxu0 %v666
      %v1835 = vpop.f32.mrb[0].mxu0
      %v1836 = vadd.f32 0.0, %v1835
      %v1837 = vpop.f32.mrb[0].mxu0
      %v1838 = vpop.f32.mrb[0].mxu0
      %v1839 = vadd.f32 0.0, %v1838
      %v1840 = vpop.f32.mrb[0].mxu0
      %1841 = vmatprep.mubr.bf16.mxu0 0
      %1842 = vmatmul.mubr.bf16.gmra.mrb[0].mxu0 %v667
      %v1843 = vpop.f32.mrb[0].mxu0
      %v1844 = vadd.f32 0.0, %v1843
      %v1845 = vpop.f32.mrb[0].mxu0
      %v1846 = vpop.f32.mrb[0].mxu0
      %v1847 = vadd.f32 0.0, %v1846
      %v1848 = vpop.f32.mrb[0].mxu0
      %1849 = vmatprep.mubr.bf16.mxu0 0
      %1850 = vmatmul.mubr.bf16.gmra.mrb[0].mxu0 %v668
      %v1851 = vpop.f32.mrb[0].mxu0
      %v1852 = vadd.f32 0.0, %v1851
      %v1853 = vpop.f32.mrb[0].mxu0
      %v1854 = vpop.f32.mrb[0].mxu0
      %v1855 = vadd.f32 0.0, %v1854
      %v1856 = vpop.f32.mrb[0].mxu0
      %1857 = vmatprep.mubr.bf16.mxu0 0
      %1858 = vmatmul.mubr.bf16.gmra.mrb[0].mxu0 %v669
      %v1859 = vpop.f32.mrb[0].mxu0
      %v1860 = vadd.f32 0.0, %v1859
      %v1861 = vpop.f32.mrb[0].mxu0
      %v1862 = vpop.f32.mrb[0].mxu0
      %v1863 = vadd.f32 0.0, %v1862
      %v1864 = vpop.f32.mrb[0].mxu0
      %1865 = vmatprep.mubr.bf16.mxu0 0
      %1866 = vmatmul.mubr.bf16.gmra.mrb[0].mxu0 %v670
      %v1867 = vpop.f32.mrb[0].mxu0
      %v1868 = vadd.f32 0.0, %v1867
      %v1869 = vpop.f32.mrb[0].mxu0
      %v1870 = vpop.f32.mrb[0].mxu0
      %v1871 = vadd.f32 0.0, %v1870
      %v1872 = vpop.f32.mrb[0].mxu0
      %1873 = vmatprep.mubr.bf16.mxu0 0
      %1874 = vmatmul.mubr.bf16.gmra.mrb[0].mxu0 %v671
      %v1875 = vpop.f32.mrb[0].mxu0
      %v1876 = vadd.f32 0.0, %v1875
      %v1877 = vpop.f32.mrb[0].mxu0
      %v1878 = vpop.f32.mrb[0].mxu0
      %v1879 = vadd.f32 0.0, %v1878
      %v1880 = vpop.f32.mrb[0].mxu0
      %1881 = vmatprep.mubr.bf16.mxu0 0
      %1882 = vmatmul.mubr.bf16.gmra.mrb[0].mxu0 %v672
      %v1883 = vpop.f32.mrb[0].mxu0
      %v1884 = vadd.f32 0.0, %v1883
      %v1885 = vpop.f32.mrb[0].mxu0
      %v1886 = vpop.f32.mrb[0].mxu0
      %v1887 = vadd.f32 0.0, %v1886
      %v1888 = vpop.f32.mrb[0].mxu0
      %1889 = vmatprep.mubr.bf16.mxu0 0
      %1890 = vmatmul.mubr.bf16.gmra.mrb[0].mxu0 %v673
      %v1891 = vpop.f32.mrb[0].mxu0
      %v1892 = vadd.f32 0.0, %v1891
      %v1893 = vpop.f32.mrb[0].mxu0
      %v1894 = vpop.f32.mrb[0].mxu0
      %v1895 = vadd.f32 0.0, %v1894
      %v1896 = vpop.f32.mrb[0].mxu0
      %1897 = vmatprep.mubr.bf16.mxu0 0
      %1898 = vmatmul.mubr.bf16.gmra.mrb[0].mxu0 %v674
      %v1899 = vpop.f32.mrb[0].mxu0
      %v1900 = vadd.f32 0.0, %v1899
      %v1901 = vpop.f32.mrb[0].mxu0
      %v1902 = vpop.f32.mrb[0].mxu0
      %v1903 = vadd.f32 0.0, %v1902
      %v1904 = vpop.f32.mrb[0].mxu0
      %1905 = vmatprep.mubr.bf16.mxu0 0
      %1906 = vmatmul.mubr.bf16.gmra.mrb[0].mxu0 %v675
      %v1907 = vpop.f32.mrb[0].mxu0
      %v1908 = vadd.f32 0.0, %v1907
      %v1909 = vpop.f32.mrb[0].mxu0
      %v1910 = vpop.f32.mrb[0].mxu0
      %v1911 = vadd.f32 0.0, %v1910
      %v1912 = vpop.f32.mrb[0].mxu0
      %1913 = vmatprep.mubr.bf16.mxu0 0
      %1914 = vmatmul.mubr.bf16.gmra.mrb[0].mxu0 %v1712
      %v1915 = vpop.f32.mrb[0].mxu0
      %v1916 = vadd.f32 0.0, %v1915
      %v1917 = vpop.f32.mrb[0].mxu0
      %v1918 = vpop.f32.mrb[0].mxu0
      %v1919 = vadd.f32 0.0, %v1918
      %v1920 = vpop.f32.mrb[0].mxu0
      %1921 = vdwg.mxu0
      %v1922 = vadd.f32 %v1670, %v1796
      %v1923 = vadd.f32 %v1671, %v1799
      %v1924 = vadd.f32 %v1672, %v1804
      %v1925 = vadd.f32 %v1673, %v1807
      %v1926 = vadd.f32 %v1674, %v1812
      %v1927 = vadd.f32 %v1675, %v1815
      %v1928 = vadd.f32 %v1676, %v1820
      %v1929 = vadd.f32 %v1677, %v1823
      %v1930 = vadd.f32 %v1678, %v1828
      %v1931 = vadd.f32 %v1679, %v1831
      %v1932 = vadd.f32 %v1680, %v1836
      %v1933 = vadd.f32 %v1681, %v1839
      %v1934 = vadd.f32 %v1682, %v1844
      %v1935 = vadd.f32 %v1683, %v1847
      %v1936 = vadd.f32 %v1684, %v1852
      %v1937 = vadd.f32 %v1685, %v1855
      %v1938 = vadd.f32 %v1686, %v1860
      %v1939 = vadd.f32 %v1687, %v1863
      %v1940 = vadd.f32 %v1688, %v1868
      %v1941 = vadd.f32 %v1689, %v1871
      %v1942 = vadd.f32 %v1690, %v1876
      %v1943 = vadd.f32 %v1691, %v1879
      %v1944 = vadd.f32 %v1692, %v1884
      %v1945 = vadd.f32 %v1693, %v1887
      %v1946 = vadd.f32 %v1694, %v1892
      %v1947 = vadd.f32 %v1695, %v1895
      %v1948 = vadd.f32 %v1696, %v1900
      %v1949 = vadd.f32 %v1697, %v1903
      %v1950 = vadd.f32 %v1698, %v1908
      %v1951 = vadd.f32 %v1699, %v1911
      %v1952 = vadd.f32 %v1700, %v1916
      %v1953 = vadd.f32 %v1701, %v1919
      %v1954 = vrot.slane %v342, 2
      %v1955 = vrot.slane %v343, 2
      %v1956 = vsel %vm1094, %v1954, %v1955
      %v1957 = vrot.slane %v344, 2
      %v1958 = vsel %vm1094, %v1955, %v1957
      %v1961 = vpack.c.bf16 %v1958, %v1956
      %v1978 = vunpack.c.l.b16 %v425
      %v1979 = vunpack.c.l.b16 %v426
      %v1980 = vunpack.c.l.b16 %v427
      %v1981 = vunpack.c.l.b16 %v428
      %v1982 = vunpack.c.l.b16 %v429
      %v1983 = vunpack.c.l.b16 %v430
      %v1984 = vunpack.c.l.b16 %v431
      %v1985 = vunpack.c.l.b16 %v432
      %v1986 = vunpack.c.l.b16 %v433
      %v1987 = vunpack.c.l.b16 %v434
      %v1988 = vunpack.c.l.b16 %v435
      %v1989 = vunpack.c.l.b16 %v436
      %v1990 = vunpack.c.l.b16 %v437
      %v1991 = vunpack.c.l.b16 %v438
      %v1992 = vunpack.c.l.b16 %v439
      %v1993 = vunpack.c.l.b16 %v440
      %v1994 = vpack.c.b16 %v1979, %v1978
      %v1995 = vpack.c.b16 %v1981, %v1980
      %v1996 = vpack.c.b16 %v1983, %v1982
      %v1997 = vpack.c.b16 %v1985, %v1984
      %v1998 = vpack.c.b16 %v1987, %v1986
      %v1999 = vpack.c.b16 %v1989, %v1988
      %v2000 = vpack.c.b16 %v1991, %v1990
      %v2001 = vpack.c.b16 %v1993, %v1992
      %2010 = vmatprep.subr.bf16.mxu0 0
      %2011 = vmatpush1.bf16.msra.mxu0 %v1994
      %2012 = vmatprep.subr.bf16.mxu0 0
      %2013 = vmatpush1.bf16.msra.mxu0 %v1995
      %2014 = vmatprep.subr.bf16.mxu0 0
      %2015 = vmatpush1.bf16.msra.mxu0 %v1996
      %2016 = vmatprep.subr.bf16.mxu0 0
      %2017 = vmatpush1.bf16.msra.mxu0 %v1997
      %2018 = vmatprep.subr.bf16.mxu0 0
      %2019 = vmatpush1.bf16.msra.mxu0 %v1998
      %2020 = vmatprep.subr.bf16.mxu0 0
      %2021 = vmatpush1.bf16.msra.mxu0 %v1999
      %2022 = vmatprep.subr.bf16.mxu0 0
      %2023 = vmatpush1.bf16.msra.mxu0 %v2000
      %2024 = vmatprep.subr.bf16.mxu0 0
      %2025 = vmatpush1.bf16.msra.mxu0 %v2001
      %2026 = vmatprep.subr.bf16.mxu0 0
      %2027 = vmatpush1.bf16.msra.mxu0 0
      %2028 = vmatprep.subr.bf16.mxu0 0
      %2029 = vmatpush1.bf16.msra.mxu0 0
      %2030 = vmatprep.subr.bf16.mxu0 0
      %2031 = vmatpush1.bf16.msra.mxu0 0
      %2032 = vmatprep.subr.bf16.mxu0 0
      %2033 = vmatpush1.bf16.msra.mxu0 0
      %2034 = vmatprep.subr.bf16.mxu0 0
      %2035 = vmatpush1.bf16.msra.mxu0 0
      %2036 = vmatprep.subr.bf16.mxu0 0
      %2037 = vmatpush1.bf16.msra.mxu0 0
      %2038 = vmatprep.subr.bf16.mxu0 0
      %2039 = vmatpush1.bf16.msra.mxu0 0
      %2040 = vmatprep.subr.bf16.mxu0 0
      %2041 = vmatpush1.bf16.msra.mxu0 0
      %2042 = vmatprep.mubr.bf16.mxu0 0
      %2043 = vmatmul.mubr.bf16.gmra.mrb[0].mxu0 %v1204
      %v2044 = vpop.f32.mrb[0].mxu0
      %v2045 = vadd.f32 0.0, %v2044
      %v2046 = vpop.f32.mrb[0].mxu0
      %v2047 = vpop.f32.mrb[0].mxu0
      %v2048 = vadd.f32 0.0, %v2047
      %v2049 = vpop.f32.mrb[0].mxu0
      %2050 = vmatprep.mubr.bf16.mxu0 0
      %2051 = vmatmul.mubr.bf16.gmra.mrb[0].mxu0 %v1205
      %v2052 = vpop.f32.mrb[0].mxu0
      %v2053 = vadd.f32 0.0, %v2052
      %v2054 = vpop.f32.mrb[0].mxu0
      %v2055 = vpop.f32.mrb[0].mxu0
      %v2056 = vadd.f32 0.0, %v2055
      %v2057 = vpop.f32.mrb[0].mxu0
      %2058 = vmatprep.mubr.bf16.mxu0 0
      %2059 = vmatmul.mubr.bf16.gmra.mrb[0].mxu0 %v1206
      %v2060 = vpop.f32.mrb[0].mxu0
      %v2061 = vadd.f32 0.0, %v2060
      %v2062 = vpop.f32.mrb[0].mxu0
      %v2063 = vpop.f32.mrb[0].mxu0
      %v2064 = vadd.f32 0.0, %v2063
      %v2065 = vpop.f32.mrb[0].mxu0
      %2066 = vmatprep.mubr.bf16.mxu0 0
      %2067 = vmatmul.mubr.bf16.gmra.mrb[0].mxu0 %v1207
      %v2068 = vpop.f32.mrb[0].mxu0
      %v2069 = vadd.f32 0.0, %v2068
      %v2070 = vpop.f32.mrb[0].mxu0
      %v2071 = vpop.f32.mrb[0].mxu0
      %v2072 = vadd.f32 0.0, %v2071
      %v2073 = vpop.f32.mrb[0].mxu0
      %2074 = vmatprep.mubr.bf16.mxu0 0
      %2075 = vmatmul.mubr.bf16.gmra.mrb[0].mxu0 %v1208
      %v2076 = vpop.f32.mrb[0].mxu0
      %v2077 = vadd.f32 0.0, %v2076
      %v2078 = vpop.f32.mrb[0].mxu0
      %v2079 = vpop.f32.mrb[0].mxu0
      %v2080 = vadd.f32 0.0, %v2079
      %v2081 = vpop.f32.mrb[0].mxu0
      %2082 = vmatprep.mubr.bf16.mxu0 0
      %2083 = vmatmul.mubr.bf16.gmra.mrb[0].mxu0 %v1209
      %v2084 = vpop.f32.mrb[0].mxu0
      %v2085 = vadd.f32 0.0, %v2084
      %v2086 = vpop.f32.mrb[0].mxu0
      %v2087 = vpop.f32.mrb[0].mxu0
      %v2088 = vadd.f32 0.0, %v2087
      %v2089 = vpop.f32.mrb[0].mxu0
      %2090 = vmatprep.mubr.bf16.mxu0 0
      %2091 = vmatmul.mubr.bf16.gmra.mrb[0].mxu0 %v1210
      %v2092 = vpop.f32.mrb[0].mxu0
      %v2093 = vadd.f32 0.0, %v2092
      %v2094 = vpop.f32.mrb[0].mxu0
      %v2095 = vpop.f32.mrb[0].mxu0
      %v2096 = vadd.f32 0.0, %v2095
      %v2097 = vpop.f32.mrb[0].mxu0
      %2098 = vmatprep.mubr.bf16.mxu0 0
      %2099 = vmatmul.mubr.bf16.gmra.mrb[0].mxu0 %v1211
      %v2100 = vpop.f32.mrb[0].mxu0
      %v2101 = vadd.f32 0.0, %v2100
      %v2102 = vpop.f32.mrb[0].mxu0
      %v2103 = vpop.f32.mrb[0].mxu0
      %v2104 = vadd.f32 0.0, %v2103
      %v2105 = vpop.f32.mrb[0].mxu0
      %2106 = vmatprep.mubr.bf16.mxu0 0
      %2107 = vmatmul.mubr.bf16.gmra.mrb[0].mxu0 %v1212
      %v2108 = vpop.f32.mrb[0].mxu0
      %v2109 = vadd.f32 0.0, %v2108
      %v2110 = vpop.f32.mrb[0].mxu0
      %v2111 = vpop.f32.mrb[0].mxu0
      %v2112 = vadd.f32 0.0, %v2111
      %v2113 = vpop.f32.mrb[0].mxu0
      %2114 = vmatprep.mubr.bf16.mxu0 0
      %2115 = vmatmul.mubr.bf16.gmra.mrb[0].mxu0 %v1213
      %v2116 = vpop.f32.mrb[0].mxu0
      %v2117 = vadd.f32 0.0, %v2116
      %v2118 = vpop.f32.mrb[0].mxu0
      %v2119 = vpop.f32.mrb[0].mxu0
      %v2120 = vadd.f32 0.0, %v2119
      %v2121 = vpop.f32.mrb[0].mxu0
      %2122 = vmatprep.mubr.bf16.mxu0 0
      %2123 = vmatmul.mubr.bf16.gmra.mrb[0].mxu0 %v1214
      %v2124 = vpop.f32.mrb[0].mxu0
      %v2125 = vadd.f32 0.0, %v2124
      %v2126 = vpop.f32.mrb[0].mxu0
      %v2127 = vpop.f32.mrb[0].mxu0
      %v2128 = vadd.f32 0.0, %v2127
      %v2129 = vpop.f32.mrb[0].mxu0
      %2130 = vmatprep.mubr.bf16.mxu0 0
      %2131 = vmatmul.mubr.bf16.gmra.mrb[0].mxu0 %v1215
      %v2132 = vpop.f32.mrb[0].mxu0
      %v2133 = vadd.f32 0.0, %v2132
      %v2134 = vpop.f32.mrb[0].mxu0
      %v2135 = vpop.f32.mrb[0].mxu0
      %v2136 = vadd.f32 0.0, %v2135
      %v2137 = vpop.f32.mrb[0].mxu0
      %2138 = vmatprep.mubr.bf16.mxu0 0
      %2139 = vmatmul.mubr.bf16.gmra.mrb[0].mxu0 %v1216
      %v2140 = vpop.f32.mrb[0].mxu0
      %v2141 = vadd.f32 0.0, %v2140
      %v2142 = vpop.f32.mrb[0].mxu0
      %v2143 = vpop.f32.mrb[0].mxu0
      %v2144 = vadd.f32 0.0, %v2143
      %v2145 = vpop.f32.mrb[0].mxu0
      %2146 = vmatprep.mubr.bf16.mxu0 0
      %2147 = vmatmul.mubr.bf16.gmra.mrb[0].mxu0 %v1217
      %v2148 = vpop.f32.mrb[0].mxu0
      %v2149 = vadd.f32 0.0, %v2148
      %v2150 = vpop.f32.mrb[0].mxu0
      %v2151 = vpop.f32.mrb[0].mxu0
      %v2152 = vadd.f32 0.0, %v2151
      %v2153 = vpop.f32.mrb[0].mxu0
      %2154 = vmatprep.mubr.bf16.mxu0 0
      %2155 = vmatmul.mubr.bf16.gmra.mrb[0].mxu0 %v1218
      %v2156 = vpop.f32.mrb[0].mxu0
      %v2157 = vadd.f32 0.0, %v2156
      %v2158 = vpop.f32.mrb[0].mxu0
      %v2159 = vpop.f32.mrb[0].mxu0
      %v2160 = vadd.f32 0.0, %v2159
      %v2161 = vpop.f32.mrb[0].mxu0
      %2162 = vmatprep.mubr.bf16.mxu0 0
      %2163 = vmatmul.mubr.bf16.gmra.mrb[0].mxu0 %v1961
      %v2164 = vpop.f32.mrb[0].mxu0
      %v2165 = vadd.f32 0.0, %v2164
      %v2166 = vpop.f32.mrb[0].mxu0
      %v2167 = vpop.f32.mrb[0].mxu0
      %v2168 = vadd.f32 0.0, %v2167
      %v2169 = vpop.f32.mrb[0].mxu0
      %2170 = vdwg.mxu0
      %v2171 = vadd.f32 %v1922, %v2045
      %v2172 = vadd.f32 %v1923, %v2048
      %v2173 = vadd.f32 %v1924, %v2053
      %v2174 = vadd.f32 %v1925, %v2056
      %v2175 = vadd.f32 %v1926, %v2061
      %v2176 = vadd.f32 %v1927, %v2064
      %v2177 = vadd.f32 %v1928, %v2069
      %v2178 = vadd.f32 %v1929, %v2072
      %v2179 = vadd.f32 %v1930, %v2077
      %v2180 = vadd.f32 %v1931, %v2080
      %v2181 = vadd.f32 %v1932, %v2085
      %v2182 = vadd.f32 %v1933, %v2088
      %v2183 = vadd.f32 %v1934, %v2093
      %v2184 = vadd.f32 %v1935, %v2096
      %v2185 = vadd.f32 %v1936, %v2101
      %v2186 = vadd.f32 %v1937, %v2104
      %v2187 = vadd.f32 %v1938, %v2109
      %v2188 = vadd.f32 %v1939, %v2112
      %v2189 = vadd.f32 %v1940, %v2117
      %v2190 = vadd.f32 %v1941, %v2120
      %v2191 = vadd.f32 %v1942, %v2125
      %v2192 = vadd.f32 %v1943, %v2128
      %v2193 = vadd.f32 %v1944, %v2133
      %v2194 = vadd.f32 %v1945, %v2136
      %v2195 = vadd.f32 %v1946, %v2141
      %v2196 = vadd.f32 %v1947, %v2144
      %v2197 = vadd.f32 %v1948, %v2149
      %v2198 = vadd.f32 %v1949, %v2152
      %v2199 = vadd.f32 %v1950, %v2157
      %v2200 = vadd.f32 %v1951, %v2160
      %v2201 = vadd.f32 %v1952, %v2165
      %v2202 = vadd.f32 %v1953, %v2168
      %v2219 = vunpack.c.l.b16 %v441
      %v2220 = vunpack.c.l.b16 %v442
      %v2221 = vunpack.c.l.b16 %v443
      %v2222 = vunpack.c.l.b16 %v444
      %v2223 = vunpack.c.l.b16 %v445
      %v2224 = vunpack.c.l.b16 %v446
      %v2225 = vunpack.c.l.b16 %v447
      %v2226 = vunpack.c.l.b16 %v448
      %v2227 = vunpack.c.l.b16 %v449
      %v2228 = vunpack.c.l.b16 %v450
      %v2229 = vunpack.c.l.b16 %v451
      %v2230 = vunpack.c.l.b16 %v452
      %v2231 = vunpack.c.l.b16 %v453
      %v2232 = vunpack.c.l.b16 %v454
      %v2233 = vunpack.c.l.b16 %v455
      %v2234 = vunpack.c.l.b16 %v456
      %v2235 = vpack.c.b16 %v2220, %v2219
      %v2236 = vpack.c.b16 %v2222, %v2221
      %v2237 = vpack.c.b16 %v2224, %v2223
      %v2238 = vpack.c.b16 %v2226, %v2225
      %v2239 = vpack.c.b16 %v2228, %v2227
      %v2240 = vpack.c.b16 %v2230, %v2229
      %v2241 = vpack.c.b16 %v2232, %v2231
      %v2242 = vpack.c.b16 %v2234, %v2233
      %2251 = vmatprep.subr.bf16.mxu0 0
      %2252 = vmatpush1.bf16.msra.mxu0 %v2235
      %2253 = vmatprep.subr.bf16.mxu0 0
      %2254 = vmatpush1.bf16.msra.mxu0 %v2236
      %2255 = vmatprep.subr.bf16.mxu0 0
      %2256 = vmatpush1.bf16.msra.mxu0 %v2237
      %2257 = vmatprep.subr.bf16.mxu0 0
      %2258 = vmatpush1.bf16.msra.mxu0 %v2238
      %2259 = vmatprep.subr.bf16.mxu0 0
      %2260 = vmatpush1.bf16.msra.mxu0 %v2239
      %2261 = vmatprep.subr.bf16.mxu0 0
      %2262 = vmatpush1.bf16.msra.mxu0 %v2240
      %2263 = vmatprep.subr.bf16.mxu0 0
      %2264 = vmatpush1.bf16.msra.mxu0 %v2241
      %2265 = vmatprep.subr.bf16.mxu0 0
      %2266 = vmatpush1.bf16.msra.mxu0 %v2242
      %2267 = vmatprep.subr.bf16.mxu0 0
      %2268 = vmatpush1.bf16.msra.mxu0 0
      %2269 = vmatprep.subr.bf16.mxu0 0
      %2270 = vmatpush1.bf16.msra.mxu0 0
      %2271 = vmatprep.subr.bf16.mxu0 0
      %2272 = vmatpush1.bf16.msra.mxu0 0
      %2273 = vmatprep.subr.bf16.mxu0 0
      %2274 = vmatpush1.bf16.msra.mxu0 0
      %2275 = vmatprep.subr.bf16.mxu0 0
      %2276 = vmatpush1.bf16.msra.mxu0 0
      %2277 = vmatprep.subr.bf16.mxu0 0
      %2278 = vmatpush1.bf16.msra.mxu0 0
      %2279 = vmatprep.subr.bf16.mxu0 0
      %2280 = vmatpush1.bf16.msra.mxu0 0
      %2281 = vmatprep.subr.bf16.mxu0 0
      %2282 = vmatpush1.bf16.msra.mxu0 0
      %2283 = vmatprep.mubr.bf16.mxu0 0
      %2284 = vmatmul.mubr.bf16.gmra.mrb[0].mxu0 %v491
      %v2285 = vpop.f32.mrb[0].mxu0
      %v2286 = vadd.f32 0.0, %v2285
      %v2287 = vpop.f32.mrb[0].mxu0
      %v2288 = vpop.f32.mrb[0].mxu0
      %v2289 = vadd.f32 0.0, %v2288
      %v2290 = vpop.f32.mrb[0].mxu0
      %2291 = vmatprep.mubr.bf16.mxu0 0
      %2292 = vmatmul.mubr.bf16.gmra.mrb[0].mxu0 %v492
      %v2293 = vpop.f32.mrb[0].mxu0
      %v2294 = vadd.f32 0.0, %v2293
      %v2295 = vpop.f32.mrb[0].mxu0
      %v2296 = vpop.f32.mrb[0].mxu0
      %v2297 = vadd.f32 0.0, %v2296
      %v2298 = vpop.f32.mrb[0].mxu0
      %2299 = vmatprep.mubr.bf16.mxu0 0
      %2300 = vmatmul.mubr.bf16.gmra.mrb[0].mxu0 %v493
      %v2301 = vpop.f32.mrb[0].mxu0
      %v2302 = vadd.f32 0.0, %v2301
      %v2303 = vpop.f32.mrb[0].mxu0
      %v2304 = vpop.f32.mrb[0].mxu0
      %v2305 = vadd.f32 0.0, %v2304
      %v2306 = vpop.f32.mrb[0].mxu0
      %2307 = vmatprep.mubr.bf16.mxu0 0
      %2308 = vmatmul.mubr.bf16.gmra.mrb[0].mxu0 %v494
      %v2309 = vpop.f32.mrb[0].mxu0
      %v2310 = vadd.f32 0.0, %v2309
      %v2311 = vpop.f32.mrb[0].mxu0
      %v2312 = vpop.f32.mrb[0].mxu0
      %v2313 = vadd.f32 0.0, %v2312
      %v2314 = vpop.f32.mrb[0].mxu0
      %2315 = vmatprep.mubr.bf16.mxu0 0
      %2316 = vmatmul.mubr.bf16.gmra.mrb[0].mxu0 %v495
      %v2317 = vpop.f32.mrb[0].mxu0
      %v2318 = vadd.f32 0.0, %v2317
      %v2319 = vpop.f32.mrb[0].mxu0
      %v2320 = vpop.f32.mrb[0].mxu0
      %v2321 = vadd.f32 0.0, %v2320
      %v2322 = vpop.f32.mrb[0].mxu0
      %2323 = vmatprep.mubr.bf16.mxu0 0
      %2324 = vmatmul.mubr.bf16.gmra.mrb[0].mxu0 %v496
      %v2325 = vpop.f32.mrb[0].mxu0
      %v2326 = vadd.f32 0.0, %v2325
      %v2327 = vpop.f32.mrb[0].mxu0
      %v2328 = vpop.f32.mrb[0].mxu0
      %v2329 = vadd.f32 0.0, %v2328
      %v2330 = vpop.f32.mrb[0].mxu0
      %2331 = vmatprep.mubr.bf16.mxu0 0
      %2332 = vmatmul.mubr.bf16.gmra.mrb[0].mxu0 %v497
      %v2333 = vpop.f32.mrb[0].mxu0
      %v2334 = vadd.f32 0.0, %v2333
      %v2335 = vpop.f32.mrb[0].mxu0
      %v2336 = vpop.f32.mrb[0].mxu0
      %v2337 = vadd.f32 0.0, %v2336
      %v2338 = vpop.f32.mrb[0].mxu0
      %2339 = vmatprep.mubr.bf16.mxu0 0
      %2340 = vmatmul.mubr.bf16.gmra.mrb[0].mxu0 %v498
      %v2341 = vpop.f32.mrb[0].mxu0
      %v2342 = vadd.f32 0.0, %v2341
      %v2343 = vpop.f32.mrb[0].mxu0
      %v2344 = vpop.f32.mrb[0].mxu0
      %v2345 = vadd.f32 0.0, %v2344
      %v2346 = vpop.f32.mrb[0].mxu0
      %2347 = vmatprep.mubr.bf16.mxu0 0
      %2348 = vmatmul.mubr.bf16.gmra.mrb[0].mxu0 %v499
      %v2349 = vpop.f32.mrb[0].mxu0
      %v2350 = vadd.f32 0.0, %v2349
      %v2351 = vpop.f32.mrb[0].mxu0
      %v2352 = vpop.f32.mrb[0].mxu0
      %v2353 = vadd.f32 0.0, %v2352
      %v2354 = vpop.f32.mrb[0].mxu0
      %2355 = vmatprep.mubr.bf16.mxu0 0
      %2356 = vmatmul.mubr.bf16.gmra.mrb[0].mxu0 %v500
      %v2357 = vpop.f32.mrb[0].mxu0
      %v2358 = vadd.f32 0.0, %v2357
      %v2359 = vpop.f32.mrb[0].mxu0
      %v2360 = vpop.f32.mrb[0].mxu0
      %v2361 = vadd.f32 0.0, %v2360
      %v2362 = vpop.f32.mrb[0].mxu0
      %2363 = vmatprep.mubr.bf16.mxu0 0
      %2364 = vmatmul.mubr.bf16.gmra.mrb[0].mxu0 %v501
      %v2365 = vpop.f32.mrb[0].mxu0
      %v2366 = vadd.f32 0.0, %v2365
      %v2367 = vpop.f32.mrb[0].mxu0
      %v2368 = vpop.f32.mrb[0].mxu0
      %v2369 = vadd.f32 0.0, %v2368
      %v2370 = vpop.f32.mrb[0].mxu0
      %2371 = vmatprep.mubr.bf16.mxu0 0
      %2372 = vmatmul.mubr.bf16.gmra.mrb[0].mxu0 %v502
      %v2373 = vpop.f32.mrb[0].mxu0
      %v2374 = vadd.f32 0.0, %v2373
      %v2375 = vpop.f32.mrb[0].mxu0
      %v2376 = vpop.f32.mrb[0].mxu0
      %v2377 = vadd.f32 0.0, %v2376
      %v2378 = vpop.f32.mrb[0].mxu0
      %2379 = vmatprep.mubr.bf16.mxu0 0
      %2380 = vmatmul.mubr.bf16.gmra.mrb[0].mxu0 %v503
      %v2381 = vpop.f32.mrb[0].mxu0
      %v2382 = vadd.f32 0.0, %v2381
      %v2383 = vpop.f32.mrb[0].mxu0
      %v2384 = vpop.f32.mrb[0].mxu0
      %v2385 = vadd.f32 0.0, %v2384
      %v2386 = vpop.f32.mrb[0].mxu0
      %2387 = vmatprep.mubr.bf16.mxu0 0
      %2388 = vmatmul.mubr.bf16.gmra.mrb[0].mxu0 %v504
      %v2389 = vpop.f32.mrb[0].mxu0
      %v2390 = vadd.f32 0.0, %v2389
      %v2391 = vpop.f32.mrb[0].mxu0
      %v2392 = vpop.f32.mrb[0].mxu0
      %v2393 = vadd.f32 0.0, %v2392
      %v2394 = vpop.f32.mrb[0].mxu0
      %2395 = vmatprep.mubr.bf16.mxu0 0
      %2396 = vmatmul.mubr.bf16.gmra.mrb[0].mxu0 %v1460
      %v2397 = vpop.f32.mrb[0].mxu0
      %v2398 = vadd.f32 0.0, %v2397
      %v2399 = vpop.f32.mrb[0].mxu0
      %v2400 = vpop.f32.mrb[0].mxu0
      %v2401 = vadd.f32 0.0, %v2400
      %v2402 = vpop.f32.mrb[0].mxu0
      %2403 = vmatprep.mubr.bf16.mxu0 0
      %2404 = vmatmul.mubr.bf16.gmra.mrb[0].mxu0 %v489
      %v2405 = vpop.f32.mrb[0].mxu0
      %v2406 = vadd.f32 0.0, %v2405
      %v2407 = vpop.f32.mrb[0].mxu0
      %v2408 = vpop.f32.mrb[0].mxu0
      %v2409 = vadd.f32 0.0, %v2408
      %v2410 = vpop.f32.mrb[0].mxu0
      %2411 = vdwg.mxu0
      %v2412 = vadd.f32 %v2171, %v2286
      %v2413 = vadd.f32 %v2172, %v2289
      %v2414 = vadd.f32 %v2173, %v2294
      %v2415 = vadd.f32 %v2174, %v2297
      %v2416 = vadd.f32 %v2175, %v2302
      %v2417 = vadd.f32 %v2176, %v2305
      %v2418 = vadd.f32 %v2177, %v2310
      %v2419 = vadd.f32 %v2178, %v2313
      %v2420 = vadd.f32 %v2179, %v2318
      %v2421 = vadd.f32 %v2180, %v2321
      %v2422 = vadd.f32 %v2181, %v2326
      %v2423 = vadd.f32 %v2182, %v2329
      %v2424 = vadd.f32 %v2183, %v2334
      %v2425 = vadd.f32 %v2184, %v2337
      %v2426 = vadd.f32 %v2185, %v2342
      %v2427 = vadd.f32 %v2186, %v2345
      %v2428 = vadd.f32 %v2187, %v2350
      %v2429 = vadd.f32 %v2188, %v2353
      %v2430 = vadd.f32 %v2189, %v2358
      %v2431 = vadd.f32 %v2190, %v2361
      %v2432 = vadd.f32 %v2191, %v2366
      %v2433 = vadd.f32 %v2192, %v2369
      %v2434 = vadd.f32 %v2193, %v2374
      %v2435 = vadd.f32 %v2194, %v2377
      %v2436 = vadd.f32 %v2195, %v2382
      %v2437 = vadd.f32 %v2196, %v2385
      %v2438 = vadd.f32 %v2197, %v2390
      %v2439 = vadd.f32 %v2198, %v2393
      %v2440 = vadd.f32 %v2199, %v2398
      %v2441 = vadd.f32 %v2200, %v2401
      %v2442 = vadd.f32 %v2201, %v2406
      %v2443 = vadd.f32 %v2202, %v2409
      %v2460 = vunpack.c.l.b16 %v457
      %v2461 = vunpack.c.l.b16 %v458
      %v2462 = vunpack.c.l.b16 %v459
      %v2463 = vunpack.c.l.b16 %v460
      %v2464 = vunpack.c.l.b16 %v461
      %v2465 = vunpack.c.l.b16 %v462
      %v2466 = vunpack.c.l.b16 %v463
      %v2467 = vunpack.c.l.b16 %v464
      %v2468 = vunpack.c.l.b16 %v465
      %v2469 = vunpack.c.l.b16 %v466
      %v2470 = vunpack.c.l.b16 %v467
      %v2471 = vunpack.c.l.b16 %v468
      %v2472 = vunpack.c.l.b16 %v469
      %v2473 = vunpack.c.l.b16 %v470
      %v2474 = vunpack.c.l.b16 %v471
      %v2475 = vunpack.c.l.b16 %v472
      %v2476 = vpack.c.b16 %v2461, %v2460
      %v2477 = vpack.c.b16 %v2463, %v2462
      %v2478 = vpack.c.b16 %v2465, %v2464
      %v2479 = vpack.c.b16 %v2467, %v2466
      %v2480 = vpack.c.b16 %v2469, %v2468
      %v2481 = vpack.c.b16 %v2471, %v2470
      %v2482 = vpack.c.b16 %v2473, %v2472
      %v2483 = vpack.c.b16 %v2475, %v2474
      %2492 = vmatprep.subr.bf16.mxu0 0
      %2493 = vmatpush1.bf16.msra.mxu0 %v2476
      %2494 = vmatprep.subr.bf16.mxu0 0
      %2495 = vmatpush1.bf16.msra.mxu0 %v2477
      %2496 = vmatprep.subr.bf16.mxu0 0
      %2497 = vmatpush1.bf16.msra.mxu0 %v2478
      %2498 = vmatprep.subr.bf16.mxu0 0
      %2499 = vmatpush1.bf16.msra.mxu0 %v2479
      %2500 = vmatprep.subr.bf16.mxu0 0
      %2501 = vmatpush1.bf16.msra.mxu0 %v2480
      %2502 = vmatprep.subr.bf16.mxu0 0
      %2503 = vmatpush1.bf16.msra.mxu0 %v2481
      %2504 = vmatprep.subr.bf16.mxu0 0
      %2505 = vmatpush1.bf16.msra.mxu0 %v2482
      %2506 = vmatprep.subr.bf16.mxu0 0
      %2507 = vmatpush1.bf16.msra.mxu0 %v2483
      %2508 = vmatprep.subr.bf16.mxu0 0
      %2509 = vmatpush1.bf16.msra.mxu0 0
      %2510 = vmatprep.subr.bf16.mxu0 0
      %2511 = vmatpush1.bf16.msra.mxu0 0
      %2512 = vmatprep.subr.bf16.mxu0 0
      %2513 = vmatpush1.bf16.msra.mxu0 0
      %2514 = vmatprep.subr.bf16.mxu0 0
      %2515 = vmatpush1.bf16.msra.mxu0 0
      %2516 = vmatprep.subr.bf16.mxu0 0
      %2517 = vmatpush1.bf16.msra.mxu0 0
      %2518 = vmatprep.subr.bf16.mxu0 0
      %2519 = vmatpush1.bf16.msra.mxu0 0
      %2520 = vmatprep.subr.bf16.mxu0 0
      %2521 = vmatpush1.bf16.msra.mxu0 0
      %2522 = vmatprep.subr.bf16.mxu0 0
      %2523 = vmatpush1.bf16.msra.mxu0 0
      %2524 = vmatprep.mubr.bf16.mxu0 0
      %2525 = vmatmul.mubr.bf16.gmra.mrb[0].mxu0 %v662
      %v2526 = vpop.f32.mrb[0].mxu0
      %v2527 = vadd.f32 0.0, %v2526
      %v2528 = vpop.f32.mrb[0].mxu0
      %v2529 = vpop.f32.mrb[0].mxu0
      %v2530 = vadd.f32 0.0, %v2529
      %v2531 = vpop.f32.mrb[0].mxu0
      %2532 = vmatprep.mubr.bf16.mxu0 0
      %2533 = vmatmul.mubr.bf16.gmra.mrb[0].mxu0 %v663
      %v2534 = vpop.f32.mrb[0].mxu0
      %v2535 = vadd.f32 0.0, %v2534
      %v2536 = vpop.f32.mrb[0].mxu0
      %v2537 = vpop.f32.mrb[0].mxu0
      %v2538 = vadd.f32 0.0, %v2537
      %v2539 = vpop.f32.mrb[0].mxu0
      %2540 = vmatprep.mubr.bf16.mxu0 0
      %2541 = vmatmul.mubr.bf16.gmra.mrb[0].mxu0 %v664
      %v2542 = vpop.f32.mrb[0].mxu0
      %v2543 = vadd.f32 0.0, %v2542
      %v2544 = vpop.f32.mrb[0].mxu0
      %v2545 = vpop.f32.mrb[0].mxu0
      %v2546 = vadd.f32 0.0, %v2545
      %v2547 = vpop.f32.mrb[0].mxu0
      %2548 = vmatprep.mubr.bf16.mxu0 0
      %2549 = vmatmul.mubr.bf16.gmra.mrb[0].mxu0 %v665
      %v2550 = vpop.f32.mrb[0].mxu0
      %v2551 = vadd.f32 0.0, %v2550
      %v2552 = vpop.f32.mrb[0].mxu0
      %v2553 = vpop.f32.mrb[0].mxu0
      %v2554 = vadd.f32 0.0, %v2553
      %v2555 = vpop.f32.mrb[0].mxu0
      %2556 = vmatprep.mubr.bf16.mxu0 0
      %2557 = vmatmul.mubr.bf16.gmra.mrb[0].mxu0 %v666
      %v2558 = vpop.f32.mrb[0].mxu0
      %v2559 = vadd.f32 0.0, %v2558
      %v2560 = vpop.f32.mrb[0].mxu0
      %v2561 = vpop.f32.mrb[0].mxu0
      %v2562 = vadd.f32 0.0, %v2561
      %v2563 = vpop.f32.mrb[0].mxu0
      %2564 = vmatprep.mubr.bf16.mxu0 0
      %2565 = vmatmul.mubr.bf16.gmra.mrb[0].mxu0 %v667
      %v2566 = vpop.f32.mrb[0].mxu0
      %v2567 = vadd.f32 0.0, %v2566
      %v2568 = vpop.f32.mrb[0].mxu0
      %v2569 = vpop.f32.mrb[0].mxu0
      %v2570 = vadd.f32 0.0, %v2569
      %v2571 = vpop.f32.mrb[0].mxu0
      %2572 = vmatprep.mubr.bf16.mxu0 0
      %2573 = vmatmul.mubr.bf16.gmra.mrb[0].mxu0 %v668
      %v2574 = vpop.f32.mrb[0].mxu0
      %v2575 = vadd.f32 0.0, %v2574
      %v2576 = vpop.f32.mrb[0].mxu0
      %v2577 = vpop.f32.mrb[0].mxu0
      %v2578 = vadd.f32 0.0, %v2577
      %v2579 = vpop.f32.mrb[0].mxu0
      %2580 = vmatprep.mubr.bf16.mxu0 0
      %2581 = vmatmul.mubr.bf16.gmra.mrb[0].mxu0 %v669
      %v2582 = vpop.f32.mrb[0].mxu0
      %v2583 = vadd.f32 0.0, %v2582
      %v2584 = vpop.f32.mrb[0].mxu0
      %v2585 = vpop.f32.mrb[0].mxu0
      %v2586 = vadd.f32 0.0, %v2585
      %v2587 = vpop.f32.mrb[0].mxu0
      %2588 = vmatprep.mubr.bf16.mxu0 0
      %2589 = vmatmul.mubr.bf16.gmra.mrb[0].mxu0 %v670
      %v2590 = vpop.f32.mrb[0].mxu0
      %v2591 = vadd.f32 0.0, %v2590
      %v2592 = vpop.f32.mrb[0].mxu0
      %v2593 = vpop.f32.mrb[0].mxu0
      %v2594 = vadd.f32 0.0, %v2593
      %v2595 = vpop.f32.mrb[0].mxu0
      %2596 = vmatprep.mubr.bf16.mxu0 0
      %2597 = vmatmul.mubr.bf16.gmra.mrb[0].mxu0 %v671
      %v2598 = vpop.f32.mrb[0].mxu0
      %v2599 = vadd.f32 0.0, %v2598
      %v2600 = vpop.f32.mrb[0].mxu0
      %v2601 = vpop.f32.mrb[0].mxu0
      %v2602 = vadd.f32 0.0, %v2601
      %v2603 = vpop.f32.mrb[0].mxu0
      %2604 = vmatprep.mubr.bf16.mxu0 0
      %2605 = vmatmul.mubr.bf16.gmra.mrb[0].mxu0 %v672
      %v2606 = vpop.f32.mrb[0].mxu0
      %v2607 = vadd.f32 0.0, %v2606
      %v2608 = vpop.f32.mrb[0].mxu0
      %v2609 = vpop.f32.mrb[0].mxu0
      %v2610 = vadd.f32 0.0, %v2609
      %v2611 = vpop.f32.mrb[0].mxu0
      %2612 = vmatprep.mubr.bf16.mxu0 0
      %2613 = vmatmul.mubr.bf16.gmra.mrb[0].mxu0 %v673
      %v2614 = vpop.f32.mrb[0].mxu0
      %v2615 = vadd.f32 0.0, %v2614
      %v2616 = vpop.f32.mrb[0].mxu0
      %v2617 = vpop.f32.mrb[0].mxu0
      %v2618 = vadd.f32 0.0, %v2617
      %v2619 = vpop.f32.mrb[0].mxu0
      %2620 = vmatprep.mubr.bf16.mxu0 0
      %2621 = vmatmul.mubr.bf16.gmra.mrb[0].mxu0 %v674
      %v2622 = vpop.f32.mrb[0].mxu0
      %v2623 = vadd.f32 0.0, %v2622
      %v2624 = vpop.f32.mrb[0].mxu0
      %v2625 = vpop.f32.mrb[0].mxu0
      %v2626 = vadd.f32 0.0, %v2625
      %v2627 = vpop.f32.mrb[0].mxu0
      %2628 = vmatprep.mubr.bf16.mxu0 0
      %2629 = vmatmul.mubr.bf16.gmra.mrb[0].mxu0 %v675
      %v2630 = vpop.f32.mrb[0].mxu0
      %v2631 = vadd.f32 0.0, %v2630
      %v2632 = vpop.f32.mrb[0].mxu0
      %v2633 = vpop.f32.mrb[0].mxu0
      %v2634 = vadd.f32 0.0, %v2633
      %v2635 = vpop.f32.mrb[0].mxu0
      %2636 = vmatprep.mubr.bf16.mxu0 0
      %2637 = vmatmul.mubr.bf16.gmra.mrb[0].mxu0 %v1712
      %v2638 = vpop.f32.mrb[0].mxu0
      %v2639 = vadd.f32 0.0, %v2638
      %v2640 = vpop.f32.mrb[0].mxu0
      %v2641 = vpop.f32.mrb[0].mxu0
      %v2642 = vadd.f32 0.0, %v2641
      %v2643 = vpop.f32.mrb[0].mxu0
      %2644 = vmatprep.mubr.bf16.mxu0 0
      %2645 = vmatmul.mubr.bf16.gmra.mrb[0].mxu0 %v660
      %v2646 = vpop.f32.mrb[0].mxu0
      %v2647 = vadd.f32 0.0, %v2646
      %v2648 = vpop.f32.mrb[0].mxu0
      %v2649 = vpop.f32.mrb[0].mxu0
      %v2650 = vadd.f32 0.0, %v2649
      %v2651 = vpop.f32.mrb[0].mxu0
      %2652 = vdwg.mxu0
      %v2653 = vadd.f32 %v2412, %v2527
      %v2654 = vadd.f32 %v2413, %v2530
      %v2655 = vadd.f32 %v2414, %v2535
      %v2656 = vadd.f32 %v2415, %v2538
      %v2657 = vadd.f32 %v2416, %v2543
      %v2658 = vadd.f32 %v2417, %v2546
      %v2659 = vadd.f32 %v2418, %v2551
      %v2660 = vadd.f32 %v2419, %v2554
      %v2661 = vadd.f32 %v2420, %v2559
      %v2662 = vadd.f32 %v2421, %v2562
      %v2663 = vadd.f32 %v2422, %v2567
      %v2664 = vadd.f32 %v2423, %v2570
      %v2665 = vadd.f32 %v2424, %v2575
      %v2666 = vadd.f32 %v2425, %v2578
      %v2667 = vadd.f32 %v2426, %v2583
      %v2668 = vadd.f32 %v2427, %v2586
      %v2669 = vadd.f32 %v2428, %v2591
      %v2670 = vadd.f32 %v2429, %v2594
      %v2671 = vadd.f32 %v2430, %v2599
      %v2672 = vadd.f32 %v2431, %v2602
      %v2673 = vadd.f32 %v2432, %v2607
      %v2674 = vadd.f32 %v2433, %v2610
      %v2675 = vadd.f32 %v2434, %v2615
      %v2676 = vadd.f32 %v2435, %v2618
      %v2677 = vadd.f32 %v2436, %v2623
      %v2678 = vadd.f32 %v2437, %v2626
      %v2679 = vadd.f32 %v2438, %v2631
      %v2680 = vadd.f32 %v2439, %v2634
      %v2681 = vadd.f32 %v2440, %v2639
      %v2682 = vadd.f32 %v2441, %v2642
      %v2683 = vadd.f32 %v2442, %v2647
      %v2684 = vadd.f32 %v2443, %v2650
      %v2701 = vunpack.c.l.b16 %v473
      %v2702 = vunpack.c.l.b16 %v474
      %v2703 = vunpack.c.l.b16 %v475
      %v2704 = vunpack.c.l.b16 %v476
      %v2705 = vunpack.c.l.b16 %v477
      %v2706 = vunpack.c.l.b16 %v478
      %v2707 = vunpack.c.l.b16 %v479
      %v2708 = vunpack.c.l.b16 %v480
      %v2709 = vunpack.c.l.b16 %v481
      %v2710 = vunpack.c.l.b16 %v482
      %v2711 = vunpack.c.l.b16 %v483
      %v2712 = vunpack.c.l.b16 %v484
      %v2713 = vunpack.c.l.b16 %v485
      %v2714 = vunpack.c.l.b16 %v486
      %v2715 = vunpack.c.l.b16 %v487
      %v2716 = vunpack.c.l.b16 %v488
      %v2717 = vpack.c.b16 %v2702, %v2701
      %v2718 = vpack.c.b16 %v2704, %v2703
      %v2719 = vpack.c.b16 %v2706, %v2705
      %v2720 = vpack.c.b16 %v2708, %v2707
      %v2721 = vpack.c.b16 %v2710, %v2709
      %v2722 = vpack.c.b16 %v2712, %v2711
      %v2723 = vpack.c.b16 %v2714, %v2713
      %v2724 = vpack.c.b16 %v2716, %v2715
      %2733 = vmatprep.subr.bf16.mxu0 0
      %2734 = vmatpush1.bf16.msra.mxu0 %v2717
      %2735 = vmatprep.subr.bf16.mxu0 0
      %2736 = vmatpush1.bf16.msra.mxu0 %v2718
      %2737 = vmatprep.subr.bf16.mxu0 0
      %2738 = vmatpush1.bf16.msra.mxu0 %v2719
      %2739 = vmatprep.subr.bf16.mxu0 0
      %2740 = vmatpush1.bf16.msra.mxu0 %v2720
      %2741 = vmatprep.subr.bf16.mxu0 0
      %2742 = vmatpush1.bf16.msra.mxu0 %v2721
      %2743 = vmatprep.subr.bf16.mxu0 0
      %2744 = vmatpush1.bf16.msra.mxu0 %v2722
      %2745 = vmatprep.subr.bf16.mxu0 0
      %2746 = vmatpush1.bf16.msra.mxu0 %v2723
      %2747 = vmatprep.subr.bf16.mxu0 0
      %2748 = vmatpush1.bf16.msra.mxu0 %v2724
      %2749 = vmatprep.subr.bf16.mxu0 0
      %2750 = vmatpush1.bf16.msra.mxu0 0
      %2751 = vmatprep.subr.bf16.mxu0 0
      %2752 = vmatpush1.bf16.msra.mxu0 0
      %2753 = vmatprep.subr.bf16.mxu0 0
      %2754 = vmatpush1.bf16.msra.mxu0 0
      %2755 = vmatprep.subr.bf16.mxu0 0
      %2756 = vmatpush1.bf16.msra.mxu0 0
      %2757 = vmatprep.subr.bf16.mxu0 0
      %2758 = vmatpush1.bf16.msra.mxu0 0
      %2759 = vmatprep.subr.bf16.mxu0 0
      %2760 = vmatpush1.bf16.msra.mxu0 0
      %2761 = vmatprep.subr.bf16.mxu0 0
      %2762 = vmatpush1.bf16.msra.mxu0 0
      %2763 = vmatprep.subr.bf16.mxu0 0
      %2764 = vmatpush1.bf16.msra.mxu0 0
      %2765 = vmatprep.mubr.bf16.mxu0 0
      %2766 = vmatmul.mubr.bf16.gmra.mrb[0].mxu0 %v1205
      %v2767 = vpop.f32.mrb[0].mxu0
      %v2768 = vadd.f32 0.0, %v2767
      %v2769 = vpop.f32.mrb[0].mxu0
      %v2770 = vpop.f32.mrb[0].mxu0
      %v2771 = vadd.f32 0.0, %v2770
      %v2772 = vpop.f32.mrb[0].mxu0
      %2773 = vmatprep.mubr.bf16.mxu0 0
      %2774 = vmatmul.mubr.bf16.gmra.mrb[0].mxu0 %v1206
      %v2775 = vpop.f32.mrb[0].mxu0
      %v2776 = vadd.f32 0.0, %v2775
      %v2777 = vpop.f32.mrb[0].mxu0
      %v2778 = vpop.f32.mrb[0].mxu0
      %v2779 = vadd.f32 0.0, %v2778
      %v2780 = vpop.f32.mrb[0].mxu0
      %2781 = vmatprep.mubr.bf16.mxu0 0
      %2782 = vmatmul.mubr.bf16.gmra.mrb[0].mxu0 %v1207
      %v2783 = vpop.f32.mrb[0].mxu0
      %v2784 = vadd.f32 0.0, %v2783
      %v2785 = vpop.f32.mrb[0].mxu0
      %v2786 = vpop.f32.mrb[0].mxu0
      %v2787 = vadd.f32 0.0, %v2786
      %v2788 = vpop.f32.mrb[0].mxu0
      %2789 = vmatprep.mubr.bf16.mxu0 0
      %2790 = vmatmul.mubr.bf16.gmra.mrb[0].mxu0 %v1208
      %v2791 = vpop.f32.mrb[0].mxu0
      %v2792 = vadd.f32 0.0, %v2791
      %v2793 = vpop.f32.mrb[0].mxu0
      %v2794 = vpop.f32.mrb[0].mxu0
      %v2795 = vadd.f32 0.0, %v2794
      %v2796 = vpop.f32.mrb[0].mxu0
      %2797 = vmatprep.mubr.bf16.mxu0 0
      %2798 = vmatmul.mubr.bf16.gmra.mrb[0].mxu0 %v1209
      %v2799 = vpop.f32.mrb[0].mxu0
      %v2800 = vadd.f32 0.0, %v2799
      %v2801 = vpop.f32.mrb[0].mxu0
      %v2802 = vpop.f32.mrb[0].mxu0
      %v2803 = vadd.f32 0.0, %v2802
      %v2804 = vpop.f32.mrb[0].mxu0
      %2805 = vmatprep.mubr.bf16.mxu0 0
      %2806 = vmatmul.mubr.bf16.gmra.mrb[0].mxu0 %v1210
      %v2807 = vpop.f32.mrb[0].mxu0
      %v2808 = vadd.f32 0.0, %v2807
      %v2809 = vpop.f32.mrb[0].mxu0
      %v2810 = vpop.f32.mrb[0].mxu0
      %v2811 = vadd.f32 0.0, %v2810
      %v2812 = vpop.f32.mrb[0].mxu0
      %2813 = vmatprep.mubr.bf16.mxu0 0
      %2814 = vmatmul.mubr.bf16.gmra.mrb[0].mxu0 %v1211
      %v2815 = vpop.f32.mrb[0].mxu0
      %v2816 = vadd.f32 0.0, %v2815
      %v2817 = vpop.f32.mrb[0].mxu0
      %v2818 = vpop.f32.mrb[0].mxu0
      %v2819 = vadd.f32 0.0, %v2818
      %v2820 = vpop.f32.mrb[0].mxu0
      %2821 = vmatprep.mubr.bf16.mxu0 0
      %2822 = vmatmul.mubr.bf16.gmra.mrb[0].mxu0 %v1212
      %v2823 = vpop.f32.mrb[0].mxu0
      %v2824 = vadd.f32 0.0, %v2823
      %v2825 = vpop.f32.mrb[0].mxu0
      %v2826 = vpop.f32.mrb[0].mxu0
      %v2827 = vadd.f32 0.0, %v2826
      %v2828 = vpop.f32.mrb[0].mxu0
      %2829 = vmatprep.mubr.bf16.mxu0 0
      %2830 = vmatmul.mubr.bf16.gmra.mrb[0].mxu0 %v1213
      %v2831 = vpop.f32.mrb[0].mxu0
      %v2832 = vadd.f32 0.0, %v2831
      %v2833 = vpop.f32.mrb[0].mxu0
      %v2834 = vpop.f32.mrb[0].mxu0
      %v2835 = vadd.f32 0.0, %v2834
      %v2836 = vpop.f32.mrb[0].mxu0
      %2837 = vmatprep.mubr.bf16.mxu0 0
      %2838 = vmatmul.mubr.bf16.gmra.mrb[0].mxu0 %v1214
      %v2839 = vpop.f32.mrb[0].mxu0
      %v2840 = vadd.f32 0.0, %v2839
      %v2841 = vpop.f32.mrb[0].mxu0
      %v2842 = vpop.f32.mrb[0].mxu0
      %v2843 = vadd.f32 0.0, %v2842
      %v2844 = vpop.f32.mrb[0].mxu0
      %2845 = vmatprep.mubr.bf16.mxu0 0
      %2846 = vmatmul.mubr.bf16.gmra.mrb[0].mxu0 %v1215
      %v2847 = vpop.f32.mrb[0].mxu0
      %v2848 = vadd.f32 0.0, %v2847
      %v2849 = vpop.f32.mrb[0].mxu0
      %v2850 = vpop.f32.mrb[0].mxu0
      %v2851 = vadd.f32 0.0, %v2850
      %v2852 = vpop.f32.mrb[0].mxu0
      %2853 = vmatprep.mubr.bf16.mxu0 0
      %2854 = vmatmul.mubr.bf16.gmra.mrb[0].mxu0 %v1216
      %v2855 = vpop.f32.mrb[0].mxu0
      %v2856 = vadd.f32 0.0, %v2855
      %v2857 = vpop.f32.mrb[0].mxu0
      %v2858 = vpop.f32.mrb[0].mxu0
      %v2859 = vadd.f32 0.0, %v2858
      %v2860 = vpop.f32.mrb[0].mxu0
      %2861 = vmatprep.mubr.bf16.mxu0 0
      %2862 = vmatmul.mubr.bf16.gmra.mrb[0].mxu0 %v1217
      %v2863 = vpop.f32.mrb[0].mxu0
      %v2864 = vadd.f32 0.0, %v2863
      %v2865 = vpop.f32.mrb[0].mxu0
      %v2866 = vpop.f32.mrb[0].mxu0
      %v2867 = vadd.f32 0.0, %v2866
      %v2868 = vpop.f32.mrb[0].mxu0
      %2869 = vmatprep.mubr.bf16.mxu0 0
      %2870 = vmatmul.mubr.bf16.gmra.mrb[0].mxu0 %v1218
      %v2871 = vpop.f32.mrb[0].mxu0
      %v2872 = vadd.f32 0.0, %v2871
      %v2873 = vpop.f32.mrb[0].mxu0
      %v2874 = vpop.f32.mrb[0].mxu0
      %v2875 = vadd.f32 0.0, %v2874
      %v2876 = vpop.f32.mrb[0].mxu0
      %2877 = vmatprep.mubr.bf16.mxu0 0
      %2878 = vmatmul.mubr.bf16.gmra.mrb[0].mxu0 %v1961
      %v2879 = vpop.f32.mrb[0].mxu0
      %v2880 = vadd.f32 0.0, %v2879
      %v2881 = vpop.f32.mrb[0].mxu0
      %v2882 = vpop.f32.mrb[0].mxu0
      %v2883 = vadd.f32 0.0, %v2882
      %v2884 = vpop.f32.mrb[0].mxu0
      %2885 = vmatprep.mubr.bf16.mxu0 0
      %2886 = vmatmul.mubr.bf16.gmra.mrb[0].mxu0 %v1203
      %v2887 = vpop.f32.mrb[0].mxu0
      %v2888 = vadd.f32 0.0, %v2887
      %v2889 = vpop.f32.mrb[0].mxu0
      %v2890 = vpop.f32.mrb[0].mxu0
      %v2891 = vadd.f32 0.0, %v2890
      %v2892 = vpop.f32.mrb[0].mxu0
      %2893 = vdwg.mxu0
      %v2894 = vadd.f32 %v2653, %v2768
      %v2895 = vadd.f32 %v2654, %v2771
      %v2896 = vadd.f32 %v2655, %v2776
      %v2897 = vadd.f32 %v2656, %v2779
      %v2898 = vadd.f32 %v2657, %v2784
      %v2899 = vadd.f32 %v2658, %v2787
      %v2900 = vadd.f32 %v2659, %v2792
      %v2901 = vadd.f32 %v2660, %v2795
      %v2902 = vadd.f32 %v2661, %v2800
      %v2903 = vadd.f32 %v2662, %v2803
      %v2904 = vadd.f32 %v2663, %v2808
      %v2905 = vadd.f32 %v2664, %v2811
      %v2906 = vadd.f32 %v2665, %v2816
      %v2907 = vadd.f32 %v2666, %v2819
      %v2908 = vadd.f32 %v2667, %v2824
      %v2909 = vadd.f32 %v2668, %v2827
      %v2910 = vadd.f32 %v2669, %v2832
      %v2911 = vadd.f32 %v2670, %v2835
      %v2912 = vadd.f32 %v2671, %v2840
      %v2913 = vadd.f32 %v2672, %v2843
      %v2914 = vadd.f32 %v2673, %v2848
      %v2915 = vadd.f32 %v2674, %v2851
      %v2916 = vadd.f32 %v2675, %v2856
      %v2917 = vadd.f32 %v2676, %v2859
      %v2918 = vadd.f32 %v2677, %v2864
      %v2919 = vadd.f32 %v2678, %v2867
      %v2920 = vadd.f32 %v2679, %v2872
      %v2921 = vadd.f32 %v2680, %v2875
      %v2922 = vadd.f32 %v2681, %v2880
      %v2923 = vadd.f32 %v2682, %v2883
      %v2924 = vadd.f32 %v2683, %v2888
      %v2925 = vadd.f32 %v2684, %v2891
      %2926 = vst [vmem:[%s238] sm:$0xff] %v2894
      %2927 = vst [vmem:[%s238 + $0x8] sm:$0xff] %v2895
      %2928 = vst [vmem:[%s238 + $0x10] sm:$0xff] %v2896
      %2929 = vst [vmem:[%s238 + $0x18] sm:$0xff] %v2897
      %2930 = vst [vmem:[%s238 + $0x20] sm:$0xff] %v2898
      %2931 = vst [vmem:[%s238 + $0x28] sm:$0xff] %v2899
      %2932 = vst [vmem:[%s238 + $0x30] sm:$0xff] %v2900
      %2933 = vst [vmem:[%s238 + $0x38] sm:$0xff] %v2901
      %2934 = vst [vmem:[%s238 + $0x40] sm:$0xff] %v2902
      %2935 = vst [vmem:[%s238 + $0x48] sm:$0xff] %v2903
      %2936 = vst [vmem:[%s238 + $0x50] sm:$0xff] %v2904
      %2937 = vst [vmem:[%s238 + $0x58] sm:$0xff] %v2905
      %2938 = vst [vmem:[%s238 + $0x60] sm:$0xff] %v2906
      %2939 = vst [vmem:[%s238 + $0x68] sm:$0xff] %v2907
      %2940 = vst [vmem:[%s238 + $0x70] sm:$0xff] %v2908
      %2941 = vst [vmem:[%s238 + $0x78] sm:$0xff] %v2909
      %2942 = vst [vmem:[%s238 + $0x80] sm:$0xff] %v2910
      %2943 = vst [vmem:[%s238 + $0x88] sm:$0xff] %v2911
      %2944 = vst [vmem:[%s238 + $0x90] sm:$0xff] %v2912
      %2945 = vst [vmem:[%s238 + $0x98] sm:$0xff] %v2913
      %2946 = vst [vmem:[%s238 + $0xa0] sm:$0xff] %v2914
      %2947 = vst [vmem:[%s238 + $0xa8] sm:$0xff] %v2915
      %2948 = vst [vmem:[%s238 + $0xb0] sm:$0xff] %v2916
      %2949 = vst [vmem:[%s238 + $0xb8] sm:$0xff] %v2917
      %2950 = vst [vmem:[%s238 + $0xc0] sm:$0xff] %v2918
      %2951 = vst [vmem:[%s238 + $0xc8] sm:$0xff] %v2919
      %2952 = vst [vmem:[%s238 + $0xd0] sm:$0xff] %v2920
      %2953 = vst [vmem:[%s238 + $0xd8] sm:$0xff] %v2921
      %2954 = vst [vmem:[%s238 + $0xe0] sm:$0xff] %v2922
      %2955 = vst [vmem:[%s238 + $0xe8] sm:$0xff] %v2923
      %2956 = vst [vmem:[%s238 + $0xf0] sm:$0xff] %v2924
      %2957 = vst [vmem:[%s238 + $0xf8] sm:$0xff] %v2925
      %v2958 = vadd.f32 %v2894, %v2895
      %v2959 = vadd.f32 %v2958, %v2896
      %v2960 = vadd.f32 %v2959, %v2897
      %v2961 = vadd.f32 %v2960, %v2898
      %v2962 = vadd.f32 %v2961, %v2899
      %v2963 = vadd.f32 %v2962, %v2900
      %v2964 = vadd.f32 %v2963, %v2901
      %v2965 = vadd.f32 %v2964, %v2902
      %v2966 = vadd.f32 %v2965, %v2903
      %v2967 = vadd.f32 %v2966, %v2904
      %v2968 = vadd.f32 %v2967, %v2905
      %v2969 = vadd.f32 %v2968, %v2906
      %v2970 = vadd.f32 %v2969, %v2907
      %v2971 = vadd.f32 %v2970, %v2908
      %v2972 = vadd.f32 %v2971, %v2909
      %v2973 = vadd.f32 %v2972, %v2910
      %v2974 = vadd.f32 %v2973, %v2911
      %v2975 = vadd.f32 %v2974, %v2912
      %v2976 = vadd.f32 %v2975, %v2913
      %v2977 = vadd.f32 %v2976, %v2914
      %v2978 = vadd.f32 %v2977, %v2915
      %v2979 = vadd.f32 %v2978, %v2916
      %v2980 = vadd.f32 %v2979, %v2917
      %v2981 = vadd.f32 %v2980, %v2918
      %v2982 = vadd.f32 %v2981, %v2919
      %v2983 = vadd.f32 %v2982, %v2920
      %v2984 = vadd.f32 %v2983, %v2921
      %v2985 = vadd.f32 %v2984, %v2922
      %v2986 = vadd.f32 %v2985, %v2923
      %v2987 = vadd.f32 %v2986, %v2924
      %v2988 = vadd.f32 %v2987, %v2925
      %v2989 = vrot.slane %v2988, 4
      %v2990 = vadd.f32 %v2988, %v2989
      %v2991 = vrot.slane %v2990, 2
      %v2992 = vadd.f32 %v2990, %v2991
      %v2993 = vrot.slane %v2992, 1
      %v2994 = vadd.f32 %v2992, %v2993
      %2995 = vst [vmem:[%s247] sm:$0x1] %v2994
      %v2996 = vmul.f32 %v2894, %v2894
      %v2997 = vmul.f32 %v2895, %v2895
      %v2998 = vmul.f32 %v2896, %v2896
      %v2999 = vmul.f32 %v2897, %v2897
      %v3000 = vmul.f32 %v2898, %v2898
      %v3001 = vmul.f32 %v2899, %v2899
      %v3002 = vmul.f32 %v2900, %v2900
      %v3003 = vmul.f32 %v2901, %v2901
      %v3004 = vmul.f32 %v2902, %v2902
      %v3005 = vmul.f32 %v2903, %v2903
      %v3006 = vmul.f32 %v2904, %v2904
      %v3007 = vmul.f32 %v2905, %v2905
      %v3008 = vmul.f32 %v2906, %v2906
      %v3009 = vmul.f32 %v2907, %v2907
      %v3010 = vmul.f32 %v2908, %v2908
      %v3011 = vmul.f32 %v2909, %v2909
      %v3012 = vmul.f32 %v2910, %v2910
      %v3013 = vmul.f32 %v2911, %v2911
      %v3014 = vmul.f32 %v2912, %v2912
      %v3015 = vmul.f32 %v2913, %v2913
      %v3016 = vmul.f32 %v2914, %v2914
      %v3017 = vmul.f32 %v2915, %v2915
      %v3018 = vmul.f32 %v2916, %v2916
      %v3019 = vmul.f32 %v2917, %v2917
      %v3020 = vmul.f32 %v2918, %v2918
      %v3021 = vmul.f32 %v2919, %v2919
      %v3022 = vmul.f32 %v2920, %v2920
      %v3023 = vmul.f32 %v2921, %v2921
      %v3024 = vmul.f32 %v2922, %v2922
      %v3025 = vmul.f32 %v2923, %v2923
      %v3026 = vmul.f32 %v2924, %v2924
      %v3027 = vmul.f32 %v2925, %v2925
      %v3028 = vadd.f32 %v2996, %v2997
      %v3029 = vadd.f32 %v3028, %v2998
      %v3030 = vadd.f32 %v3029, %v2999
      %v3031 = vadd.f32 %v3030, %v3000
      %v3032 = vadd.f32 %v3031, %v3001
      %v3033 = vadd.f32 %v3032, %v3002
      %v3034 = vadd.f32 %v3033, %v3003
      %v3035 = vadd.f32 %v3034, %v3004
      %v3036 = vadd.f32 %v3035, %v3005
      %v3037 = vadd.f32 %v3036, %v3006
      %v3038 = vadd.f32 %v3037, %v3007
      %v3039 = vadd.f32 %v3038, %v3008
      %v3040 = vadd.f32 %v3039, %v3009
      %v3041 = vadd.f32 %v3040, %v3010
      %v3042 = vadd.f32 %v3041, %v3011
      %v3043 = vadd.f32 %v3042, %v3012
      %v3044 = vadd.f32 %v3043, %v3013
      %v3045 = vadd.f32 %v3044, %v3014
      %v3046 = vadd.f32 %v3045, %v3015
      %v3047 = vadd.f32 %v3046, %v3016
      %v3048 = vadd.f32 %v3047, %v3017
      %v3049 = vadd.f32 %v3048, %v3018
      %v3050 = vadd.f32 %v3049, %v3019
      %v3051 = vadd.f32 %v3050, %v3020
      %v3052 = vadd.f32 %v3051, %v3021
      %v3053 = vadd.f32 %v3052, %v3022
      %v3054 = vadd.f32 %v3053, %v3023
      %v3055 = vadd.f32 %v3054, %v3024
      %v3056 = vadd.f32 %v3055, %v3025
      %v3057 = vadd.f32 %v3056, %v3026
      %v3058 = vadd.f32 %v3057, %v3027
      %v3059 = vrot.slane %v3058, 4
      %v3060 = vadd.f32 %v3058, %v3059
      %v3061 = vrot.slane %v3060, 2
      %v3062 = vadd.f32 %v3060, %v3061
      %v3063 = vrot.slane %v3062, 1
      %v3064 = vadd.f32 %v3062, %v3063
      %3065 = vst [vmem:[%s247 + $0x1] sm:$0x1] %v3064
      %v3066 = vld [vmem:[%s2] sm:$0xf]
      %v3067 = vld [vmem:[%s2 + $0x4] sm:$0xf]
      %v3068 = vld [vmem:[%s2 + $0x8] sm:$0xf]
      %v3069 = vld [vmem:[%s2 + $0xc] sm:$0xf]
      %v3070 = vld [vmem:[%s2 + $0x10] sm:$0xf]
      %v3071 = vld [vmem:[%s2 + $0x14] sm:$0xf]
      %v3072 = vld [vmem:[%s2 + $0x18] sm:$0xf]
      %v3073 = vld [vmem:[%s2 + $0x1c] sm:$0xf]
      %v3074 = vld [vmem:[%s2 + $0x20] sm:$0xf]
      %v3075 = vld [vmem:[%s2 + $0x24] sm:$0xf]
      %v3076 = vld [vmem:[%s2 + $0x28] sm:$0xf]
      %v3077 = vld [vmem:[%s2 + $0x2c] sm:$0xf]
      %v3078 = vld [vmem:[%s2 + $0x30] sm:$0xf]
      %v3079 = vld [vmem:[%s2 + $0x34] sm:$0xf]
      %v3080 = vld [vmem:[%s2 + $0x38] sm:$0xf]
      %v3081 = vld [vmem:[%s2 + $0x3c] sm:$0xf]
      %v3098 = vunpack.c.l.b16 %v3066
      %v3099 = vunpack.c.l.b16 %v3067
      %v3100 = vunpack.c.l.b16 %v3068
      %v3101 = vunpack.c.l.b16 %v3069
      %v3102 = vunpack.c.l.b16 %v3070
      %v3103 = vunpack.c.l.b16 %v3071
      %v3104 = vunpack.c.l.b16 %v3072
      %v3105 = vunpack.c.l.b16 %v3073
      %v3106 = vunpack.c.l.b16 %v3074
      %v3107 = vunpack.c.l.b16 %v3075
      %v3108 = vunpack.c.l.b16 %v3076
      %v3109 = vunpack.c.l.b16 %v3077
      %v3110 = vunpack.c.l.b16 %v3078
      %v3111 = vunpack.c.l.b16 %v3079
      %v3112 = vunpack.c.l.b16 %v3080
      %v3113 = vunpack.c.l.b16 %v3081
      %v3114 = vpack.c.b16 %v3099, %v3098
      %v3115 = vpack.c.b16 %v3101, %v3100
      %v3116 = vpack.c.b16 %v3103, %v3102
      %v3117 = vpack.c.b16 %v3105, %v3104
      %v3118 = vpack.c.b16 %v3107, %v3106
      %v3119 = vpack.c.b16 %v3109, %v3108
      %v3120 = vpack.c.b16 %v3111, %v3110
      %v3121 = vpack.c.b16 %v3113, %v3112
      %3130 = vmatprep.subr.bf16.mxu0 0
      %3131 = vmatpush1.bf16.msra.mxu0 %v3114
      %3132 = vmatprep.subr.bf16.mxu0 0
      %3133 = vmatpush1.bf16.msra.mxu0 %v3115
      %3134 = vmatprep.subr.bf16.mxu0 0
      %3135 = vmatpush1.bf16.msra.mxu0 %v3116
      %3136 = vmatprep.subr.bf16.mxu0 0
      %3137 = vmatpush1.bf16.msra.mxu0 %v3117
      %3138 = vmatprep.subr.bf16.mxu0 0
      %3139 = vmatpush1.bf16.msra.mxu0 %v3118
      %3140 = vmatprep.subr.bf16.mxu0 0
      %3141 = vmatpush1.bf16.msra.mxu0 %v3119
      %3142 = vmatprep.subr.bf16.mxu0 0
      %3143 = vmatpush1.bf16.msra.mxu0 %v3120
      %3144 = vmatprep.subr.bf16.mxu0 0
      %3145 = vmatpush1.bf16.msra.mxu0 %v3121
      %3146 = vmatprep.subr.bf16.mxu0 0
      %3147 = vmatpush1.bf16.msra.mxu0 0
      %3148 = vmatprep.subr.bf16.mxu0 0
      %3149 = vmatpush1.bf16.msra.mxu0 0
      %3150 = vmatprep.subr.bf16.mxu0 0
      %3151 = vmatpush1.bf16.msra.mxu0 0
      %3152 = vmatprep.subr.bf16.mxu0 0
      %3153 = vmatpush1.bf16.msra.mxu0 0
      %3154 = vmatprep.subr.bf16.mxu0 0
      %3155 = vmatpush1.bf16.msra.mxu0 0
      %3156 = vmatprep.subr.bf16.mxu0 0
      %3157 = vmatpush1.bf16.msra.mxu0 0
      %3158 = vmatprep.subr.bf16.mxu0 0
      %3159 = vmatpush1.bf16.msra.mxu0 0
      %3160 = vmatprep.subr.bf16.mxu0 0
      %3161 = vmatpush1.bf16.msra.mxu0 0
      %3162 = vmatprep.mubr.bf16.mxu0 0
      %3163 = vmatmul.mubr.bf16.gmra.mrb[0].mxu0 %v661
      %v3164 = vpop.f32.mrb[0].mxu0
      %v3165 = vadd.f32 0.0, %v3164
      %v3166 = vpop.f32.mrb[0].mxu0
      %v3167 = vpop.f32.mrb[0].mxu0
      %v3168 = vadd.f32 0.0, %v3167
      %v3169 = vpop.f32.mrb[0].mxu0
      %3170 = vmatprep.mubr.bf16.mxu0 0
      %3171 = vmatmul.mubr.bf16.gmra.mrb[0].mxu0 %v662
      %v3172 = vpop.f32.mrb[0].mxu0
      %v3173 = vadd.f32 0.0, %v3172
      %v3174 = vpop.f32.mrb[0].mxu0
      %v3175 = vpop.f32.mrb[0].mxu0
      %v3176 = vadd.f32 0.0, %v3175
      %v3177 = vpop.f32.mrb[0].mxu0
      %3178 = vmatprep.mubr.bf16.mxu0 0
      %3179 = vmatmul.mubr.bf16.gmra.mrb[0].mxu0 %v663
      %v3180 = vpop.f32.mrb[0].mxu0
      %v3181 = vadd.f32 0.0, %v3180
      %v3182 = vpop.f32.mrb[0].mxu0
      %v3183 = vpop.f32.mrb[0].mxu0
      %v3184 = vadd.f32 0.0, %v3183
      %v3185 = vpop.f32.mrb[0].mxu0
      %3186 = vmatprep.mubr.bf16.mxu0 0
      %3187 = vmatmul.mubr.bf16.gmra.mrb[0].mxu0 %v664
      %v3188 = vpop.f32.mrb[0].mxu0
      %v3189 = vadd.f32 0.0, %v3188
      %v3190 = vpop.f32.mrb[0].mxu0
      %v3191 = vpop.f32.mrb[0].mxu0
      %v3192 = vadd.f32 0.0, %v3191
      %v3193 = vpop.f32.mrb[0].mxu0
      %3194 = vmatprep.mubr.bf16.mxu0 0
      %3195 = vmatmul.mubr.bf16.gmra.mrb[0].mxu0 %v665
      %v3196 = vpop.f32.mrb[0].mxu0
      %v3197 = vadd.f32 0.0, %v3196
      %v3198 = vpop.f32.mrb[0].mxu0
      %v3199 = vpop.f32.mrb[0].mxu0
      %v3200 = vadd.f32 0.0, %v3199
      %v3201 = vpop.f32.mrb[0].mxu0
      %3202 = vmatprep.mubr.bf16.mxu0 0
      %3203 = vmatmul.mubr.bf16.gmra.mrb[0].mxu0 %v666
      %v3204 = vpop.f32.mrb[0].mxu0
      %v3205 = vadd.f32 0.0, %v3204
      %v3206 = vpop.f32.mrb[0].mxu0
      %v3207 = vpop.f32.mrb[0].mxu0
      %v3208 = vadd.f32 0.0, %v3207
      %v3209 = vpop.f32.mrb[0].mxu0
      %3210 = vmatprep.mubr.bf16.mxu0 0
      %3211 = vmatmul.mubr.bf16.gmra.mrb[0].mxu0 %v667
      %v3212 = vpop.f32.mrb[0].mxu0
      %v3213 = vadd.f32 0.0, %v3212
      %v3214 = vpop.f32.mrb[0].mxu0
      %v3215 = vpop.f32.mrb[0].mxu0
      %v3216 = vadd.f32 0.0, %v3215
      %v3217 = vpop.f32.mrb[0].mxu0
      %3218 = vmatprep.mubr.bf16.mxu0 0
      %3219 = vmatmul.mubr.bf16.gmra.mrb[0].mxu0 %v668
      %v3220 = vpop.f32.mrb[0].mxu0
      %v3221 = vadd.f32 0.0, %v3220
      %v3222 = vpop.f32.mrb[0].mxu0
      %v3223 = vpop.f32.mrb[0].mxu0
      %v3224 = vadd.f32 0.0, %v3223
      %v3225 = vpop.f32.mrb[0].mxu0
      %3226 = vmatprep.mubr.bf16.mxu0 0
      %3227 = vmatmul.mubr.bf16.gmra.mrb[0].mxu0 %v669
      %v3228 = vpop.f32.mrb[0].mxu0
      %v3229 = vadd.f32 0.0, %v3228
      %v3230 = vpop.f32.mrb[0].mxu0
      %v3231 = vpop.f32.mrb[0].mxu0
      %v3232 = vadd.f32 0.0, %v3231
      %v3233 = vpop.f32.mrb[0].mxu0
      %3234 = vmatprep.mubr.bf16.mxu0 0
      %3235 = vmatmul.mubr.bf16.gmra.mrb[0].mxu0 %v670
      %v3236 = vpop.f32.mrb[0].mxu0
      %v3237 = vadd.f32 0.0, %v3236
      %v3238 = vpop.f32.mrb[0].mxu0
      %v3239 = vpop.f32.mrb[0].mxu0
      %v3240 = vadd.f32 0.0, %v3239
      %v3241 = vpop.f32.mrb[0].mxu0
      %3242 = vmatprep.mubr.bf16.mxu0 0
      %3243 = vmatmul.mubr.bf16.gmra.mrb[0].mxu0 %v671
      %v3244 = vpop.f32.mrb[0].mxu0
      %v3245 = vadd.f32 0.0, %v3244
      %v3246 = vpop.f32.mrb[0].mxu0
      %v3247 = vpop.f32.mrb[0].mxu0
      %v3248 = vadd.f32 0.0, %v3247
      %v3249 = vpop.f32.mrb[0].mxu0
      %3250 = vmatprep.mubr.bf16.mxu0 0
      %3251 = vmatmul.mubr.bf16.gmra.mrb[0].mxu0 %v672
      %v3252 = vpop.f32.mrb[0].mxu0
      %v3253 = vadd.f32 0.0, %v3252
      %v3254 = vpop.f32.mrb[0].mxu0
      %v3255 = vpop.f32.mrb[0].mxu0
      %v3256 = vadd.f32 0.0, %v3255
      %v3257 = vpop.f32.mrb[0].mxu0
      %3258 = vmatprep.mubr.bf16.mxu0 0
      %3259 = vmatmul.mubr.bf16.gmra.mrb[0].mxu0 %v673
      %v3260 = vpop.f32.mrb[0].mxu0
      %v3261 = vadd.f32 0.0, %v3260
      %v3262 = vpop.f32.mrb[0].mxu0
      %v3263 = vpop.f32.mrb[0].mxu0
      %v3264 = vadd.f32 0.0, %v3263
      %v3265 = vpop.f32.mrb[0].mxu0
      %3266 = vmatprep.mubr.bf16.mxu0 0
      %3267 = vmatmul.mubr.bf16.gmra.mrb[0].mxu0 %v674
      %v3268 = vpop.f32.mrb[0].mxu0
      %v3269 = vadd.f32 0.0, %v3268
      %v3270 = vpop.f32.mrb[0].mxu0
      %v3271 = vpop.f32.mrb[0].mxu0
      %v3272 = vadd.f32 0.0, %v3271
      %v3273 = vpop.f32.mrb[0].mxu0
      %3274 = vmatprep.mubr.bf16.mxu0 0
      %3275 = vmatmul.mubr.bf16.gmra.mrb[0].mxu0 %v675
      %v3276 = vpop.f32.mrb[0].mxu0
      %v3277 = vadd.f32 0.0, %v3276
      %v3278 = vpop.f32.mrb[0].mxu0
      %v3279 = vpop.f32.mrb[0].mxu0
      %v3280 = vadd.f32 0.0, %v3279
      %v3281 = vpop.f32.mrb[0].mxu0
      %3282 = vmatprep.mubr.bf16.mxu0 0
      %3283 = vmatmul.mubr.bf16.gmra.mrb[0].mxu0 %v1712
      %v3284 = vpop.f32.mrb[0].mxu0
      %v3285 = vadd.f32 0.0, %v3284
      %v3286 = vpop.f32.mrb[0].mxu0
      %v3287 = vpop.f32.mrb[0].mxu0
      %v3288 = vadd.f32 0.0, %v3287
      %v3289 = vpop.f32.mrb[0].mxu0
      %3290 = vdwg.mxu0
      %3291 = vst [vmem:[%s243] sm:$0xff] %v3165
      %3292 = vst [vmem:[%s243 + $0x8] sm:$0xff] %v3168
      %3293 = vst [vmem:[%s243 + $0x10] sm:$0xff] %v3173
      %3294 = vst [vmem:[%s243 + $0x18] sm:$0xff] %v3176
      %3295 = vst [vmem:[%s243 + $0x20] sm:$0xff] %v3181
      %3296 = vst [vmem:[%s243 + $0x28] sm:$0xff] %v3184
      %3297 = vst [vmem:[%s243 + $0x30] sm:$0xff] %v3189
      %3298 = vst [vmem:[%s243 + $0x38] sm:$0xff] %v3192
      %3299 = vst [vmem:[%s243 + $0x40] sm:$0xff] %v3197
      %3300 = vst [vmem:[%s243 + $0x48] sm:$0xff] %v3200
      %3301 = vst [vmem:[%s243 + $0x50] sm:$0xff] %v3205
      %3302 = vst [vmem:[%s243 + $0x58] sm:$0xff] %v3208
      %3303 = vst [vmem:[%s243 + $0x60] sm:$0xff] %v3213
      %3304 = vst [vmem:[%s243 + $0x68] sm:$0xff] %v3216
      %3305 = vst [vmem:[%s243 + $0x70] sm:$0xff] %v3221
      %3306 = vst [vmem:[%s243 + $0x78] sm:$0xff] %v3224
      %3307 = vst [vmem:[%s243 + $0x80] sm:$0xff] %v3229
      %3308 = vst [vmem:[%s243 + $0x88] sm:$0xff] %v3232
      %3309 = vst [vmem:[%s243 + $0x90] sm:$0xff] %v3237
      %3310 = vst [vmem:[%s243 + $0x98] sm:$0xff] %v3240
      %3311 = vst [vmem:[%s243 + $0xa0] sm:$0xff] %v3245
      %3312 = vst [vmem:[%s243 + $0xa8] sm:$0xff] %v3248
      %3313 = vst [vmem:[%s243 + $0xb0] sm:$0xff] %v3253
      %3314 = vst [vmem:[%s243 + $0xb8] sm:$0xff] %v3256
      %3315 = vst [vmem:[%s243 + $0xc0] sm:$0xff] %v3261
      %3316 = vst [vmem:[%s243 + $0xc8] sm:$0xff] %v3264
      %3317 = vst [vmem:[%s243 + $0xd0] sm:$0xff] %v3269
      %3318 = vst [vmem:[%s243 + $0xd8] sm:$0xff] %v3272
      %3319 = vst [vmem:[%s243 + $0xe0] sm:$0xff] %v3277
      %3320 = vst [vmem:[%s243 + $0xe8] sm:$0xff] %v3280
      %3321 = vst [vmem:[%s243 + $0xf0] sm:$0xff] %v3285
      %3322 = vst [vmem:[%s243 + $0xf8] sm:$0xff] %v3288
      %v3323 = vadd.f32 %v3165, %v3168
      %v3324 = vadd.f32 %v3323, %v3173
      %v3325 = vadd.f32 %v3324, %v3176
      %v3326 = vadd.f32 %v3325, %v3181
      %v3327 = vadd.f32 %v3326, %v3184
      %v3328 = vadd.f32 %v3327, %v3189
      %v3329 = vadd.f32 %v3328, %v3192
      %v3330 = vadd.f32 %v3329, %v3197
      %v3331 = vadd.f32 %v3330, %v3200
      %v3332 = vadd.f32 %v3331, %v3205
      %v3333 = vadd.f32 %v3332, %v3208
      %v3334 = vadd.f32 %v3333, %v3213
      %v3335 = vadd.f32 %v3334, %v3216
      %v3336 = vadd.f32 %v3335, %v3221
      %v3337 = vadd.f32 %v3336, %v3224
      %v3338 = vadd.f32 %v3337, %v3229
      %v3339 = vadd.f32 %v3338, %v3232
      %v3340 = vadd.f32 %v3339, %v3237
      %v3341 = vadd.f32 %v3340, %v3240
      %v3342 = vadd.f32 %v3341, %v3245
      %v3343 = vadd.f32 %v3342, %v3248
      %v3344 = vadd.f32 %v3343, %v3253
      %v3345 = vadd.f32 %v3344, %v3256
      %v3346 = vadd.f32 %v3345, %v3261
      %v3347 = vadd.f32 %v3346, %v3264
      %v3348 = vadd.f32 %v3347, %v3269
      %v3349 = vadd.f32 %v3348, %v3272
      %v3350 = vadd.f32 %v3349, %v3277
      %v3351 = vadd.f32 %v3350, %v3280
      %v3352 = vadd.f32 %v3351, %v3285
      %v3353 = vadd.f32 %v3352, %v3288
      %v3354 = vrot.slane %v3353, 4
      %v3355 = vadd.f32 %v3353, %v3354
      %v3356 = vrot.slane %v3355, 2
      %v3357 = vadd.f32 %v3355, %v3356
      %v3358 = vrot.slane %v3357, 1
      %v3359 = vadd.f32 %v3357, %v3358
      %3360 = vst [vmem:[%s247 + $0x2] sm:$0x1] %v3359
      %v3361 = vmul.f32 %v3165, %v3165
      %v3362 = vmul.f32 %v3168, %v3168
      %v3363 = vmul.f32 %v3173, %v3173
      %v3364 = vmul.f32 %v3176, %v3176
      %v3365 = vmul.f32 %v3181, %v3181
      %v3366 = vmul.f32 %v3184, %v3184
      %v3367 = vmul.f32 %v3189, %v3189
      %v3368 = vmul.f32 %v3192, %v3192
      %v3369 = vmul.f32 %v3197, %v3197
      %v3370 = vmul.f32 %v3200, %v3200
      %v3371 = vmul.f32 %v3205, %v3205
      %v3372 = vmul.f32 %v3208, %v3208
      %v3373 = vmul.f32 %v3213, %v3213
      %v3374 = vmul.f32 %v3216, %v3216
      %v3375 = vmul.f32 %v3221, %v3221
      %v3376 = vmul.f32 %v3224, %v3224
      %v3377 = vmul.f32 %v3229, %v3229
      %v3378 = vmul.f32 %v3232, %v3232
      %v3379 = vmul.f32 %v3237, %v3237
      %v3380 = vmul.f32 %v3240, %v3240
      %v3381 = vmul.f32 %v3245, %v3245
      %v3382 = vmul.f32 %v3248, %v3248
      %v3383 = vmul.f32 %v3253, %v3253
      %v3384 = vmul.f32 %v3256, %v3256
      %v3385 = vmul.f32 %v3261, %v3261
      %v3386 = vmul.f32 %v3264, %v3264
      %v3387 = vmul.f32 %v3269, %v3269
      %v3388 = vmul.f32 %v3272, %v3272
      %v3389 = vmul.f32 %v3277, %v3277
      %v3390 = vmul.f32 %v3280, %v3280
      %v3391 = vmul.f32 %v3285, %v3285
      %v3392 = vmul.f32 %v3288, %v3288
      %v3393 = vadd.f32 %v3361, %v3362
      %v3394 = vadd.f32 %v3393, %v3363
      %v3395 = vadd.f32 %v3394, %v3364
      %v3396 = vadd.f32 %v3395, %v3365
      %v3397 = vadd.f32 %v3396, %v3366
      %v3398 = vadd.f32 %v3397, %v3367
      %v3399 = vadd.f32 %v3398, %v3368
      %v3400 = vadd.f32 %v3399, %v3369
      %v3401 = vadd.f32 %v3400, %v3370
      %v3402 = vadd.f32 %v3401, %v3371
      %v3403 = vadd.f32 %v3402, %v3372
      %v3404 = vadd.f32 %v3403, %v3373
      %v3405 = vadd.f32 %v3404, %v3374
      %v3406 = vadd.f32 %v3405, %v3375
      %v3407 = vadd.f32 %v3406, %v3376
      %v3408 = vadd.f32 %v3407, %v3377
      %v3409 = vadd.f32 %v3408, %v3378
      %v3410 = vadd.f32 %v3409, %v3379
      %v3411 = vadd.f32 %v3410, %v3380
      %v3412 = vadd.f32 %v3411, %v3381
      %v3413 = vadd.f32 %v3412, %v3382
      %v3414 = vadd.f32 %v3413, %v3383
      %v3415 = vadd.f32 %v3414, %v3384
      %v3416 = vadd.f32 %v3415, %v3385
      %v3417 = vadd.f32 %v3416, %v3386
      %v3418 = vadd.f32 %v3417, %v3387
      %v3419 = vadd.f32 %v3418, %v3388
      %v3420 = vadd.f32 %v3419, %v3389
      %v3421 = vadd.f32 %v3420, %v3390
      %v3422 = vadd.f32 %v3421, %v3391
      %v3423 = vadd.f32 %v3422, %v3392
      %v3424 = vrot.slane %v3423, 4
      %v3425 = vadd.f32 %v3423, %v3424
      %v3426 = vrot.slane %v3425, 2
      %v3427 = vadd.f32 %v3425, %v3426
      %v3428 = vrot.slane %v3427, 1
      %v3429 = vadd.f32 %v3427, %v3428
      %3430 = vst [vmem:[%s247 + $0x3] sm:$0x1] %v3429
      %p3431 = scmp.lt.s32.totalorder %s17, 1
      %s3432 = scalar_select %p3431, %s17, 1
      %s3433 = smul.addr %s3432, 32
      %s3434 = smul.addr %s3433, 8
      %s3435 = scalar_lea.vmem %s3, %s3434
      %p3436 = scmp.lt.s32.totalorder %s17, 1
      %s3437 = scalar_select %p3436, %s17, 1
      %s3438 = smul.addr %s3437, 32
      %s3439 = smul.addr %s3438, 8
      %s3440 = scalar_lea.vmem %s4, %s3439
      %p3441 = scmp.lt.s32.totalorder %s17, 1
      %s3442 = scalar_select %p3441, %s17, 1
      %s3443 = smul.addr %s3442, 4
      %s3444 = scalar_lea.vmem %s5, %s3443
      // Predicated region
      $region33: #{local_binary_basic_block.3} parent=31 // pred_check
        %p3445 = pneg %p103
      $region34: #{local_binary_basic_block.3} parent=31 // pred_check_branch
        %3447 = sbr.rel (%p3445) target = $region36
      $region35: #{local_binary_basic_block.3} parent=31 // pred_region
        _
      $region36: #{local_binary_basic_block.3} parent=31 // pred_fallthru
        _
      // Predicated region
      $region37: #{local_binary_basic_block.3} parent=31 // pred_check
        %p3448 = pneg %p129
      $region38: #{local_binary_basic_block.3} parent=31 // pred_check_branch
        %3450 = sbr.rel (%p3448) target = $region40
      $region39: #{local_binary_basic_block.3} parent=31 // pred_region
        _
      $region40: #{local_binary_basic_block.3} parent=31 // pred_fallthru
        _
      // Predicated region
      $region41: #{local_binary_basic_block.3} parent=31 // pred_check
        %p3451 = pneg %p155
      $region42: #{local_binary_basic_block.3} parent=31 // pred_check_branch
        %3453 = sbr.rel (%p3451) target = $region44
      $region43: #{local_binary_basic_block.3} parent=31 // pred_region
        _
      $region44: #{local_binary_basic_block.3} parent=31 // pred_fallthru
        _
    $region32: #{local_binary_basic_block.3} parent=5 // pred_fallthru
      _
    %p3454 = scmp.le.s32.totalorder 2, %s12
    // Predicated region
    $region45: #{local_binary_basic_block.3} parent=5 // pred_check
      %p3455 = pneg %p3454
    $region46: #{local_binary_basic_block.3} parent=5 // pred_check_branch
      %3457 = sbr.rel (%p3455) target = $region48
    $region47: #{local_binary_basic_block.3} parent=5 // pred_region
      %s3458 = ssub.s32 %s12, 2
      // Predicated region
      $region49: #{local_binary_basic_block.3} parent=47 // pred_check
        %p3459 = pneg %p109
      $region50: #{local_binary_basic_block.3} parent=47 // pred_check_branch
        %3461 = sbr.rel (%p3459) target = $region52
      $region51: #{local_binary_basic_block.3} parent=47 // pred_region
        %p3462 = scmp.lt.s32.totalorder %s18, 1
        %s3463 = scalar_select %p3462, %s18, 1
        %s3464 = smul.addr %s3463, 32
        %s3465 = smul.addr %s3464, 8
        %s3466 = scalar_lea.vmem %s3, %s3465
      $region52: #{local_binary_basic_block.3} parent=47 // pred_fallthru
        _
      // Predicated region
      $region53: #{local_binary_basic_block.3} parent=47 // pred_check
        %p3467 = pneg %p135
      $region54: #{local_binary_basic_block.3} parent=47 // pred_check_branch
        %3469 = sbr.rel (%p3467) target = $region56
      $region55: #{local_binary_basic_block.3} parent=47 // pred_region
        %p3470 = scmp.lt.s32.totalorder %s18, 1
        %s3471 = scalar_select %p3470, %s18, 1
        %s3472 = smul.addr %s3471, 32
        %s3473 = smul.addr %s3472, 8
        %s3474 = scalar_lea.vmem %s4, %s3473
      $region56: #{local_binary_basic_block.3} parent=47 // pred_fallthru
        _
      // Predicated region
      $region57: #{local_binary_basic_block.3} parent=47 // pred_check
        %p3475 = pneg %p161
      $region58: #{local_binary_basic_block.3} parent=47 // pred_check_branch
        %3477 = sbr.rel (%p3475) target = $region60
      $region59: #{local_binary_basic_block.3} parent=47 // pred_region
        %p3478 = scmp.lt.s32.totalorder %s18, 1
        %s3479 = scalar_select %p3478, %s18, 1
        %s3480 = smul.addr %s3479, 4
        %s3481 = scalar_lea.vmem %s5, %s3480
      $region60: #{local_binary_basic_block.3} parent=47 // pred_fallthru
        _
    $region48: #{local_binary_basic_block.3} parent=5 // pred_fallthru
      _
  $region6: #{local_binary_basic_block.3} parent=0 // loop_footer
    %s16 = sadd.s32 1, %s12
  $region7: #{local_binary_basic_block.3} parent=0 // loop_footer_branch
    %11 = sbr.rel target = $region3
  $region8: #{local_binary_basic_block.3} parent=0 // loop_exit
    _

// kernel: local_binary_basic_block.4
$region0: #{local_binary_basic_block.4}
  #allocation0 [shape = 'u32[]', space=smem, size = 0x4, offset = 0x4, fixed_abs, tag = 'smem constant byte address 0x4 - core index']
  #allocation1 [shape = 'u32[144,128]{1,0:T(1,128)}', space=vmem, size = 0x12000, scoped, tag = 'internal scratch']
  #allocation2 [shape = 'f32[16,18,128]{2,1,0:T(8,128)}', space=vmem, size = 0x30000, scoped, tag = 'scratch operand']
  %s0 = inlined_call_operand.vmem [shape: f32[2,16,16,128], index: 0, kind: input, shape index: {}]
  %s1 = inlined_call_operand.vmem [shape: f32[1,128], index: 1, kind: input, shape index: {}]
  %s2 = inlined_call_operand.vmem [shape: f32[1,128], index: 2, kind: input, shape index: {}]
  %s3 = inlined_call_operand.vmem [shape: bf16[3,3,128,128], index: 3, kind: input, shape index: {}]
  %s4 = inlined_call_operand.vmem [shape: f32[2,16,16,128], index: 4, kind: output, shape index: {0}]
  %s5 = inlined_call_operand.vmem [shape: f32[2,2,128], index: 5, kind: output, shape index: {1}]
  %6 = xla_tuple %s4, %s5
  %s7 = sld [smem:[#allocation0]]
  $region57: #{local_binary_basic_block.4} parent=0
    _
  %s9 = ssub.s32 1, %s7
  %s10 = scalar_select 0, %s9, %s7
  loop: start=0, step=1, limit=4
  $region2: #{local_binary_basic_block.4} parent=0 // loop_pre_header
    _
  $region3: #{local_binary_basic_block.4} parent=0 // loop_header
    %s12 = sphi 0, %s16
    %p13 = scmp.ge.s32.totalorder %s12, 4
    %s22 = sphi 0, %s24
    %s25 = sphi 0, %s22
    %s26 = sphi 0, %s25
    %s42 = sphi 0, %s26
    %s46 = sphi 0, %s46
    %s48 = sphi 0, %s46
    %s49 = sphi 0, %s48
    %s63 = sphi 0, %s49
    %s67 = sphi 0, %s67
    %s69 = sphi 0, %s67
    %s70 = sphi 0, %s69
    %s84 = sphi 0, %s70
    %s88 = sphi 0, %s88
    %s90 = sphi 0, %s88
    %s91 = sphi 0, %s90
    %s105 = sphi 0, %s91
    %s111 = sphi 0, %s113
    %s114 = sphi 0, %s111
    %s115 = sphi 0, %s114
    %s131 = sphi 0, %s115
    %s137 = sphi 0, %s139
    %s140 = sphi 0, %s137
    %s141 = sphi 0, %s140
    %s157 = sphi 0, %s141
  $region4: #{local_binary_basic_block.4} parent=0 // loop_header_branch
    %15 = sbr.rel (%p13) target = $region8
  $region5: #{local_binary_basic_block.4} parent=0 // loop_body
    %s17 = ssub.s32 %s12, 1
    %s18 = ssub.s32 %s12, 2
    %s19 = sadd.s32 %s12, 1
    %s20 = ssub.s32 %s12, %s19
    %p21 = scmp.eq.s32.totalorder %s20, 0
    %s23 = sadd.s32 %s22, 1
    %s24 = scalar_select %p21, %s22, %s23
    %p27 = pneg %p21
    %p28 = scmp.eq.s32.totalorder %s12, 1
    %p29 = por %p27, %p28
    %p30 = scmp.ne.s32.totalorder %s22, %s25
    %p31 = scmp.eq.s32.totalorder %s12, 0
    %p32 = por %p30, %p31
    %p33 = scmp.ne.s32.totalorder %s22, %s25
    %p34 = scmp.eq.s32.totalorder %s17, 1
    %p35 = por %p33, %p34
    %p36 = scmp.ne.s32.totalorder %s25, %s26
    %p37 = scmp.eq.s32.totalorder %s17, 0
    %p38 = por %p36, %p37
    %p39 = scmp.ne.s32.totalorder %s25, %s26
    %p40 = scmp.eq.s32.totalorder %s18, 1
    %p41 = por %p39, %p40
    %p43 = scmp.ne.s32.totalorder %s26, %s42
    %p44 = scmp.eq.s32.totalorder %s18, 0
    %p45 = por %p43, %p44
    %s47 = sadd.s32 %s46, 1
    %p50 = scmp.eq.s32.totalorder %s12, 1
    %p51 = scmp.ne.s32.totalorder %s46, %s48
    %p52 = scmp.eq.s32.totalorder %s12, 0
    %p53 = por %p51, %p52
    %p54 = scmp.ne.s32.totalorder %s46, %s48
    %p55 = scmp.eq.s32.totalorder %s17, 1
    %p56 = por %p54, %p55
    %p57 = scmp.ne.s32.totalorder %s48, %s49
    %p58 = scmp.eq.s32.totalorder %s17, 0
    %p59 = por %p57, %p58
    %p60 = scmp.ne.s32.totalorder %s48, %s49
    %p61 = scmp.eq.s32.totalorder %s18, 1
    %p62 = por %p60, %p61
    %p64 = scmp.ne.s32.totalorder %s49, %s63
    %p65 = scmp.eq.s32.totalorder %s18, 0
    %p66 = por %p64, %p65
    %s68 = sadd.s32 %s67, 1
    %p71 = scmp.eq.s32.totalorder %s12, 1
    %p72 = scmp.ne.s32.totalorder %s67, %s69
    %p73 = scmp.eq.s32.totalorder %s12, 0
    %p74 = por %p72, %p73
    %p75 = scmp.ne.s32.totalorder %s67, %s69
    %p76 = scmp.eq.s32.totalorder %s17, 1
    %p77 = por %p75, %p76
    %p78 = scmp.ne.s32.totalorder %s69, %s70
    %p79 = scmp.eq.s32.totalorder %s17, 0
    %p80 = por %p78, %p79
    %p81 = scmp.ne.s32.totalorder %s69, %s70
    %p82 = scmp.eq.s32.totalorder %s18, 1
    %p83 = por %p81, %p82
    %p85 = scmp.ne.s32.totalorder %s70, %s84
    %p86 = scmp.eq.s32.totalorder %s18, 0
    %p87 = por %p85, %p86
    %s89 = sadd.s32 %s88, 1
    %p92 = scmp.eq.s32.totalorder %s12, 1
    %p93 = scmp.ne.s32.totalorder %s88, %s90
    %p94 = scmp.eq.s32.totalorder %s12, 0
    %p95 = por %p93, %p94
    %p96 = scmp.ne.s32.totalorder %s88, %s90
    %p97 = scmp.eq.s32.totalorder %s17, 1
    %p98 = por %p96, %p97
    %p99 = scmp.ne.s32.totalorder %s90, %s91
    %p100 = scmp.eq.s32.totalorder %s17, 0
    %p101 = por %p99, %p100
    %p102 = scmp.ne.s32.totalorder %s90, %s91
    %p103 = scmp.eq.s32.totalorder %s18, 1
    %p104 = por %p102, %p103
    %p106 = scmp.ne.s32.totalorder %s91, %s105
    %p107 = scmp.eq.s32.totalorder %s18, 0
    %p108 = por %p106, %p107
    %s109 = ssub.s32 %s12, %s19
    %p110 = scmp.eq.s32.totalorder %s109, 0
    %s112 = sadd.s32 %s111, 1
    %s113 = scalar_select %p110, %s111, %s112
    %p116 = pneg %p110
    %p117 = scmp.eq.s32.totalorder %s12, 1
    %p118 = por %p116, %p117
    %p119 = scmp.ne.s32.totalorder %s111, %s114
    %p120 = scmp.eq.s32.totalorder %s12, 0
    %p121 = por %p119, %p120
    %p122 = scmp.ne.s32.totalorder %s111, %s114
    %p123 = scmp.eq.s32.totalorder %s17, 1
    %p124 = por %p122, %p123
    %p125 = scmp.ne.s32.totalorder %s114, %s115
    %p126 = scmp.eq.s32.totalorder %s17, 0
    %p127 = por %p125, %p126
    %p128 = scmp.ne.s32.totalorder %s114, %s115
    %p129 = scmp.eq.s32.totalorder %s18, 1
    %p130 = por %p128, %p129
    %p132 = scmp.ne.s32.totalorder %s115, %s131
    %p133 = scmp.eq.s32.totalorder %s18, 0
    %p134 = por %p132, %p133
    %s135 = ssub.s32 %s12, %s19
    %p136 = scmp.eq.s32.totalorder %s135, 0
    %s138 = sadd.s32 %s137, 1
    %s139 = scalar_select %p136, %s137, %s138
    %p142 = pneg %p136
    %p143 = scmp.eq.s32.totalorder %s12, 1
    %p144 = por %p142, %p143
    %p145 = scmp.ne.s32.totalorder %s137, %s140
    %p146 = scmp.eq.s32.totalorder %s12, 0
    %p147 = por %p145, %p146
    %p148 = scmp.ne.s32.totalorder %s137, %s140
    %p149 = scmp.eq.s32.totalorder %s17, 1
    %p150 = por %p148, %p149
    %p151 = scmp.ne.s32.totalorder %s140, %s141
    %p152 = scmp.eq.s32.totalorder %s17, 0
    %p153 = por %p151, %p152
    %p154 = scmp.ne.s32.totalorder %s140, %s141
    %p155 = scmp.eq.s32.totalorder %s18, 1
    %p156 = por %p154, %p155
    %p158 = scmp.ne.s32.totalorder %s141, %s157
    %p159 = scmp.eq.s32.totalorder %s18, 0
    %p160 = por %p158, %p159
    %p161 = scmp.le.s32.totalorder 1, %s12
    %p162 = scmp.lt.s32.totalorder %s12, 3
    %p163 = pnand %p161, %p162
    %p164 = pneg %p163
    // Predicated region
    $region9: #{local_binary_basic_block.4} parent=5 // pred_check
      _
    $region10: #{local_binary_basic_block.4} parent=5 // pred_check_branch
      %166 = sbr.rel (%p163) target = $region12
    $region11: #{local_binary_basic_block.4} parent=5 // pred_region
      %s167 = ssub.s32 %s12, 1
      // Predicated region
      $region13: #{local_binary_basic_block.4} parent=11 // pred_check
        %p168 = pneg %p59
      $region14: #{local_binary_basic_block.4} parent=11 // pred_check_branch
        %170 = sbr.rel (%p168) target = $region16
      $region15: #{local_binary_basic_block.4} parent=11 // pred_region
        _
      $region16: #{local_binary_basic_block.4} parent=11 // pred_fallthru
        _
      // Predicated region
      $region17: #{local_binary_basic_block.4} parent=11 // pred_check
        %p171 = pneg %p80
      $region18: #{local_binary_basic_block.4} parent=11 // pred_check_branch
        %173 = sbr.rel (%p171) target = $region20
      $region19: #{local_binary_basic_block.4} parent=11 // pred_region
        _
      $region20: #{local_binary_basic_block.4} parent=11 // pred_fallthru
        _
      // Predicated region
      $region21: #{local_binary_basic_block.4} parent=11 // pred_check
        %p174 = pneg %p101
      $region22: #{local_binary_basic_block.4} parent=11 // pred_check_branch
        %176 = sbr.rel (%p174) target = $region24
      $region23: #{local_binary_basic_block.4} parent=11 // pred_region
        _
      $region24: #{local_binary_basic_block.4} parent=11 // pred_fallthru
        _
    $region12: #{local_binary_basic_block.4} parent=5 // pred_fallthru
      _
    %p177 = scmp.lt.s32.totalorder %s12, 2
    // Predicated region
    $region25: #{local_binary_basic_block.4} parent=5 // pred_check
      %p178 = pneg %p177
    $region26: #{local_binary_basic_block.4} parent=5 // pred_check_branch
      %180 = sbr.rel (%p178) target = $region28
    $region27: #{local_binary_basic_block.4} parent=5 // pred_region
      // Predicated region
      $region29: #{local_binary_basic_block.4} parent=27 // pred_check
        %p181 = pneg %p32
      $region30: #{local_binary_basic_block.4} parent=27 // pred_check_branch
        %183 = sbr.rel (%p181) target = $region32
      $region31: #{local_binary_basic_block.4} parent=27 // pred_region
        %p184 = scmp.lt.s32.totalorder %s12, 1
        %s185 = scalar_select %p184, %s12, 1
        %s186 = smul.addr %s185, 32
        %s187 = smul.addr %s186, 8
        %s188 = scalar_lea.vmem %s0, %s187
      $region32: #{local_binary_basic_block.4} parent=27 // pred_fallthru
        _
    $region28: #{local_binary_basic_block.4} parent=5 // pred_fallthru
      _
    %p189 = scmp.le.s32.totalorder 1, %s12
    %p190 = scmp.lt.s32.totalorder %s12, 3
    %p191 = pnand %p189, %p190
    %p192 = pneg %p191
    // Predicated region
    $region33: #{local_binary_basic_block.4} parent=5 // pred_check
      _
    $region34: #{local_binary_basic_block.4} parent=5 // pred_check_branch
      %194 = sbr.rel (%p191) target = $region36
    $region35: #{local_binary_basic_block.4} parent=5 // pred_region
      %s195 = ssub.s32 %s12, 1
      %p196 = scmp.lt.s32.totalorder %s17, 1
      %s197 = scalar_select %p196, %s17, 1
      %s198 = smul.addr %s197, 32
      %s199 = smul.addr %s198, 8
      %s200 = scalar_lea.vmem %s0, %s199
      %p201 = pneg %p38
      %p202 = pneg %p35
      %p203 = pneg %p59
      %p204 = pneg %p56
      %p205 = pneg %p80
      %p206 = pneg %p77
      %p207 = pneg %p101
      %p208 = pneg %p98
      %p209 = pneg %p127
      %p210 = pneg %p124
      %p211 = scmp.lt.s32.totalorder %s17, 1
      %s212 = scalar_select %p211, %s17, 1
      %s213 = smul.addr %s212, 32
      %s214 = smul.addr %s213, 8
      %s215 = scalar_lea.vmem %s4, %s214
      %p216 = pneg %p153
      %p217 = pneg %p150
      %p218 = scmp.lt.s32.totalorder %s17, 1
      %s219 = scalar_select %p218, %s17, 1
      %s220 = smul.addr %s219, 2
      %s221 = scalar_lea.vmem %s5, %s220
      %p222 = scmp.lt.s32.totalorder %s17, 1
      %s223 = scalar_select %p222, %s17, 1
      %s224 = smul.addr %s223, 32
      %s225 = smul.addr %s224, 8
      %s226 = scalar_lea.vmem %s0, %s225
      %p227 = scmp.lt.s32.totalorder %s17, 1
      %s228 = scalar_select %p227, %s17, 1
      %s229 = smul.addr %s228, 32
      %s230 = smul.addr %s229, 8
      %s231 = scalar_lea.vmem %s4, %s230
      %p232 = scmp.lt.s32.totalorder %s17, 1
      %s233 = scalar_select %p232, %s17, 1
      %s234 = smul.addr %s233, 2
      %s235 = scalar_lea.vmem %s5, %s234
      %v237 = vld [vmem:[%s226] sm:$0xff]
      %v238 = vld [vmem:[%s226 + $0x8] sm:$0xff]
      %v239 = vld [vmem:[%s226 + $0x10] sm:$0xff]
      %v240 = vld [vmem:[%s226 + $0x18] sm:$0xff]
      %v241 = vld [vmem:[%s226 + $0x20] sm:$0xff]
      %v242 = vld [vmem:[%s226 + $0x28] sm:$0xff]
      %v243 = vld [vmem:[%s226 + $0x30] sm:$0xff]
      %v244 = vld [vmem:[%s226 + $0x38] sm:$0xff]
      %v245 = vld [vmem:[%s226 + $0x40] sm:$0xff]
      %v246 = vld [vmem:[%s226 + $0x48] sm:$0xff]
      %v247 = vld [vmem:[%s226 + $0x50] sm:$0xff]
      %v248 = vld [vmem:[%s226 + $0x58] sm:$0xff]
      %v249 = vld [vmem:[%s226 + $0x60] sm:$0xff]
      %v250 = vld [vmem:[%s226 + $0x68] sm:$0xff]
      %v251 = vld [vmem:[%s226 + $0x70] sm:$0xff]
      %v252 = vld [vmem:[%s226 + $0x78] sm:$0xff]
      %v253 = vld [vmem:[%s226 + $0x80] sm:$0xff]
      %v254 = vld [vmem:[%s226 + $0x88] sm:$0xff]
      %v255 = vld [vmem:[%s226 + $0x90] sm:$0xff]
      %v256 = vld [vmem:[%s226 + $0x98] sm:$0xff]
      %v257 = vld [vmem:[%s226 + $0xa0] sm:$0xff]
      %v258 = vld [vmem:[%s226 + $0xa8] sm:$0xff]
      %v259 = vld [vmem:[%s226 + $0xb0] sm:$0xff]
      %v260 = vld [vmem:[%s226 + $0xb8] sm:$0xff]
      %v261 = vld [vmem:[%s226 + $0xc0] sm:$0xff]
      %v262 = vld [vmem:[%s226 + $0xc8] sm:$0xff]
      %v263 = vld [vmem:[%s226 + $0xd0] sm:$0xff]
      %v264 = vld [vmem:[%s226 + $0xd8] sm:$0xff]
      %v265 = vld [vmem:[%s226 + $0xe0] sm:$0xff]
      %v266 = vld [vmem:[%s226 + $0xe8] sm:$0xff]
      %v267 = vld [vmem:[%s226 + $0xf0] sm:$0xff]
      %v268 = vld [vmem:[%s226 + $0xf8] sm:$0xff]
      %v269 = vld [vmem:[%s1] sm:$0x1]
      %v271 = vlaneseq
      %v272 = vshrl.u32 %v271, 7
      %v273 = vsub.s32 0, %v272
      %v274 = vrot.slane %v269, %v273
      %v276 = vmul.f32 %v237, %v274
      %v277 = vmul.f32 %v238, %v274
      %v278 = vmul.f32 %v239, %v274
      %v279 = vmul.f32 %v240, %v274
      %v280 = vmul.f32 %v241, %v274
      %v281 = vmul.f32 %v242, %v274
      %v282 = vmul.f32 %v243, %v274
      %v283 = vmul.f32 %v244, %v274
      %v284 = vmul.f32 %v245, %v274
      %v285 = vmul.f32 %v246, %v274
      %v286 = vmul.f32 %v247, %v274
      %v287 = vmul.f32 %v248, %v274
      %v288 = vmul.f32 %v249, %v274
      %v289 = vmul.f32 %v250, %v274
      %v290 = vmul.f32 %v251, %v274
      %v291 = vmul.f32 %v252, %v274
      %v292 = vmul.f32 %v253, %v274
      %v293 = vmul.f32 %v254, %v274
      %v294 = vmul.f32 %v255, %v274
      %v295 = vmul.f32 %v256, %v274
      %v296 = vmul.f32 %v257, %v274
      %v297 = vmul.f32 %v258, %v274
      %v298 = vmul.f32 %v259, %v274
      %v299 = vmul.f32 %v260, %v274
      %v300 = vmul.f32 %v261, %v274
      %v301 = vmul.f32 %v262, %v274
      %v302 = vmul.f32 %v263, %v274
      %v303 = vmul.f32 %v264, %v274
      %v304 = vmul.f32 %v265, %v274
      %v305 = vmul.f32 %v266, %v274
      %v306 = vmul.f32 %v267, %v274
      %v307 = vmul.f32 %v268, %v274
      %v308 = vld [vmem:[%s2] sm:$0x1]
      %v310 = vlaneseq
      %v311 = vshrl.u32 %v310, 7
      %v312 = vsub.s32 0, %v311
      %v313 = vrot.slane %v308, %v312
      %v315 = vadd.f32 %v276, %v313
      %v316 = vadd.f32 %v277, %v313
      %v317 = vadd.f32 %v278, %v313
      %v318 = vadd.f32 %v279, %v313
      %v319 = vadd.f32 %v280, %v313
      %v320 = vadd.f32 %v281, %v313
      %v321 = vadd.f32 %v282, %v313
      %v322 = vadd.f32 %v283, %v313
      %v323 = vadd.f32 %v284, %v313
      %v324 = vadd.f32 %v285, %v313
      %v325 = vadd.f32 %v286, %v313
      %v326 = vadd.f32 %v287, %v313
      %v327 = vadd.f32 %v288, %v313
      %v328 = vadd.f32 %v289, %v313
      %v329 = vadd.f32 %v290, %v313
      %v330 = vadd.f32 %v291, %v313
      %v331 = vadd.f32 %v292, %v313
      %v332 = vadd.f32 %v293, %v313
      %v333 = vadd.f32 %v294, %v313
      %v334 = vadd.f32 %v295, %v313
      %v335 = vadd.f32 %v296, %v313
      %v336 = vadd.f32 %v297, %v313
      %v337 = vadd.f32 %v298, %v313
      %v338 = vadd.f32 %v299, %v313
      %v339 = vadd.f32 %v300, %v313
      %v340 = vadd.f32 %v301, %v313
      %v341 = vadd.f32 %v302, %v313
      %v342 = vadd.f32 %v303, %v313
      %v343 = vadd.f32 %v304, %v313
      %v344 = vadd.f32 %v305, %v313
      %v345 = vadd.f32 %v306, %v313
      %v346 = vadd.f32 %v307, %v313
      %v347 = vmax.f32 %v315, 0.0
      %v348 = vmax.f32 %v316, 0.0
      %v349 = vmax.f32 %v317, 0.0
      %v350 = vmax.f32 %v318, 0.0
      %v351 = vmax.f32 %v319, 0.0
      %v352 = vmax.f32 %v320, 0.0
      %v353 = vmax.f32 %v321, 0.0
      %v354 = vmax.f32 %v322, 0.0
      %v355 = vmax.f32 %v323, 0.0
      %v356 = vmax.f32 %v324, 0.0
      %v357 = vmax.f32 %v325, 0.0
      %v358 = vmax.f32 %v326, 0.0
      %v359 = vmax.f32 %v327, 0.0
      %v360 = vmax.f32 %v328, 0.0
      %v361 = vmax.f32 %v329, 0.0
      %v362 = vmax.f32 %v330, 0.0
      %v363 = vmax.f32 %v331, 0.0
      %v364 = vmax.f32 %v332, 0.0
      %v365 = vmax.f32 %v333, 0.0
      %v366 = vmax.f32 %v334, 0.0
      %v367 = vmax.f32 %v335, 0.0
      %v368 = vmax.f32 %v336, 0.0
      %v369 = vmax.f32 %v337, 0.0
      %v370 = vmax.f32 %v338, 0.0
      %v371 = vmax.f32 %v339, 0.0
      %v372 = vmax.f32 %v340, 0.0
      %v373 = vmax.f32 %v341, 0.0
      %v374 = vmax.f32 %v342, 0.0
      %v375 = vmax.f32 %v343, 0.0
      %v376 = vmax.f32 %v344, 0.0
      %v377 = vmax.f32 %v345, 0.0
      %v378 = vmax.f32 %v346, 0.0
      %379 = vst [vmem:[#allocation2] sm:$0x1] 0.0
      %380 = vst [vmem:[#allocation2 + $0x18] sm:$0x1] 0.0
      %381 = vst [vmem:[#allocation2 + $0x30] sm:$0x1] 0.0
      %382 = vst [vmem:[#allocation2 + $0x48] sm:$0x1] 0.0
      %383 = vst [vmem:[#allocation2 + $0x60] sm:$0x1] 0.0
      %384 = vst [vmem:[#allocation2 + $0x78] sm:$0x1] 0.0
      %385 = vst [vmem:[#allocation2 + $0x90] sm:$0x1] 0.0
      %386 = vst [vmem:[#allocation2 + $0xa8] sm:$0x1] 0.0
      %387 = vst [vmem:[#allocation2 + $0xc0] sm:$0x1] 0.0
      %388 = vst [vmem:[#allocation2 + $0xd8] sm:$0x1] 0.0
      %389 = vst [vmem:[#allocation2 + $0xf0] sm:$0x1] 0.0
      %390 = vst [vmem:[#allocation2 + $0x108] sm:$0x1] 0.0
      %391 = vst [vmem:[#allocation2 + $0x120] sm:$0x1] 0.0
      %392 = vst [vmem:[#allocation2 + $0x138] sm:$0x1] 0.0
      %393 = vst [vmem:[#allocation2 + $0x150] sm:$0x1] 0.0
      %394 = vst [vmem:[#allocation2 + $0x168] sm:$0x1] 0.0
      %395 = vst [vmem:[#allocation2 + $0x11] sm:$0x1] 0.0
      %396 = vst [vmem:[#allocation2 + $0x29] sm:$0x1] 0.0
      %397 = vst [vmem:[#allocation2 + $0x41] sm:$0x1] 0.0
      %398 = vst [vmem:[#allocation2 + $0x59] sm:$0x1] 0.0
      %399 = vst [vmem:[#allocation2 + $0x71] sm:$0x1] 0.0
      %400 = vst [vmem:[#allocation2 + $0x89] sm:$0x1] 0.0
      %401 = vst [vmem:[#allocation2 + $0xa1] sm:$0x1] 0.0
      %402 = vst [vmem:[#allocation2 + $0xb9] sm:$0x1] 0.0
      %403 = vst [vmem:[#allocation2 + $0xd1] sm:$0x1] 0.0
      %404 = vst [vmem:[#allocation2 + $0xe9] sm:$0x1] 0.0
      %405 = vst [vmem:[#allocation2 + $0x101] sm:$0x1] 0.0
      %406 = vst [vmem:[#allocation2 + $0x119] sm:$0x1] 0.0
      %407 = vst [vmem:[#allocation2 + $0x131] sm:$0x1] 0.0
      %408 = vst [vmem:[#allocation2 + $0x149] sm:$0x1] 0.0
      %409 = vst [vmem:[#allocation2 + $0x161] sm:$0x1] 0.0
      %410 = vst [vmem:[#allocation2 + $0x179] sm:$0x1] 0.0
      %411 = vst [vmem:[#allocation2 + $0x1] sm:$0xff] %v347
      %412 = vst [vmem:[#allocation2 + $0x9] sm:$0xff] %v348
      %413 = vst [vmem:[#allocation2 + $0x19] sm:$0xff] %v349
      %414 = vst [vmem:[#allocation2 + $0x21] sm:$0xff] %v350
      %415 = vst [vmem:[#allocation2 + $0x31] sm:$0xff] %v351
      %416 = vst [vmem:[#allocation2 + $0x39] sm:$0xff] %v352
      %417 = vst [vmem:[#allocation2 + $0x49] sm:$0xff] %v353
      %418 = vst [vmem:[#allocation2 + $0x51] sm:$0xff] %v354
      %419 = vst [vmem:[#allocation2 + $0x61] sm:$0xff] %v355
      %420 = vst [vmem:[#allocation2 + $0x69] sm:$0xff] %v356
      %421 = vst [vmem:[#allocation2 + $0x79] sm:$0xff] %v357
      %422 = vst [vmem:[#allocation2 + $0x81] sm:$0xff] %v358
      %423 = vst [vmem:[#allocation2 + $0x91] sm:$0xff] %v359
      %424 = vst [vmem:[#allocation2 + $0x99] sm:$0xff] %v360
      %425 = vst [vmem:[#allocation2 + $0xa9] sm:$0xff] %v361
      %426 = vst [vmem:[#allocation2 + $0xb1] sm:$0xff] %v362
      %427 = vst [vmem:[#allocation2 + $0xc1] sm:$0xff] %v363
      %428 = vst [vmem:[#allocation2 + $0xc9] sm:$0xff] %v364
      %429 = vst [vmem:[#allocation2 + $0xd9] sm:$0xff] %v365
      %430 = vst [vmem:[#allocation2 + $0xe1] sm:$0xff] %v366
      %431 = vst [vmem:[#allocation2 + $0xf1] sm:$0xff] %v367
      %432 = vst [vmem:[#allocation2 + $0xf9] sm:$0xff] %v368
      %433 = vst [vmem:[#allocation2 + $0x109] sm:$0xff] %v369
      %434 = vst [vmem:[#allocation2 + $0x111] sm:$0xff] %v370
      %435 = vst [vmem:[#allocation2 + $0x121] sm:$0xff] %v371
      %436 = vst [vmem:[#allocation2 + $0x129] sm:$0xff] %v372
      %437 = vst [vmem:[#allocation2 + $0x139] sm:$0xff] %v373
      %438 = vst [vmem:[#allocation2 + $0x141] sm:$0xff] %v374
      %439 = vst [vmem:[#allocation2 + $0x151] sm:$0xff] %v375
      %440 = vst [vmem:[#allocation2 + $0x159] sm:$0xff] %v376
      %441 = vst [vmem:[#allocation2 + $0x169] sm:$0xff] %v377
      %442 = vst [vmem:[#allocation2 + $0x171] sm:$0xff] %v378
      %v443 = vld [vmem:[#allocation2] sm:$0xff]
      %v444 = vld [vmem:[#allocation2 + $0x8] sm:$0xff]
      %v445 = vld [vmem:[#allocation2 + $0x10] sm:$0x3]
      %v446 = vld [vmem:[#allocation2 + $0x18] sm:$0xff]
      %v447 = vld [vmem:[#allocation2 + $0x20] sm:$0xff]
      %v448 = vld [vmem:[#allocation2 + $0x28] sm:$0x3]
      %v449 = vld [vmem:[#allocation2 + $0x30] sm:$0xff]
      %v450 = vld [vmem:[#allocation2 + $0x38] sm:$0xff]
      %v451 = vld [vmem:[#allocation2 + $0x40] sm:$0x3]
      %v452 = vld [vmem:[#allocation2 + $0x48] sm:$0xff]
      %v453 = vld [vmem:[#allocation2 + $0x50] sm:$0xff]
      %v454 = vld [vmem:[#allocation2 + $0x58] sm:$0x3]
      %v455 = vld [vmem:[#allocation2 + $0x60] sm:$0xff]
      %v456 = vld [vmem:[#allocation2 + $0x68] sm:$0xff]
      %v457 = vld [vmem:[#allocation2 + $0x70] sm:$0x3]
      %v458 = vld [vmem:[#allocation2 + $0x78] sm:$0xff]
      %v459 = vld [vmem:[#allocation2 + $0x80] sm:$0xff]
      %v460 = vld [vmem:[#allocation2 + $0x88] sm:$0x3]
      %v461 = vld [vmem:[#allocation2 + $0x90] sm:$0xff]
      %v462 = vld [vmem:[#allocation2 + $0x98] sm:$0xff]
      %v463 = vld [vmem:[#allocation2 + $0xa0] sm:$0x3]
      %v464 = vld [vmem:[#allocation2 + $0xa8] sm:$0xff]
      %v465 = vld [vmem:[#allocation2 + $0xb0] sm:$0xff]
      %v466 = vld [vmem:[#allocation2 + $0xb8] sm:$0x3]
      %v467 = vld [vmem:[#allocation2 + $0xc0] sm:$0xff]
      %v468 = vld [vmem:[#allocation2 + $0xc8] sm:$0xff]
      %v469 = vld [vmem:[#allocation2 + $0xd0] sm:$0x3]
      %v470 = vld [vmem:[#allocation2 + $0xd8] sm:$0xff]
      %v471 = vld [vmem:[#allocation2 + $0xe0] sm:$0xff]
      %v472 = vld [vmem:[#allocation2 + $0xe8] sm:$0x3]
      %v473 = vld [vmem:[#allocation2 + $0xf0] sm:$0xff]
      %v474 = vld [vmem:[#allocation2 + $0xf8] sm:$0xff]
      %v475 = vld [vmem:[#allocation2 + $0x100] sm:$0x3]
      %v476 = vld [vmem:[#allocation2 + $0x108] sm:$0xff]
      %v477 = vld [vmem:[#allocation2 + $0x110] sm:$0xff]
      %v478 = vld [vmem:[#allocation2 + $0x118] sm:$0x3]
      %v479 = vld [vmem:[#allocation2 + $0x120] sm:$0xff]
      %v480 = vld [vmem:[#allocation2 + $0x128] sm:$0xff]
      %v481 = vld [vmem:[#allocation2 + $0x130] sm:$0x3]
      %v482 = vld [vmem:[#allocation2 + $0x138] sm:$0xff]
      %v483 = vld [vmem:[#allocation2 + $0x140] sm:$0xff]
      %v484 = vld [vmem:[#allocation2 + $0x148] sm:$0x3]
      %v485 = vld [vmem:[#allocation2 + $0x150] sm:$0xff]
      %v486 = vld [vmem:[#allocation2 + $0x158] sm:$0xff]
      %v487 = vld [vmem:[#allocation2 + $0x160] sm:$0x3]
      %v488 = vld [vmem:[#allocation2 + $0x168] sm:$0xff]
      %v489 = vld [vmem:[#allocation2 + $0x170] sm:$0xff]
      %v490 = vld [vmem:[#allocation2 + $0x178] sm:$0x3]
      %v491 = vld [vmem:[%s3] sm:$0xf]
      %v492 = vld [vmem:[%s3 + $0x4] sm:$0xf]
      %v493 = vld [vmem:[%s3 + $0x8] sm:$0xf]
      %v494 = vld [vmem:[%s3 + $0xc] sm:$0xf]
      %v495 = vld [vmem:[%s3 + $0x10] sm:$0xf]
      %v496 = vld [vmem:[%s3 + $0x14] sm:$0xf]
      %v497 = vld [vmem:[%s3 + $0x18] sm:$0xf]
      %v498 = vld [vmem:[%s3 + $0x1c] sm:$0xf]
      %v499 = vld [vmem:[%s3 + $0x20] sm:$0xf]
      %v500 = vld [vmem:[%s3 + $0x24] sm:$0xf]
      %v501 = vld [vmem:[%s3 + $0x28] sm:$0xf]
      %v502 = vld [vmem:[%s3 + $0x2c] sm:$0xf]
      %v503 = vld [vmem:[%s3 + $0x30] sm:$0xf]
      %v504 = vld [vmem:[%s3 + $0x34] sm:$0xf]
      %v505 = vld [vmem:[%s3 + $0x38] sm:$0xf]
      %v506 = vld [vmem:[%s3 + $0x3c] sm:$0xf]
      %v507 = vld [vmem:[%s3 + $0x40] sm:$0xf]
      %v508 = vld [vmem:[%s3 + $0x44] sm:$0xf]
      %v509 = vld [vmem:[%s3 + $0x48] sm:$0xf]
      %v510 = vld [vmem:[%s3 + $0x4c] sm:$0xf]
      %v511 = vld [vmem:[%s3 + $0x50] sm:$0xf]
      %v512 = vld [vmem:[%s3 + $0x54] sm:$0xf]
      %v513 = vld [vmem:[%s3 + $0x58] sm:$0xf]
      %v514 = vld [vmem:[%s3 + $0x5c] sm:$0xf]
      %v515 = vld [vmem:[%s3 + $0x60] sm:$0xf]
      %v516 = vld [vmem:[%s3 + $0x64] sm:$0xf]
      %v517 = vld [vmem:[%s3 + $0x68] sm:$0xf]
      %v518 = vld [vmem:[%s3 + $0x6c] sm:$0xf]
      %v519 = vld [vmem:[%s3 + $0x70] sm:$0xf]
      %v520 = vld [vmem:[%s3 + $0x74] sm:$0xf]
      %v521 = vld [vmem:[%s3 + $0x78] sm:$0xf]
      %v522 = vld [vmem:[%s3 + $0x7c] sm:$0xf]
      %v523 = vld [vmem:[%s3 + $0x80] sm:$0xf]
      %v524 = vld [vmem:[%s3 + $0x84] sm:$0xf]
      %v525 = vld [vmem:[%s3 + $0x88] sm:$0xf]
      %v526 = vld [vmem:[%s3 + $0x8c] sm:$0xf]
      %v527 = vld [vmem:[%s3 + $0x90] sm:$0xf]
      %v528 = vld [vmem:[%s3 + $0x94] sm:$0xf]
      %v529 = vld [vmem:[%s3 + $0x98] sm:$0xf]
      %v530 = vld [vmem:[%s3 + $0x9c] sm:$0xf]
      %v531 = vld [vmem:[%s3 + $0xa0] sm:$0xf]
      %v532 = vld [vmem:[%s3 + $0xa4] sm:$0xf]
      %v533 = vld [vmem:[%s3 + $0xa8] sm:$0xf]
      %v534 = vld [vmem:[%s3 + $0xac] sm:$0xf]
      %v535 = vld [vmem:[%s3 + $0xb0] sm:$0xf]
      %v536 = vld [vmem:[%s3 + $0xb4] sm:$0xf]
      %v537 = vld [vmem:[%s3 + $0xb8] sm:$0xf]
      %v538 = vld [vmem:[%s3 + $0xbc] sm:$0xf]
      %v539 = vld [vmem:[%s3 + $0xc0] sm:$0xf]
      %v540 = vld [vmem:[%s3 + $0xc4] sm:$0xf]
      %v541 = vld [vmem:[%s3 + $0xc8] sm:$0xf]
      %v542 = vld [vmem:[%s3 + $0xcc] sm:$0xf]
      %v543 = vld [vmem:[%s3 + $0xd0] sm:$0xf]
      %v544 = vld [vmem:[%s3 + $0xd4] sm:$0xf]
      %v545 = vld [vmem:[%s3 + $0xd8] sm:$0xf]
      %v546 = vld [vmem:[%s3 + $0xdc] sm:$0xf]
      %v547 = vld [vmem:[%s3 + $0xe0] sm:$0xf]
      %v548 = vld [vmem:[%s3 + $0xe4] sm:$0xf]
      %v549 = vld [vmem:[%s3 + $0xe8] sm:$0xf]
      %v550 = vld [vmem:[%s3 + $0xec] sm:$0xf]
      %v551 = vld [vmem:[%s3 + $0xf0] sm:$0xf]
      %v552 = vld [vmem:[%s3 + $0xf4] sm:$0xf]
      %v553 = vld [vmem:[%s3 + $0xf8] sm:$0xf]
      %v554 = vld [vmem:[%s3 + $0xfc] sm:$0xf]
      %v555 = vld [vmem:[%s3 + $0x100] sm:$0xf]
      %v556 = vld [vmem:[%s3 + $0x104] sm:$0xf]
      %v557 = vld [vmem:[%s3 + $0x108] sm:$0xf]
      %v558 = vld [vmem:[%s3 + $0x10c] sm:$0xf]
      %v559 = vld [vmem:[%s3 + $0x110] sm:$0xf]
      %v560 = vld [vmem:[%s3 + $0x114] sm:$0xf]
      %v561 = vld [vmem:[%s3 + $0x118] sm:$0xf]
      %v562 = vld [vmem:[%s3 + $0x11c] sm:$0xf]
      %v563 = vld [vmem:[%s3 + $0x120] sm:$0xf]
      %v564 = vld [vmem:[%s3 + $0x124] sm:$0xf]
      %v565 = vld [vmem:[%s3 + $0x128] sm:$0xf]
      %v566 = vld [vmem:[%s3 + $0x12c] sm:$0xf]
      %v567 = vld [vmem:[%s3 + $0x130] sm:$0xf]
      %v568 = vld [vmem:[%s3 + $0x134] sm:$0xf]
      %v569 = vld [vmem:[%s3 + $0x138] sm:$0xf]
      %v570 = vld [vmem:[%s3 + $0x13c] sm:$0xf]
      %v571 = vld [vmem:[%s3 + $0x140] sm:$0xf]
      %v572 = vld [vmem:[%s3 + $0x144] sm:$0xf]
      %v573 = vld [vmem:[%s3 + $0x148] sm:$0xf]
      %v574 = vld [vmem:[%s3 + $0x14c] sm:$0xf]
      %v575 = vld [vmem:[%s3 + $0x150] sm:$0xf]
      %v576 = vld [vmem:[%s3 + $0x154] sm:$0xf]
      %v577 = vld [vmem:[%s3 + $0x158] sm:$0xf]
      %v578 = vld [vmem:[%s3 + $0x15c] sm:$0xf]
      %v579 = vld [vmem:[%s3 + $0x160] sm:$0xf]
      %v580 = vld [vmem:[%s3 + $0x164] sm:$0xf]
      %v581 = vld [vmem:[%s3 + $0x168] sm:$0xf]
      %v582 = vld [vmem:[%s3 + $0x16c] sm:$0xf]
      %v583 = vld [vmem:[%s3 + $0x170] sm:$0xf]
      %v584 = vld [vmem:[%s3 + $0x174] sm:$0xf]
      %v585 = vld [vmem:[%s3 + $0x178] sm:$0xf]
      %v586 = vld [vmem:[%s3 + $0x17c] sm:$0xf]
      %v587 = vld [vmem:[%s3 + $0x180] sm:$0xf]
      %v588 = vld [vmem:[%s3 + $0x184] sm:$0xf]
      %v589 = vld [vmem:[%s3 + $0x188] sm:$0xf]
      %v590 = vld [vmem:[%s3 + $0x18c] sm:$0xf]
      %v591 = vld [vmem:[%s3 + $0x190] sm:$0xf]
      %v592 = vld [vmem:[%s3 + $0x194] sm:$0xf]
      %v593 = vld [vmem:[%s3 + $0x198] sm:$0xf]
      %v594 = vld [vmem:[%s3 + $0x19c] sm:$0xf]
      %v595 = vld [vmem:[%s3 + $0x1a0] sm:$0xf]
      %v596 = vld [vmem:[%s3 + $0x1a4] sm:$0xf]
      %v597 = vld [vmem:[%s3 + $0x1a8] sm:$0xf]
      %v598 = vld [vmem:[%s3 + $0x1ac] sm:$0xf]
      %v599 = vld [vmem:[%s3 + $0x1b0] sm:$0xf]
      %v600 = vld [vmem:[%s3 + $0x1b4] sm:$0xf]
      %v601 = vld [vmem:[%s3 + $0x1b8] sm:$0xf]
      %v602 = vld [vmem:[%s3 + $0x1bc] sm:$0xf]
      %v603 = vld [vmem:[%s3 + $0x1c0] sm:$0xf]
      %v604 = vld [vmem:[%s3 + $0x1c4] sm:$0xf]
      %v605 = vld [vmem:[%s3 + $0x1c8] sm:$0xf]
      %v606 = vld [vmem:[%s3 + $0x1cc] sm:$0xf]
      %v607 = vld [vmem:[%s3 + $0x1d0] sm:$0xf]
      %v608 = vld [vmem:[%s3 + $0x1d4] sm:$0xf]
      %v609 = vld [vmem:[%s3 + $0x1d8] sm:$0xf]
      %v610 = vld [vmem:[%s3 + $0x1dc] sm:$0xf]
      %v611 = vld [vmem:[%s3 + $0x1e0] sm:$0xf]
      %v612 = vld [vmem:[%s3 + $0x1e4] sm:$0xf]
      %v613 = vld [vmem:[%s3 + $0x1e8] sm:$0xf]
      %v614 = vld [vmem:[%s3 + $0x1ec] sm:$0xf]
      %v615 = vld [vmem:[%s3 + $0x1f0] sm:$0xf]
      %v616 = vld [vmem:[%s3 + $0x1f4] sm:$0xf]
      %v617 = vld [vmem:[%s3 + $0x1f8] sm:$0xf]
      %v618 = vld [vmem:[%s3 + $0x1fc] sm:$0xf]
      %v619 = vld [vmem:[%s3 + $0x200] sm:$0xf]
      %v620 = vld [vmem:[%s3 + $0x204] sm:$0xf]
      %v621 = vld [vmem:[%s3 + $0x208] sm:$0xf]
      %v622 = vld [vmem:[%s3 + $0x20c] sm:$0xf]
      %v623 = vld [vmem:[%s3 + $0x210] sm:$0xf]
      %v624 = vld [vmem:[%s3 + $0x214] sm:$0xf]
      %v625 = vld [vmem:[%s3 + $0x218] sm:$0xf]
      %v626 = vld [vmem:[%s3 + $0x21c] sm:$0xf]
      %v627 = vld [vmem:[%s3 + $0x220] sm:$0xf]
      %v628 = vld [vmem:[%s3 + $0x224] sm:$0xf]
      %v629 = vld [vmem:[%s3 + $0x228] sm:$0xf]
      %v630 = vld [vmem:[%s3 + $0x22c] sm:$0xf]
      %v631 = vld [vmem:[%s3 + $0x230] sm:$0xf]
      %v632 = vld [vmem:[%s3 + $0x234] sm:$0xf]
      %v633 = vld [vmem:[%s3 + $0x238] sm:$0xf]
      %v634 = vld [vmem:[%s3 + $0x23c] sm:$0xf]
      %v635 = vpack.c.bf16 0.0, 0.0
      %v636 = vpack.c.bf16 %v444, %v443
      %v637 = vpack.c.bf16 %v447, %v446
      %v638 = vpack.c.bf16 %v450, %v449
      %v639 = vpack.c.bf16 %v453, %v452
      %v640 = vpack.c.bf16 %v456, %v455
      %v641 = vpack.c.bf16 %v459, %v458
      %v642 = vpack.c.bf16 %v462, %v461
      %v643 = vpack.c.bf16 %v465, %v464
      %v644 = vpack.c.bf16 %v468, %v467
      %v645 = vpack.c.bf16 %v471, %v470
      %v646 = vpack.c.bf16 %v474, %v473
      %v647 = vpack.c.bf16 %v477, %v476
      %v648 = vpack.c.bf16 %v480, %v479
      %v649 = vpack.c.bf16 %v483, %v482
      %v650 = vpack.c.bf16 %v486, %v485
      %vm697 = vcmask 1046528
      %v698 = vrot.slane 0.0, 1
      %v699 = vsel %vm697, %v698, %v698
      %v700 = vrot.slane %v443, 1
      %v701 = vrot.slane %v444, 1
      %v702 = vsel %vm697, %v700, %v701
      %v703 = vrot.slane %v445, 1
      %v704 = vsel %vm697, %v701, %v703
      %v705 = vrot.slane %v446, 1
      %v706 = vrot.slane %v447, 1
      %v707 = vsel %vm697, %v705, %v706
      %v708 = vrot.slane %v448, 1
      %v709 = vsel %vm697, %v706, %v708
      %v710 = vrot.slane %v449, 1
      %v711 = vrot.slane %v450, 1
      %v712 = vsel %vm697, %v710, %v711
      %v713 = vrot.slane %v451, 1
      %v714 = vsel %vm697, %v711, %v713
      %v715 = vrot.slane %v452, 1
      %v716 = vrot.slane %v453, 1
      %v717 = vsel %vm697, %v715, %v716
      %v718 = vrot.slane %v454, 1
      %v719 = vsel %vm697, %v716, %v718
      %v720 = vrot.slane %v455, 1
      %v721 = vrot.slane %v456, 1
      %v722 = vsel %vm697, %v720, %v721
      %v723 = vrot.slane %v457, 1
      %v724 = vsel %vm697, %v721, %v723
      %v725 = vrot.slane %v458, 1
      %v726 = vrot.slane %v459, 1
      %v727 = vsel %vm697, %v725, %v726
      %v728 = vrot.slane %v460, 1
      %v729 = vsel %vm697, %v726, %v728
      %v730 = vrot.slane %v461, 1
      %v731 = vrot.slane %v462, 1
      %v732 = vsel %vm697, %v730, %v731
      %v733 = vrot.slane %v463, 1
      %v734 = vsel %vm697, %v731, %v733
      %v735 = vrot.slane %v464, 1
      %v736 = vrot.slane %v465, 1
      %v737 = vsel %vm697, %v735, %v736
      %v738 = vrot.slane %v466, 1
      %v739 = vsel %vm697, %v736, %v738
      %v740 = vrot.slane %v467, 1
      %v741 = vrot.slane %v468, 1
      %v742 = vsel %vm697, %v740, %v741
      %v743 = vrot.slane %v469, 1
      %v744 = vsel %vm697, %v741, %v743
      %v745 = vrot.slane %v470, 1
      %v746 = vrot.slane %v471, 1
      %v747 = vsel %vm697, %v745, %v746
      %v748 = vrot.slane %v472, 1
      %v749 = vsel %vm697, %v746, %v748
      %v750 = vrot.slane %v473, 1
      %v751 = vrot.slane %v474, 1
      %v752 = vsel %vm697, %v750, %v751
      %v753 = vrot.slane %v475, 1
      %v754 = vsel %vm697, %v751, %v753
      %v755 = vrot.slane %v476, 1
      %v756 = vrot.slane %v477, 1
      %v757 = vsel %vm697, %v755, %v756
      %v758 = vrot.slane %v478, 1
      %v759 = vsel %vm697, %v756, %v758
      %v760 = vrot.slane %v479, 1
      %v761 = vrot.slane %v480, 1
      %v762 = vsel %vm697, %v760, %v761
      %v763 = vrot.slane %v481, 1
      %v764 = vsel %vm697, %v761, %v763
      %v765 = vrot.slane %v482, 1
      %v766 = vrot.slane %v483, 1
      %v767 = vsel %vm697, %v765, %v766
      %v768 = vrot.slane %v484, 1
      %v769 = vsel %vm697, %v766, %v768
      %v770 = vrot.slane %v485, 1
      %v771 = vrot.slane %v486, 1
      %v772 = vsel %vm697, %v770, %v771
      %v773 = vrot.slane %v487, 1
      %v774 = vsel %vm697, %v771, %v773
      %v806 = vpack.c.bf16 %v699, %v699
      %v807 = vpack.c.bf16 %v704, %v702
      %v808 = vpack.c.bf16 %v709, %v707
      %v809 = vpack.c.bf16 %v714, %v712
      %v810 = vpack.c.bf16 %v719, %v717
      %v811 = vpack.c.bf16 %v724, %v722
      %v812 = vpack.c.bf16 %v729, %v727
      %v813 = vpack.c.bf16 %v734, %v732
      %v814 = vpack.c.bf16 %v739, %v737
      %v815 = vpack.c.bf16 %v744, %v742
      %v816 = vpack.c.bf16 %v749, %v747
      %v817 = vpack.c.bf16 %v754, %v752
      %v818 = vpack.c.bf16 %v759, %v757
      %v819 = vpack.c.bf16 %v764, %v762
      %v820 = vpack.c.bf16 %v769, %v767
      %v821 = vpack.c.bf16 %v774, %v772
      %v838 = vunpack.c.l.b16 %v507
      %v839 = vunpack.c.l.b16 %v508
      %v840 = vunpack.c.l.b16 %v509
      %v841 = vunpack.c.l.b16 %v510
      %v842 = vunpack.c.l.b16 %v511
      %v843 = vunpack.c.l.b16 %v512
      %v844 = vunpack.c.l.b16 %v513
      %v845 = vunpack.c.l.b16 %v514
      %v846 = vunpack.c.l.b16 %v515
      %v847 = vunpack.c.l.b16 %v516
      %v848 = vunpack.c.l.b16 %v517
      %v849 = vunpack.c.l.b16 %v518
      %v850 = vunpack.c.l.b16 %v519
      %v851 = vunpack.c.l.b16 %v520
      %v852 = vunpack.c.l.b16 %v521
      %v853 = vunpack.c.l.b16 %v522
      %v854 = vpack.c.b16 %v839, %v838
      %v855 = vpack.c.b16 %v841, %v840
      %v856 = vpack.c.b16 %v843, %v842
      %v857 = vpack.c.b16 %v845, %v844
      %v858 = vpack.c.b16 %v847, %v846
      %v859 = vpack.c.b16 %v849, %v848
      %v860 = vpack.c.b16 %v851, %v850
      %v861 = vpack.c.b16 %v853, %v852
      %870 = vmatprep.subr.bf16.mxu0 0
      %871 = vmatpush1.bf16.msra.mxu0 %v854
      %872 = vmatprep.subr.bf16.mxu0 0
      %873 = vmatpush1.bf16.msra.mxu0 %v855
      %874 = vmatprep.subr.bf16.mxu0 0
      %875 = vmatpush1.bf16.msra.mxu0 %v856
      %876 = vmatprep.subr.bf16.mxu0 0
      %877 = vmatpush1.bf16.msra.mxu0 %v857
      %878 = vmatprep.subr.bf16.mxu0 0
      %879 = vmatpush1.bf16.msra.mxu0 %v858
      %880 = vmatprep.subr.bf16.mxu0 0
      %881 = vmatpush1.bf16.msra.mxu0 %v859
      %882 = vmatprep.subr.bf16.mxu0 0
      %883 = vmatpush1.bf16.msra.mxu0 %v860
      %884 = vmatprep.subr.bf16.mxu0 0
      %885 = vmatpush1.bf16.msra.mxu0 %v861
      %886 = vmatprep.subr.bf16.mxu0 0
      %887 = vmatpush1.bf16.msra.mxu0 0
      %888 = vmatprep.subr.bf16.mxu0 0
      %889 = vmatpush1.bf16.msra.mxu0 0
      %890 = vmatprep.subr.bf16.mxu0 0
      %891 = vmatpush1.bf16.msra.mxu0 0
      %892 = vmatprep.subr.bf16.mxu0 0
      %893 = vmatpush1.bf16.msra.mxu0 0
      %894 = vmatprep.subr.bf16.mxu0 0
      %895 = vmatpush1.bf16.msra.mxu0 0
      %896 = vmatprep.subr.bf16.mxu0 0
      %897 = vmatpush1.bf16.msra.mxu0 0
      %898 = vmatprep.subr.bf16.mxu0 0
      %899 = vmatpush1.bf16.msra.mxu0 0
      %900 = vmatprep.subr.bf16.mxu0 0
      %901 = vmatpush1.bf16.msra.mxu0 0
      %902 = vmatprep.mubr.bf16.mxu0 0
      %903 = vmatmul.mubr.bf16.gmra.mrb[0].mxu0 %v806
      %v904 = vpop.f32.mrb[0].mxu0
      %v905 = vadd.f32 0.0, %v904
      %v906 = vpop.f32.mrb[0].mxu0
      %v907 = vpop.f32.mrb[0].mxu0
      %v908 = vadd.f32 0.0, %v907
      %v909 = vpop.f32.mrb[0].mxu0
      %910 = vmatprep.mubr.bf16.mxu0 0
      %911 = vmatmul.mubr.bf16.gmra.mrb[0].mxu0 %v807
      %v912 = vpop.f32.mrb[0].mxu0
      %v913 = vadd.f32 0.0, %v912
      %v914 = vpop.f32.mrb[0].mxu0
      %v915 = vpop.f32.mrb[0].mxu0
      %v916 = vadd.f32 0.0, %v915
      %v917 = vpop.f32.mrb[0].mxu0
      %918 = vmatprep.mubr.bf16.mxu0 0
      %919 = vmatmul.mubr.bf16.gmra.mrb[0].mxu0 %v808
      %v920 = vpop.f32.mrb[0].mxu0
      %v921 = vadd.f32 0.0, %v920
      %v922 = vpop.f32.mrb[0].mxu0
      %v923 = vpop.f32.mrb[0].mxu0
      %v924 = vadd.f32 0.0, %v923
      %v925 = vpop.f32.mrb[0].mxu0
      %926 = vmatprep.mubr.bf16.mxu0 0
      %927 = vmatmul.mubr.bf16.gmra.mrb[0].mxu0 %v809
      %v928 = vpop.f32.mrb[0].mxu0
      %v929 = vadd.f32 0.0, %v928
      %v930 = vpop.f32.mrb[0].mxu0
      %v931 = vpop.f32.mrb[0].mxu0
      %v932 = vadd.f32 0.0, %v931
      %v933 = vpop.f32.mrb[0].mxu0
      %934 = vmatprep.mubr.bf16.mxu0 0
      %935 = vmatmul.mubr.bf16.gmra.mrb[0].mxu0 %v810
      %v936 = vpop.f32.mrb[0].mxu0
      %v937 = vadd.f32 0.0, %v936
      %v938 = vpop.f32.mrb[0].mxu0
      %v939 = vpop.f32.mrb[0].mxu0
      %v940 = vadd.f32 0.0, %v939
      %v941 = vpop.f32.mrb[0].mxu0
      %942 = vmatprep.mubr.bf16.mxu0 0
      %943 = vmatmul.mubr.bf16.gmra.mrb[0].mxu0 %v811
      %v944 = vpop.f32.mrb[0].mxu0
      %v945 = vadd.f32 0.0, %v944
      %v946 = vpop.f32.mrb[0].mxu0
      %v947 = vpop.f32.mrb[0].mxu0
      %v948 = vadd.f32 0.0, %v947
      %v949 = vpop.f32.mrb[0].mxu0
      %950 = vmatprep.mubr.bf16.mxu0 0
      %951 = vmatmul.mubr.bf16.gmra.mrb[0].mxu0 %v812
      %v952 = vpop.f32.mrb[0].mxu0
      %v953 = vadd.f32 0.0, %v952
      %v954 = vpop.f32.mrb[0].mxu0
      %v955 = vpop.f32.mrb[0].mxu0
      %v956 = vadd.f32 0.0, %v955
      %v957 = vpop.f32.mrb[0].mxu0
      %958 = vmatprep.mubr.bf16.mxu0 0
      %959 = vmatmul.mubr.bf16.gmra.mrb[0].mxu0 %v813
      %v960 = vpop.f32.mrb[0].mxu0
      %v961 = vadd.f32 0.0, %v960
      %v962 = vpop.f32.mrb[0].mxu0
      %v963 = vpop.f32.mrb[0].mxu0
      %v964 = vadd.f32 0.0, %v963
      %v965 = vpop.f32.mrb[0].mxu0
      %966 = vmatprep.mubr.bf16.mxu0 0
      %967 = vmatmul.mubr.bf16.gmra.mrb[0].mxu0 %v814
      %v968 = vpop.f32.mrb[0].mxu0
      %v969 = vadd.f32 0.0, %v968
      %v970 = vpop.f32.mrb[0].mxu0
      %v971 = vpop.f32.mrb[0].mxu0
      %v972 = vadd.f32 0.0, %v971
      %v973 = vpop.f32.mrb[0].mxu0
      %974 = vmatprep.mubr.bf16.mxu0 0
      %975 = vmatmul.mubr.bf16.gmra.mrb[0].mxu0 %v815
      %v976 = vpop.f32.mrb[0].mxu0
      %v977 = vadd.f32 0.0, %v976
      %v978 = vpop.f32.mrb[0].mxu0
      %v979 = vpop.f32.mrb[0].mxu0
      %v980 = vadd.f32 0.0, %v979
      %v981 = vpop.f32.mrb[0].mxu0
      %982 = vmatprep.mubr.bf16.mxu0 0
      %983 = vmatmul.mubr.bf16.gmra.mrb[0].mxu0 %v816
      %v984 = vpop.f32.mrb[0].mxu0
      %v985 = vadd.f32 0.0, %v984
      %v986 = vpop.f32.mrb[0].mxu0
      %v987 = vpop.f32.mrb[0].mxu0
      %v988 = vadd.f32 0.0, %v987
      %v989 = vpop.f32.mrb[0].mxu0
      %990 = vmatprep.mubr.bf16.mxu0 0
      %991 = vmatmul.mubr.bf16.gmra.mrb[0].mxu0 %v817
      %v992 = vpop.f32.mrb[0].mxu0
      %v993 = vadd.f32 0.0, %v992
      %v994 = vpop.f32.mrb[0].mxu0
      %v995 = vpop.f32.mrb[0].mxu0
      %v996 = vadd.f32 0.0, %v995
      %v997 = vpop.f32.mrb[0].mxu0
      %998 = vmatprep.mubr.bf16.mxu0 0
      %999 = vmatmul.mubr.bf16.gmra.mrb[0].mxu0 %v818
      %v1000 = vpop.f32.mrb[0].mxu0
      %v1001 = vadd.f32 0.0, %v1000
      %v1002 = vpop.f32.mrb[0].mxu0
      %v1003 = vpop.f32.mrb[0].mxu0
      %v1004 = vadd.f32 0.0, %v1003
      %v1005 = vpop.f32.mrb[0].mxu0
      %1006 = vmatprep.mubr.bf16.mxu0 0
      %1007 = vmatmul.mubr.bf16.gmra.mrb[0].mxu0 %v819
      %v1008 = vpop.f32.mrb[0].mxu0
      %v1009 = vadd.f32 0.0, %v1008
      %v1010 = vpop.f32.mrb[0].mxu0
      %v1011 = vpop.f32.mrb[0].mxu0
      %v1012 = vadd.f32 0.0, %v1011
      %v1013 = vpop.f32.mrb[0].mxu0
      %1014 = vmatprep.mubr.bf16.mxu0 0
      %1015 = vmatmul.mubr.bf16.gmra.mrb[0].mxu0 %v820
      %v1016 = vpop.f32.mrb[0].mxu0
      %v1017 = vadd.f32 0.0, %v1016
      %v1018 = vpop.f32.mrb[0].mxu0
      %v1019 = vpop.f32.mrb[0].mxu0
      %v1020 = vadd.f32 0.0, %v1019
      %v1021 = vpop.f32.mrb[0].mxu0
      %1022 = vmatprep.mubr.bf16.mxu0 0
      %1023 = vmatmul.mubr.bf16.gmra.mrb[0].mxu0 %v821
      %v1024 = vpop.f32.mrb[0].mxu0
      %v1025 = vadd.f32 0.0, %v1024
      %v1026 = vpop.f32.mrb[0].mxu0
      %v1027 = vpop.f32.mrb[0].mxu0
      %v1028 = vadd.f32 0.0, %v1027
      %v1029 = vpop.f32.mrb[0].mxu0
      %1030 = vdwg.mxu0
      %v1047 = vunpack.c.l.b16 %v491
      %v1048 = vunpack.c.l.b16 %v492
      %v1049 = vunpack.c.l.b16 %v493
      %v1050 = vunpack.c.l.b16 %v494
      %v1051 = vunpack.c.l.b16 %v495
      %v1052 = vunpack.c.l.b16 %v496
      %v1053 = vunpack.c.l.b16 %v497
      %v1054 = vunpack.c.l.b16 %v498
      %v1055 = vunpack.c.l.b16 %v499
      %v1056 = vunpack.c.l.b16 %v500
      %v1057 = vunpack.c.l.b16 %v501
      %v1058 = vunpack.c.l.b16 %v502
      %v1059 = vunpack.c.l.b16 %v503
      %v1060 = vunpack.c.l.b16 %v504
      %v1061 = vunpack.c.l.b16 %v505
      %v1062 = vunpack.c.l.b16 %v506
      %v1063 = vpack.c.b16 %v1048, %v1047
      %v1064 = vpack.c.b16 %v1050, %v1049
      %v1065 = vpack.c.b16 %v1052, %v1051
      %v1066 = vpack.c.b16 %v1054, %v1053
      %v1067 = vpack.c.b16 %v1056, %v1055
      %v1068 = vpack.c.b16 %v1058, %v1057
      %v1069 = vpack.c.b16 %v1060, %v1059
      %v1070 = vpack.c.b16 %v1062, %v1061
      %1079 = vmatprep.subr.bf16.mxu0 0
      %1080 = vmatpush1.bf16.msra.mxu0 %v1063
      %1081 = vmatprep.subr.bf16.mxu0 0
      %1082 = vmatpush1.bf16.msra.mxu0 %v1064
      %1083 = vmatprep.subr.bf16.mxu0 0
      %1084 = vmatpush1.bf16.msra.mxu0 %v1065
      %1085 = vmatprep.subr.bf16.mxu0 0
      %1086 = vmatpush1.bf16.msra.mxu0 %v1066
      %1087 = vmatprep.subr.bf16.mxu0 0
      %1088 = vmatpush1.bf16.msra.mxu0 %v1067
      %1089 = vmatprep.subr.bf16.mxu0 0
      %1090 = vmatpush1.bf16.msra.mxu0 %v1068
      %1091 = vmatprep.subr.bf16.mxu0 0
      %1092 = vmatpush1.bf16.msra.mxu0 %v1069
      %1093 = vmatprep.subr.bf16.mxu0 0
      %1094 = vmatpush1.bf16.msra.mxu0 %v1070
      %1095 = vmatprep.subr.bf16.mxu0 0
      %1096 = vmatpush1.bf16.msra.mxu0 0
      %1097 = vmatprep.subr.bf16.mxu0 0
      %1098 = vmatpush1.bf16.msra.mxu0 0
      %1099 = vmatprep.subr.bf16.mxu0 0
      %1100 = vmatpush1.bf16.msra.mxu0 0
      %1101 = vmatprep.subr.bf16.mxu0 0
      %1102 = vmatpush1.bf16.msra.mxu0 0
      %1103 = vmatprep.subr.bf16.mxu0 0
      %1104 = vmatpush1.bf16.msra.mxu0 0
      %1105 = vmatprep.subr.bf16.mxu0 0
      %1106 = vmatpush1.bf16.msra.mxu0 0
      %1107 = vmatprep.subr.bf16.mxu0 0
      %1108 = vmatpush1.bf16.msra.mxu0 0
      %1109 = vmatprep.subr.bf16.mxu0 0
      %1110 = vmatpush1.bf16.msra.mxu0 0
      %1111 = vmatprep.mubr.bf16.mxu0 0
      %1112 = vmatmul.mubr.bf16.gmra.mrb[0].mxu0 %v635
      %v1113 = vpop.f32.mrb[0].mxu0
      %v1114 = vadd.f32 %v905, %v1113
      %v1115 = vpop.f32.mrb[0].mxu0
      %v1116 = vpop.f32.mrb[0].mxu0
      %v1117 = vadd.f32 %v908, %v1116
      %v1118 = vpop.f32.mrb[0].mxu0
      %1119 = vmatprep.mubr.bf16.mxu0 0
      %1120 = vmatmul.mubr.bf16.gmra.mrb[0].mxu0 %v636
      %v1121 = vpop.f32.mrb[0].mxu0
      %v1122 = vadd.f32 %v913, %v1121
      %v1123 = vpop.f32.mrb[0].mxu0
      %v1124 = vpop.f32.mrb[0].mxu0
      %v1125 = vadd.f32 %v916, %v1124
      %v1126 = vpop.f32.mrb[0].mxu0
      %1127 = vmatprep.mubr.bf16.mxu0 0
      %1128 = vmatmul.mubr.bf16.gmra.mrb[0].mxu0 %v637
      %v1129 = vpop.f32.mrb[0].mxu0
      %v1130 = vadd.f32 %v921, %v1129
      %v1131 = vpop.f32.mrb[0].mxu0
      %v1132 = vpop.f32.mrb[0].mxu0
      %v1133 = vadd.f32 %v924, %v1132
      %v1134 = vpop.f32.mrb[0].mxu0
      %1135 = vmatprep.mubr.bf16.mxu0 0
      %1136 = vmatmul.mubr.bf16.gmra.mrb[0].mxu0 %v638
      %v1137 = vpop.f32.mrb[0].mxu0
      %v1138 = vadd.f32 %v929, %v1137
      %v1139 = vpop.f32.mrb[0].mxu0
      %v1140 = vpop.f32.mrb[0].mxu0
      %v1141 = vadd.f32 %v932, %v1140
      %v1142 = vpop.f32.mrb[0].mxu0
      %1143 = vmatprep.mubr.bf16.mxu0 0
      %1144 = vmatmul.mubr.bf16.gmra.mrb[0].mxu0 %v639
      %v1145 = vpop.f32.mrb[0].mxu0
      %v1146 = vadd.f32 %v937, %v1145
      %v1147 = vpop.f32.mrb[0].mxu0
      %v1148 = vpop.f32.mrb[0].mxu0
      %v1149 = vadd.f32 %v940, %v1148
      %v1150 = vpop.f32.mrb[0].mxu0
      %1151 = vmatprep.mubr.bf16.mxu0 0
      %1152 = vmatmul.mubr.bf16.gmra.mrb[0].mxu0 %v640
      %v1153 = vpop.f32.mrb[0].mxu0
      %v1154 = vadd.f32 %v945, %v1153
      %v1155 = vpop.f32.mrb[0].mxu0
      %v1156 = vpop.f32.mrb[0].mxu0
      %v1157 = vadd.f32 %v948, %v1156
      %v1158 = vpop.f32.mrb[0].mxu0
      %1159 = vmatprep.mubr.bf16.mxu0 0
      %1160 = vmatmul.mubr.bf16.gmra.mrb[0].mxu0 %v641
      %v1161 = vpop.f32.mrb[0].mxu0
      %v1162 = vadd.f32 %v953, %v1161
      %v1163 = vpop.f32.mrb[0].mxu0
      %v1164 = vpop.f32.mrb[0].mxu0
      %v1165 = vadd.f32 %v956, %v1164
      %v1166 = vpop.f32.mrb[0].mxu0
      %1167 = vmatprep.mubr.bf16.mxu0 0
      %1168 = vmatmul.mubr.bf16.gmra.mrb[0].mxu0 %v642
      %v1169 = vpop.f32.mrb[0].mxu0
      %v1170 = vadd.f32 %v961, %v1169
      %v1171 = vpop.f32.mrb[0].mxu0
      %v1172 = vpop.f32.mrb[0].mxu0
      %v1173 = vadd.f32 %v964, %v1172
      %v1174 = vpop.f32.mrb[0].mxu0
      %1175 = vmatprep.mubr.bf16.mxu0 0
      %1176 = vmatmul.mubr.bf16.gmra.mrb[0].mxu0 %v643
      %v1177 = vpop.f32.mrb[0].mxu0
      %v1178 = vadd.f32 %v969, %v1177
      %v1179 = vpop.f32.mrb[0].mxu0
      %v1180 = vpop.f32.mrb[0].mxu0
      %v1181 = vadd.f32 %v972, %v1180
      %v1182 = vpop.f32.mrb[0].mxu0
      %1183 = vmatprep.mubr.bf16.mxu0 0
      %1184 = vmatmul.mubr.bf16.gmra.mrb[0].mxu0 %v644
      %v1185 = vpop.f32.mrb[0].mxu0
      %v1186 = vadd.f32 %v977, %v1185
      %v1187 = vpop.f32.mrb[0].mxu0
      %v1188 = vpop.f32.mrb[0].mxu0
      %v1189 = vadd.f32 %v980, %v1188
      %v1190 = vpop.f32.mrb[0].mxu0
      %1191 = vmatprep.mubr.bf16.mxu0 0
      %1192 = vmatmul.mubr.bf16.gmra.mrb[0].mxu0 %v645
      %v1193 = vpop.f32.mrb[0].mxu0
      %v1194 = vadd.f32 %v985, %v1193
      %v1195 = vpop.f32.mrb[0].mxu0
      %v1196 = vpop.f32.mrb[0].mxu0
      %v1197 = vadd.f32 %v988, %v1196
      %v1198 = vpop.f32.mrb[0].mxu0
      %1199 = vmatprep.mubr.bf16.mxu0 0
      %1200 = vmatmul.mubr.bf16.gmra.mrb[0].mxu0 %v646
      %v1201 = vpop.f32.mrb[0].mxu0
      %v1202 = vadd.f32 %v993, %v1201
      %v1203 = vpop.f32.mrb[0].mxu0
      %v1204 = vpop.f32.mrb[0].mxu0
      %v1205 = vadd.f32 %v996, %v1204
      %v1206 = vpop.f32.mrb[0].mxu0
      %1207 = vmatprep.mubr.bf16.mxu0 0
      %1208 = vmatmul.mubr.bf16.gmra.mrb[0].mxu0 %v647
      %v1209 = vpop.f32.mrb[0].mxu0
      %v1210 = vadd.f32 %v1001, %v1209
      %v1211 = vpop.f32.mrb[0].mxu0
      %v1212 = vpop.f32.mrb[0].mxu0
      %v1213 = vadd.f32 %v1004, %v1212
      %v1214 = vpop.f32.mrb[0].mxu0
      %1215 = vmatprep.mubr.bf16.mxu0 0
      %1216 = vmatmul.mubr.bf16.gmra.mrb[0].mxu0 %v648
      %v1217 = vpop.f32.mrb[0].mxu0
      %v1218 = vadd.f32 %v1009, %v1217
      %v1219 = vpop.f32.mrb[0].mxu0
      %v1220 = vpop.f32.mrb[0].mxu0
      %v1221 = vadd.f32 %v1012, %v1220
      %v1222 = vpop.f32.mrb[0].mxu0
      %1223 = vmatprep.mubr.bf16.mxu0 0
      %1224 = vmatmul.mubr.bf16.gmra.mrb[0].mxu0 %v649
      %v1225 = vpop.f32.mrb[0].mxu0
      %v1226 = vadd.f32 %v1017, %v1225
      %v1227 = vpop.f32.mrb[0].mxu0
      %v1228 = vpop.f32.mrb[0].mxu0
      %v1229 = vadd.f32 %v1020, %v1228
      %v1230 = vpop.f32.mrb[0].mxu0
      %1231 = vmatprep.mubr.bf16.mxu0 0
      %1232 = vmatmul.mubr.bf16.gmra.mrb[0].mxu0 %v650
      %v1233 = vpop.f32.mrb[0].mxu0
      %v1234 = vadd.f32 %v1025, %v1233
      %v1235 = vpop.f32.mrb[0].mxu0
      %v1236 = vpop.f32.mrb[0].mxu0
      %v1237 = vadd.f32 %v1028, %v1236
      %v1238 = vpop.f32.mrb[0].mxu0
      %1239 = vdwg.mxu0
      %vm1240 = vcmask 1045504
      %v1241 = vrot.slane 0.0, 2
      %v1242 = vsel %vm1240, %v1241, %v1241
      %v1243 = vrot.slane %v443, 2
      %v1244 = vrot.slane %v444, 2
      %v1245 = vsel %vm1240, %v1243, %v1244
      %v1246 = vrot.slane %v445, 2
      %v1247 = vsel %vm1240, %v1244, %v1246
      %v1248 = vrot.slane %v446, 2
      %v1249 = vrot.slane %v447, 2
      %v1250 = vsel %vm1240, %v1248, %v1249
      %v1251 = vrot.slane %v448, 2
      %v1252 = vsel %vm1240, %v1249, %v1251
      %v1253 = vrot.slane %v449, 2
      %v1254 = vrot.slane %v450, 2
      %v1255 = vsel %vm1240, %v1253, %v1254
      %v1256 = vrot.slane %v451, 2
      %v1257 = vsel %vm1240, %v1254, %v1256
      %v1258 = vrot.slane %v452, 2
      %v1259 = vrot.slane %v453, 2
      %v1260 = vsel %vm1240, %v1258, %v1259
      %v1261 = vrot.slane %v454, 2
      %v1262 = vsel %vm1240, %v1259, %v1261
      %v1263 = vrot.slane %v455, 2
      %v1264 = vrot.slane %v456, 2
      %v1265 = vsel %vm1240, %v1263, %v1264
      %v1266 = vrot.slane %v457, 2
      %v1267 = vsel %vm1240, %v1264, %v1266
      %v1268 = vrot.slane %v458, 2
      %v1269 = vrot.slane %v459, 2
      %v1270 = vsel %vm1240, %v1268, %v1269
      %v1271 = vrot.slane %v460, 2
      %v1272 = vsel %vm1240, %v1269, %v1271
      %v1273 = vrot.slane %v461, 2
      %v1274 = vrot.slane %v462, 2
      %v1275 = vsel %vm1240, %v1273, %v1274
      %v1276 = vrot.slane %v463, 2
      %v1277 = vsel %vm1240, %v1274, %v1276
      %v1278 = vrot.slane %v464, 2
      %v1279 = vrot.slane %v465, 2
      %v1280 = vsel %vm1240, %v1278, %v1279
      %v1281 = vrot.slane %v466, 2
      %v1282 = vsel %vm1240, %v1279, %v1281
      %v1283 = vrot.slane %v467, 2
      %v1284 = vrot.slane %v468, 2
      %v1285 = vsel %vm1240, %v1283, %v1284
      %v1286 = vrot.slane %v469, 2
      %v1287 = vsel %vm1240, %v1284, %v1286
      %v1288 = vrot.slane %v470, 2
      %v1289 = vrot.slane %v471, 2
      %v1290 = vsel %vm1240, %v1288, %v1289
      %v1291 = vrot.slane %v472, 2
      %v1292 = vsel %vm1240, %v1289, %v1291
      %v1293 = vrot.slane %v473, 2
      %v1294 = vrot.slane %v474, 2
      %v1295 = vsel %vm1240, %v1293, %v1294
      %v1296 = vrot.slane %v475, 2
      %v1297 = vsel %vm1240, %v1294, %v1296
      %v1298 = vrot.slane %v476, 2
      %v1299 = vrot.slane %v477, 2
      %v1300 = vsel %vm1240, %v1298, %v1299
      %v1301 = vrot.slane %v478, 2
      %v1302 = vsel %vm1240, %v1299, %v1301
      %v1303 = vrot.slane %v479, 2
      %v1304 = vrot.slane %v480, 2
      %v1305 = vsel %vm1240, %v1303, %v1304
      %v1306 = vrot.slane %v481, 2
      %v1307 = vsel %vm1240, %v1304, %v1306
      %v1308 = vrot.slane %v482, 2
      %v1309 = vrot.slane %v483, 2
      %v1310 = vsel %vm1240, %v1308, %v1309
      %v1311 = vrot.slane %v484, 2
      %v1312 = vsel %vm1240, %v1309, %v1311
      %v1313 = vrot.slane %v485, 2
      %v1314 = vrot.slane %v486, 2
      %v1315 = vsel %vm1240, %v1313, %v1314
      %v1316 = vrot.slane %v487, 2
      %v1317 = vsel %vm1240, %v1314, %v1316
      %v1349 = vpack.c.bf16 %v1242, %v1242
      %v1350 = vpack.c.bf16 %v1247, %v1245
      %v1351 = vpack.c.bf16 %v1252, %v1250
      %v1352 = vpack.c.bf16 %v1257, %v1255
      %v1353 = vpack.c.bf16 %v1262, %v1260
      %v1354 = vpack.c.bf16 %v1267, %v1265
      %v1355 = vpack.c.bf16 %v1272, %v1270
      %v1356 = vpack.c.bf16 %v1277, %v1275
      %v1357 = vpack.c.bf16 %v1282, %v1280
      %v1358 = vpack.c.bf16 %v1287, %v1285
      %v1359 = vpack.c.bf16 %v1292, %v1290
      %v1360 = vpack.c.bf16 %v1297, %v1295
      %v1361 = vpack.c.bf16 %v1302, %v1300
      %v1362 = vpack.c.bf16 %v1307, %v1305
      %v1363 = vpack.c.bf16 %v1312, %v1310
      %v1364 = vpack.c.bf16 %v1317, %v1315
      %v1381 = vunpack.c.l.b16 %v523
      %v1382 = vunpack.c.l.b16 %v524
      %v1383 = vunpack.c.l.b16 %v525
      %v1384 = vunpack.c.l.b16 %v526
      %v1385 = vunpack.c.l.b16 %v527
      %v1386 = vunpack.c.l.b16 %v528
      %v1387 = vunpack.c.l.b16 %v529
      %v1388 = vunpack.c.l.b16 %v530
      %v1389 = vunpack.c.l.b16 %v531
      %v1390 = vunpack.c.l.b16 %v532
      %v1391 = vunpack.c.l.b16 %v533
      %v1392 = vunpack.c.l.b16 %v534
      %v1393 = vunpack.c.l.b16 %v535
      %v1394 = vunpack.c.l.b16 %v536
      %v1395 = vunpack.c.l.b16 %v537
      %v1396 = vunpack.c.l.b16 %v538
      %v1397 = vpack.c.b16 %v1382, %v1381
      %v1398 = vpack.c.b16 %v1384, %v1383
      %v1399 = vpack.c.b16 %v1386, %v1385
      %v1400 = vpack.c.b16 %v1388, %v1387
      %v1401 = vpack.c.b16 %v1390, %v1389
      %v1402 = vpack.c.b16 %v1392, %v1391
      %v1403 = vpack.c.b16 %v1394, %v1393
      %v1404 = vpack.c.b16 %v1396, %v1395
      %1413 = vmatprep.subr.bf16.mxu0 0
      %1414 = vmatpush1.bf16.msra.mxu0 %v1397
      %1415 = vmatprep.subr.bf16.mxu0 0
      %1416 = vmatpush1.bf16.msra.mxu0 %v1398
      %1417 = vmatprep.subr.bf16.mxu0 0
      %1418 = vmatpush1.bf16.msra.mxu0 %v1399
      %1419 = vmatprep.subr.bf16.mxu0 0
      %1420 = vmatpush1.bf16.msra.mxu0 %v1400
      %1421 = vmatprep.subr.bf16.mxu0 0
      %1422 = vmatpush1.bf16.msra.mxu0 %v1401
      %1423 = vmatprep.subr.bf16.mxu0 0
      %1424 = vmatpush1.bf16.msra.mxu0 %v1402
      %1425 = vmatprep.subr.bf16.mxu0 0
      %1426 = vmatpush1.bf16.msra.mxu0 %v1403
      %1427 = vmatprep.subr.bf16.mxu0 0
      %1428 = vmatpush1.bf16.msra.mxu0 %v1404
      %1429 = vmatprep.subr.bf16.mxu0 0
      %1430 = vmatpush1.bf16.msra.mxu0 0
      %1431 = vmatprep.subr.bf16.mxu0 0
      %1432 = vmatpush1.bf16.msra.mxu0 0
      %1433 = vmatprep.subr.bf16.mxu0 0
      %1434 = vmatpush1.bf16.msra.mxu0 0
      %1435 = vmatprep.subr.bf16.mxu0 0
      %1436 = vmatpush1.bf16.msra.mxu0 0
      %1437 = vmatprep.subr.bf16.mxu0 0
      %1438 = vmatpush1.bf16.msra.mxu0 0
      %1439 = vmatprep.subr.bf16.mxu0 0
      %1440 = vmatpush1.bf16.msra.mxu0 0
      %1441 = vmatprep.subr.bf16.mxu0 0
      %1442 = vmatpush1.bf16.msra.mxu0 0
      %1443 = vmatprep.subr.bf16.mxu0 0
      %1444 = vmatpush1.bf16.msra.mxu0 0
      %1445 = vmatprep.mubr.bf16.mxu0 0
      %1446 = vmatmul.mubr.bf16.gmra.mrb[0].mxu0 %v1349
      %v1447 = vpop.f32.mrb[0].mxu0
      %v1448 = vadd.f32 0.0, %v1447
      %v1449 = vpop.f32.mrb[0].mxu0
      %v1450 = vpop.f32.mrb[0].mxu0
      %v1451 = vadd.f32 0.0, %v1450
      %v1452 = vpop.f32.mrb[0].mxu0
      %1453 = vmatprep.mubr.bf16.mxu0 0
      %1454 = vmatmul.mubr.bf16.gmra.mrb[0].mxu0 %v1350
      %v1455 = vpop.f32.mrb[0].mxu0
      %v1456 = vadd.f32 0.0, %v1455
      %v1457 = vpop.f32.mrb[0].mxu0
      %v1458 = vpop.f32.mrb[0].mxu0
      %v1459 = vadd.f32 0.0, %v1458
      %v1460 = vpop.f32.mrb[0].mxu0
      %1461 = vmatprep.mubr.bf16.mxu0 0
      %1462 = vmatmul.mubr.bf16.gmra.mrb[0].mxu0 %v1351
      %v1463 = vpop.f32.mrb[0].mxu0
      %v1464 = vadd.f32 0.0, %v1463
      %v1465 = vpop.f32.mrb[0].mxu0
      %v1466 = vpop.f32.mrb[0].mxu0
      %v1467 = vadd.f32 0.0, %v1466
      %v1468 = vpop.f32.mrb[0].mxu0
      %1469 = vmatprep.mubr.bf16.mxu0 0
      %1470 = vmatmul.mubr.bf16.gmra.mrb[0].mxu0 %v1352
      %v1471 = vpop.f32.mrb[0].mxu0
      %v1472 = vadd.f32 0.0, %v1471
      %v1473 = vpop.f32.mrb[0].mxu0
      %v1474 = vpop.f32.mrb[0].mxu0
      %v1475 = vadd.f32 0.0, %v1474
      %v1476 = vpop.f32.mrb[0].mxu0
      %1477 = vmatprep.mubr.bf16.mxu0 0
      %1478 = vmatmul.mubr.bf16.gmra.mrb[0].mxu0 %v1353
      %v1479 = vpop.f32.mrb[0].mxu0
      %v1480 = vadd.f32 0.0, %v1479
      %v1481 = vpop.f32.mrb[0].mxu0
      %v1482 = vpop.f32.mrb[0].mxu0
      %v1483 = vadd.f32 0.0, %v1482
      %v1484 = vpop.f32.mrb[0].mxu0
      %1485 = vmatprep.mubr.bf16.mxu0 0
      %1486 = vmatmul.mubr.bf16.gmra.mrb[0].mxu0 %v1354
      %v1487 = vpop.f32.mrb[0].mxu0
      %v1488 = vadd.f32 0.0, %v1487
      %v1489 = vpop.f32.mrb[0].mxu0
      %v1490 = vpop.f32.mrb[0].mxu0
      %v1491 = vadd.f32 0.0, %v1490
      %v1492 = vpop.f32.mrb[0].mxu0
      %1493 = vmatprep.mubr.bf16.mxu0 0
      %1494 = vmatmul.mubr.bf16.gmra.mrb[0].mxu0 %v1355
      %v1495 = vpop.f32.mrb[0].mxu0
      %v1496 = vadd.f32 0.0, %v1495
      %v1497 = vpop.f32.mrb[0].mxu0
      %v1498 = vpop.f32.mrb[0].mxu0
      %v1499 = vadd.f32 0.0, %v1498
      %v1500 = vpop.f32.mrb[0].mxu0
      %1501 = vmatprep.mubr.bf16.mxu0 0
      %1502 = vmatmul.mubr.bf16.gmra.mrb[0].mxu0 %v1356
      %v1503 = vpop.f32.mrb[0].mxu0
      %v1504 = vadd.f32 0.0, %v1503
      %v1505 = vpop.f32.mrb[0].mxu0
      %v1506 = vpop.f32.mrb[0].mxu0
      %v1507 = vadd.f32 0.0, %v1506
      %v1508 = vpop.f32.mrb[0].mxu0
      %1509 = vmatprep.mubr.bf16.mxu0 0
      %1510 = vmatmul.mubr.bf16.gmra.mrb[0].mxu0 %v1357
      %v1511 = vpop.f32.mrb[0].mxu0
      %v1512 = vadd.f32 0.0, %v1511
      %v1513 = vpop.f32.mrb[0].mxu0
      %v1514 = vpop.f32.mrb[0].mxu0
      %v1515 = vadd.f32 0.0, %v1514
      %v1516 = vpop.f32.mrb[0].mxu0
      %1517 = vmatprep.mubr.bf16.mxu0 0
      %1518 = vmatmul.mubr.bf16.gmra.mrb[0].mxu0 %v1358
      %v1519 = vpop.f32.mrb[0].mxu0
      %v1520 = vadd.f32 0.0, %v1519
      %v1521 = vpop.f32.mrb[0].mxu0
      %v1522 = vpop.f32.mrb[0].mxu0
      %v1523 = vadd.f32 0.0, %v1522
      %v1524 = vpop.f32.mrb[0].mxu0
      %1525 = vmatprep.mubr.bf16.mxu0 0
      %1526 = vmatmul.mubr.bf16.gmra.mrb[0].mxu0 %v1359
      %v1527 = vpop.f32.mrb[0].mxu0
      %v1528 = vadd.f32 0.0, %v1527
      %v1529 = vpop.f32.mrb[0].mxu0
      %v1530 = vpop.f32.mrb[0].mxu0
      %v1531 = vadd.f32 0.0, %v1530
      %v1532 = vpop.f32.mrb[0].mxu0
      %1533 = vmatprep.mubr.bf16.mxu0 0
      %1534 = vmatmul.mubr.bf16.gmra.mrb[0].mxu0 %v1360
      %v1535 = vpop.f32.mrb[0].mxu0
      %v1536 = vadd.f32 0.0, %v1535
      %v1537 = vpop.f32.mrb[0].mxu0
      %v1538 = vpop.f32.mrb[0].mxu0
      %v1539 = vadd.f32 0.0, %v1538
      %v1540 = vpop.f32.mrb[0].mxu0
      %1541 = vmatprep.mubr.bf16.mxu0 0
      %1542 = vmatmul.mubr.bf16.gmra.mrb[0].mxu0 %v1361
      %v1543 = vpop.f32.mrb[0].mxu0
      %v1544 = vadd.f32 0.0, %v1543
      %v1545 = vpop.f32.mrb[0].mxu0
      %v1546 = vpop.f32.mrb[0].mxu0
      %v1547 = vadd.f32 0.0, %v1546
      %v1548 = vpop.f32.mrb[0].mxu0
      %1549 = vmatprep.mubr.bf16.mxu0 0
      %1550 = vmatmul.mubr.bf16.gmra.mrb[0].mxu0 %v1362
      %v1551 = vpop.f32.mrb[0].mxu0
      %v1552 = vadd.f32 0.0, %v1551
      %v1553 = vpop.f32.mrb[0].mxu0
      %v1554 = vpop.f32.mrb[0].mxu0
      %v1555 = vadd.f32 0.0, %v1554
      %v1556 = vpop.f32.mrb[0].mxu0
      %1557 = vmatprep.mubr.bf16.mxu0 0
      %1558 = vmatmul.mubr.bf16.gmra.mrb[0].mxu0 %v1363
      %v1559 = vpop.f32.mrb[0].mxu0
      %v1560 = vadd.f32 0.0, %v1559
      %v1561 = vpop.f32.mrb[0].mxu0
      %v1562 = vpop.f32.mrb[0].mxu0
      %v1563 = vadd.f32 0.0, %v1562
      %v1564 = vpop.f32.mrb[0].mxu0
      %1565 = vmatprep.mubr.bf16.mxu0 0
      %1566 = vmatmul.mubr.bf16.gmra.mrb[0].mxu0 %v1364
      %v1567 = vpop.f32.mrb[0].mxu0
      %v1568 = vadd.f32 0.0, %v1567
      %v1569 = vpop.f32.mrb[0].mxu0
      %v1570 = vpop.f32.mrb[0].mxu0
      %v1571 = vadd.f32 0.0, %v1570
      %v1572 = vpop.f32.mrb[0].mxu0
      %1573 = vdwg.mxu0
      %v1574 = vadd.f32 %v1114, %v1448
      %v1575 = vadd.f32 %v1117, %v1451
      %v1576 = vadd.f32 %v1122, %v1456
      %v1577 = vadd.f32 %v1125, %v1459
      %v1578 = vadd.f32 %v1130, %v1464
      %v1579 = vadd.f32 %v1133, %v1467
      %v1580 = vadd.f32 %v1138, %v1472
      %v1581 = vadd.f32 %v1141, %v1475
      %v1582 = vadd.f32 %v1146, %v1480
      %v1583 = vadd.f32 %v1149, %v1483
      %v1584 = vadd.f32 %v1154, %v1488
      %v1585 = vadd.f32 %v1157, %v1491
      %v1586 = vadd.f32 %v1162, %v1496
      %v1587 = vadd.f32 %v1165, %v1499
      %v1588 = vadd.f32 %v1170, %v1504
      %v1589 = vadd.f32 %v1173, %v1507
      %v1590 = vadd.f32 %v1178, %v1512
      %v1591 = vadd.f32 %v1181, %v1515
      %v1592 = vadd.f32 %v1186, %v1520
      %v1593 = vadd.f32 %v1189, %v1523
      %v1594 = vadd.f32 %v1194, %v1528
      %v1595 = vadd.f32 %v1197, %v1531
      %v1596 = vadd.f32 %v1202, %v1536
      %v1597 = vadd.f32 %v1205, %v1539
      %v1598 = vadd.f32 %v1210, %v1544
      %v1599 = vadd.f32 %v1213, %v1547
      %v1600 = vadd.f32 %v1218, %v1552
      %v1601 = vadd.f32 %v1221, %v1555
      %v1602 = vadd.f32 %v1226, %v1560
      %v1603 = vadd.f32 %v1229, %v1563
      %v1604 = vadd.f32 %v1234, %v1568
      %v1605 = vadd.f32 %v1237, %v1571
      %v1606 = vpack.c.bf16 %v489, %v488
      %v1623 = vunpack.c.l.b16 %v539
      %v1624 = vunpack.c.l.b16 %v540
      %v1625 = vunpack.c.l.b16 %v541
      %v1626 = vunpack.c.l.b16 %v542
      %v1627 = vunpack.c.l.b16 %v543
      %v1628 = vunpack.c.l.b16 %v544
      %v1629 = vunpack.c.l.b16 %v545
      %v1630 = vunpack.c.l.b16 %v546
      %v1631 = vunpack.c.l.b16 %v547
      %v1632 = vunpack.c.l.b16 %v548
      %v1633 = vunpack.c.l.b16 %v549
      %v1634 = vunpack.c.l.b16 %v550
      %v1635 = vunpack.c.l.b16 %v551
      %v1636 = vunpack.c.l.b16 %v552
      %v1637 = vunpack.c.l.b16 %v553
      %v1638 = vunpack.c.l.b16 %v554
      %v1639 = vpack.c.b16 %v1624, %v1623
      %v1640 = vpack.c.b16 %v1626, %v1625
      %v1641 = vpack.c.b16 %v1628, %v1627
      %v1642 = vpack.c.b16 %v1630, %v1629
      %v1643 = vpack.c.b16 %v1632, %v1631
      %v1644 = vpack.c.b16 %v1634, %v1633
      %v1645 = vpack.c.b16 %v1636, %v1635
      %v1646 = vpack.c.b16 %v1638, %v1637
      %1655 = vmatprep.subr.bf16.mxu0 0
      %1656 = vmatpush1.bf16.msra.mxu0 %v1639
      %1657 = vmatprep.subr.bf16.mxu0 0
      %1658 = vmatpush1.bf16.msra.mxu0 %v1640
      %1659 = vmatprep.subr.bf16.mxu0 0
      %1660 = vmatpush1.bf16.msra.mxu0 %v1641
      %1661 = vmatprep.subr.bf16.mxu0 0
      %1662 = vmatpush1.bf16.msra.mxu0 %v1642
      %1663 = vmatprep.subr.bf16.mxu0 0
      %1664 = vmatpush1.bf16.msra.mxu0 %v1643
      %1665 = vmatprep.subr.bf16.mxu0 0
      %1666 = vmatpush1.bf16.msra.mxu0 %v1644
      %1667 = vmatprep.subr.bf16.mxu0 0
      %1668 = vmatpush1.bf16.msra.mxu0 %v1645
      %1669 = vmatprep.subr.bf16.mxu0 0
      %1670 = vmatpush1.bf16.msra.mxu0 %v1646
      %1671 = vmatprep.subr.bf16.mxu0 0
      %1672 = vmatpush1.bf16.msra.mxu0 0
      %1673 = vmatprep.subr.bf16.mxu0 0
      %1674 = vmatpush1.bf16.msra.mxu0 0
      %1675 = vmatprep.subr.bf16.mxu0 0
      %1676 = vmatpush1.bf16.msra.mxu0 0
      %1677 = vmatprep.subr.bf16.mxu0 0
      %1678 = vmatpush1.bf16.msra.mxu0 0
      %1679 = vmatprep.subr.bf16.mxu0 0
      %1680 = vmatpush1.bf16.msra.mxu0 0
      %1681 = vmatprep.subr.bf16.mxu0 0
      %1682 = vmatpush1.bf16.msra.mxu0 0
      %1683 = vmatprep.subr.bf16.mxu0 0
      %1684 = vmatpush1.bf16.msra.mxu0 0
      %1685 = vmatprep.subr.bf16.mxu0 0
      %1686 = vmatpush1.bf16.msra.mxu0 0
      %1687 = vmatprep.mubr.bf16.mxu0 0
      %1688 = vmatmul.mubr.bf16.gmra.mrb[0].mxu0 %v636
      %v1689 = vpop.f32.mrb[0].mxu0
      %v1690 = vadd.f32 0.0, %v1689
      %v1691 = vpop.f32.mrb[0].mxu0
      %v1692 = vpop.f32.mrb[0].mxu0
      %v1693 = vadd.f32 0.0, %v1692
      %v1694 = vpop.f32.mrb[0].mxu0
      %1695 = vmatprep.mubr.bf16.mxu0 0
      %1696 = vmatmul.mubr.bf16.gmra.mrb[0].mxu0 %v637
      %v1697 = vpop.f32.mrb[0].mxu0
      %v1698 = vadd.f32 0.0, %v1697
      %v1699 = vpop.f32.mrb[0].mxu0
      %v1700 = vpop.f32.mrb[0].mxu0
      %v1701 = vadd.f32 0.0, %v1700
      %v1702 = vpop.f32.mrb[0].mxu0
      %1703 = vmatprep.mubr.bf16.mxu0 0
      %1704 = vmatmul.mubr.bf16.gmra.mrb[0].mxu0 %v638
      %v1705 = vpop.f32.mrb[0].mxu0
      %v1706 = vadd.f32 0.0, %v1705
      %v1707 = vpop.f32.mrb[0].mxu0
      %v1708 = vpop.f32.mrb[0].mxu0
      %v1709 = vadd.f32 0.0, %v1708
      %v1710 = vpop.f32.mrb[0].mxu0
      %1711 = vmatprep.mubr.bf16.mxu0 0
      %1712 = vmatmul.mubr.bf16.gmra.mrb[0].mxu0 %v639
      %v1713 = vpop.f32.mrb[0].mxu0
      %v1714 = vadd.f32 0.0, %v1713
      %v1715 = vpop.f32.mrb[0].mxu0
      %v1716 = vpop.f32.mrb[0].mxu0
      %v1717 = vadd.f32 0.0, %v1716
      %v1718 = vpop.f32.mrb[0].mxu0
      %1719 = vmatprep.mubr.bf16.mxu0 0
      %1720 = vmatmul.mubr.bf16.gmra.mrb[0].mxu0 %v640
      %v1721 = vpop.f32.mrb[0].mxu0
      %v1722 = vadd.f32 0.0, %v1721
      %v1723 = vpop.f32.mrb[0].mxu0
      %v1724 = vpop.f32.mrb[0].mxu0
      %v1725 = vadd.f32 0.0, %v1724
      %v1726 = vpop.f32.mrb[0].mxu0
      %1727 = vmatprep.mubr.bf16.mxu0 0
      %1728 = vmatmul.mubr.bf16.gmra.mrb[0].mxu0 %v641
      %v1729 = vpop.f32.mrb[0].mxu0
      %v1730 = vadd.f32 0.0, %v1729
      %v1731 = vpop.f32.mrb[0].mxu0
      %v1732 = vpop.f32.mrb[0].mxu0
      %v1733 = vadd.f32 0.0, %v1732
      %v1734 = vpop.f32.mrb[0].mxu0
      %1735 = vmatprep.mubr.bf16.mxu0 0
      %1736 = vmatmul.mubr.bf16.gmra.mrb[0].mxu0 %v642
      %v1737 = vpop.f32.mrb[0].mxu0
      %v1738 = vadd.f32 0.0, %v1737
      %v1739 = vpop.f32.mrb[0].mxu0
      %v1740 = vpop.f32.mrb[0].mxu0
      %v1741 = vadd.f32 0.0, %v1740
      %v1742 = vpop.f32.mrb[0].mxu0
      %1743 = vmatprep.mubr.bf16.mxu0 0
      %1744 = vmatmul.mubr.bf16.gmra.mrb[0].mxu0 %v643
      %v1745 = vpop.f32.mrb[0].mxu0
      %v1746 = vadd.f32 0.0, %v1745
      %v1747 = vpop.f32.mrb[0].mxu0
      %v1748 = vpop.f32.mrb[0].mxu0
      %v1749 = vadd.f32 0.0, %v1748
      %v1750 = vpop.f32.mrb[0].mxu0
      %1751 = vmatprep.mubr.bf16.mxu0 0
      %1752 = vmatmul.mubr.bf16.gmra.mrb[0].mxu0 %v644
      %v1753 = vpop.f32.mrb[0].mxu0
      %v1754 = vadd.f32 0.0, %v1753
      %v1755 = vpop.f32.mrb[0].mxu0
      %v1756 = vpop.f32.mrb[0].mxu0
      %v1757 = vadd.f32 0.0, %v1756
      %v1758 = vpop.f32.mrb[0].mxu0
      %1759 = vmatprep.mubr.bf16.mxu0 0
      %1760 = vmatmul.mubr.bf16.gmra.mrb[0].mxu0 %v645
      %v1761 = vpop.f32.mrb[0].mxu0
      %v1762 = vadd.f32 0.0, %v1761
      %v1763 = vpop.f32.mrb[0].mxu0
      %v1764 = vpop.f32.mrb[0].mxu0
      %v1765 = vadd.f32 0.0, %v1764
      %v1766 = vpop.f32.mrb[0].mxu0
      %1767 = vmatprep.mubr.bf16.mxu0 0
      %1768 = vmatmul.mubr.bf16.gmra.mrb[0].mxu0 %v646
      %v1769 = vpop.f32.mrb[0].mxu0
      %v1770 = vadd.f32 0.0, %v1769
      %v1771 = vpop.f32.mrb[0].mxu0
      %v1772 = vpop.f32.mrb[0].mxu0
      %v1773 = vadd.f32 0.0, %v1772
      %v1774 = vpop.f32.mrb[0].mxu0
      %1775 = vmatprep.mubr.bf16.mxu0 0
      %1776 = vmatmul.mubr.bf16.gmra.mrb[0].mxu0 %v647
      %v1777 = vpop.f32.mrb[0].mxu0
      %v1778 = vadd.f32 0.0, %v1777
      %v1779 = vpop.f32.mrb[0].mxu0
      %v1780 = vpop.f32.mrb[0].mxu0
      %v1781 = vadd.f32 0.0, %v1780
      %v1782 = vpop.f32.mrb[0].mxu0
      %1783 = vmatprep.mubr.bf16.mxu0 0
      %1784 = vmatmul.mubr.bf16.gmra.mrb[0].mxu0 %v648
      %v1785 = vpop.f32.mrb[0].mxu0
      %v1786 = vadd.f32 0.0, %v1785
      %v1787 = vpop.f32.mrb[0].mxu0
      %v1788 = vpop.f32.mrb[0].mxu0
      %v1789 = vadd.f32 0.0, %v1788
      %v1790 = vpop.f32.mrb[0].mxu0
      %1791 = vmatprep.mubr.bf16.mxu0 0
      %1792 = vmatmul.mubr.bf16.gmra.mrb[0].mxu0 %v649
      %v1793 = vpop.f32.mrb[0].mxu0
      %v1794 = vadd.f32 0.0, %v1793
      %v1795 = vpop.f32.mrb[0].mxu0
      %v1796 = vpop.f32.mrb[0].mxu0
      %v1797 = vadd.f32 0.0, %v1796
      %v1798 = vpop.f32.mrb[0].mxu0
      %1799 = vmatprep.mubr.bf16.mxu0 0
      %1800 = vmatmul.mubr.bf16.gmra.mrb[0].mxu0 %v650
      %v1801 = vpop.f32.mrb[0].mxu0
      %v1802 = vadd.f32 0.0, %v1801
      %v1803 = vpop.f32.mrb[0].mxu0
      %v1804 = vpop.f32.mrb[0].mxu0
      %v1805 = vadd.f32 0.0, %v1804
      %v1806 = vpop.f32.mrb[0].mxu0
      %1807 = vmatprep.mubr.bf16.mxu0 0
      %1808 = vmatmul.mubr.bf16.gmra.mrb[0].mxu0 %v1606
      %v1809 = vpop.f32.mrb[0].mxu0
      %v1810 = vadd.f32 0.0, %v1809
      %v1811 = vpop.f32.mrb[0].mxu0
      %v1812 = vpop.f32.mrb[0].mxu0
      %v1813 = vadd.f32 0.0, %v1812
      %v1814 = vpop.f32.mrb[0].mxu0
      %1815 = vdwg.mxu0
      %v1816 = vadd.f32 %v1574, %v1690
      %v1817 = vadd.f32 %v1575, %v1693
      %v1818 = vadd.f32 %v1576, %v1698
      %v1819 = vadd.f32 %v1577, %v1701
      %v1820 = vadd.f32 %v1578, %v1706
      %v1821 = vadd.f32 %v1579, %v1709
      %v1822 = vadd.f32 %v1580, %v1714
      %v1823 = vadd.f32 %v1581, %v1717
      %v1824 = vadd.f32 %v1582, %v1722
      %v1825 = vadd.f32 %v1583, %v1725
      %v1826 = vadd.f32 %v1584, %v1730
      %v1827 = vadd.f32 %v1585, %v1733
      %v1828 = vadd.f32 %v1586, %v1738
      %v1829 = vadd.f32 %v1587, %v1741
      %v1830 = vadd.f32 %v1588, %v1746
      %v1831 = vadd.f32 %v1589, %v1749
      %v1832 = vadd.f32 %v1590, %v1754
      %v1833 = vadd.f32 %v1591, %v1757
      %v1834 = vadd.f32 %v1592, %v1762
      %v1835 = vadd.f32 %v1593, %v1765
      %v1836 = vadd.f32 %v1594, %v1770
      %v1837 = vadd.f32 %v1595, %v1773
      %v1838 = vadd.f32 %v1596, %v1778
      %v1839 = vadd.f32 %v1597, %v1781
      %v1840 = vadd.f32 %v1598, %v1786
      %v1841 = vadd.f32 %v1599, %v1789
      %v1842 = vadd.f32 %v1600, %v1794
      %v1843 = vadd.f32 %v1601, %v1797
      %v1844 = vadd.f32 %v1602, %v1802
      %v1845 = vadd.f32 %v1603, %v1805
      %v1846 = vadd.f32 %v1604, %v1810
      %v1847 = vadd.f32 %v1605, %v1813
      %v1851 = vrot.slane %v488, 1
      %v1852 = vrot.slane %v489, 1
      %v1853 = vsel %vm697, %v1851, %v1852
      %v1854 = vrot.slane %v490, 1
      %v1855 = vsel %vm697, %v1852, %v1854
      %v1858 = vpack.c.bf16 %v1855, %v1853
      %v1875 = vunpack.c.l.b16 %v555
      %v1876 = vunpack.c.l.b16 %v556
      %v1877 = vunpack.c.l.b16 %v557
      %v1878 = vunpack.c.l.b16 %v558
      %v1879 = vunpack.c.l.b16 %v559
      %v1880 = vunpack.c.l.b16 %v560
      %v1881 = vunpack.c.l.b16 %v561
      %v1882 = vunpack.c.l.b16 %v562
      %v1883 = vunpack.c.l.b16 %v563
      %v1884 = vunpack.c.l.b16 %v564
      %v1885 = vunpack.c.l.b16 %v565
      %v1886 = vunpack.c.l.b16 %v566
      %v1887 = vunpack.c.l.b16 %v567
      %v1888 = vunpack.c.l.b16 %v568
      %v1889 = vunpack.c.l.b16 %v569
      %v1890 = vunpack.c.l.b16 %v570
      %v1891 = vpack.c.b16 %v1876, %v1875
      %v1892 = vpack.c.b16 %v1878, %v1877
      %v1893 = vpack.c.b16 %v1880, %v1879
      %v1894 = vpack.c.b16 %v1882, %v1881
      %v1895 = vpack.c.b16 %v1884, %v1883
      %v1896 = vpack.c.b16 %v1886, %v1885
      %v1897 = vpack.c.b16 %v1888, %v1887
      %v1898 = vpack.c.b16 %v1890, %v1889
      %1907 = vmatprep.subr.bf16.mxu0 0
      %1908 = vmatpush1.bf16.msra.mxu0 %v1891
      %1909 = vmatprep.subr.bf16.mxu0 0
      %1910 = vmatpush1.bf16.msra.mxu0 %v1892
      %1911 = vmatprep.subr.bf16.mxu0 0
      %1912 = vmatpush1.bf16.msra.mxu0 %v1893
      %1913 = vmatprep.subr.bf16.mxu0 0
      %1914 = vmatpush1.bf16.msra.mxu0 %v1894
      %1915 = vmatprep.subr.bf16.mxu0 0
      %1916 = vmatpush1.bf16.msra.mxu0 %v1895
      %1917 = vmatprep.subr.bf16.mxu0 0
      %1918 = vmatpush1.bf16.msra.mxu0 %v1896
      %1919 = vmatprep.subr.bf16.mxu0 0
      %1920 = vmatpush1.bf16.msra.mxu0 %v1897
      %1921 = vmatprep.subr.bf16.mxu0 0
      %1922 = vmatpush1.bf16.msra.mxu0 %v1898
      %1923 = vmatprep.subr.bf16.mxu0 0
      %1924 = vmatpush1.bf16.msra.mxu0 0
      %1925 = vmatprep.subr.bf16.mxu0 0
      %1926 = vmatpush1.bf16.msra.mxu0 0
      %1927 = vmatprep.subr.bf16.mxu0 0
      %1928 = vmatpush1.bf16.msra.mxu0 0
      %1929 = vmatprep.subr.bf16.mxu0 0
      %1930 = vmatpush1.bf16.msra.mxu0 0
      %1931 = vmatprep.subr.bf16.mxu0 0
      %1932 = vmatpush1.bf16.msra.mxu0 0
      %1933 = vmatprep.subr.bf16.mxu0 0
      %1934 = vmatpush1.bf16.msra.mxu0 0
      %1935 = vmatprep.subr.bf16.mxu0 0
      %1936 = vmatpush1.bf16.msra.mxu0 0
      %1937 = vmatprep.subr.bf16.mxu0 0
      %1938 = vmatpush1.bf16.msra.mxu0 0
      %1939 = vmatprep.mubr.bf16.mxu0 0
      %1940 = vmatmul.mubr.bf16.gmra.mrb[0].mxu0 %v807
      %v1941 = vpop.f32.mrb[0].mxu0
      %v1942 = vadd.f32 0.0, %v1941
      %v1943 = vpop.f32.mrb[0].mxu0
      %v1944 = vpop.f32.mrb[0].mxu0
      %v1945 = vadd.f32 0.0, %v1944
      %v1946 = vpop.f32.mrb[0].mxu0
      %1947 = vmatprep.mubr.bf16.mxu0 0
      %1948 = vmatmul.mubr.bf16.gmra.mrb[0].mxu0 %v808
      %v1949 = vpop.f32.mrb[0].mxu0
      %v1950 = vadd.f32 0.0, %v1949
      %v1951 = vpop.f32.mrb[0].mxu0
      %v1952 = vpop.f32.mrb[0].mxu0
      %v1953 = vadd.f32 0.0, %v1952
      %v1954 = vpop.f32.mrb[0].mxu0
      %1955 = vmatprep.mubr.bf16.mxu0 0
      %1956 = vmatmul.mubr.bf16.gmra.mrb[0].mxu0 %v809
      %v1957 = vpop.f32.mrb[0].mxu0
      %v1958 = vadd.f32 0.0, %v1957
      %v1959 = vpop.f32.mrb[0].mxu0
      %v1960 = vpop.f32.mrb[0].mxu0
      %v1961 = vadd.f32 0.0, %v1960
      %v1962 = vpop.f32.mrb[0].mxu0
      %1963 = vmatprep.mubr.bf16.mxu0 0
      %1964 = vmatmul.mubr.bf16.gmra.mrb[0].mxu0 %v810
      %v1965 = vpop.f32.mrb[0].mxu0
      %v1966 = vadd.f32 0.0, %v1965
      %v1967 = vpop.f32.mrb[0].mxu0
      %v1968 = vpop.f32.mrb[0].mxu0
      %v1969 = vadd.f32 0.0, %v1968
      %v1970 = vpop.f32.mrb[0].mxu0
      %1971 = vmatprep.mubr.bf16.mxu0 0
      %1972 = vmatmul.mubr.bf16.gmra.mrb[0].mxu0 %v811
      %v1973 = vpop.f32.mrb[0].mxu0
      %v1974 = vadd.f32 0.0, %v1973
      %v1975 = vpop.f32.mrb[0].mxu0
      %v1976 = vpop.f32.mrb[0].mxu0
      %v1977 = vadd.f32 0.0, %v1976
      %v1978 = vpop.f32.mrb[0].mxu0
      %1979 = vmatprep.mubr.bf16.mxu0 0
      %1980 = vmatmul.mubr.bf16.gmra.mrb[0].mxu0 %v812
      %v1981 = vpop.f32.mrb[0].mxu0
      %v1982 = vadd.f32 0.0, %v1981
      %v1983 = vpop.f32.mrb[0].mxu0
      %v1984 = vpop.f32.mrb[0].mxu0
      %v1985 = vadd.f32 0.0, %v1984
      %v1986 = vpop.f32.mrb[0].mxu0
      %1987 = vmatprep.mubr.bf16.mxu0 0
      %1988 = vmatmul.mubr.bf16.gmra.mrb[0].mxu0 %v813
      %v1989 = vpop.f32.mrb[0].mxu0
      %v1990 = vadd.f32 0.0, %v1989
      %v1991 = vpop.f32.mrb[0].mxu0
      %v1992 = vpop.f32.mrb[0].mxu0
      %v1993 = vadd.f32 0.0, %v1992
      %v1994 = vpop.f32.mrb[0].mxu0
      %1995 = vmatprep.mubr.bf16.mxu0 0
      %1996 = vmatmul.mubr.bf16.gmra.mrb[0].mxu0 %v814
      %v1997 = vpop.f32.mrb[0].mxu0
      %v1998 = vadd.f32 0.0, %v1997
      %v1999 = vpop.f32.mrb[0].mxu0
      %v2000 = vpop.f32.mrb[0].mxu0
      %v2001 = vadd.f32 0.0, %v2000
      %v2002 = vpop.f32.mrb[0].mxu0
      %2003 = vmatprep.mubr.bf16.mxu0 0
      %2004 = vmatmul.mubr.bf16.gmra.mrb[0].mxu0 %v815
      %v2005 = vpop.f32.mrb[0].mxu0
      %v2006 = vadd.f32 0.0, %v2005
      %v2007 = vpop.f32.mrb[0].mxu0
      %v2008 = vpop.f32.mrb[0].mxu0
      %v2009 = vadd.f32 0.0, %v2008
      %v2010 = vpop.f32.mrb[0].mxu0
      %2011 = vmatprep.mubr.bf16.mxu0 0
      %2012 = vmatmul.mubr.bf16.gmra.mrb[0].mxu0 %v816
      %v2013 = vpop.f32.mrb[0].mxu0
      %v2014 = vadd.f32 0.0, %v2013
      %v2015 = vpop.f32.mrb[0].mxu0
      %v2016 = vpop.f32.mrb[0].mxu0
      %v2017 = vadd.f32 0.0, %v2016
      %v2018 = vpop.f32.mrb[0].mxu0
      %2019 = vmatprep.mubr.bf16.mxu0 0
      %2020 = vmatmul.mubr.bf16.gmra.mrb[0].mxu0 %v817
      %v2021 = vpop.f32.mrb[0].mxu0
      %v2022 = vadd.f32 0.0, %v2021
      %v2023 = vpop.f32.mrb[0].mxu0
      %v2024 = vpop.f32.mrb[0].mxu0
      %v2025 = vadd.f32 0.0, %v2024
      %v2026 = vpop.f32.mrb[0].mxu0
      %2027 = vmatprep.mubr.bf16.mxu0 0
      %2028 = vmatmul.mubr.bf16.gmra.mrb[0].mxu0 %v818
      %v2029 = vpop.f32.mrb[0].mxu0
      %v2030 = vadd.f32 0.0, %v2029
      %v2031 = vpop.f32.mrb[0].mxu0
      %v2032 = vpop.f32.mrb[0].mxu0
      %v2033 = vadd.f32 0.0, %v2032
      %v2034 = vpop.f32.mrb[0].mxu0
      %2035 = vmatprep.mubr.bf16.mxu0 0
      %2036 = vmatmul.mubr.bf16.gmra.mrb[0].mxu0 %v819
      %v2037 = vpop.f32.mrb[0].mxu0
      %v2038 = vadd.f32 0.0, %v2037
      %v2039 = vpop.f32.mrb[0].mxu0
      %v2040 = vpop.f32.mrb[0].mxu0
      %v2041 = vadd.f32 0.0, %v2040
      %v2042 = vpop.f32.mrb[0].mxu0
      %2043 = vmatprep.mubr.bf16.mxu0 0
      %2044 = vmatmul.mubr.bf16.gmra.mrb[0].mxu0 %v820
      %v2045 = vpop.f32.mrb[0].mxu0
      %v2046 = vadd.f32 0.0, %v2045
      %v2047 = vpop.f32.mrb[0].mxu0
      %v2048 = vpop.f32.mrb[0].mxu0
      %v2049 = vadd.f32 0.0, %v2048
      %v2050 = vpop.f32.mrb[0].mxu0
      %2051 = vmatprep.mubr.bf16.mxu0 0
      %2052 = vmatmul.mubr.bf16.gmra.mrb[0].mxu0 %v821
      %v2053 = vpop.f32.mrb[0].mxu0
      %v2054 = vadd.f32 0.0, %v2053
      %v2055 = vpop.f32.mrb[0].mxu0
      %v2056 = vpop.f32.mrb[0].mxu0
      %v2057 = vadd.f32 0.0, %v2056
      %v2058 = vpop.f32.mrb[0].mxu0
      %2059 = vmatprep.mubr.bf16.mxu0 0
      %2060 = vmatmul.mubr.bf16.gmra.mrb[0].mxu0 %v1858
      %v2061 = vpop.f32.mrb[0].mxu0
      %v2062 = vadd.f32 0.0, %v2061
      %v2063 = vpop.f32.mrb[0].mxu0
      %v2064 = vpop.f32.mrb[0].mxu0
      %v2065 = vadd.f32 0.0, %v2064
      %v2066 = vpop.f32.mrb[0].mxu0
      %2067 = vdwg.mxu0
      %v2068 = vadd.f32 %v1816, %v1942
      %v2069 = vadd.f32 %v1817, %v1945
      %v2070 = vadd.f32 %v1818, %v1950
      %v2071 = vadd.f32 %v1819, %v1953
      %v2072 = vadd.f32 %v1820, %v1958
      %v2073 = vadd.f32 %v1821, %v1961
      %v2074 = vadd.f32 %v1822, %v1966
      %v2075 = vadd.f32 %v1823, %v1969
      %v2076 = vadd.f32 %v1824, %v1974
      %v2077 = vadd.f32 %v1825, %v1977
      %v2078 = vadd.f32 %v1826, %v1982
      %v2079 = vadd.f32 %v1827, %v1985
      %v2080 = vadd.f32 %v1828, %v1990
      %v2081 = vadd.f32 %v1829, %v1993
      %v2082 = vadd.f32 %v1830, %v1998
      %v2083 = vadd.f32 %v1831, %v2001
      %v2084 = vadd.f32 %v1832, %v2006
      %v2085 = vadd.f32 %v1833, %v2009
      %v2086 = vadd.f32 %v1834, %v2014
      %v2087 = vadd.f32 %v1835, %v2017
      %v2088 = vadd.f32 %v1836, %v2022
      %v2089 = vadd.f32 %v1837, %v2025
      %v2090 = vadd.f32 %v1838, %v2030
      %v2091 = vadd.f32 %v1839, %v2033
      %v2092 = vadd.f32 %v1840, %v2038
      %v2093 = vadd.f32 %v1841, %v2041
      %v2094 = vadd.f32 %v1842, %v2046
      %v2095 = vadd.f32 %v1843, %v2049
      %v2096 = vadd.f32 %v1844, %v2054
      %v2097 = vadd.f32 %v1845, %v2057
      %v2098 = vadd.f32 %v1846, %v2062
      %v2099 = vadd.f32 %v1847, %v2065
      %v2100 = vrot.slane %v488, 2
      %v2101 = vrot.slane %v489, 2
      %v2102 = vsel %vm1240, %v2100, %v2101
      %v2103 = vrot.slane %v490, 2
      %v2104 = vsel %vm1240, %v2101, %v2103
      %v2107 = vpack.c.bf16 %v2104, %v2102
      %v2124 = vunpack.c.l.b16 %v571
      %v2125 = vunpack.c.l.b16 %v572
      %v2126 = vunpack.c.l.b16 %v573
      %v2127 = vunpack.c.l.b16 %v574
      %v2128 = vunpack.c.l.b16 %v575
      %v2129 = vunpack.c.l.b16 %v576
      %v2130 = vunpack.c.l.b16 %v577
      %v2131 = vunpack.c.l.b16 %v578
      %v2132 = vunpack.c.l.b16 %v579
      %v2133 = vunpack.c.l.b16 %v580
      %v2134 = vunpack.c.l.b16 %v581
      %v2135 = vunpack.c.l.b16 %v582
      %v2136 = vunpack.c.l.b16 %v583
      %v2137 = vunpack.c.l.b16 %v584
      %v2138 = vunpack.c.l.b16 %v585
      %v2139 = vunpack.c.l.b16 %v586
      %v2140 = vpack.c.b16 %v2125, %v2124
      %v2141 = vpack.c.b16 %v2127, %v2126
      %v2142 = vpack.c.b16 %v2129, %v2128
      %v2143 = vpack.c.b16 %v2131, %v2130
      %v2144 = vpack.c.b16 %v2133, %v2132
      %v2145 = vpack.c.b16 %v2135, %v2134
      %v2146 = vpack.c.b16 %v2137, %v2136
      %v2147 = vpack.c.b16 %v2139, %v2138
      %2156 = vmatprep.subr.bf16.mxu0 0
      %2157 = vmatpush1.bf16.msra.mxu0 %v2140
      %2158 = vmatprep.subr.bf16.mxu0 0
      %2159 = vmatpush1.bf16.msra.mxu0 %v2141
      %2160 = vmatprep.subr.bf16.mxu0 0
      %2161 = vmatpush1.bf16.msra.mxu0 %v2142
      %2162 = vmatprep.subr.bf16.mxu0 0
      %2163 = vmatpush1.bf16.msra.mxu0 %v2143
      %2164 = vmatprep.subr.bf16.mxu0 0
      %2165 = vmatpush1.bf16.msra.mxu0 %v2144
      %2166 = vmatprep.subr.bf16.mxu0 0
      %2167 = vmatpush1.bf16.msra.mxu0 %v2145
      %2168 = vmatprep.subr.bf16.mxu0 0
      %2169 = vmatpush1.bf16.msra.mxu0 %v2146
      %2170 = vmatprep.subr.bf16.mxu0 0
      %2171 = vmatpush1.bf16.msra.mxu0 %v2147
      %2172 = vmatprep.subr.bf16.mxu0 0
      %2173 = vmatpush1.bf16.msra.mxu0 0
      %2174 = vmatprep.subr.bf16.mxu0 0
      %2175 = vmatpush1.bf16.msra.mxu0 0
      %2176 = vmatprep.subr.bf16.mxu0 0
      %2177 = vmatpush1.bf16.msra.mxu0 0
      %2178 = vmatprep.subr.bf16.mxu0 0
      %2179 = vmatpush1.bf16.msra.mxu0 0
      %2180 = vmatprep.subr.bf16.mxu0 0
      %2181 = vmatpush1.bf16.msra.mxu0 0
      %2182 = vmatprep.subr.bf16.mxu0 0
      %2183 = vmatpush1.bf16.msra.mxu0 0
      %2184 = vmatprep.subr.bf16.mxu0 0
      %2185 = vmatpush1.bf16.msra.mxu0 0
      %2186 = vmatprep.subr.bf16.mxu0 0
      %2187 = vmatpush1.bf16.msra.mxu0 0
      %2188 = vmatprep.mubr.bf16.mxu0 0
      %2189 = vmatmul.mubr.bf16.gmra.mrb[0].mxu0 %v1350
      %v2190 = vpop.f32.mrb[0].mxu0
      %v2191 = vadd.f32 0.0, %v2190
      %v2192 = vpop.f32.mrb[0].mxu0
      %v2193 = vpop.f32.mrb[0].mxu0
      %v2194 = vadd.f32 0.0, %v2193
      %v2195 = vpop.f32.mrb[0].mxu0
      %2196 = vmatprep.mubr.bf16.mxu0 0
      %2197 = vmatmul.mubr.bf16.gmra.mrb[0].mxu0 %v1351
      %v2198 = vpop.f32.mrb[0].mxu0
      %v2199 = vadd.f32 0.0, %v2198
      %v2200 = vpop.f32.mrb[0].mxu0
      %v2201 = vpop.f32.mrb[0].mxu0
      %v2202 = vadd.f32 0.0, %v2201
      %v2203 = vpop.f32.mrb[0].mxu0
      %2204 = vmatprep.mubr.bf16.mxu0 0
      %2205 = vmatmul.mubr.bf16.gmra.mrb[0].mxu0 %v1352
      %v2206 = vpop.f32.mrb[0].mxu0
      %v2207 = vadd.f32 0.0, %v2206
      %v2208 = vpop.f32.mrb[0].mxu0
      %v2209 = vpop.f32.mrb[0].mxu0
      %v2210 = vadd.f32 0.0, %v2209
      %v2211 = vpop.f32.mrb[0].mxu0
      %2212 = vmatprep.mubr.bf16.mxu0 0
      %2213 = vmatmul.mubr.bf16.gmra.mrb[0].mxu0 %v1353
      %v2214 = vpop.f32.mrb[0].mxu0
      %v2215 = vadd.f32 0.0, %v2214
      %v2216 = vpop.f32.mrb[0].mxu0
      %v2217 = vpop.f32.mrb[0].mxu0
      %v2218 = vadd.f32 0.0, %v2217
      %v2219 = vpop.f32.mrb[0].mxu0
      %2220 = vmatprep.mubr.bf16.mxu0 0
      %2221 = vmatmul.mubr.bf16.gmra.mrb[0].mxu0 %v1354
      %v2222 = vpop.f32.mrb[0].mxu0
      %v2223 = vadd.f32 0.0, %v2222
      %v2224 = vpop.f32.mrb[0].mxu0
      %v2225 = vpop.f32.mrb[0].mxu0
      %v2226 = vadd.f32 0.0, %v2225
      %v2227 = vpop.f32.mrb[0].mxu0
      %2228 = vmatprep.mubr.bf16.mxu0 0
      %2229 = vmatmul.mubr.bf16.gmra.mrb[0].mxu0 %v1355
      %v2230 = vpop.f32.mrb[0].mxu0
      %v2231 = vadd.f32 0.0, %v2230
      %v2232 = vpop.f32.mrb[0].mxu0
      %v2233 = vpop.f32.mrb[0].mxu0
      %v2234 = vadd.f32 0.0, %v2233
      %v2235 = vpop.f32.mrb[0].mxu0
      %2236 = vmatprep.mubr.bf16.mxu0 0
      %2237 = vmatmul.mubr.bf16.gmra.mrb[0].mxu0 %v1356
      %v2238 = vpop.f32.mrb[0].mxu0
      %v2239 = vadd.f32 0.0, %v2238
      %v2240 = vpop.f32.mrb[0].mxu0
      %v2241 = vpop.f32.mrb[0].mxu0
      %v2242 = vadd.f32 0.0, %v2241
      %v2243 = vpop.f32.mrb[0].mxu0
      %2244 = vmatprep.mubr.bf16.mxu0 0
      %2245 = vmatmul.mubr.bf16.gmra.mrb[0].mxu0 %v1357
      %v2246 = vpop.f32.mrb[0].mxu0
      %v2247 = vadd.f32 0.0, %v2246
      %v2248 = vpop.f32.mrb[0].mxu0
      %v2249 = vpop.f32.mrb[0].mxu0
      %v2250 = vadd.f32 0.0, %v2249
      %v2251 = vpop.f32.mrb[0].mxu0
      %2252 = vmatprep.mubr.bf16.mxu0 0
      %2253 = vmatmul.mubr.bf16.gmra.mrb[0].mxu0 %v1358
      %v2254 = vpop.f32.mrb[0].mxu0
      %v2255 = vadd.f32 0.0, %v2254
      %v2256 = vpop.f32.mrb[0].mxu0
      %v2257 = vpop.f32.mrb[0].mxu0
      %v2258 = vadd.f32 0.0, %v2257
      %v2259 = vpop.f32.mrb[0].mxu0
      %2260 = vmatprep.mubr.bf16.mxu0 0
      %2261 = vmatmul.mubr.bf16.gmra.mrb[0].mxu0 %v1359
      %v2262 = vpop.f32.mrb[0].mxu0
      %v2263 = vadd.f32 0.0, %v2262
      %v2264 = vpop.f32.mrb[0].mxu0
      %v2265 = vpop.f32.mrb[0].mxu0
      %v2266 = vadd.f32 0.0, %v2265
      %v2267 = vpop.f32.mrb[0].mxu0
      %2268 = vmatprep.mubr.bf16.mxu0 0
      %2269 = vmatmul.mubr.bf16.gmra.mrb[0].mxu0 %v1360
      %v2270 = vpop.f32.mrb[0].mxu0
      %v2271 = vadd.f32 0.0, %v2270
      %v2272 = vpop.f32.mrb[0].mxu0
      %v2273 = vpop.f32.mrb[0].mxu0
      %v2274 = vadd.f32 0.0, %v2273
      %v2275 = vpop.f32.mrb[0].mxu0
      %2276 = vmatprep.mubr.bf16.mxu0 0
      %2277 = vmatmul.mubr.bf16.gmra.mrb[0].mxu0 %v1361
      %v2278 = vpop.f32.mrb[0].mxu0
      %v2279 = vadd.f32 0.0, %v2278
      %v2280 = vpop.f32.mrb[0].mxu0
      %v2281 = vpop.f32.mrb[0].mxu0
      %v2282 = vadd.f32 0.0, %v2281
      %v2283 = vpop.f32.mrb[0].mxu0
      %2284 = vmatprep.mubr.bf16.mxu0 0
      %2285 = vmatmul.mubr.bf16.gmra.mrb[0].mxu0 %v1362
      %v2286 = vpop.f32.mrb[0].mxu0
      %v2287 = vadd.f32 0.0, %v2286
      %v2288 = vpop.f32.mrb[0].mxu0
      %v2289 = vpop.f32.mrb[0].mxu0
      %v2290 = vadd.f32 0.0, %v2289
      %v2291 = vpop.f32.mrb[0].mxu0
      %2292 = vmatprep.mubr.bf16.mxu0 0
      %2293 = vmatmul.mubr.bf16.gmra.mrb[0].mxu0 %v1363
      %v2294 = vpop.f32.mrb[0].mxu0
      %v2295 = vadd.f32 0.0, %v2294
      %v2296 = vpop.f32.mrb[0].mxu0
      %v2297 = vpop.f32.mrb[0].mxu0
      %v2298 = vadd.f32 0.0, %v2297
      %v2299 = vpop.f32.mrb[0].mxu0
      %2300 = vmatprep.mubr.bf16.mxu0 0
      %2301 = vmatmul.mubr.bf16.gmra.mrb[0].mxu0 %v1364
      %v2302 = vpop.f32.mrb[0].mxu0
      %v2303 = vadd.f32 0.0, %v2302
      %v2304 = vpop.f32.mrb[0].mxu0
      %v2305 = vpop.f32.mrb[0].mxu0
      %v2306 = vadd.f32 0.0, %v2305
      %v2307 = vpop.f32.mrb[0].mxu0
      %2308 = vmatprep.mubr.bf16.mxu0 0
      %2309 = vmatmul.mubr.bf16.gmra.mrb[0].mxu0 %v2107
      %v2310 = vpop.f32.mrb[0].mxu0
      %v2311 = vadd.f32 0.0, %v2310
      %v2312 = vpop.f32.mrb[0].mxu0
      %v2313 = vpop.f32.mrb[0].mxu0
      %v2314 = vadd.f32 0.0, %v2313
      %v2315 = vpop.f32.mrb[0].mxu0
      %2316 = vdwg.mxu0
      %v2317 = vadd.f32 %v2068, %v2191
      %v2318 = vadd.f32 %v2069, %v2194
      %v2319 = vadd.f32 %v2070, %v2199
      %v2320 = vadd.f32 %v2071, %v2202
      %v2321 = vadd.f32 %v2072, %v2207
      %v2322 = vadd.f32 %v2073, %v2210
      %v2323 = vadd.f32 %v2074, %v2215
      %v2324 = vadd.f32 %v2075, %v2218
      %v2325 = vadd.f32 %v2076, %v2223
      %v2326 = vadd.f32 %v2077, %v2226
      %v2327 = vadd.f32 %v2078, %v2231
      %v2328 = vadd.f32 %v2079, %v2234
      %v2329 = vadd.f32 %v2080, %v2239
      %v2330 = vadd.f32 %v2081, %v2242
      %v2331 = vadd.f32 %v2082, %v2247
      %v2332 = vadd.f32 %v2083, %v2250
      %v2333 = vadd.f32 %v2084, %v2255
      %v2334 = vadd.f32 %v2085, %v2258
      %v2335 = vadd.f32 %v2086, %v2263
      %v2336 = vadd.f32 %v2087, %v2266
      %v2337 = vadd.f32 %v2088, %v2271
      %v2338 = vadd.f32 %v2089, %v2274
      %v2339 = vadd.f32 %v2090, %v2279
      %v2340 = vadd.f32 %v2091, %v2282
      %v2341 = vadd.f32 %v2092, %v2287
      %v2342 = vadd.f32 %v2093, %v2290
      %v2343 = vadd.f32 %v2094, %v2295
      %v2344 = vadd.f32 %v2095, %v2298
      %v2345 = vadd.f32 %v2096, %v2303
      %v2346 = vadd.f32 %v2097, %v2306
      %v2347 = vadd.f32 %v2098, %v2311
      %v2348 = vadd.f32 %v2099, %v2314
      %v2365 = vunpack.c.l.b16 %v587
      %v2366 = vunpack.c.l.b16 %v588
      %v2367 = vunpack.c.l.b16 %v589
      %v2368 = vunpack.c.l.b16 %v590
      %v2369 = vunpack.c.l.b16 %v591
      %v2370 = vunpack.c.l.b16 %v592
      %v2371 = vunpack.c.l.b16 %v593
      %v2372 = vunpack.c.l.b16 %v594
      %v2373 = vunpack.c.l.b16 %v595
      %v2374 = vunpack.c.l.b16 %v596
      %v2375 = vunpack.c.l.b16 %v597
      %v2376 = vunpack.c.l.b16 %v598
      %v2377 = vunpack.c.l.b16 %v599
      %v2378 = vunpack.c.l.b16 %v600
      %v2379 = vunpack.c.l.b16 %v601
      %v2380 = vunpack.c.l.b16 %v602
      %v2381 = vpack.c.b16 %v2366, %v2365
      %v2382 = vpack.c.b16 %v2368, %v2367
      %v2383 = vpack.c.b16 %v2370, %v2369
      %v2384 = vpack.c.b16 %v2372, %v2371
      %v2385 = vpack.c.b16 %v2374, %v2373
      %v2386 = vpack.c.b16 %v2376, %v2375
      %v2387 = vpack.c.b16 %v2378, %v2377
      %v2388 = vpack.c.b16 %v2380, %v2379
      %2397 = vmatprep.subr.bf16.mxu0 0
      %2398 = vmatpush1.bf16.msra.mxu0 %v2381
      %2399 = vmatprep.subr.bf16.mxu0 0
      %2400 = vmatpush1.bf16.msra.mxu0 %v2382
      %2401 = vmatprep.subr.bf16.mxu0 0
      %2402 = vmatpush1.bf16.msra.mxu0 %v2383
      %2403 = vmatprep.subr.bf16.mxu0 0
      %2404 = vmatpush1.bf16.msra.mxu0 %v2384
      %2405 = vmatprep.subr.bf16.mxu0 0
      %2406 = vmatpush1.bf16.msra.mxu0 %v2385
      %2407 = vmatprep.subr.bf16.mxu0 0
      %2408 = vmatpush1.bf16.msra.mxu0 %v2386
      %2409 = vmatprep.subr.bf16.mxu0 0
      %2410 = vmatpush1.bf16.msra.mxu0 %v2387
      %2411 = vmatprep.subr.bf16.mxu0 0
      %2412 = vmatpush1.bf16.msra.mxu0 %v2388
      %2413 = vmatprep.subr.bf16.mxu0 0
      %2414 = vmatpush1.bf16.msra.mxu0 0
      %2415 = vmatprep.subr.bf16.mxu0 0
      %2416 = vmatpush1.bf16.msra.mxu0 0
      %2417 = vmatprep.subr.bf16.mxu0 0
      %2418 = vmatpush1.bf16.msra.mxu0 0
      %2419 = vmatprep.subr.bf16.mxu0 0
      %2420 = vmatpush1.bf16.msra.mxu0 0
      %2421 = vmatprep.subr.bf16.mxu0 0
      %2422 = vmatpush1.bf16.msra.mxu0 0
      %2423 = vmatprep.subr.bf16.mxu0 0
      %2424 = vmatpush1.bf16.msra.mxu0 0
      %2425 = vmatprep.subr.bf16.mxu0 0
      %2426 = vmatpush1.bf16.msra.mxu0 0
      %2427 = vmatprep.subr.bf16.mxu0 0
      %2428 = vmatpush1.bf16.msra.mxu0 0
      %2429 = vmatprep.mubr.bf16.mxu0 0
      %2430 = vmatmul.mubr.bf16.gmra.mrb[0].mxu0 %v637
      %v2431 = vpop.f32.mrb[0].mxu0
      %v2432 = vadd.f32 0.0, %v2431
      %v2433 = vpop.f32.mrb[0].mxu0
      %v2434 = vpop.f32.mrb[0].mxu0
      %v2435 = vadd.f32 0.0, %v2434
      %v2436 = vpop.f32.mrb[0].mxu0
      %2437 = vmatprep.mubr.bf16.mxu0 0
      %2438 = vmatmul.mubr.bf16.gmra.mrb[0].mxu0 %v638
      %v2439 = vpop.f32.mrb[0].mxu0
      %v2440 = vadd.f32 0.0, %v2439
      %v2441 = vpop.f32.mrb[0].mxu0
      %v2442 = vpop.f32.mrb[0].mxu0
      %v2443 = vadd.f32 0.0, %v2442
      %v2444 = vpop.f32.mrb[0].mxu0
      %2445 = vmatprep.mubr.bf16.mxu0 0
      %2446 = vmatmul.mubr.bf16.gmra.mrb[0].mxu0 %v639
      %v2447 = vpop.f32.mrb[0].mxu0
      %v2448 = vadd.f32 0.0, %v2447
      %v2449 = vpop.f32.mrb[0].mxu0
      %v2450 = vpop.f32.mrb[0].mxu0
      %v2451 = vadd.f32 0.0, %v2450
      %v2452 = vpop.f32.mrb[0].mxu0
      %2453 = vmatprep.mubr.bf16.mxu0 0
      %2454 = vmatmul.mubr.bf16.gmra.mrb[0].mxu0 %v640
      %v2455 = vpop.f32.mrb[0].mxu0
      %v2456 = vadd.f32 0.0, %v2455
      %v2457 = vpop.f32.mrb[0].mxu0
      %v2458 = vpop.f32.mrb[0].mxu0
      %v2459 = vadd.f32 0.0, %v2458
      %v2460 = vpop.f32.mrb[0].mxu0
      %2461 = vmatprep.mubr.bf16.mxu0 0
      %2462 = vmatmul.mubr.bf16.gmra.mrb[0].mxu0 %v641
      %v2463 = vpop.f32.mrb[0].mxu0
      %v2464 = vadd.f32 0.0, %v2463
      %v2465 = vpop.f32.mrb[0].mxu0
      %v2466 = vpop.f32.mrb[0].mxu0
      %v2467 = vadd.f32 0.0, %v2466
      %v2468 = vpop.f32.mrb[0].mxu0
      %2469 = vmatprep.mubr.bf16.mxu0 0
      %2470 = vmatmul.mubr.bf16.gmra.mrb[0].mxu0 %v642
      %v2471 = vpop.f32.mrb[0].mxu0
      %v2472 = vadd.f32 0.0, %v2471
      %v2473 = vpop.f32.mrb[0].mxu0
      %v2474 = vpop.f32.mrb[0].mxu0
      %v2475 = vadd.f32 0.0, %v2474
      %v2476 = vpop.f32.mrb[0].mxu0
      %2477 = vmatprep.mubr.bf16.mxu0 0
      %2478 = vmatmul.mubr.bf16.gmra.mrb[0].mxu0 %v643
      %v2479 = vpop.f32.mrb[0].mxu0
      %v2480 = vadd.f32 0.0, %v2479
      %v2481 = vpop.f32.mrb[0].mxu0
      %v2482 = vpop.f32.mrb[0].mxu0
      %v2483 = vadd.f32 0.0, %v2482
      %v2484 = vpop.f32.mrb[0].mxu0
      %2485 = vmatprep.mubr.bf16.mxu0 0
      %2486 = vmatmul.mubr.bf16.gmra.mrb[0].mxu0 %v644
      %v2487 = vpop.f32.mrb[0].mxu0
      %v2488 = vadd.f32 0.0, %v2487
      %v2489 = vpop.f32.mrb[0].mxu0
      %v2490 = vpop.f32.mrb[0].mxu0
      %v2491 = vadd.f32 0.0, %v2490
      %v2492 = vpop.f32.mrb[0].mxu0
      %2493 = vmatprep.mubr.bf16.mxu0 0
      %2494 = vmatmul.mubr.bf16.gmra.mrb[0].mxu0 %v645
      %v2495 = vpop.f32.mrb[0].mxu0
      %v2496 = vadd.f32 0.0, %v2495
      %v2497 = vpop.f32.mrb[0].mxu0
      %v2498 = vpop.f32.mrb[0].mxu0
      %v2499 = vadd.f32 0.0, %v2498
      %v2500 = vpop.f32.mrb[0].mxu0
      %2501 = vmatprep.mubr.bf16.mxu0 0
      %2502 = vmatmul.mubr.bf16.gmra.mrb[0].mxu0 %v646
      %v2503 = vpop.f32.mrb[0].mxu0
      %v2504 = vadd.f32 0.0, %v2503
      %v2505 = vpop.f32.mrb[0].mxu0
      %v2506 = vpop.f32.mrb[0].mxu0
      %v2507 = vadd.f32 0.0, %v2506
      %v2508 = vpop.f32.mrb[0].mxu0
      %2509 = vmatprep.mubr.bf16.mxu0 0
      %2510 = vmatmul.mubr.bf16.gmra.mrb[0].mxu0 %v647
      %v2511 = vpop.f32.mrb[0].mxu0
      %v2512 = vadd.f32 0.0, %v2511
      %v2513 = vpop.f32.mrb[0].mxu0
      %v2514 = vpop.f32.mrb[0].mxu0
      %v2515 = vadd.f32 0.0, %v2514
      %v2516 = vpop.f32.mrb[0].mxu0
      %2517 = vmatprep.mubr.bf16.mxu0 0
      %2518 = vmatmul.mubr.bf16.gmra.mrb[0].mxu0 %v648
      %v2519 = vpop.f32.mrb[0].mxu0
      %v2520 = vadd.f32 0.0, %v2519
      %v2521 = vpop.f32.mrb[0].mxu0
      %v2522 = vpop.f32.mrb[0].mxu0
      %v2523 = vadd.f32 0.0, %v2522
      %v2524 = vpop.f32.mrb[0].mxu0
      %2525 = vmatprep.mubr.bf16.mxu0 0
      %2526 = vmatmul.mubr.bf16.gmra.mrb[0].mxu0 %v649
      %v2527 = vpop.f32.mrb[0].mxu0
      %v2528 = vadd.f32 0.0, %v2527
      %v2529 = vpop.f32.mrb[0].mxu0
      %v2530 = vpop.f32.mrb[0].mxu0
      %v2531 = vadd.f32 0.0, %v2530
      %v2532 = vpop.f32.mrb[0].mxu0
      %2533 = vmatprep.mubr.bf16.mxu0 0
      %2534 = vmatmul.mubr.bf16.gmra.mrb[0].mxu0 %v650
      %v2535 = vpop.f32.mrb[0].mxu0
      %v2536 = vadd.f32 0.0, %v2535
      %v2537 = vpop.f32.mrb[0].mxu0
      %v2538 = vpop.f32.mrb[0].mxu0
      %v2539 = vadd.f32 0.0, %v2538
      %v2540 = vpop.f32.mrb[0].mxu0
      %2541 = vmatprep.mubr.bf16.mxu0 0
      %2542 = vmatmul.mubr.bf16.gmra.mrb[0].mxu0 %v1606
      %v2543 = vpop.f32.mrb[0].mxu0
      %v2544 = vadd.f32 0.0, %v2543
      %v2545 = vpop.f32.mrb[0].mxu0
      %v2546 = vpop.f32.mrb[0].mxu0
      %v2547 = vadd.f32 0.0, %v2546
      %v2548 = vpop.f32.mrb[0].mxu0
      %2549 = vmatprep.mubr.bf16.mxu0 0
      %2550 = vmatmul.mubr.bf16.gmra.mrb[0].mxu0 %v635
      %v2551 = vpop.f32.mrb[0].mxu0
      %v2552 = vadd.f32 0.0, %v2551
      %v2553 = vpop.f32.mrb[0].mxu0
      %v2554 = vpop.f32.mrb[0].mxu0
      %v2555 = vadd.f32 0.0, %v2554
      %v2556 = vpop.f32.mrb[0].mxu0
      %2557 = vdwg.mxu0
      %v2558 = vadd.f32 %v2317, %v2432
      %v2559 = vadd.f32 %v2318, %v2435
      %v2560 = vadd.f32 %v2319, %v2440
      %v2561 = vadd.f32 %v2320, %v2443
      %v2562 = vadd.f32 %v2321, %v2448
      %v2563 = vadd.f32 %v2322, %v2451
      %v2564 = vadd.f32 %v2323, %v2456
      %v2565 = vadd.f32 %v2324, %v2459
      %v2566 = vadd.f32 %v2325, %v2464
      %v2567 = vadd.f32 %v2326, %v2467
      %v2568 = vadd.f32 %v2327, %v2472
      %v2569 = vadd.f32 %v2328, %v2475
      %v2570 = vadd.f32 %v2329, %v2480
      %v2571 = vadd.f32 %v2330, %v2483
      %v2572 = vadd.f32 %v2331, %v2488
      %v2573 = vadd.f32 %v2332, %v2491
      %v2574 = vadd.f32 %v2333, %v2496
      %v2575 = vadd.f32 %v2334, %v2499
      %v2576 = vadd.f32 %v2335, %v2504
      %v2577 = vadd.f32 %v2336, %v2507
      %v2578 = vadd.f32 %v2337, %v2512
      %v2579 = vadd.f32 %v2338, %v2515
      %v2580 = vadd.f32 %v2339, %v2520
      %v2581 = vadd.f32 %v2340, %v2523
      %v2582 = vadd.f32 %v2341, %v2528
      %v2583 = vadd.f32 %v2342, %v2531
      %v2584 = vadd.f32 %v2343, %v2536
      %v2585 = vadd.f32 %v2344, %v2539
      %v2586 = vadd.f32 %v2345, %v2544
      %v2587 = vadd.f32 %v2346, %v2547
      %v2588 = vadd.f32 %v2347, %v2552
      %v2589 = vadd.f32 %v2348, %v2555
      %v2606 = vunpack.c.l.b16 %v603
      %v2607 = vunpack.c.l.b16 %v604
      %v2608 = vunpack.c.l.b16 %v605
      %v2609 = vunpack.c.l.b16 %v606
      %v2610 = vunpack.c.l.b16 %v607
      %v2611 = vunpack.c.l.b16 %v608
      %v2612 = vunpack.c.l.b16 %v609
      %v2613 = vunpack.c.l.b16 %v610
      %v2614 = vunpack.c.l.b16 %v611
      %v2615 = vunpack.c.l.b16 %v612
      %v2616 = vunpack.c.l.b16 %v613
      %v2617 = vunpack.c.l.b16 %v614
      %v2618 = vunpack.c.l.b16 %v615
      %v2619 = vunpack.c.l.b16 %v616
      %v2620 = vunpack.c.l.b16 %v617
      %v2621 = vunpack.c.l.b16 %v618
      %v2622 = vpack.c.b16 %v2607, %v2606
      %v2623 = vpack.c.b16 %v2609, %v2608
      %v2624 = vpack.c.b16 %v2611, %v2610
      %v2625 = vpack.c.b16 %v2613, %v2612
      %v2626 = vpack.c.b16 %v2615, %v2614
      %v2627 = vpack.c.b16 %v2617, %v2616
      %v2628 = vpack.c.b16 %v2619, %v2618
      %v2629 = vpack.c.b16 %v2621, %v2620
      %2638 = vmatprep.subr.bf16.mxu0 0
      %2639 = vmatpush1.bf16.msra.mxu0 %v2622
      %2640 = vmatprep.subr.bf16.mxu0 0
      %2641 = vmatpush1.bf16.msra.mxu0 %v2623
      %2642 = vmatprep.subr.bf16.mxu0 0
      %2643 = vmatpush1.bf16.msra.mxu0 %v2624
      %2644 = vmatprep.subr.bf16.mxu0 0
      %2645 = vmatpush1.bf16.msra.mxu0 %v2625
      %2646 = vmatprep.subr.bf16.mxu0 0
      %2647 = vmatpush1.bf16.msra.mxu0 %v2626
      %2648 = vmatprep.subr.bf16.mxu0 0
      %2649 = vmatpush1.bf16.msra.mxu0 %v2627
      %2650 = vmatprep.subr.bf16.mxu0 0
      %2651 = vmatpush1.bf16.msra.mxu0 %v2628
      %2652 = vmatprep.subr.bf16.mxu0 0
      %2653 = vmatpush1.bf16.msra.mxu0 %v2629
      %2654 = vmatprep.subr.bf16.mxu0 0
      %2655 = vmatpush1.bf16.msra.mxu0 0
      %2656 = vmatprep.subr.bf16.mxu0 0
      %2657 = vmatpush1.bf16.msra.mxu0 0
      %2658 = vmatprep.subr.bf16.mxu0 0
      %2659 = vmatpush1.bf16.msra.mxu0 0
      %2660 = vmatprep.subr.bf16.mxu0 0
      %2661 = vmatpush1.bf16.msra.mxu0 0
      %2662 = vmatprep.subr.bf16.mxu0 0
      %2663 = vmatpush1.bf16.msra.mxu0 0
      %2664 = vmatprep.subr.bf16.mxu0 0
      %2665 = vmatpush1.bf16.msra.mxu0 0
      %2666 = vmatprep.subr.bf16.mxu0 0
      %2667 = vmatpush1.bf16.msra.mxu0 0
      %2668 = vmatprep.subr.bf16.mxu0 0
      %2669 = vmatpush1.bf16.msra.mxu0 0
      %2670 = vmatprep.mubr.bf16.mxu0 0
      %2671 = vmatmul.mubr.bf16.gmra.mrb[0].mxu0 %v808
      %v2672 = vpop.f32.mrb[0].mxu0
      %v2673 = vadd.f32 0.0, %v2672
      %v2674 = vpop.f32.mrb[0].mxu0
      %v2675 = vpop.f32.mrb[0].mxu0
      %v2676 = vadd.f32 0.0, %v2675
      %v2677 = vpop.f32.mrb[0].mxu0
      %2678 = vmatprep.mubr.bf16.mxu0 0
      %2679 = vmatmul.mubr.bf16.gmra.mrb[0].mxu0 %v809
      %v2680 = vpop.f32.mrb[0].mxu0
      %v2681 = vadd.f32 0.0, %v2680
      %v2682 = vpop.f32.mrb[0].mxu0
      %v2683 = vpop.f32.mrb[0].mxu0
      %v2684 = vadd.f32 0.0, %v2683
      %v2685 = vpop.f32.mrb[0].mxu0
      %2686 = vmatprep.mubr.bf16.mxu0 0
      %2687 = vmatmul.mubr.bf16.gmra.mrb[0].mxu0 %v810
      %v2688 = vpop.f32.mrb[0].mxu0
      %v2689 = vadd.f32 0.0, %v2688
      %v2690 = vpop.f32.mrb[0].mxu0
      %v2691 = vpop.f32.mrb[0].mxu0
      %v2692 = vadd.f32 0.0, %v2691
      %v2693 = vpop.f32.mrb[0].mxu0
      %2694 = vmatprep.mubr.bf16.mxu0 0
      %2695 = vmatmul.mubr.bf16.gmra.mrb[0].mxu0 %v811
      %v2696 = vpop.f32.mrb[0].mxu0
      %v2697 = vadd.f32 0.0, %v2696
      %v2698 = vpop.f32.mrb[0].mxu0
      %v2699 = vpop.f32.mrb[0].mxu0
      %v2700 = vadd.f32 0.0, %v2699
      %v2701 = vpop.f32.mrb[0].mxu0
      %2702 = vmatprep.mubr.bf16.mxu0 0
      %2703 = vmatmul.mubr.bf16.gmra.mrb[0].mxu0 %v812
      %v2704 = vpop.f32.mrb[0].mxu0
      %v2705 = vadd.f32 0.0, %v2704
      %v2706 = vpop.f32.mrb[0].mxu0
      %v2707 = vpop.f32.mrb[0].mxu0
      %v2708 = vadd.f32 0.0, %v2707
      %v2709 = vpop.f32.mrb[0].mxu0
      %2710 = vmatprep.mubr.bf16.mxu0 0
      %2711 = vmatmul.mubr.bf16.gmra.mrb[0].mxu0 %v813
      %v2712 = vpop.f32.mrb[0].mxu0
      %v2713 = vadd.f32 0.0, %v2712
      %v2714 = vpop.f32.mrb[0].mxu0
      %v2715 = vpop.f32.mrb[0].mxu0
      %v2716 = vadd.f32 0.0, %v2715
      %v2717 = vpop.f32.mrb[0].mxu0
      %2718 = vmatprep.mubr.bf16.mxu0 0
      %2719 = vmatmul.mubr.bf16.gmra.mrb[0].mxu0 %v814
      %v2720 = vpop.f32.mrb[0].mxu0
      %v2721 = vadd.f32 0.0, %v2720
      %v2722 = vpop.f32.mrb[0].mxu0
      %v2723 = vpop.f32.mrb[0].mxu0
      %v2724 = vadd.f32 0.0, %v2723
      %v2725 = vpop.f32.mrb[0].mxu0
      %2726 = vmatprep.mubr.bf16.mxu0 0
      %2727 = vmatmul.mubr.bf16.gmra.mrb[0].mxu0 %v815
      %v2728 = vpop.f32.mrb[0].mxu0
      %v2729 = vadd.f32 0.0, %v2728
      %v2730 = vpop.f32.mrb[0].mxu0
      %v2731 = vpop.f32.mrb[0].mxu0
      %v2732 = vadd.f32 0.0, %v2731
      %v2733 = vpop.f32.mrb[0].mxu0
      %2734 = vmatprep.mubr.bf16.mxu0 0
      %2735 = vmatmul.mubr.bf16.gmra.mrb[0].mxu0 %v816
      %v2736 = vpop.f32.mrb[0].mxu0
      %v2737 = vadd.f32 0.0, %v2736
      %v2738 = vpop.f32.mrb[0].mxu0
      %v2739 = vpop.f32.mrb[0].mxu0
      %v2740 = vadd.f32 0.0, %v2739
      %v2741 = vpop.f32.mrb[0].mxu0
      %2742 = vmatprep.mubr.bf16.mxu0 0
      %2743 = vmatmul.mubr.bf16.gmra.mrb[0].mxu0 %v817
      %v2744 = vpop.f32.mrb[0].mxu0
      %v2745 = vadd.f32 0.0, %v2744
      %v2746 = vpop.f32.mrb[0].mxu0
      %v2747 = vpop.f32.mrb[0].mxu0
      %v2748 = vadd.f32 0.0, %v2747
      %v2749 = vpop.f32.mrb[0].mxu0
      %2750 = vmatprep.mubr.bf16.mxu0 0
      %2751 = vmatmul.mubr.bf16.gmra.mrb[0].mxu0 %v818
      %v2752 = vpop.f32.mrb[0].mxu0
      %v2753 = vadd.f32 0.0, %v2752
      %v2754 = vpop.f32.mrb[0].mxu0
      %v2755 = vpop.f32.mrb[0].mxu0
      %v2756 = vadd.f32 0.0, %v2755
      %v2757 = vpop.f32.mrb[0].mxu0
      %2758 = vmatprep.mubr.bf16.mxu0 0
      %2759 = vmatmul.mubr.bf16.gmra.mrb[0].mxu0 %v819
      %v2760 = vpop.f32.mrb[0].mxu0
      %v2761 = vadd.f32 0.0, %v2760
      %v2762 = vpop.f32.mrb[0].mxu0
      %v2763 = vpop.f32.mrb[0].mxu0
      %v2764 = vadd.f32 0.0, %v2763
      %v2765 = vpop.f32.mrb[0].mxu0
      %2766 = vmatprep.mubr.bf16.mxu0 0
      %2767 = vmatmul.mubr.bf16.gmra.mrb[0].mxu0 %v820
      %v2768 = vpop.f32.mrb[0].mxu0
      %v2769 = vadd.f32 0.0, %v2768
      %v2770 = vpop.f32.mrb[0].mxu0
      %v2771 = vpop.f32.mrb[0].mxu0
      %v2772 = vadd.f32 0.0, %v2771
      %v2773 = vpop.f32.mrb[0].mxu0
      %2774 = vmatprep.mubr.bf16.mxu0 0
      %2775 = vmatmul.mubr.bf16.gmra.mrb[0].mxu0 %v821
      %v2776 = vpop.f32.mrb[0].mxu0
      %v2777 = vadd.f32 0.0, %v2776
      %v2778 = vpop.f32.mrb[0].mxu0
      %v2779 = vpop.f32.mrb[0].mxu0
      %v2780 = vadd.f32 0.0, %v2779
      %v2781 = vpop.f32.mrb[0].mxu0
      %2782 = vmatprep.mubr.bf16.mxu0 0
      %2783 = vmatmul.mubr.bf16.gmra.mrb[0].mxu0 %v1858
      %v2784 = vpop.f32.mrb[0].mxu0
      %v2785 = vadd.f32 0.0, %v2784
      %v2786 = vpop.f32.mrb[0].mxu0
      %v2787 = vpop.f32.mrb[0].mxu0
      %v2788 = vadd.f32 0.0, %v2787
      %v2789 = vpop.f32.mrb[0].mxu0
      %2790 = vmatprep.mubr.bf16.mxu0 0
      %2791 = vmatmul.mubr.bf16.gmra.mrb[0].mxu0 %v806
      %v2792 = vpop.f32.mrb[0].mxu0
      %v2793 = vadd.f32 0.0, %v2792
      %v2794 = vpop.f32.mrb[0].mxu0
      %v2795 = vpop.f32.mrb[0].mxu0
      %v2796 = vadd.f32 0.0, %v2795
      %v2797 = vpop.f32.mrb[0].mxu0
      %2798 = vdwg.mxu0
      %v2799 = vadd.f32 %v2558, %v2673
      %v2800 = vadd.f32 %v2559, %v2676
      %v2801 = vadd.f32 %v2560, %v2681
      %v2802 = vadd.f32 %v2561, %v2684
      %v2803 = vadd.f32 %v2562, %v2689
      %v2804 = vadd.f32 %v2563, %v2692
      %v2805 = vadd.f32 %v2564, %v2697
      %v2806 = vadd.f32 %v2565, %v2700
      %v2807 = vadd.f32 %v2566, %v2705
      %v2808 = vadd.f32 %v2567, %v2708
      %v2809 = vadd.f32 %v2568, %v2713
      %v2810 = vadd.f32 %v2569, %v2716
      %v2811 = vadd.f32 %v2570, %v2721
      %v2812 = vadd.f32 %v2571, %v2724
      %v2813 = vadd.f32 %v2572, %v2729
      %v2814 = vadd.f32 %v2573, %v2732
      %v2815 = vadd.f32 %v2574, %v2737
      %v2816 = vadd.f32 %v2575, %v2740
      %v2817 = vadd.f32 %v2576, %v2745
      %v2818 = vadd.f32 %v2577, %v2748
      %v2819 = vadd.f32 %v2578, %v2753
      %v2820 = vadd.f32 %v2579, %v2756
      %v2821 = vadd.f32 %v2580, %v2761
      %v2822 = vadd.f32 %v2581, %v2764
      %v2823 = vadd.f32 %v2582, %v2769
      %v2824 = vadd.f32 %v2583, %v2772
      %v2825 = vadd.f32 %v2584, %v2777
      %v2826 = vadd.f32 %v2585, %v2780
      %v2827 = vadd.f32 %v2586, %v2785
      %v2828 = vadd.f32 %v2587, %v2788
      %v2829 = vadd.f32 %v2588, %v2793
      %v2830 = vadd.f32 %v2589, %v2796
      %v2847 = vunpack.c.l.b16 %v619
      %v2848 = vunpack.c.l.b16 %v620
      %v2849 = vunpack.c.l.b16 %v621
      %v2850 = vunpack.c.l.b16 %v622
      %v2851 = vunpack.c.l.b16 %v623
      %v2852 = vunpack.c.l.b16 %v624
      %v2853 = vunpack.c.l.b16 %v625
      %v2854 = vunpack.c.l.b16 %v626
      %v2855 = vunpack.c.l.b16 %v627
      %v2856 = vunpack.c.l.b16 %v628
      %v2857 = vunpack.c.l.b16 %v629
      %v2858 = vunpack.c.l.b16 %v630
      %v2859 = vunpack.c.l.b16 %v631
      %v2860 = vunpack.c.l.b16 %v632
      %v2861 = vunpack.c.l.b16 %v633
      %v2862 = vunpack.c.l.b16 %v634
      %v2863 = vpack.c.b16 %v2848, %v2847
      %v2864 = vpack.c.b16 %v2850, %v2849
      %v2865 = vpack.c.b16 %v2852, %v2851
      %v2866 = vpack.c.b16 %v2854, %v2853
      %v2867 = vpack.c.b16 %v2856, %v2855
      %v2868 = vpack.c.b16 %v2858, %v2857
      %v2869 = vpack.c.b16 %v2860, %v2859
      %v2870 = vpack.c.b16 %v2862, %v2861
      %2879 = vmatprep.subr.bf16.mxu0 0
      %2880 = vmatpush1.bf16.msra.mxu0 %v2863
      %2881 = vmatprep.subr.bf16.mxu0 0
      %2882 = vmatpush1.bf16.msra.mxu0 %v2864
      %2883 = vmatprep.subr.bf16.mxu0 0
      %2884 = vmatpush1.bf16.msra.mxu0 %v2865
      %2885 = vmatprep.subr.bf16.mxu0 0
      %2886 = vmatpush1.bf16.msra.mxu0 %v2866
      %2887 = vmatprep.subr.bf16.mxu0 0
      %2888 = vmatpush1.bf16.msra.mxu0 %v2867
      %2889 = vmatprep.subr.bf16.mxu0 0
      %2890 = vmatpush1.bf16.msra.mxu0 %v2868
      %2891 = vmatprep.subr.bf16.mxu0 0
      %2892 = vmatpush1.bf16.msra.mxu0 %v2869
      %2893 = vmatprep.subr.bf16.mxu0 0
      %2894 = vmatpush1.bf16.msra.mxu0 %v2870
      %2895 = vmatprep.subr.bf16.mxu0 0
      %2896 = vmatpush1.bf16.msra.mxu0 0
      %2897 = vmatprep.subr.bf16.mxu0 0
      %2898 = vmatpush1.bf16.msra.mxu0 0
      %2899 = vmatprep.subr.bf16.mxu0 0
      %2900 = vmatpush1.bf16.msra.mxu0 0
      %2901 = vmatprep.subr.bf16.mxu0 0
      %2902 = vmatpush1.bf16.msra.mxu0 0
      %2903 = vmatprep.subr.bf16.mxu0 0
      %2904 = vmatpush1.bf16.msra.mxu0 0
      %2905 = vmatprep.subr.bf16.mxu0 0
      %2906 = vmatpush1.bf16.msra.mxu0 0
      %2907 = vmatprep.subr.bf16.mxu0 0
      %2908 = vmatpush1.bf16.msra.mxu0 0
      %2909 = vmatprep.subr.bf16.mxu0 0
      %2910 = vmatpush1.bf16.msra.mxu0 0
      %2911 = vmatprep.mubr.bf16.mxu0 0
      %2912 = vmatmul.mubr.bf16.gmra.mrb[0].mxu0 %v1351
      %v2913 = vpop.f32.mrb[0].mxu0
      %v2914 = vadd.f32 0.0, %v2913
      %v2915 = vpop.f32.mrb[0].mxu0
      %v2916 = vpop.f32.mrb[0].mxu0
      %v2917 = vadd.f32 0.0, %v2916
      %v2918 = vpop.f32.mrb[0].mxu0
      %2919 = vmatprep.mubr.bf16.mxu0 0
      %2920 = vmatmul.mubr.bf16.gmra.mrb[0].mxu0 %v1352
      %v2921 = vpop.f32.mrb[0].mxu0
      %v2922 = vadd.f32 0.0, %v2921
      %v2923 = vpop.f32.mrb[0].mxu0
      %v2924 = vpop.f32.mrb[0].mxu0
      %v2925 = vadd.f32 0.0, %v2924
      %v2926 = vpop.f32.mrb[0].mxu0
      %2927 = vmatprep.mubr.bf16.mxu0 0
      %2928 = vmatmul.mubr.bf16.gmra.mrb[0].mxu0 %v1353
      %v2929 = vpop.f32.mrb[0].mxu0
      %v2930 = vadd.f32 0.0, %v2929
      %v2931 = vpop.f32.mrb[0].mxu0
      %v2932 = vpop.f32.mrb[0].mxu0
      %v2933 = vadd.f32 0.0, %v2932
      %v2934 = vpop.f32.mrb[0].mxu0
      %2935 = vmatprep.mubr.bf16.mxu0 0
      %2936 = vmatmul.mubr.bf16.gmra.mrb[0].mxu0 %v1354
      %v2937 = vpop.f32.mrb[0].mxu0
      %v2938 = vadd.f32 0.0, %v2937
      %v2939 = vpop.f32.mrb[0].mxu0
      %v2940 = vpop.f32.mrb[0].mxu0
      %v2941 = vadd.f32 0.0, %v2940
      %v2942 = vpop.f32.mrb[0].mxu0
      %2943 = vmatprep.mubr.bf16.mxu0 0
      %2944 = vmatmul.mubr.bf16.gmra.mrb[0].mxu0 %v1355
      %v2945 = vpop.f32.mrb[0].mxu0
      %v2946 = vadd.f32 0.0, %v2945
      %v2947 = vpop.f32.mrb[0].mxu0
      %v2948 = vpop.f32.mrb[0].mxu0
      %v2949 = vadd.f32 0.0, %v2948
      %v2950 = vpop.f32.mrb[0].mxu0
      %2951 = vmatprep.mubr.bf16.mxu0 0
      %2952 = vmatmul.mubr.bf16.gmra.mrb[0].mxu0 %v1356
      %v2953 = vpop.f32.mrb[0].mxu0
      %v2954 = vadd.f32 0.0, %v2953
      %v2955 = vpop.f32.mrb[0].mxu0
      %v2956 = vpop.f32.mrb[0].mxu0
      %v2957 = vadd.f32 0.0, %v2956
      %v2958 = vpop.f32.mrb[0].mxu0
      %2959 = vmatprep.mubr.bf16.mxu0 0
      %2960 = vmatmul.mubr.bf16.gmra.mrb[0].mxu0 %v1357
      %v2961 = vpop.f32.mrb[0].mxu0
      %v2962 = vadd.f32 0.0, %v2961
      %v2963 = vpop.f32.mrb[0].mxu0
      %v2964 = vpop.f32.mrb[0].mxu0
      %v2965 = vadd.f32 0.0, %v2964
      %v2966 = vpop.f32.mrb[0].mxu0
      %2967 = vmatprep.mubr.bf16.mxu0 0
      %2968 = vmatmul.mubr.bf16.gmra.mrb[0].mxu0 %v1358
      %v2969 = vpop.f32.mrb[0].mxu0
      %v2970 = vadd.f32 0.0, %v2969
      %v2971 = vpop.f32.mrb[0].mxu0
      %v2972 = vpop.f32.mrb[0].mxu0
      %v2973 = vadd.f32 0.0, %v2972
      %v2974 = vpop.f32.mrb[0].mxu0
      %2975 = vmatprep.mubr.bf16.mxu0 0
      %2976 = vmatmul.mubr.bf16.gmra.mrb[0].mxu0 %v1359
      %v2977 = vpop.f32.mrb[0].mxu0
      %v2978 = vadd.f32 0.0, %v2977
      %v2979 = vpop.f32.mrb[0].mxu0
      %v2980 = vpop.f32.mrb[0].mxu0
      %v2981 = vadd.f32 0.0, %v2980
      %v2982 = vpop.f32.mrb[0].mxu0
      %2983 = vmatprep.mubr.bf16.mxu0 0
      %2984 = vmatmul.mubr.bf16.gmra.mrb[0].mxu0 %v1360
      %v2985 = vpop.f32.mrb[0].mxu0
      %v2986 = vadd.f32 0.0, %v2985
      %v2987 = vpop.f32.mrb[0].mxu0
      %v2988 = vpop.f32.mrb[0].mxu0
      %v2989 = vadd.f32 0.0, %v2988
      %v2990 = vpop.f32.mrb[0].mxu0
      %2991 = vmatprep.mubr.bf16.mxu0 0
      %2992 = vmatmul.mubr.bf16.gmra.mrb[0].mxu0 %v1361
      %v2993 = vpop.f32.mrb[0].mxu0
      %v2994 = vadd.f32 0.0, %v2993
      %v2995 = vpop.f32.mrb[0].mxu0
      %v2996 = vpop.f32.mrb[0].mxu0
      %v2997 = vadd.f32 0.0, %v2996
      %v2998 = vpop.f32.mrb[0].mxu0
      %2999 = vmatprep.mubr.bf16.mxu0 0
      %3000 = vmatmul.mubr.bf16.gmra.mrb[0].mxu0 %v1362
      %v3001 = vpop.f32.mrb[0].mxu0
      %v3002 = vadd.f32 0.0, %v3001
      %v3003 = vpop.f32.mrb[0].mxu0
      %v3004 = vpop.f32.mrb[0].mxu0
      %v3005 = vadd.f32 0.0, %v3004
      %v3006 = vpop.f32.mrb[0].mxu0
      %3007 = vmatprep.mubr.bf16.mxu0 0
      %3008 = vmatmul.mubr.bf16.gmra.mrb[0].mxu0 %v1363
      %v3009 = vpop.f32.mrb[0].mxu0
      %v3010 = vadd.f32 0.0, %v3009
      %v3011 = vpop.f32.mrb[0].mxu0
      %v3012 = vpop.f32.mrb[0].mxu0
      %v3013 = vadd.f32 0.0, %v3012
      %v3014 = vpop.f32.mrb[0].mxu0
      %3015 = vmatprep.mubr.bf16.mxu0 0
      %3016 = vmatmul.mubr.bf16.gmra.mrb[0].mxu0 %v1364
      %v3017 = vpop.f32.mrb[0].mxu0
      %v3018 = vadd.f32 0.0, %v3017
      %v3019 = vpop.f32.mrb[0].mxu0
      %v3020 = vpop.f32.mrb[0].mxu0
      %v3021 = vadd.f32 0.0, %v3020
      %v3022 = vpop.f32.mrb[0].mxu0
      %3023 = vmatprep.mubr.bf16.mxu0 0
      %3024 = vmatmul.mubr.bf16.gmra.mrb[0].mxu0 %v2107
      %v3025 = vpop.f32.mrb[0].mxu0
      %v3026 = vadd.f32 0.0, %v3025
      %v3027 = vpop.f32.mrb[0].mxu0
      %v3028 = vpop.f32.mrb[0].mxu0
      %v3029 = vadd.f32 0.0, %v3028
      %v3030 = vpop.f32.mrb[0].mxu0
      %3031 = vmatprep.mubr.bf16.mxu0 0
      %3032 = vmatmul.mubr.bf16.gmra.mrb[0].mxu0 %v1349
      %v3033 = vpop.f32.mrb[0].mxu0
      %v3034 = vadd.f32 0.0, %v3033
      %v3035 = vpop.f32.mrb[0].mxu0
      %v3036 = vpop.f32.mrb[0].mxu0
      %v3037 = vadd.f32 0.0, %v3036
      %v3038 = vpop.f32.mrb[0].mxu0
      %3039 = vdwg.mxu0
      %v3040 = vadd.f32 %v2799, %v2914
      %v3041 = vadd.f32 %v2800, %v2917
      %v3042 = vadd.f32 %v2801, %v2922
      %v3043 = vadd.f32 %v2802, %v2925
      %v3044 = vadd.f32 %v2803, %v2930
      %v3045 = vadd.f32 %v2804, %v2933
      %v3046 = vadd.f32 %v2805, %v2938
      %v3047 = vadd.f32 %v2806, %v2941
      %v3048 = vadd.f32 %v2807, %v2946
      %v3049 = vadd.f32 %v2808, %v2949
      %v3050 = vadd.f32 %v2809, %v2954
      %v3051 = vadd.f32 %v2810, %v2957
      %v3052 = vadd.f32 %v2811, %v2962
      %v3053 = vadd.f32 %v2812, %v2965
      %v3054 = vadd.f32 %v2813, %v2970
      %v3055 = vadd.f32 %v2814, %v2973
      %v3056 = vadd.f32 %v2815, %v2978
      %v3057 = vadd.f32 %v2816, %v2981
      %v3058 = vadd.f32 %v2817, %v2986
      %v3059 = vadd.f32 %v2818, %v2989
      %v3060 = vadd.f32 %v2819, %v2994
      %v3061 = vadd.f32 %v2820, %v2997
      %v3062 = vadd.f32 %v2821, %v3002
      %v3063 = vadd.f32 %v2822, %v3005
      %v3064 = vadd.f32 %v2823, %v3010
      %v3065 = vadd.f32 %v2824, %v3013
      %v3066 = vadd.f32 %v2825, %v3018
      %v3067 = vadd.f32 %v2826, %v3021
      %v3068 = vadd.f32 %v2827, %v3026
      %v3069 = vadd.f32 %v2828, %v3029
      %v3070 = vadd.f32 %v2829, %v3034
      %v3071 = vadd.f32 %v2830, %v3037
      %3072 = vst [vmem:[%s231] sm:$0xff] %v3040
      %3073 = vst [vmem:[%s231 + $0x8] sm:$0xff] %v3041
      %3074 = vst [vmem:[%s231 + $0x10] sm:$0xff] %v3042
      %3075 = vst [vmem:[%s231 + $0x18] sm:$0xff] %v3043
      %3076 = vst [vmem:[%s231 + $0x20] sm:$0xff] %v3044
      %3077 = vst [vmem:[%s231 + $0x28] sm:$0xff] %v3045
      %3078 = vst [vmem:[%s231 + $0x30] sm:$0xff] %v3046
      %3079 = vst [vmem:[%s231 + $0x38] sm:$0xff] %v3047
      %3080 = vst [vmem:[%s231 + $0x40] sm:$0xff] %v3048
      %3081 = vst [vmem:[%s231 + $0x48] sm:$0xff] %v3049
      %3082 = vst [vmem:[%s231 + $0x50] sm:$0xff] %v3050
      %3083 = vst [vmem:[%s231 + $0x58] sm:$0xff] %v3051
      %3084 = vst [vmem:[%s231 + $0x60] sm:$0xff] %v3052
      %3085 = vst [vmem:[%s231 + $0x68] sm:$0xff] %v3053
      %3086 = vst [vmem:[%s231 + $0x70] sm:$0xff] %v3054
      %3087 = vst [vmem:[%s231 + $0x78] sm:$0xff] %v3055
      %3088 = vst [vmem:[%s231 + $0x80] sm:$0xff] %v3056
      %3089 = vst [vmem:[%s231 + $0x88] sm:$0xff] %v3057
      %3090 = vst [vmem:[%s231 + $0x90] sm:$0xff] %v3058
      %3091 = vst [vmem:[%s231 + $0x98] sm:$0xff] %v3059
      %3092 = vst [vmem:[%s231 + $0xa0] sm:$0xff] %v3060
      %3093 = vst [vmem:[%s231 + $0xa8] sm:$0xff] %v3061
      %3094 = vst [vmem:[%s231 + $0xb0] sm:$0xff] %v3062
      %3095 = vst [vmem:[%s231 + $0xb8] sm:$0xff] %v3063
      %3096 = vst [vmem:[%s231 + $0xc0] sm:$0xff] %v3064
      %3097 = vst [vmem:[%s231 + $0xc8] sm:$0xff] %v3065
      %3098 = vst [vmem:[%s231 + $0xd0] sm:$0xff] %v3066
      %3099 = vst [vmem:[%s231 + $0xd8] sm:$0xff] %v3067
      %3100 = vst [vmem:[%s231 + $0xe0] sm:$0xff] %v3068
      %3101 = vst [vmem:[%s231 + $0xe8] sm:$0xff] %v3069
      %3102 = vst [vmem:[%s231 + $0xf0] sm:$0xff] %v3070
      %3103 = vst [vmem:[%s231 + $0xf8] sm:$0xff] %v3071
      %v3104 = vadd.f32 %v3040, %v3041
      %v3105 = vadd.f32 %v3104, %v3042
      %v3106 = vadd.f32 %v3105, %v3043
      %v3107 = vadd.f32 %v3106, %v3044
      %v3108 = vadd.f32 %v3107, %v3045
      %v3109 = vadd.f32 %v3108, %v3046
      %v3110 = vadd.f32 %v3109, %v3047
      %v3111 = vadd.f32 %v3110, %v3048
      %v3112 = vadd.f32 %v3111, %v3049
      %v3113 = vadd.f32 %v3112, %v3050
      %v3114 = vadd.f32 %v3113, %v3051
      %v3115 = vadd.f32 %v3114, %v3052
      %v3116 = vadd.f32 %v3115, %v3053
      %v3117 = vadd.f32 %v3116, %v3054
      %v3118 = vadd.f32 %v3117, %v3055
      %v3119 = vadd.f32 %v3118, %v3056
      %v3120 = vadd.f32 %v3119, %v3057
      %v3121 = vadd.f32 %v3120, %v3058
      %v3122 = vadd.f32 %v3121, %v3059
      %v3123 = vadd.f32 %v3122, %v3060
      %v3124 = vadd.f32 %v3123, %v3061
      %v3125 = vadd.f32 %v3124, %v3062
      %v3126 = vadd.f32 %v3125, %v3063
      %v3127 = vadd.f32 %v3126, %v3064
      %v3128 = vadd.f32 %v3127, %v3065
      %v3129 = vadd.f32 %v3128, %v3066
      %v3130 = vadd.f32 %v3129, %v3067
      %v3131 = vadd.f32 %v3130, %v3068
      %v3132 = vadd.f32 %v3131, %v3069
      %v3133 = vadd.f32 %v3132, %v3070
      %v3134 = vadd.f32 %v3133, %v3071
      %v3135 = vrot.slane %v3134, 4
      %v3136 = vadd.f32 %v3134, %v3135
      %v3137 = vrot.slane %v3136, 2
      %v3138 = vadd.f32 %v3136, %v3137
      %v3139 = vrot.slane %v3138, 1
      %v3140 = vadd.f32 %v3138, %v3139
      %3141 = vst [vmem:[%s235] sm:$0x1] %v3140
      %v3142 = vmul.f32 %v3040, %v3040
      %v3143 = vmul.f32 %v3041, %v3041
      %v3144 = vmul.f32 %v3042, %v3042
      %v3145 = vmul.f32 %v3043, %v3043
      %v3146 = vmul.f32 %v3044, %v3044
      %v3147 = vmul.f32 %v3045, %v3045
      %v3148 = vmul.f32 %v3046, %v3046
      %v3149 = vmul.f32 %v3047, %v3047
      %v3150 = vmul.f32 %v3048, %v3048
      %v3151 = vmul.f32 %v3049, %v3049
      %v3152 = vmul.f32 %v3050, %v3050
      %v3153 = vmul.f32 %v3051, %v3051
      %v3154 = vmul.f32 %v3052, %v3052
      %v3155 = vmul.f32 %v3053, %v3053
      %v3156 = vmul.f32 %v3054, %v3054
      %v3157 = vmul.f32 %v3055, %v3055
      %v3158 = vmul.f32 %v3056, %v3056
      %v3159 = vmul.f32 %v3057, %v3057
      %v3160 = vmul.f32 %v3058, %v3058
      %v3161 = vmul.f32 %v3059, %v3059
      %v3162 = vmul.f32 %v3060, %v3060
      %v3163 = vmul.f32 %v3061, %v3061
      %v3164 = vmul.f32 %v3062, %v3062
      %v3165 = vmul.f32 %v3063, %v3063
      %v3166 = vmul.f32 %v3064, %v3064
      %v3167 = vmul.f32 %v3065, %v3065
      %v3168 = vmul.f32 %v3066, %v3066
      %v3169 = vmul.f32 %v3067, %v3067
      %v3170 = vmul.f32 %v3068, %v3068
      %v3171 = vmul.f32 %v3069, %v3069
      %v3172 = vmul.f32 %v3070, %v3070
      %v3173 = vmul.f32 %v3071, %v3071
      %v3174 = vadd.f32 %v3142, %v3143
      %v3175 = vadd.f32 %v3174, %v3144
      %v3176 = vadd.f32 %v3175, %v3145
      %v3177 = vadd.f32 %v3176, %v3146
      %v3178 = vadd.f32 %v3177, %v3147
      %v3179 = vadd.f32 %v3178, %v3148
      %v3180 = vadd.f32 %v3179, %v3149
      %v3181 = vadd.f32 %v3180, %v3150
      %v3182 = vadd.f32 %v3181, %v3151
      %v3183 = vadd.f32 %v3182, %v3152
      %v3184 = vadd.f32 %v3183, %v3153
      %v3185 = vadd.f32 %v3184, %v3154
      %v3186 = vadd.f32 %v3185, %v3155
      %v3187 = vadd.f32 %v3186, %v3156
      %v3188 = vadd.f32 %v3187, %v3157
      %v3189 = vadd.f32 %v3188, %v3158
      %v3190 = vadd.f32 %v3189, %v3159
      %v3191 = vadd.f32 %v3190, %v3160
      %v3192 = vadd.f32 %v3191, %v3161
      %v3193 = vadd.f32 %v3192, %v3162
      %v3194 = vadd.f32 %v3193, %v3163
      %v3195 = vadd.f32 %v3194, %v3164
      %v3196 = vadd.f32 %v3195, %v3165
      %v3197 = vadd.f32 %v3196, %v3166
      %v3198 = vadd.f32 %v3197, %v3167
      %v3199 = vadd.f32 %v3198, %v3168
      %v3200 = vadd.f32 %v3199, %v3169
      %v3201 = vadd.f32 %v3200, %v3170
      %v3202 = vadd.f32 %v3201, %v3171
      %v3203 = vadd.f32 %v3202, %v3172
      %v3204 = vadd.f32 %v3203, %v3173
      %v3205 = vrot.slane %v3204, 4
      %v3206 = vadd.f32 %v3204, %v3205
      %v3207 = vrot.slane %v3206, 2
      %v3208 = vadd.f32 %v3206, %v3207
      %v3209 = vrot.slane %v3208, 1
      %v3210 = vadd.f32 %v3208, %v3209
      %3211 = vst [vmem:[%s235 + $0x1] sm:$0x1] %v3210
      %p3212 = scmp.lt.s32.totalorder %s17, 1
      %s3213 = scalar_select %p3212, %s17, 1
      %s3214 = smul.addr %s3213, 32
      %s3215 = smul.addr %s3214, 8
      %s3216 = scalar_lea.vmem %s4, %s3215
      %p3217 = scmp.lt.s32.totalorder %s17, 1
      %s3218 = scalar_select %p3217, %s17, 1
      %s3219 = smul.addr %s3218, 2
      %s3220 = scalar_lea.vmem %s5, %s3219
      // Predicated region
      $region37: #{local_binary_basic_block.4} parent=35 // pred_check
        %p3221 = pneg %p124
      $region38: #{local_binary_basic_block.4} parent=35 // pred_check_branch
        %3223 = sbr.rel (%p3221) target = $region40
      $region39: #{local_binary_basic_block.4} parent=35 // pred_region
        _
      $region40: #{local_binary_basic_block.4} parent=35 // pred_fallthru
        _
      // Predicated region
      $region41: #{local_binary_basic_block.4} parent=35 // pred_check
        %p3224 = pneg %p150
      $region42: #{local_binary_basic_block.4} parent=35 // pred_check_branch
        %3226 = sbr.rel (%p3224) target = $region44
      $region43: #{local_binary_basic_block.4} parent=35 // pred_region
        _
      $region44: #{local_binary_basic_block.4} parent=35 // pred_fallthru
        _
    $region36: #{local_binary_basic_block.4} parent=5 // pred_fallthru
      _
    %p3227 = scmp.le.s32.totalorder 2, %s12
    // Predicated region
    $region45: #{local_binary_basic_block.4} parent=5 // pred_check
      %p3228 = pneg %p3227
    $region46: #{local_binary_basic_block.4} parent=5 // pred_check_branch
      %3230 = sbr.rel (%p3228) target = $region48
    $region47: #{local_binary_basic_block.4} parent=5 // pred_region
      %s3231 = ssub.s32 %s12, 2
      // Predicated region
      $region49: #{local_binary_basic_block.4} parent=47 // pred_check
        %p3232 = pneg %p130
      $region50: #{local_binary_basic_block.4} parent=47 // pred_check_branch
        %3234 = sbr.rel (%p3232) target = $region52
      $region51: #{local_binary_basic_block.4} parent=47 // pred_region
        %p3235 = scmp.lt.s32.totalorder %s18, 1
        %s3236 = scalar_select %p3235, %s18, 1
        %s3237 = smul.addr %s3236, 32
        %s3238 = smul.addr %s3237, 8
        %s3239 = scalar_lea.vmem %s4, %s3238
      $region52: #{local_binary_basic_block.4} parent=47 // pred_fallthru
        _
      // Predicated region
      $region53: #{local_binary_basic_block.4} parent=47 // pred_check
        %p3240 = pneg %p156
      $region54: #{local_binary_basic_block.4} parent=47 // pred_check_branch
        %3242 = sbr.rel (%p3240) target = $region56
      $region55: #{local_binary_basic_block.4} parent=47 // pred_region
        %p3243 = scmp.lt.s32.totalorder %s18, 1
        %s3244 = scalar_select %p3243, %s18, 1
        %s3245 = smul.addr %s3244, 2
        %s3246 = scalar_lea.vmem %s5, %s3245
      $region56: #{local_binary_basic_block.4} parent=47 // pred_fallthru
        _
    $region48: #{local_binary_basic_block.4} parent=5 // pred_fallthru
      _
  $region6: #{local_binary_basic_block.4} parent=0 // loop_footer
    %s16 = sadd.s32 1, %s12
  $region7: #{local_binary_basic_block.4} parent=0 // loop_footer_branch
    %11 = sbr.rel target = $region3
  $region8: #{local_binary_basic_block.4} parent=0 // loop_exit
    _

</llo_original>
